<compile_context>
chip_gen: v7x
topology: tpu7x:2x2x1
jax: 0.10.0
libtpu: 0.0.40
codegen_flags: <defaults>
</compile_context>

<pallas_src>
import jax
import jax.numpy as jnp
from jax import lax
from jax.experimental import pallas as pl
from jax.experimental.pallas import tpu as pltpu


# ------------------------------ conv stack kernel ------------------------------

def _pool_rows(y, se_ref):
    # MaxPool1d(2) over rows of a (L, C) value: out[m] = max(y[2m], y[2m+1]).
    # z[i] = max(y[i], y[i+1]) via two static row slices, then one even-row
    # selection matmul with a host-precomputed 0/1 mask (L/2, L-1).
    lr = y.shape[0]
    z = jnp.maximum(y[0:lr - 1, :], y[1:lr, :])
    return jnp.dot(se_ref[...], z, preferred_element_type=jnp.float32)


def _pool_into_pad(y, se_ref, pad_ref):
    # Write the pooled rows straight into the next conv's zero-bordered pad
    # scratch (rows 1..Lh); rows 0 and Lh+1 are the padding=1 zeros.
    lh = se_ref.shape[0]
    cols = y.shape[1]
    pad_ref[0:1, :] = jnp.zeros((1, cols), jnp.float32)
    pad_ref[lh + 1:lh + 2, :] = jnp.zeros((1, cols), jnp.float32)
    pad_ref[1:lh + 1, :] = _pool_rows(y, se_ref)


def _conv3_from_pad(pad_ref, length, w_ref, scale, shift):
    # kernel_size=3, padding=1 conv as 3 tap matmuls on the padded scratch.
    # bf16 operands on the MXU, f32 accumulate.
    xp = pad_ref[...]                                          # (length+2, Cin) f32
    acc = jnp.dot(xp[0:length, :].astype(jnp.bfloat16), w_ref[0],
                  preferred_element_type=jnp.float32)
    acc = acc + jnp.dot(xp[1:length + 1, :].astype(jnp.bfloat16), w_ref[1],
                        preferred_element_type=jnp.float32)
    acc = acc + jnp.dot(xp[2:length + 2, :].astype(jnp.bfloat16), w_ref[2],
                        preferred_element_type=jnp.float32)
    return jnp.maximum(acc * scale + shift, 0.0)


def _conv_stack_kernel(xcol_ref, se1_ref, se2_ref, se3_ref,
                       w1_ref, s1_ref, t1_ref,
                       w2_ref, s2_ref, t2_ref,
                       w3_ref, s3_ref, t3_ref,
                       o_ref, pad2_ref, pad3_ref):
    L = xcol_ref.shape[1]          # 296
    L2 = L // 2                    # 148
    L3 = L // 4                    # 74

    # conv1 (Cin=1) arrives as wrapper-built im2col taps (L, 3) -> one matmul.
    x1 = xcol_ref[0]                                           # (L, 3) f32
    y = jnp.dot(x1, w1_ref[...], preferred_element_type=jnp.float32)
    y = jnp.maximum(y * s1_ref[...] + t1_ref[...], 0.0)        # (L, 128)

    _pool_into_pad(y, se1_ref, pad2_ref)                       # pool1 -> pad2
    y = _conv3_from_pad(pad2_ref, L2, w2_ref, s2_ref[...], t2_ref[...])   # (L2, 256)

    _pool_into_pad(y, se2_ref, pad3_ref)                       # pool2 -> pad3
    y = _conv3_from_pad(pad3_ref, L3, w3_ref, s3_ref[...], t3_ref[...])   # (L3, 512)

    # pool3 -> bf16 output (feeds fc1 directly as bf16)
    o_ref[0] = _pool_rows(y, se3_ref).astype(jnp.bfloat16)     # (L/8, 512)


def conv_stack(xcol, p):
    B, L, _ = xcol.shape
    Lo = L // 8
    return pl.pallas_call(
        _conv_stack_kernel,
        out_shape=jax.ShapeDtypeStruct((B, Lo, 512), jnp.bfloat16),
        grid_spec=pltpu.PrefetchScalarGridSpec(
            num_scalar_prefetch=0,
            grid=(B,),
            in_specs=[
                pl.BlockSpec((1, L, 3), lambda b: (b, 0, 0)),
                # pool selection masks: constant index_map -> fetched once.
                pl.BlockSpec((L // 2, L - 1), lambda b: (0, 0)),
                pl.BlockSpec((L // 4, L // 2 - 1), lambda b: (0, 0)),
                pl.BlockSpec((L // 8, L // 4 - 1), lambda b: (0, 0)),
                pl.BlockSpec((3, 128), lambda b: (0, 0)),
                pl.BlockSpec((1, 128), lambda b: (0, 0)),
                pl.BlockSpec((1, 128), lambda b: (0, 0)),
                pl.BlockSpec((3, 128, 256), lambda b: (0, 0, 0)),
                pl.BlockSpec((1, 256), lambda b: (0, 0)),
                pl.BlockSpec((1, 256), lambda b: (0, 0)),
                pl.BlockSpec((3, 256, 512), lambda b: (0, 0, 0)),
                pl.BlockSpec((1, 512), lambda b: (0, 0)),
                pl.BlockSpec((1, 512), lambda b: (0, 0)),
            ],
            out_specs=pl.BlockSpec((1, Lo, 512), lambda b: (b, 0, 0)),
            scratch_shapes=[
                pltpu.VMEM((L // 2 + 2, 128), jnp.float32),    # conv2 pad buffer
                pltpu.VMEM((L // 4 + 2, 256), jnp.float32),    # conv3 pad buffer
            ],
        ),
        compiler_params=pltpu.CompilerParams(
            dimension_semantics=("parallel",)),
    )(xcol, p["se1"], p["se2"], p["se3"],
      p["conv1_w"], p["bn1_scale"], p["bn1_shift"],
      p["conv2_w"], p["bn2_scale"], p["bn2_shift"],
      p["conv3_w"], p["bn3_scale"], p["bn3_shift"])


# ---------------- fused fc1 + bn4 + relu + fc2..attention..sigmoid -------------

def _fc_tail_kernel(x_ref, w1_ref, s4_ref, t4_ref,
                    fc2_ref, s5_ref, t5_ref,
                    fc3_ref, s6_ref, t6_ref,
                    qw_ref, qb_ref, kw_ref, kb_ref, vw_ref, vb_ref,
                    ow_ref, ob_ref, o_ref, acc_ref):
    k = pl.program_id(0)

    @pl.when(k == 0)
    def _():
        acc_ref[...] = jnp.zeros_like(acc_ref)

    # fc1: bf16 x bf16 matmul, f32 accumulate (HBM-bandwidth-bound weight stream)
    acc_ref[...] += jnp.dot(x_ref[...], w1_ref[...],
                            preferred_element_type=jnp.float32)

    @pl.when(k == pl.num_programs(0) - 1)
    def _():
        # bn4 + relu                (dropout = identity, inference)
        h = jnp.maximum(acc_ref[...] * s4_ref[...] + t4_ref[...], 0.0)
        h = h.astype(jnp.bfloat16)                              # (B, 256)
        # fc2 + bn5 + relu
        h = jnp.maximum(
            jnp.dot(h, fc2_ref[...], preferred_element_type=jnp.float32)
            * s5_ref[...] + t5_ref[...], 0.0).astype(jnp.bfloat16)   # (B, 128)
        # fc3 + bn6 + relu
        h = jnp.maximum(
            jnp.dot(h, fc3_ref[...], preferred_element_type=jnp.float32)
            * s6_ref[...] + t6_ref[...], 0.0).astype(jnp.bfloat16)   # (B, 64)
        # attention q/k/v projections
        q = jnp.dot(h, qw_ref[...], preferred_element_type=jnp.float32) + qb_ref[...]
        km = jnp.dot(h, kw_ref[...], preferred_element_type=jnp.float32) + kb_ref[...]
        v = jnp.dot(h, vw_ref[...], preferred_element_type=jnp.float32) + vb_ref[...]
        # scores are (B, B); softmax over last dim (torch semantics on 2-D input)
        s = lax.dot_general(q, km, (((1,), (1,)), ((), ())),
                            preferred_element_type=jnp.float32) * 0.125  # 1/sqrt(64)
        s = s - jnp.max(s, axis=-1, keepdims=True)
        e = jnp.exp(s)
        pw = e / jnp.sum(e, axis=-1, keepdims=True)
        a = jnp.dot(pw, v, preferred_element_type=jnp.float32)  # (B, 64)
        # output head + sigmoid
        o_ref[...] = jax.nn.sigmoid(
            jnp.dot(a, ow_ref[...], preferred_element_type=jnp.float32)
            + ob_ref[...])                                       # (B, 1)


def fc_tail(x, p, *, tk=4736):
    B, Din = x.shape
    assert Din % tk == 0
    return pl.pallas_call(
        _fc_tail_kernel,
        out_shape=jax.ShapeDtypeStruct((B, 1), jnp.float32),
        grid_spec=pltpu.PrefetchScalarGridSpec(
            num_scalar_prefetch=0,
            grid=(Din // tk,),                      # pure K loop, full 256-wide output
            in_specs=[
                pl.BlockSpec((B, tk), lambda k: (0, k)),
                pl.BlockSpec((tk, 256), lambda k: (k, 0)),
                pl.BlockSpec((1, 256), lambda k: (0, 0)),
                pl.BlockSpec((1, 256), lambda k: (0, 0)),
                pl.BlockSpec((256, 128), lambda k: (0, 0)),
                pl.BlockSpec((1, 128), lambda k: (0, 0)),
                pl.BlockSpec((1, 128), lambda k: (0, 0)),
                pl.BlockSpec((128, 64), lambda k: (0, 0)),
                pl.BlockSpec((1, 64), lambda k: (0, 0)),
                pl.BlockSpec((1, 64), lambda k: (0, 0)),
                pl.BlockSpec((64, 64), lambda k: (0, 0)),
                pl.BlockSpec((1, 64), lambda k: (0, 0)),
                pl.BlockSpec((64, 64), lambda k: (0, 0)),
                pl.BlockSpec((1, 64), lambda k: (0, 0)),
                pl.BlockSpec((64, 64), lambda k: (0, 0)),
                pl.BlockSpec((1, 64), lambda k: (0, 0)),
                pl.BlockSpec((64, 1), lambda k: (0, 0)),
                pl.BlockSpec((1, 1), lambda k: (0, 0)),
            ],
            out_specs=pl.BlockSpec((B, 1), lambda k: (0, 0)),
            scratch_shapes=[pltpu.VMEM((B, 256), jnp.float32)],
        ),
        compiler_params=pltpu.CompilerParams(
            dimension_semantics=("arbitrary",)),
    )(x, p["fc1_w"], p["bn4_scale"], p["bn4_shift"],
      p["fc2_w"], p["bn5_scale"], p["bn5_shift"],
      p["fc3_w"], p["bn6_scale"], p["bn6_shift"],
      p["q_w"], p["q_b"], p["k_w"], p["k_b"], p["v_w"], p["v_b"],
      p["out_w"], p["out_b"])


# --------------------------------- parameters ----------------------------------

_BN_EPS = 1e-5


def _bn_fold(bias, n):
    # PyTorch-default BN init: gamma=1, beta=0, running_mean=0, running_var=1.
    # TODO(synk): plug in trained running stats / affine params here if loading
    #             a real checkpoint.
    gamma = jnp.ones((1, n), jnp.float32)
    beta = jnp.zeros((1, n), jnp.float32)
    mean = jnp.zeros((1, n), jnp.float32)
    var = jnp.ones((1, n), jnp.float32)
    scale = gamma / jnp.sqrt(var + _BN_EPS)
    shift = beta + scale * (bias - mean)          # conv/linear bias folded in
    return scale, shift


def _even_select(l_out, l_in):
    # 0/1 mask (l_out, l_in) with a 1 at column 2*row — picks even rows of the
    # pairwise-max value.  Built once on host; DMA'd once per launch.
    r = jnp.arange(l_out, dtype=jnp.int32)[:, None]
    c = jnp.arange(l_in, dtype=jnp.int32)[None, :]
    return (c == 2 * r).astype(jnp.float32)


def init_params(key, L=296):
    ks = jax.random.split(key, 20)

    def w_init(k, shape, fan_in):
        return jax.random.normal(k, shape, jnp.float32) / jnp.sqrt(
            jnp.float32(fan_in))

    def b_init(k, n):
        return jax.random.normal(k, (1, n), jnp.float32) * 0.01

    p = {}
    # maxpool selection masks (pool1/2/3)
    p["se1"] = _even_select(L // 2, L - 1)
    p["se2"] = _even_select(L // 4, L // 2 - 1)
    p["se3"] = _even_select(L // 8, L // 4 - 1)

    # conv1 weight: (3 taps, 128) — Cin == 1 folded away (wrapper builds im2col taps)
    p["conv1_w"] = w_init(ks[0], (3, 128), 3 * 1)
    p["bn1_scale"], p["bn1_shift"] = _bn_fold(b_init(ks[1], 128), 128)
    # conv2/conv3 weights stored as (K, Cin, Cout) in bf16
    p["conv2_w"] = w_init(ks[2], (3, 128, 256), 3 * 128).astype(jnp.bfloat16)
    p["bn2_scale"], p["bn2_shift"] = _bn_fold(b_init(ks[3], 256), 256)
    p["conv3_w"] = w_init(ks[4], (3, 256, 512), 3 * 256).astype(jnp.bfloat16)
    p["bn3_scale"], p["bn3_shift"] = _bn_fold(b_init(ks[5], 512), 512)
    # fc1: generate in torch row order (c*37 + l), permute rows once to the
    # channels-last flatten order (l*512 + c), store bf16 (fc1 is HBM-bound).
    w_t = w_init(ks[6], (512 * 37, 256), 512 * 37)
    f = jnp.arange(512 * 37)
    perm = (f % 512) * 37 + (f // 512)
    p["fc1_w"] = w_t[perm].astype(jnp.bfloat16)
    p["bn4_scale"], p["bn4_shift"] = _bn_fold(b_init(ks[7], 256), 256)
    p["fc2_w"] = w_init(ks[8], (256, 128), 256).astype(jnp.bfloat16)
    p["bn5_scale"], p["bn5_shift"] = _bn_fold(b_init(ks[9], 128), 128)
    p["fc3_w"] = w_init(ks[10], (128, 64), 128).astype(jnp.bfloat16)
    p["bn6_scale"], p["bn6_shift"] = _bn_fold(b_init(ks[11], 64), 64)
    # attention q/k/v projections
    p["q_w"] = w_init(ks[12], (64, 64), 64).astype(jnp.bfloat16)
    p["q_b"] = b_init(ks[13], 64)
    p["k_w"] = w_init(ks[14], (64, 64), 64).astype(jnp.bfloat16)
    p["k_b"] = b_init(ks[15], 64)
    p["v_w"] = w_init(ks[16], (64, 64), 64).astype(jnp.bfloat16)
    p["v_b"] = b_init(ks[17], 64)
    p["out_w"] = w_init(ks[18], (64, 1), 64)
    p["out_b"] = b_init(ks[19], 1)
    return p


# ----------------------------------- forward -----------------------------------

def cnn_forward(x, p):
    B, L = x.shape
    # conv1 has Cin=1: build its 3 shifted taps (padding=1) once in the wrapper so
    # the kernel sees a lane-friendly (B, L, 3) operand instead of a (L, 1) one.
    xpad = jnp.pad(x, ((0, 0), (1, 1)))
    xcol = jnp.stack(
        [xpad[:, 0:L], xpad[:, 1:L + 1], xpad[:, 2:L + 2]], axis=-1)  # (B, L, 3)
    h = conv_stack(xcol, p)                        # (B, L//8, 512) bf16, channels-last
    h = h.reshape(B, (L // 8) * 512)               # fc1_w rows pre-permuted to match
    # fc1 + bn4 + relu + fc2 + bn5 + relu + fc3 + bn6 + relu + attention + sigmoid
    return fc_tail(h, p)                           # (B, 1)


if __name__ == "__main__":
    key = jax.random.PRNGKey(0)
    pkey, xkey = jax.random.split(key)
    params = init_params(pkey)

    # fc1 expects 512 * 37 features => L // 8 == 37 => L = 296
    B, L = 4, 296
    x = jax.random.normal(xkey, (B, L), jnp.float32)

    fwd = jax.jit(cnn_forward)
    out = jax.block_until_ready(fwd(x, params))
    assert out.shape == (B, 1)
    assert bool(jnp.all(jnp.isfinite(out)))
    print("KERNEL_OK")
</pallas_src>

<mosaic_0001>
module attributes {stable_mosaic.version = 11 : i64} {
  func.func @_conv_stack_kernel(%arg0: i32, %arg1: memref<1x296x3xf32, #tpu.memory_space<vmem>>, %arg2: memref<148x295xf32, #tpu.memory_space<vmem>>, %arg3: memref<74x147xf32, #tpu.memory_space<vmem>>, %arg4: memref<37x73xf32, #tpu.memory_space<vmem>>, %arg5: memref<3x128xf32, #tpu.memory_space<vmem>>, %arg6: memref<1x128xf32, #tpu.memory_space<vmem>>, %arg7: memref<1x128xf32, #tpu.memory_space<vmem>>, %arg8: memref<3x128x256xbf16, #tpu.memory_space<vmem>>, %arg9: memref<1x256xf32, #tpu.memory_space<vmem>>, %arg10: memref<1x256xf32, #tpu.memory_space<vmem>>, %arg11: memref<3x256x512xbf16, #tpu.memory_space<vmem>>, %arg12: memref<1x512xf32, #tpu.memory_space<vmem>>, %arg13: memref<1x512xf32, #tpu.memory_space<vmem>>, %arg14: memref<1x37x512xbf16, #tpu.memory_space<vmem>>, %arg15: memref<150x128xf32, #tpu.memory_space<vmem>>, %arg16: memref<76x256xf32, #tpu.memory_space<vmem>>) attributes {dimension_semantics = [#tpu.dimension_semantics<parallel>], iteration_bounds = array<i64: 4>, scalar_prefetch = 0 : i64, scratch_operands = 2 : i64, tpu.core_type = #tpu.core_type<tc>, window_params = [{transform_indices = @transform_0, window_bounds = array<i64: 1, 296, 3>}, {pipeline_mode = #tpu.pipeline_mode<synchronous>, transform_indices = @transform_1, window_bounds = array<i64: 148, 295>}, {pipeline_mode = #tpu.pipeline_mode<synchronous>, transform_indices = @transform_2, window_bounds = array<i64: 74, 147>}, {pipeline_mode = #tpu.pipeline_mode<synchronous>, transform_indices = @transform_3, window_bounds = array<i64: 37, 73>}, {pipeline_mode = #tpu.pipeline_mode<synchronous>, transform_indices = @transform_4, window_bounds = array<i64: 3, 128>}, {pipeline_mode = #tpu.pipeline_mode<synchronous>, transform_indices = @transform_5, window_bounds = array<i64: 1, 128>}, {pipeline_mode = #tpu.pipeline_mode<synchronous>, transform_indices = @transform_6, window_bounds = array<i64: 1, 128>}, {pipeline_mode = #tpu.pipeline_mode<synchronous>, transform_indices = @transform_7, window_bounds = array<i64: 3, 128, 256>}, {pipeline_mode = #tpu.pipeline_mode<synchronous>, transform_indices = @transform_8, window_bounds = array<i64: 1, 256>}, {pipeline_mode = #tpu.pipeline_mode<synchronous>, transform_indices = @transform_9, window_bounds = array<i64: 1, 256>}, {pipeline_mode = #tpu.pipeline_mode<synchronous>, transform_indices = @transform_10, window_bounds = array<i64: 3, 256, 512>}, {pipeline_mode = #tpu.pipeline_mode<synchronous>, transform_indices = @transform_11, window_bounds = array<i64: 1, 512>}, {pipeline_mode = #tpu.pipeline_mode<synchronous>, transform_indices = @transform_12, window_bounds = array<i64: 1, 512>}, {transform_indices = @transform_13, window_bounds = array<i64: 1, 37, 512>}]} {
    %c0 = arith.constant 0 : index
    %c0_0 = arith.constant 0 : index
    %c0_1 = arith.constant 0 : index
    %0 = vector.load %arg1[%c0, %c0_0, %c0_1] : memref<1x296x3xf32, #tpu.memory_space<vmem>>, vector<1x296x3xf32>
    %1 = vector.shape_cast %0 : vector<1x296x3xf32> to vector<296x3xf32>
    %c0_2 = arith.constant 0 : index
    %c0_3 = arith.constant 0 : index
    %2 = vector.load %arg5[%c0_2, %c0_3] : memref<3x128xf32, #tpu.memory_space<vmem>>, vector<3x128xf32>
    %cst = arith.constant dense<0.000000e+00> : vector<296x128xf32>
    %3 = tpu.matmul %1, %2, %cst {dimension_numbers = #tpu.dot_dimension_numbers<[1], [0], [0], [1], [0, 0, 1, 1], [], []>} : vector<296x3xf32>, vector<3x128xf32>, vector<296x128xf32> -> vector<296x128xf32>
    %c0_4 = arith.constant 0 : index
    %c0_5 = arith.constant 0 : index
    %4 = vector.load %arg6[%c0_4, %c0_5] : memref<1x128xf32, #tpu.memory_space<vmem>>, vector<1x128xf32>
    %5 = vector.broadcast %4 : vector<1x128xf32> to vector<296x128xf32>
    %6 = arith.mulf %3, %5 : vector<296x128xf32>
    %c0_6 = arith.constant 0 : index
    %c0_7 = arith.constant 0 : index
    %7 = vector.load %arg7[%c0_6, %c0_7] : memref<1x128xf32, #tpu.memory_space<vmem>>, vector<1x128xf32>
    %8 = vector.broadcast %7 : vector<1x128xf32> to vector<296x128xf32>
    %9 = arith.addf %6, %8 : vector<296x128xf32>
    %cst_8 = arith.constant 0.000000e+00 : f32
    %10 = vector.broadcast %cst_8 : f32 to vector<296x128xf32>
    %11 = arith.maximumf %9, %10 : vector<296x128xf32>
    %cst_9 = arith.constant 0.000000e+00 : f32
    %12 = vector.broadcast %cst_9 : f32 to vector<1x128xf32>
    %c0_10 = arith.constant 0 : index
    %c0_11 = arith.constant 0 : index
    %13 = vector.load %arg15[%c0_10, %c0_11] : memref<150x128xf32, #tpu.memory_space<vmem>>, vector<1x128xf32>
    tpu.vector_store %arg15[%c0_10, %c0_11], %12 {strides = array<i32>} : memref<150x128xf32, #tpu.memory_space<vmem>>, vector<1x128xf32>,
    %cst_12 = arith.constant 0.000000e+00 : f32
    %14 = vector.broadcast %cst_12 : f32 to vector<1x128xf32>
    %c149 = arith.constant 149 : index
    %c0_13 = arith.constant 0 : index
    %15 = vector.load %arg15[%c149, %c0_13] : memref<150x128xf32, #tpu.memory_space<vmem>>, vector<1x128xf32>
    tpu.vector_store %arg15[%c149, %c0_13], %14 {strides = array<i32>} : memref<150x128xf32, #tpu.memory_space<vmem>>, vector<1x128xf32>,
    %16 = vector.extract_strided_slice %11 {offsets = [0, 0], sizes = [295, 128], strides = [1, 1]} : vector<296x128xf32> to vector<295x128xf32>
    %17 = vector.extract_strided_slice %11 {offsets = [1, 0], sizes = [295, 128], strides = [1, 1]} : vector<296x128xf32> to vector<295x128xf32>
    %18 = arith.maximumf %16, %17 : vector<295x128xf32>
    %c0_14 = arith.constant 0 : index
    %c0_15 = arith.constant 0 : index
    %19 = vector.load %arg2[%c0_14, %c0_15] : memref<148x295xf32, #tpu.memory_space<vmem>>, vector<148x295xf32>
    %cst_16 = arith.constant dense<0.000000e+00> : vector<148x128xf32>
    %20 = tpu.matmul %19, %18, %cst_16 {dimension_numbers = #tpu.dot_dimension_numbers<[1], [0], [0], [1], [0, 0, 1, 1], [], []>} : vector<148x295xf32>, vector<295x128xf32>, vector<148x128xf32> -> vector<148x128xf32>
    %c1 = arith.constant 1 : index
    %c0_17 = arith.constant 0 : index
    %21 = vector.load %arg15[%c1, %c0_17] : memref<150x128xf32, #tpu.memory_space<vmem>>, vector<148x128xf32>
    tpu.vector_store %arg15[%c1, %c0_17], %20 {strides = array<i32>} : memref<150x128xf32, #tpu.memory_space<vmem>>, vector<148x128xf32>,
    %c0_18 = arith.constant 0 : index
    %c0_19 = arith.constant 0 : index
    %22 = vector.load %arg9[%c0_18, %c0_19] : memref<1x256xf32, #tpu.memory_space<vmem>>, vector<1x256xf32>
    %c0_20 = arith.constant 0 : index
    %c0_21 = arith.constant 0 : index
    %23 = vector.load %arg10[%c0_20, %c0_21] : memref<1x256xf32, #tpu.memory_space<vmem>>, vector<1x256xf32>
    %c0_22 = arith.constant 0 : index
    %c0_23 = arith.constant 0 : index
    %24 = vector.load %arg15[%c0_22, %c0_23] : memref<150x128xf32, #tpu.memory_space<vmem>>, vector<150x128xf32>
    %25 = vector.extract_strided_slice %24 {offsets = [0, 0], sizes = [148, 128], strides = [1, 1]} : vector<150x128xf32> to vector<148x128xf32>
    %26 = arith.truncf %25 : vector<148x128xf32> to vector<148x128xbf16>
    %c0_24 = arith.constant 0 : index
    %c0_25 = arith.constant 0 : index
    %c0_26 = arith.constant 0 : index
    %27 = vector.load %arg8[%c0_24, %c0_25, %c0_26] : memref<3x128x256xbf16, #tpu.memory_space<vmem>>, vector<1x128x256xbf16>
    %28 = vector.shape_cast %27 : vector<1x128x256xbf16> to vector<128x256xbf16>
    %cst_27 = arith.constant dense<0.000000e+00> : vector<148x256xf32>
    %29 = tpu.matmul %26, %28, %cst_27 {dimension_numbers = #tpu.dot_dimension_numbers<[1], [0], [0], [1], [0, 0, 1, 1], [], []>} : vector<148x128xbf16>, vector<128x256xbf16>, vector<148x256xf32> -> vector<148x256xf32>
    %30 = vector.extract_strided_slice %24 {offsets = [1, 0], sizes = [148, 128], strides = [1, 1]} : vector<150x128xf32> to vector<148x128xf32>
    %31 = arith.truncf %30 : vector<148x128xf32> to vector<148x128xbf16>
    %c1_28 = arith.constant 1 : index
    %c0_29 = arith.constant 0 : index
    %c0_30 = arith.constant 0 : index
    %32 = vector.load %arg8[%c1_28, %c0_29, %c0_30] : memref<3x128x256xbf16, #tpu.memory_space<vmem>>, vector<1x128x256xbf16>
    %33 = vector.shape_cast %32 : vector<1x128x256xbf16> to vector<128x256xbf16>
    %cst_31 = arith.constant dense<0.000000e+00> : vector<148x256xf32>
    %34 = tpu.matmul %31, %33, %cst_31 {dimension_numbers = #tpu.dot_dimension_numbers<[1], [0], [0], [1], [0, 0, 1, 1], [], []>} : vector<148x128xbf16>, vector<128x256xbf16>, vector<148x256xf32> -> vector<148x256xf32>
    %35 = arith.addf %29, %34 : vector<148x256xf32>
    %36 = vector.extract_strided_slice %24 {offsets = [2, 0], sizes = [148, 128], strides = [1, 1]} : vector<150x128xf32> to vector<148x128xf32>
    %37 = arith.truncf %36 : vector<148x128xf32> to vector<148x128xbf16>
    %c2 = arith.constant 2 : index
    %c0_32 = arith.constant 0 : index
    %c0_33 = arith.constant 0 : index
    %38 = vector.load %arg8[%c2, %c0_32, %c0_33] : memref<3x128x256xbf16, #tpu.memory_space<vmem>>, vector<1x128x256xbf16>
    %39 = vector.shape_cast %38 : vector<1x128x256xbf16> to vector<128x256xbf16>
    %cst_34 = arith.constant dense<0.000000e+00> : vector<148x256xf32>
    %40 = tpu.matmul %37, %39, %cst_34 {dimension_numbers = #tpu.dot_dimension_numbers<[1], [0], [0], [1], [0, 0, 1, 1], [], []>} : vector<148x128xbf16>, vector<128x256xbf16>, vector<148x256xf32> -> vector<148x256xf32>
    %41 = arith.addf %35, %40 : vector<148x256xf32>
    %42 = vector.broadcast %22 : vector<1x256xf32> to vector<148x256xf32>
    %43 = arith.mulf %41, %42 : vector<148x256xf32>
    %44 = vector.broadcast %23 : vector<1x256xf32> to vector<148x256xf32>
    %45 = arith.addf %43, %44 : vector<148x256xf32>
    %cst_35 = arith.constant 0.000000e+00 : f32
    %46 = vector.broadcast %cst_35 : f32 to vector<148x256xf32>
    %47 = arith.maximumf %45, %46 : vector<148x256xf32>
    %cst_36 = arith.constant 0.000000e+00 : f32
    %48 = vector.broadcast %cst_36 : f32 to vector<1x256xf32>
    %c0_37 = arith.constant 0 : index
    %c0_38 = arith.constant 0 : index
    %49 = vector.load %arg16[%c0_37, %c0_38] : memref<76x256xf32, #tpu.memory_space<vmem>>, vector<1x256xf32>
    tpu.vector_store %arg16[%c0_37, %c0_38], %48 {strides = array<i32>} : memref<76x256xf32, #tpu.memory_space<vmem>>, vector<1x256xf32>,
    %cst_39 = arith.constant 0.000000e+00 : f32
    %50 = vector.broadcast %cst_39 : f32 to vector<1x256xf32>
    %c75 = arith.constant 75 : index
    %c0_40 = arith.constant 0 : index
    %51 = vector.load %arg16[%c75, %c0_40] : memref<76x256xf32, #tpu.memory_space<vmem>>, vector<1x256xf32>
    tpu.vector_store %arg16[%c75, %c0_40], %50 {strides = array<i32>} : memref<76x256xf32, #tpu.memory_space<vmem>>, vector<1x256xf32>,
    %52 = vector.extract_strided_slice %47 {offsets = [0, 0], sizes = [147, 256], strides = [1, 1]} : vector<148x256xf32> to vector<147x256xf32>
    %53 = vector.extract_strided_slice %47 {offsets = [1, 0], sizes = [147, 256], strides = [1, 1]} : vector<148x256xf32> to vector<147x256xf32>
    %54 = arith.maximumf %52, %53 : vector<147x256xf32>
    %c0_41 = arith.constant 0 : index
    %c0_42 = arith.constant 0 : index
    %55 = vector.load %arg3[%c0_41, %c0_42] : memref<74x147xf32, #tpu.memory_space<vmem>>, vector<74x147xf32>
    %cst_43 = arith.constant dense<0.000000e+00> : vector<74x256xf32>
    %56 = tpu.matmul %55, %54, %cst_43 {dimension_numbers = #tpu.dot_dimension_numbers<[1], [0], [0], [1], [0, 0, 1, 1], [], []>} : vector<74x147xf32>, vector<147x256xf32>, vector<74x256xf32> -> vector<74x256xf32>
    %c1_44 = arith.constant 1 : index
    %c0_45 = arith.constant 0 : index
    %57 = vector.load %arg16[%c1_44, %c0_45] : memref<76x256xf32, #tpu.memory_space<vmem>>, vector<74x256xf32>
    tpu.vector_store %arg16[%c1_44, %c0_45], %56 {strides = array<i32>} : memref<76x256xf32, #tpu.memory_space<vmem>>, vector<74x256xf32>,
    %c0_46 = arith.constant 0 : index
    %c0_47 = arith.constant 0 : index
    %58 = vector.load %arg12[%c0_46, %c0_47] : memref<1x512xf32, #tpu.memory_space<vmem>>, vector<1x512xf32>
    %c0_48 = arith.constant 0 : index
    %c0_49 = arith.constant 0 : index
    %59 = vector.load %arg13[%c0_48, %c0_49] : memref<1x512xf32, #tpu.memory_space<vmem>>, vector<1x512xf32>
    %c0_50 = arith.constant 0 : index
    %c0_51 = arith.constant 0 : index
    %60 = vector.load %arg16[%c0_50, %c0_51] : memref<76x256xf32, #tpu.memory_space<vmem>>, vector<76x256xf32>
    %61 = vector.extract_strided_slice %60 {offsets = [0, 0], sizes = [74, 256], strides = [1, 1]} : vector<76x256xf32> to vector<74x256xf32>
    %62 = arith.truncf %61 : vector<74x256xf32> to vector<74x256xbf16>
    %c0_52 = arith.constant 0 : index
    %c0_53 = arith.constant 0 : index
    %c0_54 = arith.constant 0 : index
    %63 = vector.load %arg11[%c0_52, %c0_53, %c0_54] : memref<3x256x512xbf16, #tpu.memory_space<vmem>>, vector<1x256x512xbf16>
    %64 = vector.shape_cast %63 : vector<1x256x512xbf16> to vector<256x512xbf16>
    %cst_55 = arith.constant dense<0.000000e+00> : vector<74x512xf32>
    %65 = tpu.matmul %62, %64, %cst_55 {dimension_numbers = #tpu.dot_dimension_numbers<[1], [0], [0], [1], [0, 0, 1, 1], [], []>} : vector<74x256xbf16>, vector<256x512xbf16>, vector<74x512xf32> -> vector<74x512xf32>
    %66 = vector.extract_strided_slice %60 {offsets = [1, 0], sizes = [74, 256], strides = [1, 1]} : vector<76x256xf32> to vector<74x256xf32>
    %67 = arith.truncf %66 : vector<74x256xf32> to vector<74x256xbf16>
    %c1_56 = arith.constant 1 : index
    %c0_57 = arith.constant 0 : index
    %c0_58 = arith.constant 0 : index
    %68 = vector.load %arg11[%c1_56, %c0_57, %c0_58] : memref<3x256x512xbf16, #tpu.memory_space<vmem>>, vector<1x256x512xbf16>
    %69 = vector.shape_cast %68 : vector<1x256x512xbf16> to vector<256x512xbf16>
    %cst_59 = arith.constant dense<0.000000e+00> : vector<74x512xf32>
    %70 = tpu.matmul %67, %69, %cst_59 {dimension_numbers = #tpu.dot_dimension_numbers<[1], [0], [0], [1], [0, 0, 1, 1], [], []>} : vector<74x256xbf16>, vector<256x512xbf16>, vector<74x512xf32> -> vector<74x512xf32>
    %71 = arith.addf %65, %70 : vector<74x512xf32>
    %72 = vector.extract_strided_slice %60 {offsets = [2, 0], sizes = [74, 256], strides = [1, 1]} : vector<76x256xf32> to vector<74x256xf32>
    %73 = arith.truncf %72 : vector<74x256xf32> to vector<74x256xbf16>
    %c2_60 = arith.constant 2 : index
    %c0_61 = arith.constant 0 : index
    %c0_62 = arith.constant 0 : index
    %74 = vector.load %arg11[%c2_60, %c0_61, %c0_62] : memref<3x256x512xbf16, #tpu.memory_space<vmem>>, vector<1x256x512xbf16>
    %75 = vector.shape_cast %74 : vector<1x256x512xbf16> to vector<256x512xbf16>
    %cst_63 = arith.constant dense<0.000000e+00> : vector<74x512xf32>
    %76 = tpu.matmul %73, %75, %cst_63 {dimension_numbers = #tpu.dot_dimension_numbers<[1], [0], [0], [1], [0, 0, 1, 1], [], []>} : vector<74x256xbf16>, vector<256x512xbf16>, vector<74x512xf32> -> vector<74x512xf32>
    %77 = arith.addf %71, %76 : vector<74x512xf32>
    %78 = vector.broadcast %58 : vector<1x512xf32> to vector<74x512xf32>
    %79 = arith.mulf %77, %78 : vector<74x512xf32>
    %80 = vector.broadcast %59 : vector<1x512xf32> to vector<74x512xf32>
    %81 = arith.addf %79, %80 : vector<74x512xf32>
    %cst_64 = arith.constant 0.000000e+00 : f32
    %82 = vector.broadcast %cst_64 : f32 to vector<74x512xf32>
    %83 = arith.maximumf %81, %82 : vector<74x512xf32>
    %84 = vector.extract_strided_slice %83 {offsets = [0, 0], sizes = [73, 512], strides = [1, 1]} : vector<74x512xf32> to vector<73x512xf32>
    %85 = vector.extract_strided_slice %83 {offsets = [1, 0], sizes = [73, 512], strides = [1, 1]} : vector<74x512xf32> to vector<73x512xf32>
    %86 = arith.maximumf %84, %85 : vector<73x512xf32>
    %c0_65 = arith.constant 0 : index
    %c0_66 = arith.constant 0 : index
    %87 = vector.load %arg4[%c0_65, %c0_66] : memref<37x73xf32, #tpu.memory_space<vmem>>, vector<37x73xf32>
    %cst_67 = arith.constant dense<0.000000e+00> : vector<37x512xf32>
    %88 = tpu.matmul %87, %86, %cst_67 {dimension_numbers = #tpu.dot_dimension_numbers<[1], [0], [0], [1], [0, 0, 1, 1], [], []>} : vector<37x73xf32>, vector<73x512xf32>, vector<37x512xf32> -> vector<37x512xf32>
    %89 = arith.truncf %88 : vector<37x512xf32> to vector<37x512xbf16>
    %c0_68 = arith.constant 0 : index
    %c0_69 = arith.constant 0 : index
    %c0_70 = arith.constant 0 : index
    %90 = vector.load %arg14[%c0_68, %c0_69, %c0_70] : memref<1x37x512xbf16, #tpu.memory_space<vmem>>, vector<1x37x512xbf16>
    %91 = vector.shape_cast %90 : vector<1x37x512xbf16> to vector<37x512xbf16>
    %92 = vector.shape_cast %89 : vector<37x512xbf16> to vector<1x37x512xbf16>
    tpu.vector_store %arg14[%c0_68, %c0_69, %c0_70], %92 {strides = array<i32>} : memref<1x37x512xbf16, #tpu.memory_space<vmem>>, vector<1x37x512xbf16>,
    return
  }
  func.func @transform_0(%arg0: i32) -> (i32, i32, i32) {
    %c0_i32 = arith.constant 0 : i32
    %c0_i32_0 = arith.constant 0 : i32
    %c0_i32_1 = arith.constant 0 : i32
    return %arg0, %c0_i32, %c0_i32_0 : i32, i32, i32
  }
  func.func @transform_1(%arg0: i32) -> (i32, i32) {
    %c0_i32 = arith.constant 0 : i32
    %c0_i32_0 = arith.constant 0 : i32
    %c0_i32_1 = arith.constant 0 : i32
    return %c0_i32, %c0_i32_0 : i32, i32
  }
  func.func @transform_2(%arg0: i32) -> (i32, i32) {
    %c0_i32 = arith.constant 0 : i32
    %c0_i32_0 = arith.constant 0 : i32
    %c0_i32_1 = arith.constant 0 : i32
    return %c0_i32, %c0_i32_0 : i32, i32
  }
  func.func @transform_3(%arg0: i32) -> (i32, i32) {
    %c0_i32 = arith.constant 0 : i32
    %c0_i32_0 = arith.constant 0 : i32
    %c0_i32_1 = arith.constant 0 : i32
    return %c0_i32, %c0_i32_0 : i32, i32
  }
  func.func @transform_4(%arg0: i32) -> (i32, i32) {
    %c0_i32 = arith.constant 0 : i32
    %c0_i32_0 = arith.constant 0 : i32
    %c0_i32_1 = arith.constant 0 : i32
    return %c0_i32, %c0_i32_0 : i32, i32
  }
  func.func @transform_5(%arg0: i32) -> (i32, i32) {
    %c0_i32 = arith.constant 0 : i32
    %c0_i32_0 = arith.constant 0 : i32
    %c0_i32_1 = arith.constant 0 : i32
    return %c0_i32, %c0_i32_0 : i32, i32
  }
  func.func @transform_6(%arg0: i32) -> (i32, i32) {
    %c0_i32 = arith.constant 0 : i32
    %c0_i32_0 = arith.constant 0 : i32
    %c0_i32_1 = arith.constant 0 : i32
    return %c0_i32, %c0_i32_0 : i32, i32
  }
  func.func @transform_7(%arg0: i32) -> (i32, i32, i32) {
    %c0_i32 = arith.constant 0 : i32
    %c0_i32_0 = arith.constant 0 : i32
    %c0_i32_1 = arith.constant 0 : i32
    %c0_i32_2 = arith.constant 0 : i32
    return %c0_i32, %c0_i32_0, %c0_i32_1 : i32, i32, i32
  }
  func.func @transform_8(%arg0: i32) -> (i32, i32) {
    %c0_i32 = arith.constant 0 : i32
    %c0_i32_0 = arith.constant 0 : i32
    %c0_i32_1 = arith.constant 0 : i32
    return %c0_i32, %c0_i32_0 : i32, i32
  }
  func.func @transform_9(%arg0: i32) -> (i32, i32) {
    %c0_i32 = arith.constant 0 : i32
    %c0_i32_0 = arith.constant 0 : i32
    %c0_i32_1 = arith.constant 0 : i32
    return %c0_i32, %c0_i32_0 : i32, i32
  }
  func.func @transform_10(%arg0: i32) -> (i32, i32, i32) {
    %c0_i32 = arith.constant 0 : i32
    %c0_i32_0 = arith.constant 0 : i32
    %c0_i32_1 = arith.constant 0 : i32
    %c0_i32_2 = arith.constant 0 : i32
    return %c0_i32, %c0_i32_0, %c0_i32_1 : i32, i32, i32
  }
  func.func @transform_11(%arg0: i32) -> (i32, i32) {
    %c0_i32 = arith.constant 0 : i32
    %c0_i32_0 = arith.constant 0 : i32
    %c0_i32_1 = arith.constant 0 : i32
    return %c0_i32, %c0_i32_0 : i32, i32
  }
  func.func @transform_12(%arg0: i32) -> (i32, i32) {
    %c0_i32 = arith.constant 0 : i32
    %c0_i32_0 = arith.constant 0 : i32
    %c0_i32_1 = arith.constant 0 : i32
    return %c0_i32, %c0_i32_0 : i32, i32
  }
  func.func @transform_13(%arg0: i32) -> (i32, i32, i32) {
    %c0_i32 = arith.constant 0 : i32
    %c0_i32_0 = arith.constant 0 : i32
    %c0_i32_1 = arith.constant 0 : i32
    return %arg0, %c0_i32, %c0_i32_0 : i32, i32, i32
  }
}

module attributes {stable_mosaic.version = 11 : i64} {
  func.func @_fc_tail_kernel(%arg0: i32, %arg1: memref<4x4736xbf16, #tpu.memory_space<vmem>>, %arg2: memref<4736x256xbf16, #tpu.memory_space<vmem>>, %arg3: memref<1x256xf32, #tpu.memory_space<vmem>>, %arg4: memref<1x256xf32, #tpu.memory_space<vmem>>, %arg5: memref<256x128xbf16, #tpu.memory_space<vmem>>, %arg6: memref<1x128xf32, #tpu.memory_space<vmem>>, %arg7: memref<1x128xf32, #tpu.memory_space<vmem>>, %arg8: memref<128x64xbf16, #tpu.memory_space<vmem>>, %arg9: memref<1x64xf32, #tpu.memory_space<vmem>>, %arg10: memref<1x64xf32, #tpu.memory_space<vmem>>, %arg11: memref<64x64xbf16, #tpu.memory_space<vmem>>, %arg12: memref<1x64xf32, #tpu.memory_space<vmem>>, %arg13: memref<64x64xbf16, #tpu.memory_space<vmem>>, %arg14: memref<1x64xf32, #tpu.memory_space<vmem>>, %arg15: memref<64x64xbf16, #tpu.memory_space<vmem>>, %arg16: memref<1x64xf32, #tpu.memory_space<vmem>>, %arg17: memref<64x1xf32, #tpu.memory_space<vmem>>, %arg18: memref<1x1xf32, #tpu.memory_space<vmem>>, %arg19: memref<4x1xf32, #tpu.memory_space<vmem>>, %arg20: memref<4x256xf32, #tpu.memory_space<vmem>>) attributes {dimension_semantics = [#tpu.dimension_semantics<arbitrary>], iteration_bounds = array<i64: 4>, scalar_prefetch = 0 : i64, scratch_operands = 1 : i64, tpu.core_type = #tpu.core_type<tc>, window_params = [{transform_indices = @transform_0, window_bounds = array<i64: 4, 4736>}, {transform_indices = @transform_1, window_bounds = array<i64: 4736, 256>}, {pipeline_mode = #tpu.pipeline_mode<synchronous>, transform_indices = @transform_2, window_bounds = array<i64: 1, 256>}, {pipeline_mode = #tpu.pipeline_mode<synchronous>, transform_indices = @transform_3, window_bounds = array<i64: 1, 256>}, {pipeline_mode = #tpu.pipeline_mode<synchronous>, transform_indices = @transform_4, window_bounds = array<i64: 256, 128>}, {pipeline_mode = #tpu.pipeline_mode<synchronous>, transform_indices = @transform_5, window_bounds = array<i64: 1, 128>}, {pipeline_mode = #tpu.pipeline_mode<synchronous>, transform_indices = @transform_6, window_bounds = array<i64: 1, 128>}, {pipeline_mode = #tpu.pipeline_mode<synchronous>, transform_indices = @transform_7, window_bounds = array<i64: 128, 64>}, {pipeline_mode = #tpu.pipeline_mode<synchronous>, transform_indices = @transform_8, window_bounds = array<i64: 1, 64>}, {pipeline_mode = #tpu.pipeline_mode<synchronous>, transform_indices = @transform_9, window_bounds = array<i64: 1, 64>}, {pipeline_mode = #tpu.pipeline_mode<synchronous>, transform_indices = @transform_10, window_bounds = array<i64: 64, 64>}, {pipeline_mode = #tpu.pipeline_mode<synchronous>, transform_indices = @transform_11, window_bounds = array<i64: 1, 64>}, {pipeline_mode = #tpu.pipeline_mode<synchronous>, transform_indices = @transform_12, window_bounds = array<i64: 64, 64>}, {pipeline_mode = #tpu.pipeline_mode<synchronous>, transform_indices = @transform_13, window_bounds = array<i64: 1, 64>}, {pipeline_mode = #tpu.pipeline_mode<synchronous>, transform_indices = @transform_14, window_bounds = array<i64: 64, 64>}, {pipeline_mode = #tpu.pipeline_mode<synchronous>, transform_indices = @transform_15, window_bounds = array<i64: 1, 64>}, {pipeline_mode = #tpu.pipeline_mode<synchronous>, transform_indices = @transform_16, window_bounds = array<i64: 64, 1>}, {pipeline_mode = #tpu.pipeline_mode<synchronous>, transform_indices = @transform_17, window_bounds = array<i64: 1, 1>}, {pipeline_mode = #tpu.pipeline_mode<synchronous>, transform_indices = @transform_18, window_bounds = array<i64: 4, 1>}]} {
    %c0_i32 = arith.constant 0 : i32
    %0 = arith.cmpi eq, %arg0, %c0_i32 : i32
    %1 = arith.extui %0 : i1 to i32
    %c0_i32_0 = arith.constant 0 : i32
    %2 = arith.cmpi ne, %1, %c0_i32_0 : i32
    scf.if %2 {
      %cst_9 = arith.constant 0.000000e+00 : f32
      %12 = vector.broadcast %cst_9 : f32 to vector<4x256xf32>
      %c0_10 = arith.constant 0 : index
      %c0_11 = arith.constant 0 : index
      %13 = vector.load %arg20[%c0_10, %c0_11] : memref<4x256xf32, #tpu.memory_space<vmem>>, vector<4x256xf32>
      tpu.vector_store %arg20[%c0_10, %c0_11], %12 {strides = array<i32>} : memref<4x256xf32, #tpu.memory_space<vmem>>, vector<4x256xf32>,
    } else {
    }
    %c0 = arith.constant 0 : index
    %c0_1 = arith.constant 0 : index
    %3 = vector.load %arg20[%c0, %c0_1] : memref<4x256xf32, #tpu.memory_space<vmem>>, vector<4x256xf32>
    %c0_2 = arith.constant 0 : index
    %c0_3 = arith.constant 0 : index
    %4 = vector.load %arg1[%c0_2, %c0_3] : memref<4x4736xbf16, #tpu.memory_space<vmem>>, vector<4x4736xbf16>
    %c0_4 = arith.constant 0 : index
    %c0_5 = arith.constant 0 : index
    %5 = vector.load %arg2[%c0_4, %c0_5] : memref<4736x256xbf16, #tpu.memory_space<vmem>>, vector<4736x256xbf16>
    %cst = arith.constant dense<0.000000e+00> : vector<4x256xf32>
    %6 = tpu.matmul %4, %5, %cst {dimension_numbers = #tpu.dot_dimension_numbers<[1], [0], [0], [1], [0, 0, 1, 1], [], []>} : vector<4x4736xbf16>, vector<4736x256xbf16>, vector<4x256xf32> -> vector<4x256xf32>
    %7 = arith.addf %3, %6 : vector<4x256xf32>
    %c0_6 = arith.constant 0 : index
    %c0_7 = arith.constant 0 : index
    %8 = vector.load %arg20[%c0_6, %c0_7] : memref<4x256xf32, #tpu.memory_space<vmem>>, vector<4x256xf32>
    tpu.vector_store %arg20[%c0_6, %c0_7], %7 {strides = array<i32>} : memref<4x256xf32, #tpu.memory_space<vmem>>, vector<4x256xf32>,
    %c3_i32 = arith.constant 3 : i32
    %9 = arith.cmpi eq, %arg0, %c3_i32 : i32
    %10 = arith.extui %9 : i1 to i32
    %c0_i32_8 = arith.constant 0 : i32
    %11 = arith.cmpi ne, %10, %c0_i32_8 : i32
    scf.if %11 {
      %c0_9 = arith.constant 0 : index
      %c0_10 = arith.constant 0 : index
      %12 = vector.load %arg20[%c0_9, %c0_10] : memref<4x256xf32, #tpu.memory_space<vmem>>, vector<4x256xf32>
      %c0_11 = arith.constant 0 : index
      %c0_12 = arith.constant 0 : index
      %13 = vector.load %arg3[%c0_11, %c0_12] : memref<1x256xf32, #tpu.memory_space<vmem>>, vector<1x256xf32>
      %14 = vector.broadcast %13 : vector<1x256xf32> to vector<4x256xf32>
      %15 = arith.mulf %12, %14 : vector<4x256xf32>
      %c0_13 = arith.constant 0 : index
      %c0_14 = arith.constant 0 : index
      %16 = vector.load %arg4[%c0_13, %c0_14] : memref<1x256xf32, #tpu.memory_space<vmem>>, vector<1x256xf32>
      %17 = vector.broadcast %16 : vector<1x256xf32> to vector<4x256xf32>
      %18 = arith.addf %15, %17 : vector<4x256xf32>
      %cst_15 = arith.constant 0.000000e+00 : f32
      %19 = vector.broadcast %cst_15 : f32 to vector<4x256xf32>
      %20 = arith.maximumf %18, %19 : vector<4x256xf32>
      %21 = arith.truncf %20 : vector<4x256xf32> to vector<4x256xbf16>
      %c0_16 = arith.constant 0 : index
      %c0_17 = arith.constant 0 : index
      %22 = vector.load %arg5[%c0_16, %c0_17] : memref<256x128xbf16, #tpu.memory_space<vmem>>, vector<256x128xbf16>
      %cst_18 = arith.constant dense<0.000000e+00> : vector<4x128xf32>
      %23 = tpu.matmul %21, %22, %cst_18 {dimension_numbers = #tpu.dot_dimension_numbers<[1], [0], [0], [1], [0, 0, 1, 1], [], []>} : vector<4x256xbf16>, vector<256x128xbf16>, vector<4x128xf32> -> vector<4x128xf32>
      %c0_19 = arith.constant 0 : index
      %c0_20 = arith.constant 0 : index
      %24 = vector.load %arg6[%c0_19, %c0_20] : memref<1x128xf32, #tpu.memory_space<vmem>>, vector<1x128xf32>
      %25 = vector.broadcast %24 : vector<1x128xf32> to vector<4x128xf32>
      %26 = arith.mulf %23, %25 : vector<4x128xf32>
      %c0_21 = arith.constant 0 : index
      %c0_22 = arith.constant 0 : index
      %27 = vector.load %arg7[%c0_21, %c0_22] : memref<1x128xf32, #tpu.memory_space<vmem>>, vector<1x128xf32>
      %28 = vector.broadcast %27 : vector<1x128xf32> to vector<4x128xf32>
      %29 = arith.addf %26, %28 : vector<4x128xf32>
      %cst_23 = arith.constant 0.000000e+00 : f32
      %30 = vector.broadcast %cst_23 : f32 to vector<4x128xf32>
      %31 = arith.maximumf %29, %30 : vector<4x128xf32>
      %32 = arith.truncf %31 : vector<4x128xf32> to vector<4x128xbf16>
      %c0_24 = arith.constant 0 : index
      %c0_25 = arith.constant 0 : index
      %33 = vector.load %arg8[%c0_24, %c0_25] : memref<128x64xbf16, #tpu.memory_space<vmem>>, vector<128x64xbf16>
      %cst_26 = arith.constant dense<0.000000e+00> : vector<4x64xf32>
      %34 = tpu.matmul %32, %33, %cst_26 {dimension_numbers = #tpu.dot_dimension_numbers<[1], [0], [0], [1], [0, 0, 1, 1], [], []>} : vector<4x128xbf16>, vector<128x64xbf16>, vector<4x64xf32> -> vector<4x64xf32>
      %c0_27 = arith.constant 0 : index
      %c0_28 = arith.constant 0 : index
      %35 = vector.load %arg9[%c0_27, %c0_28] : memref<1x64xf32, #tpu.memory_space<vmem>>, vector<1x64xf32>
      %36 = vector.broadcast %35 : vector<1x64xf32> to vector<4x64xf32>
      %37 = arith.mulf %34, %36 : vector<4x64xf32>
      %c0_29 = arith.constant 0 : index
      %c0_30 = arith.constant 0 : index
      %38 = vector.load %arg10[%c0_29, %c0_30] : memref<1x64xf32, #tpu.memory_space<vmem>>, vector<1x64xf32>
      %39 = vector.broadcast %38 : vector<1x64xf32> to vector<4x64xf32>
      %40 = arith.addf %37, %39 : vector<4x64xf32>
      %cst_31 = arith.constant 0.000000e+00 : f32
      %41 = vector.broadcast %cst_31 : f32 to vector<4x64xf32>
      %42 = arith.maximumf %40, %41 : vector<4x64xf32>
      %43 = arith.truncf %42 : vector<4x64xf32> to vector<4x64xbf16>
      %c0_32 = arith.constant 0 : index
      %c0_33 = arith.constant 0 : index
      %44 = vector.load %arg11[%c0_32, %c0_33] : memref<64x64xbf16, #tpu.memory_space<vmem>>, vector<64x64xbf16>
      %cst_34 = arith.constant dense<0.000000e+00> : vector<4x64xf32>
      %45 = tpu.matmul %43, %44, %cst_34 {dimension_numbers = #tpu.dot_dimension_numbers<[1], [0], [0], [1], [0, 0, 1, 1], [], []>} : vector<4x64xbf16>, vector<64x64xbf16>, vector<4x64xf32> -> vector<4x64xf32>
      %c0_35 = arith.constant 0 : index
      %c0_36 = arith.constant 0 : index
      %46 = vector.load %arg12[%c0_35, %c0_36] : memref<1x64xf32, #tpu.memory_space<vmem>>, vector<1x64xf32>
      %47 = vector.broadcast %46 : vector<1x64xf32> to vector<4x64xf32>
      %48 = arith.addf %45, %47 : vector<4x64xf32>
      %c0_37 = arith.constant 0 : index
      %c0_38 = arith.constant 0 : index
      %49 = vector.load %arg13[%c0_37, %c0_38] : memref<64x64xbf16, #tpu.memory_space<vmem>>, vector<64x64xbf16>
      %cst_39 = arith.constant dense<0.000000e+00> : vector<4x64xf32>
      %50 = tpu.matmul %43, %49, %cst_39 {dimension_numbers = #tpu.dot_dimension_numbers<[1], [0], [0], [1], [0, 0, 1, 1], [], []>} : vector<4x64xbf16>, vector<64x64xbf16>, vector<4x64xf32> -> vector<4x64xf32>
      %c0_40 = arith.constant 0 : index
      %c0_41 = arith.constant 0 : index
      %51 = vector.load %arg14[%c0_40, %c0_41] : memref<1x64xf32, #tpu.memory_space<vmem>>, vector<1x64xf32>
      %52 = vector.broadcast %51 : vector<1x64xf32> to vector<4x64xf32>
      %53 = arith.addf %50, %52 : vector<4x64xf32>
      %c0_42 = arith.constant 0 : index
      %c0_43 = arith.constant 0 : index
      %54 = vector.load %arg15[%c0_42, %c0_43] : memref<64x64xbf16, #tpu.memory_space<vmem>>, vector<64x64xbf16>
      %cst_44 = arith.constant dense<0.000000e+00> : vector<4x64xf32>
      %55 = tpu.matmul %43, %54, %cst_44 {dimension_numbers = #tpu.dot_dimension_numbers<[1], [0], [0], [1], [0, 0, 1, 1], [], []>} : vector<4x64xbf16>, vector<64x64xbf16>, vector<4x64xf32> -> vector<4x64xf32>
      %c0_45 = arith.constant 0 : index
      %c0_46 = arith.constant 0 : index
      %56 = vector.load %arg16[%c0_45, %c0_46] : memref<1x64xf32, #tpu.memory_space<vmem>>, vector<1x64xf32>
      %57 = vector.broadcast %56 : vector<1x64xf32> to vector<4x64xf32>
      %58 = arith.addf %55, %57 : vector<4x64xf32>
      %cst_47 = arith.constant dense<0.000000e+00> : vector<4x4xf32>
      %59 = tpu.matmul %48, %53, %cst_47 {dimension_numbers = #tpu.dot_dimension_numbers<[1], [1], [0], [0], [0, 0, 1, 0], [], []>} : vector<4x64xf32>, vector<4x64xf32>, vector<4x4xf32> -> vector<4x4xf32>
      %cst_48 = arith.constant 1.250000e-01 : f32
      %60 = vector.broadcast %cst_48 : f32 to vector<4x4xf32>
      %61 = arith.mulf %59, %60 : vector<4x4xf32>
      %cst_49 = arith.constant dense<0xFF800000> : vector<4xf32>
      %62 = vector.multi_reduction <maximumf>, %61, %cst_49 [1] : vector<4x4xf32> to vector<4xf32>
      %63 = vector.shape_cast %62 : vector<4xf32> to vector<4x1xf32>
      %64 = vector.broadcast %63 : vector<4x1xf32> to vector<4x4xf32>
      %65 = arith.subf %61, %64 : vector<4x4xf32>
      %66 = math.exp %65 : vector<4x4xf32>
      %cst_50 = arith.constant dense<0.000000e+00> : vector<4xf32>
      %67 = vector.multi_reduction <add>, %66, %cst_50 [1] : vector<4x4xf32> to vector<4xf32>
      %68 = vector.shape_cast %67 : vector<4xf32> to vector<4x1xf32>
      %69 = vector.broadcast %68 : vector<4x1xf32> to vector<4x4xf32>
      %70 = arith.divf %66, %69 : vector<4x4xf32>
      %cst_51 = arith.constant dense<0.000000e+00> : vector<4x64xf32>
      %71 = tpu.matmul %70, %58, %cst_51 {dimension_numbers = #tpu.dot_dimension_numbers<[1], [0], [0], [1], [0, 0, 1, 1], [], []>} : vector<4x4xf32>, vector<4x64xf32>, vector<4x64xf32> -> vector<4x64xf32>
      %c0_52 = arith.constant 0 : index
      %c0_53 = arith.constant 0 : index
      %72 = vector.load %arg17[%c0_52, %c0_53] : memref<64x1xf32, #tpu.memory_space<vmem>>, vector<64x1xf32>
      %cst_54 = arith.constant dense<0.000000e+00> : vector<4x1xf32>
      %73 = tpu.matmul %71, %72, %cst_54 {dimension_numbers = #tpu.dot_dimension_numbers<[1], [0], [0], [1], [0, 0, 1, 1], [], []>} : vector<4x64xf32>, vector<64x1xf32>, vector<4x1xf32> -> vector<4x1xf32>
      %c0_55 = arith.constant 0 : index
      %c0_56 = arith.constant 0 : index
      %74 = vector.load %arg18[%c0_55, %c0_56] : memref<1x1xf32, #tpu.memory_space<vmem>>, vector<1x1xf32>
      %75 = vector.broadcast %74 : vector<1x1xf32> to vector<4x1xf32>
      %76 = arith.addf %73, %75 : vector<4x1xf32>
      %77 = arith.negf %76 : vector<4x1xf32>
      %78 = math.exp %77 : vector<4x1xf32>
      %cst_57 = arith.constant 1.000000e+00 : f32
      %79 = vector.broadcast %cst_57 : f32 to vector<4x1xf32>
      %80 = arith.addf %79, %78 : vector<4x1xf32>
      %81 = arith.divf %79, %80 : vector<4x1xf32>
      %c0_58 = arith.constant 0 : index
      %c0_59 = arith.constant 0 : index
      %82 = vector.load %arg19[%c0_58, %c0_59] : memref<4x1xf32, #tpu.memory_space<vmem>>, vector<4x1xf32>
      tpu.vector_store %arg19[%c0_58, %c0_59], %81 {strides = array<i32>} : memref<4x1xf32, #tpu.memory_space<vmem>>, vector<4x1xf32>,
    } else {
    }
    return
  }
  func.func @transform_0(%arg0: i32) -> (i32, i32) {
    %c0_i32 = arith.constant 0 : i32
    %c0_i32_0 = arith.constant 0 : i32
    return %c0_i32, %arg0 : i32, i32
  }
  func.func @transform_1(%arg0: i32) -> (i32, i32) {
    %c0_i32 = arith.constant 0 : i32
    %c0_i32_0 = arith.constant 0 : i32
    return %arg0, %c0_i32 : i32, i32
  }
  func.func @transform_2(%arg0: i32) -> (i32, i32) {
    %c0_i32 = arith.constant 0 : i32
    %c0_i32_0 = arith.constant 0 : i32
    %c0_i32_1 = arith.constant 0 : i32
    return %c0_i32, %c0_i32_0 : i32, i32
  }
  func.func @transform_3(%arg0: i32) -> (i32, i32) {
    %c0_i32 = arith.constant 0 : i32
    %c0_i32_0 = arith.constant 0 : i32
    %c0_i32_1 = arith.constant 0 : i32
    return %c0_i32, %c0_i32_0 : i32, i32
  }
  func.func @transform_4(%arg0: i32) -> (i32, i32) {
    %c0_i32 = arith.constant 0 : i32
    %c0_i32_0 = arith.constant 0 : i32
    %c0_i32_1 = arith.constant 0 : i32
    return %c0_i32, %c0_i32_0 : i32, i32
  }
  func.func @transform_5(%arg0: i32) -> (i32, i32) {
    %c0_i32 = arith.constant 0 : i32
    %c0_i32_0 = arith.constant 0 : i32
    %c0_i32_1 = arith.constant 0 : i32
    return %c0_i32, %c0_i32_0 : i32, i32
  }
  func.func @transform_6(%arg0: i32) -> (i32, i32) {
    %c0_i32 = arith.constant 0 : i32
    %c0_i32_0 = arith.constant 0 : i32
    %c0_i32_1 = arith.constant 0 : i32
    return %c0_i32, %c0_i32_0 : i32, i32
  }
  func.func @transform_7(%arg0: i32) -> (i32, i32) {
    %c0_i32 = arith.constant 0 : i32
    %c0_i32_0 = arith.constant 0 : i32
    %c0_i32_1 = arith.constant 0 : i32
    return %c0_i32, %c0_i32_0 : i32, i32
  }
  func.func @transform_8(%arg0: i32) -> (i32, i32) {
    %c0_i32 = arith.constant 0 : i32
    %c0_i32_0 = arith.constant 0 : i32
    %c0_i32_1 = arith.constant 0 : i32
    return %c0_i32, %c0_i32_0 : i32, i32
  }
  func.func @transform_9(%arg0: i32) -> (i32, i32) {
    %c0_i32 = arith.constant 0 : i32
    %c0_i32_0 = arith.constant 0 : i32
    %c0_i32_1 = arith.constant 0 : i32
    return %c0_i32, %c0_i32_0 : i32, i32
  }
  func.func @transform_10(%arg0: i32) -> (i32, i32) {
    %c0_i32 = arith.constant 0 : i32
    %c0_i32_0 = arith.constant 0 : i32
    %c0_i32_1 = arith.constant 0 : i32
    return %c0_i32, %c0_i32_0 : i32, i32
  }
  func.func @transform_11(%arg0: i32) -> (i32, i32) {
    %c0_i32 = arith.constant 0 : i32
    %c0_i32_0 = arith.constant 0 : i32
    %c0_i32_1 = arith.constant 0 : i32
    return %c0_i32, %c0_i32_0 : i32, i32
  }
  func.func @transform_12(%arg0: i32) -> (i32, i32) {
    %c0_i32 = arith.constant 0 : i32
    %c0_i32_0 = arith.constant 0 : i32
    %c0_i32_1 = arith.constant 0 : i32
    return %c0_i32, %c0_i32_0 : i32, i32
  }
  func.func @transform_13(%arg0: i32) -> (i32, i32) {
    %c0_i32 = arith.constant 0 : i32
    %c0_i32_0 = arith.constant 0 : i32
    %c0_i32_1 = arith.constant 0 : i32
    return %c0_i32, %c0_i32_0 : i32, i32
  }
  func.func @transform_14(%arg0: i32) -> (i32, i32) {
    %c0_i32 = arith.constant 0 : i32
    %c0_i32_0 = arith.constant 0 : i32
    %c0_i32_1 = arith.constant 0 : i32
    return %c0_i32, %c0_i32_0 : i32, i32
  }
  func.func @transform_15(%arg0: i32) -> (i32, i32) {
    %c0_i32 = arith.constant 0 : i32
    %c0_i32_0 = arith.constant 0 : i32
    %c0_i32_1 = arith.constant 0 : i32
    return %c0_i32, %c0_i32_0 : i32, i32
  }
  func.func @transform_16(%arg0: i32) -> (i32, i32) {
    %c0_i32 = arith.constant 0 : i32
    %c0_i32_0 = arith.constant 0 : i32
    %c0_i32_1 = arith.constant 0 : i32
    return %c0_i32, %c0_i32_0 : i32, i32
  }
  func.func @transform_17(%arg0: i32) -> (i32, i32) {
    %c0_i32 = arith.constant 0 : i32
    %c0_i32_0 = arith.constant 0 : i32
    %c0_i32_1 = arith.constant 0 : i32
    return %c0_i32, %c0_i32_0 : i32, i32
  }
  func.func @transform_18(%arg0: i32) -> (i32, i32) {
    %c0_i32 = arith.constant 0 : i32
    %c0_i32_0 = arith.constant 0 : i32
    %c0_i32_1 = arith.constant 0 : i32
    return %c0_i32, %c0_i32_0 : i32, i32
  }
}

</mosaic_0001>

<llo_original>
// kernel: cnn_forward.2
$region0: #{cnn_forward.2}
  #allocation0 [shape = 'u32[]', space=smem, size = 0x4, offset = 0x4, fixed_abs, tag = 'smem constant byte address 0x4 - core index']
  #allocation1 [shape = 'u32[144,128]{1,0:T(1,128)}', space=vmem, size = 0x12000, scoped, tag = 'internal scratch']
  #allocation2 [shape = 'f32[150,128]{1,0:T(8,128)}', space=vmem, size = 0x13000, scoped, tag = 'scratch operand']
  #allocation3 [shape = 'f32[76,256]{1,0:T(8,128)}', space=vmem, size = 0x14000, scoped, tag = 'scratch operand']
  %s0 = inlined_call_operand.vmem [shape: f32[4,296,3], index: 0, kind: input, shape index: {}]
  %s1 = inlined_call_operand.hbm [shape: f32[148,295], index: 1, kind: input, shape index: {}]
  %s2 = inlined_call_operand.vmem [shape: f32[74,147], index: 2, kind: input, shape index: {}]
  %s3 = inlined_call_operand.hbm [shape: f32[37,73], index: 3, kind: input, shape index: {}]
  %s4 = inlined_call_operand.hbm [shape: f32[3,128], index: 4, kind: input, shape index: {}]
  %s5 = inlined_call_operand.hbm [shape: f32[1,128], index: 5, kind: input, shape index: {}]
  %s6 = inlined_call_operand.hbm [shape: f32[1,128], index: 6, kind: input, shape index: {}]
  %s7 = inlined_call_operand.hbm [shape: bf16[3,128,256], index: 7, kind: input, shape index: {}]
  %s8 = inlined_call_operand.hbm [shape: f32[1,256], index: 8, kind: input, shape index: {}]
  %s9 = inlined_call_operand.hbm [shape: f32[1,256], index: 9, kind: input, shape index: {}]
  %s10 = inlined_call_operand.hbm [shape: bf16[3,256,512], index: 10, kind: input, shape index: {}]
  %s11 = inlined_call_operand.hbm [shape: f32[1,512], index: 11, kind: input, shape index: {}]
  %s12 = inlined_call_operand.hbm [shape: f32[1,512], index: 12, kind: input, shape index: {}]
  %s13 = inlined_call_operand.vmem [shape: bf16[4,37,512], index: 13, kind: output, shape index: {}]
  %s14 = sld [smem:[#allocation0]]
  $region129: #{cnn_forward.2} parent=0
    _
  %s16 = ssub.s32 1, %s14
  %s17 = scalar_select 0, %s16, %s14
  $region1: #{cnn_forward.2} parent=0
    #allocation4 [shape = 'u8[233472]{0}', space=vmem, size = 0x39000, scoped, tag = 'input window, operand 1, single buffered']
    #allocation5 [shape = 's32[2]{0}', space=sflag, size = 0x8, scoped, tag = 'scoped memory for cnn_forward.2']
    #allocation6 [shape = 'u8[20480]{0}', space=vmem, size = 0x5000, scoped, tag = 'input window, operand 3, single buffered']
    #allocation7 [shape = 's32[1]{0}', space=sflag, size = 0x4, scoped, tag = 'scoped memory for cnn_forward.2']
    #allocation8 [shape = 'u8[2048]{0}', space=vmem, size = 0x800, scoped, tag = 'input window, operand 4, single buffered']
    #allocation9 [shape = 'u8[512]{0}', space=vmem, size = 0x400, scoped, tag = 'input window, operand 5, single buffered']
    #allocation10 [shape = 's32[1]{0}', space=sflag, size = 0x4, scoped, tag = 'scoped memory for cnn_forward.2']
    #allocation11 [shape = 'u8[512]{0}', space=vmem, size = 0x400, scoped, tag = 'input window, operand 6, single buffered']
    #allocation12 [shape = 'u8[196608]{0}', space=vmem, size = 0x30000, scoped, tag = 'input window, operand 7, single buffered']
    #allocation13 [shape = 's32[1]{0}', space=sflag, size = 0x4, scoped, tag = 'scoped memory for cnn_forward.2']
    #allocation14 [shape = 'u8[1024]{0}', space=vmem, size = 0x400, scoped, tag = 'input window, operand 8, single buffered']
    #allocation15 [shape = 'u8[1024]{0}', space=vmem, size = 0x400, scoped, tag = 'input window, operand 9, single buffered']
    #allocation16 [shape = 's32[1]{0}', space=sflag, size = 0x4, scoped, tag = 'scoped memory for cnn_forward.2']
    #allocation17 [shape = 'u8[786432]{0}', space=vmem, size = 0xc0000, scoped, tag = 'input window, operand 10, single buffered']
    #allocation18 [shape = 'u8[2048]{0}', space=vmem, size = 0x800, scoped, tag = 'input window, operand 11, single buffered']
    #allocation19 [shape = 's32[1]{0}', space=sflag, size = 0x4, scoped, tag = 'scoped memory for cnn_forward.2']
    #allocation20 [shape = 'u8[2048]{0}', space=vmem, size = 0x800, scoped, tag = 'input window, operand 12, single buffered']
    %18 = vsyncpa [#allocation5], 0
    %19 = vsyncpa [#allocation7], 0
    %20 = vsyncpa [#allocation10], 0
    %21 = vsyncpa [#allocation13], 0
    %22 = vsyncpa [#allocation16], 0
    %23 = vsyncpa [#allocation19], 0
    loop: start=0, step=1, limit=6
    $region2: #{cnn_forward.2} parent=1 // loop_pre_header
      _
    $region3: #{cnn_forward.2} parent=1 // loop_header
      %s25 = sphi 0, %s29
      %p26 = scmp.ge.s32.totalorder %s25, 6
      %s35 = sphi 0, %s37
      %s38 = sphi 0, %s35
      %s39 = sphi 0, %s38
      %s55 = sphi 0, %s39
      %s59 = sphi 0, %s59
      %s61 = sphi 0, %s59
      %s62 = sphi 0, %s61
      %s76 = sphi 0, %s62
      %s80 = sphi 0, %s80
      %s82 = sphi 0, %s80
      %s83 = sphi 0, %s82
      %s97 = sphi 0, %s83
      %s101 = sphi 0, %s101
      %s103 = sphi 0, %s101
      %s104 = sphi 0, %s103
      %s118 = sphi 0, %s104
      %s122 = sphi 0, %s122
      %s124 = sphi 0, %s122
      %s125 = sphi 0, %s124
      %s139 = sphi 0, %s125
      %s143 = sphi 0, %s143
      %s145 = sphi 0, %s143
      %s146 = sphi 0, %s145
      %s160 = sphi 0, %s146
      %s164 = sphi 0, %s164
      %s166 = sphi 0, %s164
      %s167 = sphi 0, %s166
      %s181 = sphi 0, %s167
      %s185 = sphi 0, %s185
      %s187 = sphi 0, %s185
      %s188 = sphi 0, %s187
      %s202 = sphi 0, %s188
      %s206 = sphi 0, %s206
      %s208 = sphi 0, %s206
      %s209 = sphi 0, %s208
      %s223 = sphi 0, %s209
      %s227 = sphi 0, %s227
      %s229 = sphi 0, %s227
      %s230 = sphi 0, %s229
      %s244 = sphi 0, %s230
      %s248 = sphi 0, %s248
      %s250 = sphi 0, %s248
      %s251 = sphi 0, %s250
      %s265 = sphi 0, %s251
      %s269 = sphi 0, %s269
      %s271 = sphi 0, %s269
      %s272 = sphi 0, %s271
      %s286 = sphi 0, %s272
      %s290 = sphi 0, %s290
      %s292 = sphi 0, %s290
      %s293 = sphi 0, %s292
      %s307 = sphi 0, %s293
      %s313 = sphi 0, %s315
      %s316 = sphi 0, %s313
      %s317 = sphi 0, %s316
      %s333 = sphi 0, %s317
    $region4: #{cnn_forward.2} parent=1 // loop_header_branch
      %28 = sbr.rel (%p26) target = $region8
    $region5: #{cnn_forward.2} parent=1 // loop_body
      %s30 = ssub.s32 %s25, 1
      %s31 = ssub.s32 %s25, 2
      %s32 = sadd.s32 %s25, 1
      %s33 = ssub.s32 %s25, %s32
      %p34 = scmp.eq.s32.totalorder %s33, 0
      %s36 = sadd.s32 %s35, 1
      %s37 = scalar_select %p34, %s35, %s36
      %p40 = pneg %p34
      %p41 = scmp.eq.s32.totalorder %s25, 3
      %p42 = por %p40, %p41
      %p43 = scmp.ne.s32.totalorder %s35, %s38
      %p44 = scmp.eq.s32.totalorder %s25, 0
      %p45 = por %p43, %p44
      %p46 = scmp.ne.s32.totalorder %s35, %s38
      %p47 = scmp.eq.s32.totalorder %s30, 3
      %p48 = por %p46, %p47
      %p49 = scmp.ne.s32.totalorder %s38, %s39
      %p50 = scmp.eq.s32.totalorder %s30, 0
      %p51 = por %p49, %p50
      %p52 = scmp.ne.s32.totalorder %s38, %s39
      %p53 = scmp.eq.s32.totalorder %s31, 3
      %p54 = por %p52, %p53
      %p56 = scmp.ne.s32.totalorder %s39, %s55
      %p57 = scmp.eq.s32.totalorder %s31, 0
      %p58 = por %p56, %p57
      %s60 = sadd.s32 %s59, 1
      %p63 = scmp.eq.s32.totalorder %s25, 3
      %p64 = scmp.ne.s32.totalorder %s59, %s61
      %p65 = scmp.eq.s32.totalorder %s25, 0
      %p66 = por %p64, %p65
      %p67 = scmp.ne.s32.totalorder %s59, %s61
      %p68 = scmp.eq.s32.totalorder %s30, 3
      %p69 = por %p67, %p68
      %p70 = scmp.ne.s32.totalorder %s61, %s62
      %p71 = scmp.eq.s32.totalorder %s30, 0
      %p72 = por %p70, %p71
      %p73 = scmp.ne.s32.totalorder %s61, %s62
      %p74 = scmp.eq.s32.totalorder %s31, 3
      %p75 = por %p73, %p74
      %p77 = scmp.ne.s32.totalorder %s62, %s76
      %p78 = scmp.eq.s32.totalorder %s31, 0
      %p79 = por %p77, %p78
      %s81 = sadd.s32 %s80, 1
      %p84 = scmp.eq.s32.totalorder %s25, 3
      %p85 = scmp.ne.s32.totalorder %s80, %s82
      %p86 = scmp.eq.s32.totalorder %s25, 0
      %p87 = por %p85, %p86
      %p88 = scmp.ne.s32.totalorder %s80, %s82
      %p89 = scmp.eq.s32.totalorder %s30, 3
      %p90 = por %p88, %p89
      %p91 = scmp.ne.s32.totalorder %s82, %s83
      %p92 = scmp.eq.s32.totalorder %s30, 0
      %p93 = por %p91, %p92
      %p94 = scmp.ne.s32.totalorder %s82, %s83
      %p95 = scmp.eq.s32.totalorder %s31, 3
      %p96 = por %p94, %p95
      %p98 = scmp.ne.s32.totalorder %s83, %s97
      %p99 = scmp.eq.s32.totalorder %s31, 0
      %p100 = por %p98, %p99
      %s102 = sadd.s32 %s101, 1
      %p105 = scmp.eq.s32.totalorder %s25, 3
      %p106 = scmp.ne.s32.totalorder %s101, %s103
      %p107 = scmp.eq.s32.totalorder %s25, 0
      %p108 = por %p106, %p107
      %p109 = scmp.ne.s32.totalorder %s101, %s103
      %p110 = scmp.eq.s32.totalorder %s30, 3
      %p111 = por %p109, %p110
      %p112 = scmp.ne.s32.totalorder %s103, %s104
      %p113 = scmp.eq.s32.totalorder %s30, 0
      %p114 = por %p112, %p113
      %p115 = scmp.ne.s32.totalorder %s103, %s104
      %p116 = scmp.eq.s32.totalorder %s31, 3
      %p117 = por %p115, %p116
      %p119 = scmp.ne.s32.totalorder %s104, %s118
      %p120 = scmp.eq.s32.totalorder %s31, 0
      %p121 = por %p119, %p120
      %s123 = sadd.s32 %s122, 1
      %p126 = scmp.eq.s32.totalorder %s25, 3
      %p127 = scmp.ne.s32.totalorder %s122, %s124
      %p128 = scmp.eq.s32.totalorder %s25, 0
      %p129 = por %p127, %p128
      %p130 = scmp.ne.s32.totalorder %s122, %s124
      %p131 = scmp.eq.s32.totalorder %s30, 3
      %p132 = por %p130, %p131
      %p133 = scmp.ne.s32.totalorder %s124, %s125
      %p134 = scmp.eq.s32.totalorder %s30, 0
      %p135 = por %p133, %p134
      %p136 = scmp.ne.s32.totalorder %s124, %s125
      %p137 = scmp.eq.s32.totalorder %s31, 3
      %p138 = por %p136, %p137
      %p140 = scmp.ne.s32.totalorder %s125, %s139
      %p141 = scmp.eq.s32.totalorder %s31, 0
      %p142 = por %p140, %p141
      %s144 = sadd.s32 %s143, 1
      %p147 = scmp.eq.s32.totalorder %s25, 3
      %p148 = scmp.ne.s32.totalorder %s143, %s145
      %p149 = scmp.eq.s32.totalorder %s25, 0
      %p150 = por %p148, %p149
      %p151 = scmp.ne.s32.totalorder %s143, %s145
      %p152 = scmp.eq.s32.totalorder %s30, 3
      %p153 = por %p151, %p152
      %p154 = scmp.ne.s32.totalorder %s145, %s146
      %p155 = scmp.eq.s32.totalorder %s30, 0
      %p156 = por %p154, %p155
      %p157 = scmp.ne.s32.totalorder %s145, %s146
      %p158 = scmp.eq.s32.totalorder %s31, 3
      %p159 = por %p157, %p158
      %p161 = scmp.ne.s32.totalorder %s146, %s160
      %p162 = scmp.eq.s32.totalorder %s31, 0
      %p163 = por %p161, %p162
      %s165 = sadd.s32 %s164, 1
      %p168 = scmp.eq.s32.totalorder %s25, 3
      %p169 = scmp.ne.s32.totalorder %s164, %s166
      %p170 = scmp.eq.s32.totalorder %s25, 0
      %p171 = por %p169, %p170
      %p172 = scmp.ne.s32.totalorder %s164, %s166
      %p173 = scmp.eq.s32.totalorder %s30, 3
      %p174 = por %p172, %p173
      %p175 = scmp.ne.s32.totalorder %s166, %s167
      %p176 = scmp.eq.s32.totalorder %s30, 0
      %p177 = por %p175, %p176
      %p178 = scmp.ne.s32.totalorder %s166, %s167
      %p179 = scmp.eq.s32.totalorder %s31, 3
      %p180 = por %p178, %p179
      %p182 = scmp.ne.s32.totalorder %s167, %s181
      %p183 = scmp.eq.s32.totalorder %s31, 0
      %p184 = por %p182, %p183
      %s186 = sadd.s32 %s185, 1
      %p189 = scmp.eq.s32.totalorder %s25, 3
      %p190 = scmp.ne.s32.totalorder %s185, %s187
      %p191 = scmp.eq.s32.totalorder %s25, 0
      %p192 = por %p190, %p191
      %p193 = scmp.ne.s32.totalorder %s185, %s187
      %p194 = scmp.eq.s32.totalorder %s30, 3
      %p195 = por %p193, %p194
      %p196 = scmp.ne.s32.totalorder %s187, %s188
      %p197 = scmp.eq.s32.totalorder %s30, 0
      %p198 = por %p196, %p197
      %p199 = scmp.ne.s32.totalorder %s187, %s188
      %p200 = scmp.eq.s32.totalorder %s31, 3
      %p201 = por %p199, %p200
      %p203 = scmp.ne.s32.totalorder %s188, %s202
      %p204 = scmp.eq.s32.totalorder %s31, 0
      %p205 = por %p203, %p204
      %s207 = sadd.s32 %s206, 1
      %p210 = scmp.eq.s32.totalorder %s25, 3
      %p211 = scmp.ne.s32.totalorder %s206, %s208
      %p212 = scmp.eq.s32.totalorder %s25, 0
      %p213 = por %p211, %p212
      %p214 = scmp.ne.s32.totalorder %s206, %s208
      %p215 = scmp.eq.s32.totalorder %s30, 3
      %p216 = por %p214, %p215
      %p217 = scmp.ne.s32.totalorder %s208, %s209
      %p218 = scmp.eq.s32.totalorder %s30, 0
      %p219 = por %p217, %p218
      %p220 = scmp.ne.s32.totalorder %s208, %s209
      %p221 = scmp.eq.s32.totalorder %s31, 3
      %p222 = por %p220, %p221
      %p224 = scmp.ne.s32.totalorder %s209, %s223
      %p225 = scmp.eq.s32.totalorder %s31, 0
      %p226 = por %p224, %p225
      %s228 = sadd.s32 %s227, 1
      %p231 = scmp.eq.s32.totalorder %s25, 3
      %p232 = scmp.ne.s32.totalorder %s227, %s229
      %p233 = scmp.eq.s32.totalorder %s25, 0
      %p234 = por %p232, %p233
      %p235 = scmp.ne.s32.totalorder %s227, %s229
      %p236 = scmp.eq.s32.totalorder %s30, 3
      %p237 = por %p235, %p236
      %p238 = scmp.ne.s32.totalorder %s229, %s230
      %p239 = scmp.eq.s32.totalorder %s30, 0
      %p240 = por %p238, %p239
      %p241 = scmp.ne.s32.totalorder %s229, %s230
      %p242 = scmp.eq.s32.totalorder %s31, 3
      %p243 = por %p241, %p242
      %p245 = scmp.ne.s32.totalorder %s230, %s244
      %p246 = scmp.eq.s32.totalorder %s31, 0
      %p247 = por %p245, %p246
      %s249 = sadd.s32 %s248, 1
      %p252 = scmp.eq.s32.totalorder %s25, 3
      %p253 = scmp.ne.s32.totalorder %s248, %s250
      %p254 = scmp.eq.s32.totalorder %s25, 0
      %p255 = por %p253, %p254
      %p256 = scmp.ne.s32.totalorder %s248, %s250
      %p257 = scmp.eq.s32.totalorder %s30, 3
      %p258 = por %p256, %p257
      %p259 = scmp.ne.s32.totalorder %s250, %s251
      %p260 = scmp.eq.s32.totalorder %s30, 0
      %p261 = por %p259, %p260
      %p262 = scmp.ne.s32.totalorder %s250, %s251
      %p263 = scmp.eq.s32.totalorder %s31, 3
      %p264 = por %p262, %p263
      %p266 = scmp.ne.s32.totalorder %s251, %s265
      %p267 = scmp.eq.s32.totalorder %s31, 0
      %p268 = por %p266, %p267
      %s270 = sadd.s32 %s269, 1
      %p273 = scmp.eq.s32.totalorder %s25, 3
      %p274 = scmp.ne.s32.totalorder %s269, %s271
      %p275 = scmp.eq.s32.totalorder %s25, 0
      %p276 = por %p274, %p275
      %p277 = scmp.ne.s32.totalorder %s269, %s271
      %p278 = scmp.eq.s32.totalorder %s30, 3
      %p279 = por %p277, %p278
      %p280 = scmp.ne.s32.totalorder %s271, %s272
      %p281 = scmp.eq.s32.totalorder %s30, 0
      %p282 = por %p280, %p281
      %p283 = scmp.ne.s32.totalorder %s271, %s272
      %p284 = scmp.eq.s32.totalorder %s31, 3
      %p285 = por %p283, %p284
      %p287 = scmp.ne.s32.totalorder %s272, %s286
      %p288 = scmp.eq.s32.totalorder %s31, 0
      %p289 = por %p287, %p288
      %s291 = sadd.s32 %s290, 1
      %p294 = scmp.eq.s32.totalorder %s25, 3
      %p295 = scmp.ne.s32.totalorder %s290, %s292
      %p296 = scmp.eq.s32.totalorder %s25, 0
      %p297 = por %p295, %p296
      %p298 = scmp.ne.s32.totalorder %s290, %s292
      %p299 = scmp.eq.s32.totalorder %s30, 3
      %p300 = por %p298, %p299
      %p301 = scmp.ne.s32.totalorder %s292, %s293
      %p302 = scmp.eq.s32.totalorder %s30, 0
      %p303 = por %p301, %p302
      %p304 = scmp.ne.s32.totalorder %s292, %s293
      %p305 = scmp.eq.s32.totalorder %s31, 3
      %p306 = por %p304, %p305
      %p308 = scmp.ne.s32.totalorder %s293, %s307
      %p309 = scmp.eq.s32.totalorder %s31, 0
      %p310 = por %p308, %p309
      %s311 = ssub.s32 %s25, %s32
      %p312 = scmp.eq.s32.totalorder %s311, 0
      %s314 = sadd.s32 %s313, 1
      %s315 = scalar_select %p312, %s313, %s314
      %p318 = pneg %p312
      %p319 = scmp.eq.s32.totalorder %s25, 3
      %p320 = por %p318, %p319
      %p321 = scmp.ne.s32.totalorder %s313, %s316
      %p322 = scmp.eq.s32.totalorder %s25, 0
      %p323 = por %p321, %p322
      %p324 = scmp.ne.s32.totalorder %s313, %s316
      %p325 = scmp.eq.s32.totalorder %s30, 3
      %p326 = por %p324, %p325
      %p327 = scmp.ne.s32.totalorder %s316, %s317
      %p328 = scmp.eq.s32.totalorder %s30, 0
      %p329 = por %p327, %p328
      %p330 = scmp.ne.s32.totalorder %s316, %s317
      %p331 = scmp.eq.s32.totalorder %s31, 3
      %p332 = por %p330, %p331
      %p334 = scmp.ne.s32.totalorder %s317, %s333
      %p335 = scmp.eq.s32.totalorder %s31, 0
      %p336 = por %p334, %p335
      %p337 = scmp.le.s32.totalorder 1, %s25
      %p338 = scmp.lt.s32.totalorder %s25, 5
      %p339 = pnand %p337, %p338
      %p340 = pneg %p339
      // Predicated region
      $region9: #{cnn_forward.2} parent=5 // pred_check
        _
      $region10: #{cnn_forward.2} parent=5 // pred_check_branch
        %342 = sbr.rel (%p339) target = $region12
      $region11: #{cnn_forward.2} parent=5 // pred_region
        %s343 = ssub.s32 %s25, 1
        // Predicated region
        $region13: #{cnn_forward.2} parent=11 // pred_check
          %p344 = pneg %p72
        $region14: #{cnn_forward.2} parent=11 // pred_check_branch
          %346 = sbr.rel (%p344) target = $region16
        $region15: #{cnn_forward.2} parent=11 // pred_region
          %s348 = ssub.s32 7296, 7296
          %349 = vsyncadd [#allocation5], %s348
          %s350 = sshll.u32 [#allocation4], 4
          %s351 = int_to_ptr.vmem [resolvable:$true] %s350
          %356 = dma.hbm_to_vmem [thread:$0]  %s1, 7296, %s351, [#allocation5], 384, 384, 24
        $region16: #{cnn_forward.2} parent=11 // pred_fallthru
          _
        // Predicated region
        $region17: #{cnn_forward.2} parent=11 // pred_check
          %p357 = pneg %p93
        $region18: #{cnn_forward.2} parent=11 // pred_check_branch
          %359 = sbr.rel (%p357) target = $region20
        $region19: #{cnn_forward.2} parent=11 // pred_region
          _
        $region20: #{cnn_forward.2} parent=11 // pred_fallthru
          _
        // Predicated region
        $region21: #{cnn_forward.2} parent=11 // pred_check
          %p360 = pneg %p114
        $region22: #{cnn_forward.2} parent=11 // pred_check_branch
          %362 = sbr.rel (%p360) target = $region24
        $region23: #{cnn_forward.2} parent=11 // pred_region
          %s364 = ssub.s32 640, 640
          %365 = vsyncadd [#allocation7], %s364
          %s366 = sshll.u32 [#allocation6], 4
          %s367 = int_to_ptr.vmem [resolvable:$true] %s366
          %372 = dma.hbm_to_vmem [thread:$0]  %s3, 640, %s367, [#allocation7], 128, 128, 8
        $region24: #{cnn_forward.2} parent=11 // pred_fallthru
          _
        // Predicated region
        $region25: #{cnn_forward.2} parent=11 // pred_check
          %p373 = pneg %p135
        $region26: #{cnn_forward.2} parent=11 // pred_check_branch
          %375 = sbr.rel (%p373) target = $region28
        $region27: #{cnn_forward.2} parent=11 // pred_region
          %s377 = ssub.s32 64, 64
          %378 = vsyncadd [#allocation7], %s377
          %s380 = sshll.u32 [#allocation8], 4
          %s381 = int_to_ptr.vmem [resolvable:$true] %s380
          %383 = dma.hbm_to_vmem [thread:$0]  %s4, 64, %s381, [#allocation7]
        $region28: #{cnn_forward.2} parent=11 // pred_fallthru
          _
        // Predicated region
        $region29: #{cnn_forward.2} parent=11 // pred_check
          %p384 = pneg %p156
        $region30: #{cnn_forward.2} parent=11 // pred_check_branch
          %386 = sbr.rel (%p384) target = $region32
        $region31: #{cnn_forward.2} parent=11 // pred_region
          %s388 = ssub.s32 16, 16
          %389 = vsyncadd [#allocation10], %s388
          %s391 = sshll.u32 [#allocation9], 4
          %s392 = int_to_ptr.vmem [resolvable:$true] %s391
          %394 = dma.hbm_to_vmem [thread:$0]  %s5, 16, %s392, [#allocation10]
        $region32: #{cnn_forward.2} parent=11 // pred_fallthru
          _
        // Predicated region
        $region33: #{cnn_forward.2} parent=11 // pred_check
          %p395 = pneg %p177
        $region34: #{cnn_forward.2} parent=11 // pred_check_branch
          %397 = sbr.rel (%p395) target = $region36
        $region35: #{cnn_forward.2} parent=11 // pred_region
          %s399 = ssub.s32 16, 16
          %400 = vsyncadd [#allocation10], %s399
          %s402 = sshll.u32 [#allocation11], 4
          %s403 = int_to_ptr.vmem [resolvable:$true] %s402
          %405 = dma.hbm_to_vmem [thread:$0]  %s6, 16, %s403, [#allocation10]
        $region36: #{cnn_forward.2} parent=11 // pred_fallthru
          _
        // Predicated region
        $region37: #{cnn_forward.2} parent=11 // pred_check
          %p406 = pneg %p198
        $region38: #{cnn_forward.2} parent=11 // pred_check_branch
          %408 = sbr.rel (%p406) target = $region40
        $region39: #{cnn_forward.2} parent=11 // pred_region
          %s410 = ssub.s32 6144, 6144
          %411 = vsyncadd [#allocation13], %s410
          %s412 = sshll.u32 [#allocation12], 4
          %s413 = int_to_ptr.vmem [resolvable:$true] %s412
          %418 = dma.hbm_to_vmem [thread:$0]  %s7, 6144, %s413, [#allocation13], 128, 128, 8
        $region40: #{cnn_forward.2} parent=11 // pred_fallthru
          _
        // Predicated region
        $region41: #{cnn_forward.2} parent=11 // pred_check
          %p419 = pneg %p219
        $region42: #{cnn_forward.2} parent=11 // pred_check_branch
          %421 = sbr.rel (%p419) target = $region44
        $region43: #{cnn_forward.2} parent=11 // pred_region
          %s423 = ssub.s32 32, 32
          %424 = vsyncadd [#allocation13], %s423
          %s426 = sshll.u32 [#allocation14], 4
          %s427 = int_to_ptr.vmem [resolvable:$true] %s426
          %429 = dma.hbm_to_vmem [thread:$0]  %s8, 32, %s427, [#allocation13]
        $region44: #{cnn_forward.2} parent=11 // pred_fallthru
          _
        // Predicated region
        $region45: #{cnn_forward.2} parent=11 // pred_check
          %p430 = pneg %p240
        $region46: #{cnn_forward.2} parent=11 // pred_check_branch
          %432 = sbr.rel (%p430) target = $region48
        $region47: #{cnn_forward.2} parent=11 // pred_region
          %s434 = ssub.s32 32, 32
          %435 = vsyncadd [#allocation16], %s434
          %s437 = sshll.u32 [#allocation15], 4
          %s438 = int_to_ptr.vmem [resolvable:$true] %s437
          %440 = dma.hbm_to_vmem [thread:$0]  %s9, 32, %s438, [#allocation16]
        $region48: #{cnn_forward.2} parent=11 // pred_fallthru
          _
        // Predicated region
        $region49: #{cnn_forward.2} parent=11 // pred_check
          %p441 = pneg %p261
        $region50: #{cnn_forward.2} parent=11 // pred_check_branch
          %443 = sbr.rel (%p441) target = $region52
        $region51: #{cnn_forward.2} parent=11 // pred_region
          %s445 = ssub.s32 24576, 24576
          %446 = vsyncadd [#allocation16], %s445
          %s447 = sshll.u32 [#allocation17], 4
          %s448 = int_to_ptr.vmem [resolvable:$true] %s447
          %453 = dma.hbm_to_vmem [thread:$0]  %s10, 24576, %s448, [#allocation16], 256, 256, 16
        $region52: #{cnn_forward.2} parent=11 // pred_fallthru
          _
        // Predicated region
        $region53: #{cnn_forward.2} parent=11 // pred_check
          %p454 = pneg %p282
        $region54: #{cnn_forward.2} parent=11 // pred_check_branch
          %456 = sbr.rel (%p454) target = $region56
        $region55: #{cnn_forward.2} parent=11 // pred_region
          %s458 = ssub.s32 64, 64
          %459 = vsyncadd [#allocation19], %s458
          %s461 = sshll.u32 [#allocation18], 4
          %s462 = int_to_ptr.vmem [resolvable:$true] %s461
          %464 = dma.hbm_to_vmem [thread:$0]  %s11, 64, %s462, [#allocation19]
        $region56: #{cnn_forward.2} parent=11 // pred_fallthru
          _
        // Predicated region
        $region57: #{cnn_forward.2} parent=11 // pred_check
          %p465 = pneg %p303
        $region58: #{cnn_forward.2} parent=11 // pred_check_branch
          %467 = sbr.rel (%p465) target = $region60
        $region59: #{cnn_forward.2} parent=11 // pred_region
          %s469 = ssub.s32 64, 64
          %470 = vsyncadd [#allocation19], %s469
          %s472 = sshll.u32 [#allocation20], 4
          %s473 = int_to_ptr.vmem [resolvable:$true] %s472
          %475 = dma.hbm_to_vmem [thread:$0]  %s12, 64, %s473, [#allocation19]
        $region60: #{cnn_forward.2} parent=11 // pred_fallthru
          _
      $region12: #{cnn_forward.2} parent=5 // pred_fallthru
        _
      %p476 = scmp.lt.s32.totalorder %s25, 4
      // Predicated region
      $region61: #{cnn_forward.2} parent=5 // pred_check
        %p477 = pneg %p476
      $region62: #{cnn_forward.2} parent=5 // pred_check_branch
        %479 = sbr.rel (%p477) target = $region64
      $region63: #{cnn_forward.2} parent=5 // pred_region
        // Predicated region
        $region65: #{cnn_forward.2} parent=63 // pred_check
          %p480 = pneg %p45
        $region66: #{cnn_forward.2} parent=63 // pred_check_branch
          %482 = sbr.rel (%p480) target = $region68
        $region67: #{cnn_forward.2} parent=63 // pred_region
          %p483 = scmp.lt.s32.totalorder %s25, 3
          %s484 = scalar_select %p483, %s25, 3
          %s485 = smul.addr %s484, 37
          %s486 = smul.addr %s485, 8
          %s487 = scalar_lea.vmem %s0, %s486
        $region68: #{cnn_forward.2} parent=63 // pred_fallthru
          _
      $region64: #{cnn_forward.2} parent=5 // pred_fallthru
        _
      %p488 = scmp.le.s32.totalorder 1, %s25
      %p489 = scmp.lt.s32.totalorder %s25, 5
      %p490 = pnand %p488, %p489
      %p491 = pneg %p490
      // Predicated region
      $region69: #{cnn_forward.2} parent=5 // pred_check
        _
      $region70: #{cnn_forward.2} parent=5 // pred_check_branch
        %493 = sbr.rel (%p490) target = $region72
      $region71: #{cnn_forward.2} parent=5 // pred_region
        %s494 = ssub.s32 %s25, 1
        // Predicated region
        $region73: #{cnn_forward.2} parent=71 // pred_check
          %p495 = pneg %p72
        $region74: #{cnn_forward.2} parent=71 // pred_check_branch
          %497 = sbr.rel (%p495) target = $region76
        $region75: #{cnn_forward.2} parent=71 // pred_region
          %498 = dma.done [#allocation5], 7296
        $region76: #{cnn_forward.2} parent=71 // pred_fallthru
          _
        // Predicated region
        $region77: #{cnn_forward.2} parent=71 // pred_check
          %p499 = pneg %p114
        $region78: #{cnn_forward.2} parent=71 // pred_check_branch
          %501 = sbr.rel (%p499) target = $region80
        $region79: #{cnn_forward.2} parent=71 // pred_region
          %502 = dma.done [#allocation7], 640
        $region80: #{cnn_forward.2} parent=71 // pred_fallthru
          _
        // Predicated region
        $region81: #{cnn_forward.2} parent=71 // pred_check
          %p503 = pneg %p135
        $region82: #{cnn_forward.2} parent=71 // pred_check_branch
          %505 = sbr.rel (%p503) target = $region84
        $region83: #{cnn_forward.2} parent=71 // pred_region
          %506 = dma.done [#allocation7], 64
        $region84: #{cnn_forward.2} parent=71 // pred_fallthru
          _
        // Predicated region
        $region85: #{cnn_forward.2} parent=71 // pred_check
          %p507 = pneg %p156
        $region86: #{cnn_forward.2} parent=71 // pred_check_branch
          %509 = sbr.rel (%p507) target = $region88
        $region87: #{cnn_forward.2} parent=71 // pred_region
          %510 = dma.done [#allocation10], 16
        $region88: #{cnn_forward.2} parent=71 // pred_fallthru
          _
        // Predicated region
        $region89: #{cnn_forward.2} parent=71 // pred_check
          %p511 = pneg %p177
        $region90: #{cnn_forward.2} parent=71 // pred_check_branch
          %513 = sbr.rel (%p511) target = $region92
        $region91: #{cnn_forward.2} parent=71 // pred_region
          %514 = dma.done [#allocation10], 16
        $region92: #{cnn_forward.2} parent=71 // pred_fallthru
          _
        // Predicated region
        $region93: #{cnn_forward.2} parent=71 // pred_check
          %p515 = pneg %p198
        $region94: #{cnn_forward.2} parent=71 // pred_check_branch
          %517 = sbr.rel (%p515) target = $region96
        $region95: #{cnn_forward.2} parent=71 // pred_region
          %518 = dma.done [#allocation13], 6144
        $region96: #{cnn_forward.2} parent=71 // pred_fallthru
          _
        // Predicated region
        $region97: #{cnn_forward.2} parent=71 // pred_check
          %p519 = pneg %p219
        $region98: #{cnn_forward.2} parent=71 // pred_check_branch
          %521 = sbr.rel (%p519) target = $region100
        $region99: #{cnn_forward.2} parent=71 // pred_region
          %522 = dma.done [#allocation13], 32
        $region100: #{cnn_forward.2} parent=71 // pred_fallthru
          _
        // Predicated region
        $region101: #{cnn_forward.2} parent=71 // pred_check
          %p523 = pneg %p240
        $region102: #{cnn_forward.2} parent=71 // pred_check_branch
          %525 = sbr.rel (%p523) target = $region104
        $region103: #{cnn_forward.2} parent=71 // pred_region
          %526 = dma.done [#allocation16], 32
        $region104: #{cnn_forward.2} parent=71 // pred_fallthru
          _
        // Predicated region
        $region105: #{cnn_forward.2} parent=71 // pred_check
          %p527 = pneg %p261
        $region106: #{cnn_forward.2} parent=71 // pred_check_branch
          %529 = sbr.rel (%p527) target = $region108
        $region107: #{cnn_forward.2} parent=71 // pred_region
          %530 = dma.done [#allocation16], 24576
        $region108: #{cnn_forward.2} parent=71 // pred_fallthru
          _
        // Predicated region
        $region109: #{cnn_forward.2} parent=71 // pred_check
          %p531 = pneg %p282
        $region110: #{cnn_forward.2} parent=71 // pred_check_branch
          %533 = sbr.rel (%p531) target = $region112
        $region111: #{cnn_forward.2} parent=71 // pred_region
          %534 = dma.done [#allocation19], 64
        $region112: #{cnn_forward.2} parent=71 // pred_fallthru
          _
        // Predicated region
        $region113: #{cnn_forward.2} parent=71 // pred_check
          %p535 = pneg %p303
        $region114: #{cnn_forward.2} parent=71 // pred_check_branch
          %537 = sbr.rel (%p535) target = $region116
        $region115: #{cnn_forward.2} parent=71 // pred_region
          %538 = dma.done [#allocation19], 64
        $region116: #{cnn_forward.2} parent=71 // pred_fallthru
          _
        %p539 = scmp.lt.s32.totalorder %s30, 3
        %s540 = scalar_select %p539, %s30, 3
        %s541 = smul.addr %s540, 37
        %s542 = smul.addr %s541, 8
        %s543 = scalar_lea.vmem %s0, %s542
        %p544 = pneg %p51
        %p545 = pneg %p48
        %p546 = pneg %p72
        %p547 = pneg %p69
        %p548 = pneg %p93
        %p549 = pneg %p90
        %p550 = pneg %p114
        %p551 = pneg %p111
        %p552 = pneg %p135
        %p553 = pneg %p132
        %p554 = pneg %p156
        %p555 = pneg %p153
        %p556 = pneg %p177
        %p557 = pneg %p174
        %p558 = pneg %p198
        %p559 = pneg %p195
        %p560 = pneg %p219
        %p561 = pneg %p216
        %p562 = pneg %p240
        %p563 = pneg %p237
        %p564 = pneg %p261
        %p565 = pneg %p258
        %p566 = pneg %p282
        %p567 = pneg %p279
        %p568 = pneg %p303
        %p569 = pneg %p300
        %p570 = pneg %p329
        %p571 = pneg %p326
        %p572 = scmp.lt.s32.totalorder %s30, 3
        %s573 = scalar_select %p572, %s30, 3
        %s574 = smul.addr %s573, 20
        %s575 = smul.addr %s574, 4
        %s576 = scalar_lea.vmem %s13, %s575
        %p577 = scmp.lt.s32.totalorder %s30, 3
        %s578 = scalar_select %p577, %s30, 3
        %s579 = smul.addr %s578, 37
        %s580 = smul.addr %s579, 8
        %s581 = scalar_lea.vmem %s0, %s580
        %p582 = scmp.lt.s32.totalorder %s30, 3
        %s583 = scalar_select %p582, %s30, 3
        %s584 = smul.addr %s583, 20
        %s585 = smul.addr %s584, 4
        %s586 = scalar_lea.vmem %s13, %s585
        %v588 = vld [vmem:[%s581] sm:$0xff]
        %v589 = vld [vmem:[%s581 + $0x8] sm:$0xff]
        %v590 = vld [vmem:[%s581 + $0x10] sm:$0xff]
        %v591 = vld [vmem:[%s581 + $0x18] sm:$0xff]
        %v592 = vld [vmem:[%s581 + $0x20] sm:$0xff]
        %v593 = vld [vmem:[%s581 + $0x28] sm:$0xff]
        %v594 = vld [vmem:[%s581 + $0x30] sm:$0xff]
        %v595 = vld [vmem:[%s581 + $0x38] sm:$0xff]
        %v596 = vld [vmem:[%s581 + $0x40] sm:$0xff]
        %v597 = vld [vmem:[%s581 + $0x48] sm:$0xff]
        %v598 = vld [vmem:[%s581 + $0x50] sm:$0xff]
        %v599 = vld [vmem:[%s581 + $0x58] sm:$0xff]
        %v600 = vld [vmem:[%s581 + $0x60] sm:$0xff]
        %v601 = vld [vmem:[%s581 + $0x68] sm:$0xff]
        %v602 = vld [vmem:[%s581 + $0x70] sm:$0xff]
        %v603 = vld [vmem:[%s581 + $0x78] sm:$0xff]
        %v604 = vld [vmem:[%s581 + $0x80] sm:$0xff]
        %v605 = vld [vmem:[%s581 + $0x88] sm:$0xff]
        %v606 = vld [vmem:[%s581 + $0x90] sm:$0xff]
        %v607 = vld [vmem:[%s581 + $0x98] sm:$0xff]
        %v608 = vld [vmem:[%s581 + $0xa0] sm:$0xff]
        %v609 = vld [vmem:[%s581 + $0xa8] sm:$0xff]
        %v610 = vld [vmem:[%s581 + $0xb0] sm:$0xff]
        %v611 = vld [vmem:[%s581 + $0xb8] sm:$0xff]
        %v612 = vld [vmem:[%s581 + $0xc0] sm:$0xff]
        %v613 = vld [vmem:[%s581 + $0xc8] sm:$0xff]
        %v614 = vld [vmem:[%s581 + $0xd0] sm:$0xff]
        %v615 = vld [vmem:[%s581 + $0xd8] sm:$0xff]
        %v616 = vld [vmem:[%s581 + $0xe0] sm:$0xff]
        %v617 = vld [vmem:[%s581 + $0xe8] sm:$0xff]
        %v618 = vld [vmem:[%s581 + $0xf0] sm:$0xff]
        %v619 = vld [vmem:[%s581 + $0xf8] sm:$0xff]
        %v620 = vld [vmem:[%s581 + $0x100] sm:$0xff]
        %v621 = vld [vmem:[%s581 + $0x108] sm:$0xff]
        %v622 = vld [vmem:[%s581 + $0x110] sm:$0xff]
        %v623 = vld [vmem:[%s581 + $0x118] sm:$0xff]
        %v624 = vld [vmem:[%s581 + $0x120] sm:$0xff]
        %v625 = vld [vmem:[#allocation8] sm:$0x7]
        %vm626 = vcmask 23552
        %v628 = vsel %vm626, %v588, 0
        %v631 = vsel %vm626, %v589, 0
        %v634 = vsel %vm626, %v590, 0
        %v637 = vsel %vm626, %v591, 0
        %v640 = vsel %vm626, %v592, 0
        %v643 = vsel %vm626, %v593, 0
        %v646 = vsel %vm626, %v594, 0
        %v649 = vsel %vm626, %v595, 0
        %v652 = vsel %vm626, %v596, 0
        %v655 = vsel %vm626, %v597, 0
        %v658 = vsel %vm626, %v598, 0
        %v661 = vsel %vm626, %v599, 0
        %v664 = vsel %vm626, %v600, 0
        %v667 = vsel %vm626, %v601, 0
        %v670 = vsel %vm626, %v602, 0
        %v673 = vsel %vm626, %v603, 0
        %v676 = vsel %vm626, %v604, 0
        %v679 = vsel %vm626, %v605, 0
        %v682 = vsel %vm626, %v606, 0
        %v685 = vsel %vm626, %v607, 0
        %v688 = vsel %vm626, %v608, 0
        %v691 = vsel %vm626, %v609, 0
        %v694 = vsel %vm626, %v610, 0
        %v697 = vsel %vm626, %v611, 0
        %v700 = vsel %vm626, %v612, 0
        %v703 = vsel %vm626, %v613, 0
        %v706 = vsel %vm626, %v614, 0
        %v709 = vsel %vm626, %v615, 0
        %v712 = vsel %vm626, %v616, 0
        %v715 = vsel %vm626, %v617, 0
        %v718 = vsel %vm626, %v618, 0
        %v721 = vsel %vm626, %v619, 0
        %v724 = vsel %vm626, %v620, 0
        %v727 = vsel %vm626, %v621, 0
        %v730 = vsel %vm626, %v622, 0
        %v733 = vsel %vm626, %v623, 0
        %v736 = vsel %vm626, %v624, 0
        %vm738 = vcmask 1042432
        %v740 = vsel %vm738, %v625, 0
        %742 = vmatprep.subr.mxu0 0.0
        %743 = vmatpush1.msra.mxu0 %v740
        %744 = vmatprep.subr.mxu0 0.0
        %745 = vmatpush1.msra.mxu0 0.0
        %746 = vmatprep.subr.mxu0 0.0
        %747 = vmatpush1.msra.mxu0 0.0
        %748 = vmatprep.subr.mxu0 0.0
        %749 = vmatpush1.msra.mxu0 0.0
        %750 = vmatprep.subr.mxu0 0.0
        %751 = vmatpush1.msra.mxu0 0.0
        %752 = vmatprep.subr.mxu0 0.0
        %753 = vmatpush1.msra.mxu0 0.0
        %754 = vmatprep.subr.mxu0 0.0
        %755 = vmatpush1.msra.mxu0 0.0
        %756 = vmatprep.subr.mxu0 0.0
        %757 = vmatpush1.msra.mxu0 0.0
        %758 = vmatprep.subr.mxu0 0.0
        %759 = vmatpush1.msra.mxu0 0.0
        %760 = vmatprep.subr.mxu0 0.0
        %761 = vmatpush1.msra.mxu0 0.0
        %762 = vmatprep.subr.mxu0 0.0
        %763 = vmatpush1.msra.mxu0 0.0
        %764 = vmatprep.subr.mxu0 0.0
        %765 = vmatpush1.msra.mxu0 0.0
        %766 = vmatprep.subr.mxu0 0.0
        %767 = vmatpush1.msra.mxu0 0.0
        %768 = vmatprep.subr.mxu0 0.0
        %769 = vmatpush1.msra.mxu0 0.0
        %770 = vmatprep.subr.mxu0 0.0
        %771 = vmatpush1.msra.mxu0 0.0
        %772 = vmatprep.subr.mxu0 0.0
        %773 = vmatpush1.msra.mxu0 0.0
        %774 = vmatprep.subr.mxu0 0.0
        %775 = vmatpush1.msra.mxu0 0.0
        %776 = vmatprep.subr.mxu0 0.0
        %777 = vmatpush1.msra.mxu0 0.0
        %778 = vmatprep.subr.mxu0 0.0
        %779 = vmatpush1.msra.mxu0 0.0
        %780 = vmatprep.subr.mxu0 0.0
        %781 = vmatpush1.msra.mxu0 0.0
        %782 = vmatprep.subr.mxu0 0.0
        %783 = vmatpush1.msra.mxu0 0.0
        %784 = vmatprep.subr.mxu0 0.0
        %785 = vmatpush1.msra.mxu0 0.0
        %786 = vmatprep.subr.mxu0 0.0
        %787 = vmatpush1.msra.mxu0 0.0
        %788 = vmatprep.subr.mxu0 0.0
        %789 = vmatpush1.msra.mxu0 0.0
        %790 = vmatprep.subr.mxu0 0.0
        %791 = vmatpush1.msra.mxu0 0.0
        %792 = vmatprep.subr.mxu0 0.0
        %793 = vmatpush1.msra.mxu0 0.0
        %794 = vmatprep.subr.mxu0 0.0
        %795 = vmatpush1.msra.mxu0 0.0
        %796 = vmatprep.subr.mxu0 0.0
        %797 = vmatpush1.msra.mxu0 0.0
        %798 = vmatprep.subr.mxu0 0.0
        %799 = vmatpush1.msra.mxu0 0.0
        %800 = vmatprep.subr.mxu0 0.0
        %801 = vmatpush1.msra.mxu0 0.0
        %802 = vmatprep.subr.mxu0 0.0
        %803 = vmatpush1.msra.mxu0 0.0
        %804 = vmatprep.subr.mxu0 0.0
        %805 = vmatpush1.msra.mxu0 0.0
        %806 = vmatprep.mubr.f32.mxu0 0.0
        %807 = vmatmul.mubr.f32.gmra.mrb[0].mxu0 %v628
        %v808 = vpop.f32.mrb[0].mxu0
        %v809 = vadd.f32 0.0, %v808
        %v810 = vpop.f32.mrb[0].mxu0
        %811 = vmatprep.mubr.f32.mxu0 0.0
        %812 = vmatmul.mubr.f32.gmra.mrb[0].mxu0 %v631
        %v813 = vpop.f32.mrb[0].mxu0
        %v814 = vadd.f32 0.0, %v813
        %v815 = vpop.f32.mrb[0].mxu0
        %816 = vmatprep.mubr.f32.mxu0 0.0
        %817 = vmatmul.mubr.f32.gmra.mrb[0].mxu0 %v634
        %v818 = vpop.f32.mrb[0].mxu0
        %v819 = vadd.f32 0.0, %v818
        %v820 = vpop.f32.mrb[0].mxu0
        %821 = vmatprep.mubr.f32.mxu0 0.0
        %822 = vmatmul.mubr.f32.gmra.mrb[0].mxu0 %v637
        %v823 = vpop.f32.mrb[0].mxu0
        %v824 = vadd.f32 0.0, %v823
        %v825 = vpop.f32.mrb[0].mxu0
        %826 = vmatprep.mubr.f32.mxu0 0.0
        %827 = vmatmul.mubr.f32.gmra.mrb[0].mxu0 %v640
        %v828 = vpop.f32.mrb[0].mxu0
        %v829 = vadd.f32 0.0, %v828
        %v830 = vpop.f32.mrb[0].mxu0
        %831 = vmatprep.mubr.f32.mxu0 0.0
        %832 = vmatmul.mubr.f32.gmra.mrb[0].mxu0 %v643
        %v833 = vpop.f32.mrb[0].mxu0
        %v834 = vadd.f32 0.0, %v833
        %v835 = vpop.f32.mrb[0].mxu0
        %836 = vmatprep.mubr.f32.mxu0 0.0
        %837 = vmatmul.mubr.f32.gmra.mrb[0].mxu0 %v646
        %v838 = vpop.f32.mrb[0].mxu0
        %v839 = vadd.f32 0.0, %v838
        %v840 = vpop.f32.mrb[0].mxu0
        %841 = vmatprep.mubr.f32.mxu0 0.0
        %842 = vmatmul.mubr.f32.gmra.mrb[0].mxu0 %v649
        %v843 = vpop.f32.mrb[0].mxu0
        %v844 = vadd.f32 0.0, %v843
        %v845 = vpop.f32.mrb[0].mxu0
        %846 = vmatprep.mubr.f32.mxu0 0.0
        %847 = vmatmul.mubr.f32.gmra.mrb[0].mxu0 %v652
        %v848 = vpop.f32.mrb[0].mxu0
        %v849 = vadd.f32 0.0, %v848
        %v850 = vpop.f32.mrb[0].mxu0
        %851 = vmatprep.mubr.f32.mxu0 0.0
        %852 = vmatmul.mubr.f32.gmra.mrb[0].mxu0 %v655
        %v853 = vpop.f32.mrb[0].mxu0
        %v854 = vadd.f32 0.0, %v853
        %v855 = vpop.f32.mrb[0].mxu0
        %856 = vmatprep.mubr.f32.mxu0 0.0
        %857 = vmatmul.mubr.f32.gmra.mrb[0].mxu0 %v658
        %v858 = vpop.f32.mrb[0].mxu0
        %v859 = vadd.f32 0.0, %v858
        %v860 = vpop.f32.mrb[0].mxu0
        %861 = vmatprep.mubr.f32.mxu0 0.0
        %862 = vmatmul.mubr.f32.gmra.mrb[0].mxu0 %v661
        %v863 = vpop.f32.mrb[0].mxu0
        %v864 = vadd.f32 0.0, %v863
        %v865 = vpop.f32.mrb[0].mxu0
        %866 = vmatprep.mubr.f32.mxu0 0.0
        %867 = vmatmul.mubr.f32.gmra.mrb[0].mxu0 %v664
        %v868 = vpop.f32.mrb[0].mxu0
        %v869 = vadd.f32 0.0, %v868
        %v870 = vpop.f32.mrb[0].mxu0
        %871 = vmatprep.mubr.f32.mxu0 0.0
        %872 = vmatmul.mubr.f32.gmra.mrb[0].mxu0 %v667
        %v873 = vpop.f32.mrb[0].mxu0
        %v874 = vadd.f32 0.0, %v873
        %v875 = vpop.f32.mrb[0].mxu0
        %876 = vmatprep.mubr.f32.mxu0 0.0
        %877 = vmatmul.mubr.f32.gmra.mrb[0].mxu0 %v670
        %v878 = vpop.f32.mrb[0].mxu0
        %v879 = vadd.f32 0.0, %v878
        %v880 = vpop.f32.mrb[0].mxu0
        %881 = vmatprep.mubr.f32.mxu0 0.0
        %882 = vmatmul.mubr.f32.gmra.mrb[0].mxu0 %v673
        %v883 = vpop.f32.mrb[0].mxu0
        %v884 = vadd.f32 0.0, %v883
        %v885 = vpop.f32.mrb[0].mxu0
        %886 = vmatprep.mubr.f32.mxu0 0.0
        %887 = vmatmul.mubr.f32.gmra.mrb[0].mxu0 %v676
        %v888 = vpop.f32.mrb[0].mxu0
        %v889 = vadd.f32 0.0, %v888
        %v890 = vpop.f32.mrb[0].mxu0
        %891 = vmatprep.mubr.f32.mxu0 0.0
        %892 = vmatmul.mubr.f32.gmra.mrb[0].mxu0 %v679
        %v893 = vpop.f32.mrb[0].mxu0
        %v894 = vadd.f32 0.0, %v893
        %v895 = vpop.f32.mrb[0].mxu0
        %896 = vmatprep.mubr.f32.mxu0 0.0
        %897 = vmatmul.mubr.f32.gmra.mrb[0].mxu0 %v682
        %v898 = vpop.f32.mrb[0].mxu0
        %v899 = vadd.f32 0.0, %v898
        %v900 = vpop.f32.mrb[0].mxu0
        %901 = vmatprep.mubr.f32.mxu0 0.0
        %902 = vmatmul.mubr.f32.gmra.mrb[0].mxu0 %v685
        %v903 = vpop.f32.mrb[0].mxu0
        %v904 = vadd.f32 0.0, %v903
        %v905 = vpop.f32.mrb[0].mxu0
        %906 = vmatprep.mubr.f32.mxu0 0.0
        %907 = vmatmul.mubr.f32.gmra.mrb[0].mxu0 %v688
        %v908 = vpop.f32.mrb[0].mxu0
        %v909 = vadd.f32 0.0, %v908
        %v910 = vpop.f32.mrb[0].mxu0
        %911 = vmatprep.mubr.f32.mxu0 0.0
        %912 = vmatmul.mubr.f32.gmra.mrb[0].mxu0 %v691
        %v913 = vpop.f32.mrb[0].mxu0
        %v914 = vadd.f32 0.0, %v913
        %v915 = vpop.f32.mrb[0].mxu0
        %916 = vmatprep.mubr.f32.mxu0 0.0
        %917 = vmatmul.mubr.f32.gmra.mrb[0].mxu0 %v694
        %v918 = vpop.f32.mrb[0].mxu0
        %v919 = vadd.f32 0.0, %v918
        %v920 = vpop.f32.mrb[0].mxu0
        %921 = vmatprep.mubr.f32.mxu0 0.0
        %922 = vmatmul.mubr.f32.gmra.mrb[0].mxu0 %v697
        %v923 = vpop.f32.mrb[0].mxu0
        %v924 = vadd.f32 0.0, %v923
        %v925 = vpop.f32.mrb[0].mxu0
        %926 = vmatprep.mubr.f32.mxu0 0.0
        %927 = vmatmul.mubr.f32.gmra.mrb[0].mxu0 %v700
        %v928 = vpop.f32.mrb[0].mxu0
        %v929 = vadd.f32 0.0, %v928
        %v930 = vpop.f32.mrb[0].mxu0
        %931 = vmatprep.mubr.f32.mxu0 0.0
        %932 = vmatmul.mubr.f32.gmra.mrb[0].mxu0 %v703
        %v933 = vpop.f32.mrb[0].mxu0
        %v934 = vadd.f32 0.0, %v933
        %v935 = vpop.f32.mrb[0].mxu0
        %936 = vmatprep.mubr.f32.mxu0 0.0
        %937 = vmatmul.mubr.f32.gmra.mrb[0].mxu0 %v706
        %v938 = vpop.f32.mrb[0].mxu0
        %v939 = vadd.f32 0.0, %v938
        %v940 = vpop.f32.mrb[0].mxu0
        %941 = vmatprep.mubr.f32.mxu0 0.0
        %942 = vmatmul.mubr.f32.gmra.mrb[0].mxu0 %v709
        %v943 = vpop.f32.mrb[0].mxu0
        %v944 = vadd.f32 0.0, %v943
        %v945 = vpop.f32.mrb[0].mxu0
        %946 = vmatprep.mubr.f32.mxu0 0.0
        %947 = vmatmul.mubr.f32.gmra.mrb[0].mxu0 %v712
        %v948 = vpop.f32.mrb[0].mxu0
        %v949 = vadd.f32 0.0, %v948
        %v950 = vpop.f32.mrb[0].mxu0
        %951 = vmatprep.mubr.f32.mxu0 0.0
        %952 = vmatmul.mubr.f32.gmra.mrb[0].mxu0 %v715
        %v953 = vpop.f32.mrb[0].mxu0
        %v954 = vadd.f32 0.0, %v953
        %v955 = vpop.f32.mrb[0].mxu0
        %956 = vmatprep.mubr.f32.mxu0 0.0
        %957 = vmatmul.mubr.f32.gmra.mrb[0].mxu0 %v718
        %v958 = vpop.f32.mrb[0].mxu0
        %v959 = vadd.f32 0.0, %v958
        %v960 = vpop.f32.mrb[0].mxu0
        %961 = vmatprep.mubr.f32.mxu0 0.0
        %962 = vmatmul.mubr.f32.gmra.mrb[0].mxu0 %v721
        %v963 = vpop.f32.mrb[0].mxu0
        %v964 = vadd.f32 0.0, %v963
        %v965 = vpop.f32.mrb[0].mxu0
        %966 = vmatprep.mubr.f32.mxu0 0.0
        %967 = vmatmul.mubr.f32.gmra.mrb[0].mxu0 %v724
        %v968 = vpop.f32.mrb[0].mxu0
        %v969 = vadd.f32 0.0, %v968
        %v970 = vpop.f32.mrb[0].mxu0
        %971 = vmatprep.mubr.f32.mxu0 0.0
        %972 = vmatmul.mubr.f32.gmra.mrb[0].mxu0 %v727
        %v973 = vpop.f32.mrb[0].mxu0
        %v974 = vadd.f32 0.0, %v973
        %v975 = vpop.f32.mrb[0].mxu0
        %976 = vmatprep.mubr.f32.mxu0 0.0
        %977 = vmatmul.mubr.f32.gmra.mrb[0].mxu0 %v730
        %v978 = vpop.f32.mrb[0].mxu0
        %v979 = vadd.f32 0.0, %v978
        %v980 = vpop.f32.mrb[0].mxu0
        %981 = vmatprep.mubr.f32.mxu0 0.0
        %982 = vmatmul.mubr.f32.gmra.mrb[0].mxu0 %v733
        %v983 = vpop.f32.mrb[0].mxu0
        %v984 = vadd.f32 0.0, %v983
        %v985 = vpop.f32.mrb[0].mxu0
        %986 = vmatprep.mubr.f32.mxu0 0.0
        %987 = vmatmul.mubr.f32.gmra.mrb[0].mxu0 %v736
        %v988 = vpop.f32.mrb[0].mxu0
        %v989 = vadd.f32 0.0, %v988
        %v990 = vpop.f32.mrb[0].mxu0
        %991 = vdwg.mxu0
        %v992 = vld [vmem:[#allocation9] sm:$0x1]
        %v994 = vlaneseq
        %v995 = vshrl.u32 %v994, 7
        %v996 = vsub.s32 0, %v995
        %v997 = vrot.slane %v992, %v996
        %v999 = vmul.f32 %v809, %v997
        %v1000 = vmul.f32 %v814, %v997
        %v1001 = vmul.f32 %v819, %v997
        %v1002 = vmul.f32 %v824, %v997
        %v1003 = vmul.f32 %v829, %v997
        %v1004 = vmul.f32 %v834, %v997
        %v1005 = vmul.f32 %v839, %v997
        %v1006 = vmul.f32 %v844, %v997
        %v1007 = vmul.f32 %v849, %v997
        %v1008 = vmul.f32 %v854, %v997
        %v1009 = vmul.f32 %v859, %v997
        %v1010 = vmul.f32 %v864, %v997
        %v1011 = vmul.f32 %v869, %v997
        %v1012 = vmul.f32 %v874, %v997
        %v1013 = vmul.f32 %v879, %v997
        %v1014 = vmul.f32 %v884, %v997
        %v1015 = vmul.f32 %v889, %v997
        %v1016 = vmul.f32 %v894, %v997
        %v1017 = vmul.f32 %v899, %v997
        %v1018 = vmul.f32 %v904, %v997
        %v1019 = vmul.f32 %v909, %v997
        %v1020 = vmul.f32 %v914, %v997
        %v1021 = vmul.f32 %v919, %v997
        %v1022 = vmul.f32 %v924, %v997
        %v1023 = vmul.f32 %v929, %v997
        %v1024 = vmul.f32 %v934, %v997
        %v1025 = vmul.f32 %v939, %v997
        %v1026 = vmul.f32 %v944, %v997
        %v1027 = vmul.f32 %v949, %v997
        %v1028 = vmul.f32 %v954, %v997
        %v1029 = vmul.f32 %v959, %v997
        %v1030 = vmul.f32 %v964, %v997
        %v1031 = vmul.f32 %v969, %v997
        %v1032 = vmul.f32 %v974, %v997
        %v1033 = vmul.f32 %v979, %v997
        %v1034 = vmul.f32 %v984, %v997
        %v1035 = vmul.f32 %v989, %v997
        %v1036 = vld [vmem:[#allocation11] sm:$0x1]
        %v1038 = vlaneseq
        %v1039 = vshrl.u32 %v1038, 7
        %v1040 = vsub.s32 0, %v1039
        %v1041 = vrot.slane %v1036, %v1040
        %v1043 = vadd.f32 %v999, %v1041
        %v1044 = vadd.f32 %v1000, %v1041
        %v1045 = vadd.f32 %v1001, %v1041
        %v1046 = vadd.f32 %v1002, %v1041
        %v1047 = vadd.f32 %v1003, %v1041
        %v1048 = vadd.f32 %v1004, %v1041
        %v1049 = vadd.f32 %v1005, %v1041
        %v1050 = vadd.f32 %v1006, %v1041
        %v1051 = vadd.f32 %v1007, %v1041
        %v1052 = vadd.f32 %v1008, %v1041
        %v1053 = vadd.f32 %v1009, %v1041
        %v1054 = vadd.f32 %v1010, %v1041
        %v1055 = vadd.f32 %v1011, %v1041
        %v1056 = vadd.f32 %v1012, %v1041
        %v1057 = vadd.f32 %v1013, %v1041
        %v1058 = vadd.f32 %v1014, %v1041
        %v1059 = vadd.f32 %v1015, %v1041
        %v1060 = vadd.f32 %v1016, %v1041
        %v1061 = vadd.f32 %v1017, %v1041
        %v1062 = vadd.f32 %v1018, %v1041
        %v1063 = vadd.f32 %v1019, %v1041
        %v1064 = vadd.f32 %v1020, %v1041
        %v1065 = vadd.f32 %v1021, %v1041
        %v1066 = vadd.f32 %v1022, %v1041
        %v1067 = vadd.f32 %v1023, %v1041
        %v1068 = vadd.f32 %v1024, %v1041
        %v1069 = vadd.f32 %v1025, %v1041
        %v1070 = vadd.f32 %v1026, %v1041
        %v1071 = vadd.f32 %v1027, %v1041
        %v1072 = vadd.f32 %v1028, %v1041
        %v1073 = vadd.f32 %v1029, %v1041
        %v1074 = vadd.f32 %v1030, %v1041
        %v1075 = vadd.f32 %v1031, %v1041
        %v1076 = vadd.f32 %v1032, %v1041
        %v1077 = vadd.f32 %v1033, %v1041
        %v1078 = vadd.f32 %v1034, %v1041
        %v1079 = vadd.f32 %v1035, %v1041
        %v1080 = vmax.f32 %v1043, 0.0
        %v1081 = vmax.f32 %v1044, 0.0
        %v1082 = vmax.f32 %v1045, 0.0
        %v1083 = vmax.f32 %v1046, 0.0
        %v1084 = vmax.f32 %v1047, 0.0
        %v1085 = vmax.f32 %v1048, 0.0
        %v1086 = vmax.f32 %v1049, 0.0
        %v1087 = vmax.f32 %v1050, 0.0
        %v1088 = vmax.f32 %v1051, 0.0
        %v1089 = vmax.f32 %v1052, 0.0
        %v1090 = vmax.f32 %v1053, 0.0
        %v1091 = vmax.f32 %v1054, 0.0
        %v1092 = vmax.f32 %v1055, 0.0
        %v1093 = vmax.f32 %v1056, 0.0
        %v1094 = vmax.f32 %v1057, 0.0
        %v1095 = vmax.f32 %v1058, 0.0
        %v1096 = vmax.f32 %v1059, 0.0
        %v1097 = vmax.f32 %v1060, 0.0
        %v1098 = vmax.f32 %v1061, 0.0
        %v1099 = vmax.f32 %v1062, 0.0
        %v1100 = vmax.f32 %v1063, 0.0
        %v1101 = vmax.f32 %v1064, 0.0
        %v1102 = vmax.f32 %v1065, 0.0
        %v1103 = vmax.f32 %v1066, 0.0
        %v1104 = vmax.f32 %v1067, 0.0
        %v1105 = vmax.f32 %v1068, 0.0
        %v1106 = vmax.f32 %v1069, 0.0
        %v1107 = vmax.f32 %v1070, 0.0
        %v1108 = vmax.f32 %v1071, 0.0
        %v1109 = vmax.f32 %v1072, 0.0
        %v1110 = vmax.f32 %v1073, 0.0
        %v1111 = vmax.f32 %v1074, 0.0
        %v1112 = vmax.f32 %v1075, 0.0
        %v1113 = vmax.f32 %v1076, 0.0
        %v1114 = vmax.f32 %v1077, 0.0
        %v1115 = vmax.f32 %v1078, 0.0
        %v1116 = vmax.f32 %v1079, 0.0
        %1117 = vst [vmem:[#allocation2] sm:$0x1] 0.0
        %1118 = vst [vmem:[#allocation2 + $0x95] sm:$0x1] 0.0
        %vm1156 = vcmask 1046528
        %v1157 = vrot.slane %v1080, 1
        %v1158 = vrot.slane %v1081, 1
        %v1159 = vsel %vm1156, %v1157, %v1158
        %v1160 = vrot.slane %v1082, 1
        %v1161 = vsel %vm1156, %v1158, %v1160
        %v1162 = vrot.slane %v1083, 1
        %v1163 = vsel %vm1156, %v1160, %v1162
        %v1164 = vrot.slane %v1084, 1
        %v1165 = vsel %vm1156, %v1162, %v1164
        %v1166 = vrot.slane %v1085, 1
        %v1167 = vsel %vm1156, %v1164, %v1166
        %v1168 = vrot.slane %v1086, 1
        %v1169 = vsel %vm1156, %v1166, %v1168
        %v1170 = vrot.slane %v1087, 1
        %v1171 = vsel %vm1156, %v1168, %v1170
        %v1172 = vrot.slane %v1088, 1
        %v1173 = vsel %vm1156, %v1170, %v1172
        %v1174 = vrot.slane %v1089, 1
        %v1175 = vsel %vm1156, %v1172, %v1174
        %v1176 = vrot.slane %v1090, 1
        %v1177 = vsel %vm1156, %v1174, %v1176
        %v1178 = vrot.slane %v1091, 1
        %v1179 = vsel %vm1156, %v1176, %v1178
        %v1180 = vrot.slane %v1092, 1
        %v1181 = vsel %vm1156, %v1178, %v1180
        %v1182 = vrot.slane %v1093, 1
        %v1183 = vsel %vm1156, %v1180, %v1182
        %v1184 = vrot.slane %v1094, 1
        %v1185 = vsel %vm1156, %v1182, %v1184
        %v1186 = vrot.slane %v1095, 1
        %v1187 = vsel %vm1156, %v1184, %v1186
        %v1188 = vrot.slane %v1096, 1
        %v1189 = vsel %vm1156, %v1186, %v1188
        %v1190 = vrot.slane %v1097, 1
        %v1191 = vsel %vm1156, %v1188, %v1190
        %v1192 = vrot.slane %v1098, 1
        %v1193 = vsel %vm1156, %v1190, %v1192
        %v1194 = vrot.slane %v1099, 1
        %v1195 = vsel %vm1156, %v1192, %v1194
        %v1196 = vrot.slane %v1100, 1
        %v1197 = vsel %vm1156, %v1194, %v1196
        %v1198 = vrot.slane %v1101, 1
        %v1199 = vsel %vm1156, %v1196, %v1198
        %v1200 = vrot.slane %v1102, 1
        %v1201 = vsel %vm1156, %v1198, %v1200
        %v1202 = vrot.slane %v1103, 1
        %v1203 = vsel %vm1156, %v1200, %v1202
        %v1204 = vrot.slane %v1104, 1
        %v1205 = vsel %vm1156, %v1202, %v1204
        %v1206 = vrot.slane %v1105, 1
        %v1207 = vsel %vm1156, %v1204, %v1206
        %v1208 = vrot.slane %v1106, 1
        %v1209 = vsel %vm1156, %v1206, %v1208
        %v1210 = vrot.slane %v1107, 1
        %v1211 = vsel %vm1156, %v1208, %v1210
        %v1212 = vrot.slane %v1108, 1
        %v1213 = vsel %vm1156, %v1210, %v1212
        %v1214 = vrot.slane %v1109, 1
        %v1215 = vsel %vm1156, %v1212, %v1214
        %v1216 = vrot.slane %v1110, 1
        %v1217 = vsel %vm1156, %v1214, %v1216
        %v1218 = vrot.slane %v1111, 1
        %v1219 = vsel %vm1156, %v1216, %v1218
        %v1220 = vrot.slane %v1112, 1
        %v1221 = vsel %vm1156, %v1218, %v1220
        %v1222 = vrot.slane %v1113, 1
        %v1223 = vsel %vm1156, %v1220, %v1222
        %v1224 = vrot.slane %v1114, 1
        %v1225 = vsel %vm1156, %v1222, %v1224
        %v1226 = vrot.slane %v1115, 1
        %v1227 = vsel %vm1156, %v1224, %v1226
        %v1228 = vrot.slane %v1116, 1
        %v1229 = vsel %vm1156, %v1226, %v1228
        %v1267 = vmax.f32 %v1080, %v1159
        %v1268 = vmax.f32 %v1081, %v1161
        %v1269 = vmax.f32 %v1082, %v1163
        %v1270 = vmax.f32 %v1083, %v1165
        %v1271 = vmax.f32 %v1084, %v1167
        %v1272 = vmax.f32 %v1085, %v1169
        %v1273 = vmax.f32 %v1086, %v1171
        %v1274 = vmax.f32 %v1087, %v1173
        %v1275 = vmax.f32 %v1088, %v1175
        %v1276 = vmax.f32 %v1089, %v1177
        %v1277 = vmax.f32 %v1090, %v1179
        %v1278 = vmax.f32 %v1091, %v1181
        %v1279 = vmax.f32 %v1092, %v1183
        %v1280 = vmax.f32 %v1093, %v1185
        %v1281 = vmax.f32 %v1094, %v1187
        %v1282 = vmax.f32 %v1095, %v1189
        %v1283 = vmax.f32 %v1096, %v1191
        %v1284 = vmax.f32 %v1097, %v1193
        %v1285 = vmax.f32 %v1098, %v1195
        %v1286 = vmax.f32 %v1099, %v1197
        %v1287 = vmax.f32 %v1100, %v1199
        %v1288 = vmax.f32 %v1101, %v1201
        %v1289 = vmax.f32 %v1102, %v1203
        %v1290 = vmax.f32 %v1103, %v1205
        %v1291 = vmax.f32 %v1104, %v1207
        %v1292 = vmax.f32 %v1105, %v1209
        %v1293 = vmax.f32 %v1106, %v1211
        %v1294 = vmax.f32 %v1107, %v1213
        %v1295 = vmax.f32 %v1108, %v1215
        %v1296 = vmax.f32 %v1109, %v1217
        %v1297 = vmax.f32 %v1110, %v1219
        %v1298 = vmax.f32 %v1111, %v1221
        %v1299 = vmax.f32 %v1112, %v1223
        %v1300 = vmax.f32 %v1113, %v1225
        %v1301 = vmax.f32 %v1114, %v1227
        %v1302 = vmax.f32 %v1115, %v1229
        %v1303 = vmax.f32 %v1116, %v1228
        %v1304 = vld [vmem:[#allocation4] sm:$0xff]
        %v1305 = vld [vmem:[#allocation4 + $0x8] sm:$0xff]
        %v1306 = vld [vmem:[#allocation4 + $0x10] sm:$0xff]
        %v1307 = vld [vmem:[#allocation4 + $0x18] sm:$0xff]
        %v1308 = vld [vmem:[#allocation4 + $0x20] sm:$0xff]
        %v1309 = vld [vmem:[#allocation4 + $0x28] sm:$0xff]
        %v1310 = vld [vmem:[#allocation4 + $0x30] sm:$0xff]
        %v1311 = vld [vmem:[#allocation4 + $0x38] sm:$0xff]
        %v1312 = vld [vmem:[#allocation4 + $0x40] sm:$0xff]
        %v1313 = vld [vmem:[#allocation4 + $0x48] sm:$0xff]
        %v1314 = vld [vmem:[#allocation4 + $0x50] sm:$0xff]
        %v1315 = vld [vmem:[#allocation4 + $0x58] sm:$0xff]
        %v1316 = vld [vmem:[#allocation4 + $0x60] sm:$0xff]
        %v1317 = vld [vmem:[#allocation4 + $0x68] sm:$0xff]
        %v1318 = vld [vmem:[#allocation4 + $0x70] sm:$0xff]
        %v1319 = vld [vmem:[#allocation4 + $0x78] sm:$0xff]
        %v1320 = vld [vmem:[#allocation4 + $0x80] sm:$0xff]
        %v1321 = vld [vmem:[#allocation4 + $0x88] sm:$0xff]
        %v1322 = vld [vmem:[#allocation4 + $0x90] sm:$0xff]
        %v1323 = vld [vmem:[#allocation4 + $0x98] sm:$0xff]
        %v1324 = vld [vmem:[#allocation4 + $0xa0] sm:$0xff]
        %v1325 = vld [vmem:[#allocation4 + $0xa8] sm:$0xff]
        %v1326 = vld [vmem:[#allocation4 + $0xb0] sm:$0xff]
        %v1327 = vld [vmem:[#allocation4 + $0xb8] sm:$0xff]
        %v1328 = vld [vmem:[#allocation4 + $0xc0] sm:$0xff]
        %v1329 = vld [vmem:[#allocation4 + $0xc8] sm:$0xff]
        %v1330 = vld [vmem:[#allocation4 + $0xd0] sm:$0xff]
        %v1331 = vld [vmem:[#allocation4 + $0xd8] sm:$0xff]
        %v1332 = vld [vmem:[#allocation4 + $0xe0] sm:$0xff]
        %v1333 = vld [vmem:[#allocation4 + $0xe8] sm:$0xff]
        %v1334 = vld [vmem:[#allocation4 + $0xf0] sm:$0xff]
        %v1335 = vld [vmem:[#allocation4 + $0xf8] sm:$0xff]
        %v1336 = vld [vmem:[#allocation4 + $0x100] sm:$0xff]
        %v1337 = vld [vmem:[#allocation4 + $0x108] sm:$0xff]
        %v1338 = vld [vmem:[#allocation4 + $0x110] sm:$0xff]
        %v1339 = vld [vmem:[#allocation4 + $0x118] sm:$0xff]
        %v1340 = vld [vmem:[#allocation4 + $0x120] sm:$0xff]
        %v1341 = vld [vmem:[#allocation4 + $0x128] sm:$0xff]
        %v1342 = vld [vmem:[#allocation4 + $0x130] sm:$0xff]
        %v1343 = vld [vmem:[#allocation4 + $0x138] sm:$0xff]
        %v1344 = vld [vmem:[#allocation4 + $0x140] sm:$0xff]
        %v1345 = vld [vmem:[#allocation4 + $0x148] sm:$0xff]
        %v1346 = vld [vmem:[#allocation4 + $0x150] sm:$0xff]
        %v1347 = vld [vmem:[#allocation4 + $0x158] sm:$0xff]
        %v1348 = vld [vmem:[#allocation4 + $0x160] sm:$0xff]
        %v1349 = vld [vmem:[#allocation4 + $0x168] sm:$0xff]
        %v1350 = vld [vmem:[#allocation4 + $0x170] sm:$0xff]
        %v1351 = vld [vmem:[#allocation4 + $0x178] sm:$0xff]
        %v1352 = vld [vmem:[#allocation4 + $0x180] sm:$0xff]
        %v1353 = vld [vmem:[#allocation4 + $0x188] sm:$0xff]
        %v1354 = vld [vmem:[#allocation4 + $0x190] sm:$0xff]
        %v1355 = vld [vmem:[#allocation4 + $0x198] sm:$0xff]
        %v1356 = vld [vmem:[#allocation4 + $0x1a0] sm:$0xff]
        %v1357 = vld [vmem:[#allocation4 + $0x1a8] sm:$0xff]
        %v1358 = vld [vmem:[#allocation4 + $0x1b0] sm:$0xf]
        %v1359 = vld [vmem:[#allocation4 + $0x1b8] sm:$0xf]
        %v1360 = vld [vmem:[#allocation4 + $0x1c0] sm:$0xf]
        %vm1361 = vcmask 318464
        %v1363 = vsel %vm1361, %v1306, 0
        %v1366 = vsel %vm1361, %v1309, 0
        %v1369 = vsel %vm1361, %v1312, 0
        %v1372 = vsel %vm1361, %v1315, 0
        %v1375 = vsel %vm1361, %v1318, 0
        %v1378 = vsel %vm1361, %v1321, 0
        %v1381 = vsel %vm1361, %v1324, 0
        %v1384 = vsel %vm1361, %v1327, 0
        %v1387 = vsel %vm1361, %v1330, 0
        %v1390 = vsel %vm1361, %v1333, 0
        %v1393 = vsel %vm1361, %v1336, 0
        %v1396 = vsel %vm1361, %v1339, 0
        %v1399 = vsel %vm1361, %v1342, 0
        %v1402 = vsel %vm1361, %v1345, 0
        %v1405 = vsel %vm1361, %v1348, 0
        %v1408 = vsel %vm1361, %v1351, 0
        %v1411 = vsel %vm1361, %v1354, 0
        %v1414 = vsel %vm1361, %v1357, 0
        %v1417 = vsel %vm1361, %v1360, 0
        %v1420 = vsel %vm1156, %v1303, 0
        %1422 = vmatprep.subr.mxu0 0.0
        %1423 = vmatpush1.msra.mxu0 %v1267
        %1424 = vmatprep.subr.mxu0 0.0
        %1425 = vmatpush1.msra.mxu0 %v1268
        %1426 = vmatprep.subr.mxu0 0.0
        %1427 = vmatpush1.msra.mxu0 %v1269
        %1428 = vmatprep.subr.mxu0 0.0
        %1429 = vmatpush1.msra.mxu0 %v1270
        %1430 = vmatprep.subr.mxu0 0.0
        %1431 = vmatpush1.msra.mxu0 %v1271
        %1432 = vmatprep.subr.mxu0 0.0
        %1433 = vmatpush1.msra.mxu0 %v1272
        %1434 = vmatprep.subr.mxu0 0.0
        %1435 = vmatpush1.msra.mxu0 %v1273
        %1436 = vmatprep.subr.mxu0 0.0
        %1437 = vmatpush1.msra.mxu0 %v1274
        %1438 = vmatprep.subr.mxu0 0.0
        %1439 = vmatpush1.msra.mxu0 %v1275
        %1440 = vmatprep.subr.mxu0 0.0
        %1441 = vmatpush1.msra.mxu0 %v1276
        %1442 = vmatprep.subr.mxu0 0.0
        %1443 = vmatpush1.msra.mxu0 %v1277
        %1444 = vmatprep.subr.mxu0 0.0
        %1445 = vmatpush1.msra.mxu0 %v1278
        %1446 = vmatprep.subr.mxu0 0.0
        %1447 = vmatpush1.msra.mxu0 %v1279
        %1448 = vmatprep.subr.mxu0 0.0
        %1449 = vmatpush1.msra.mxu0 %v1280
        %1450 = vmatprep.subr.mxu0 0.0
        %1451 = vmatpush1.msra.mxu0 %v1281
        %1452 = vmatprep.subr.mxu0 0.0
        %1453 = vmatpush1.msra.mxu0 %v1282
        %1454 = vmatprep.subr.mxu0 0.0
        %1455 = vmatpush1.msra.mxu0 %v1283
        %1456 = vmatprep.subr.mxu0 0.0
        %1457 = vmatpush1.msra.mxu0 %v1284
        %1458 = vmatprep.subr.mxu0 0.0
        %1459 = vmatpush1.msra.mxu0 %v1285
        %1460 = vmatprep.subr.mxu0 0.0
        %1461 = vmatpush1.msra.mxu0 %v1286
        %1462 = vmatprep.subr.mxu0 0.0
        %1463 = vmatpush1.msra.mxu0 %v1287
        %1464 = vmatprep.subr.mxu0 0.0
        %1465 = vmatpush1.msra.mxu0 %v1288
        %1466 = vmatprep.subr.mxu0 0.0
        %1467 = vmatpush1.msra.mxu0 %v1289
        %1468 = vmatprep.subr.mxu0 0.0
        %1469 = vmatpush1.msra.mxu0 %v1290
        %1470 = vmatprep.subr.mxu0 0.0
        %1471 = vmatpush1.msra.mxu0 %v1291
        %1472 = vmatprep.subr.mxu0 0.0
        %1473 = vmatpush1.msra.mxu0 %v1292
        %1474 = vmatprep.subr.mxu0 0.0
        %1475 = vmatpush1.msra.mxu0 %v1293
        %1476 = vmatprep.subr.mxu0 0.0
        %1477 = vmatpush1.msra.mxu0 %v1294
        %1478 = vmatprep.subr.mxu0 0.0
        %1479 = vmatpush1.msra.mxu0 %v1295
        %1480 = vmatprep.subr.mxu0 0.0
        %1481 = vmatpush1.msra.mxu0 %v1296
        %1482 = vmatprep.subr.mxu0 0.0
        %1483 = vmatpush1.msra.mxu0 %v1297
        %1484 = vmatprep.subr.mxu0 0.0
        %1485 = vmatpush1.msra.mxu0 %v1298
        %1486 = vmatprep.mubr.f32.mxu0 %v1305
        %1487 = vmatmul.mubr.f32.gmra.mrb[0].mxu0 %v1304
        %v1488 = vpop.f32.mrb[0].mxu0
        %v1489 = vadd.f32 0.0, %v1488
        %v1490 = vpop.f32.mrb[0].mxu0
        %1491 = vmatprep.mubr.f32.mxu0 %v1308
        %1492 = vmatmul.mubr.f32.gmra.mrb[0].mxu0 %v1307
        %v1493 = vpop.f32.mrb[0].mxu0
        %v1494 = vadd.f32 0.0, %v1493
        %v1495 = vpop.f32.mrb[0].mxu0
        %1496 = vmatprep.mubr.f32.mxu0 %v1311
        %1497 = vmatmul.mubr.f32.gmra.mrb[0].mxu0 %v1310
        %v1498 = vpop.f32.mrb[0].mxu0
        %v1499 = vadd.f32 0.0, %v1498
        %v1500 = vpop.f32.mrb[0].mxu0
        %1501 = vmatprep.mubr.f32.mxu0 %v1314
        %1502 = vmatmul.mubr.f32.gmra.mrb[0].mxu0 %v1313
        %v1503 = vpop.f32.mrb[0].mxu0
        %v1504 = vadd.f32 0.0, %v1503
        %v1505 = vpop.f32.mrb[0].mxu0
        %1506 = vmatprep.mubr.f32.mxu0 %v1317
        %1507 = vmatmul.mubr.f32.gmra.mrb[0].mxu0 %v1316
        %v1508 = vpop.f32.mrb[0].mxu0
        %v1509 = vadd.f32 0.0, %v1508
        %v1510 = vpop.f32.mrb[0].mxu0
        %1511 = vmatprep.mubr.f32.mxu0 %v1320
        %1512 = vmatmul.mubr.f32.gmra.mrb[0].mxu0 %v1319
        %v1513 = vpop.f32.mrb[0].mxu0
        %v1514 = vadd.f32 0.0, %v1513
        %v1515 = vpop.f32.mrb[0].mxu0
        %1516 = vmatprep.mubr.f32.mxu0 %v1323
        %1517 = vmatmul.mubr.f32.gmra.mrb[0].mxu0 %v1322
        %v1518 = vpop.f32.mrb[0].mxu0
        %v1519 = vadd.f32 0.0, %v1518
        %v1520 = vpop.f32.mrb[0].mxu0
        %1521 = vmatprep.mubr.f32.mxu0 %v1326
        %1522 = vmatmul.mubr.f32.gmra.mrb[0].mxu0 %v1325
        %v1523 = vpop.f32.mrb[0].mxu0
        %v1524 = vadd.f32 0.0, %v1523
        %v1525 = vpop.f32.mrb[0].mxu0
        %1526 = vmatprep.mubr.f32.mxu0 %v1329
        %1527 = vmatmul.mubr.f32.gmra.mrb[0].mxu0 %v1328
        %v1528 = vpop.f32.mrb[0].mxu0
        %v1529 = vadd.f32 0.0, %v1528
        %v1530 = vpop.f32.mrb[0].mxu0
        %1531 = vmatprep.mubr.f32.mxu0 %v1332
        %1532 = vmatmul.mubr.f32.gmra.mrb[0].mxu0 %v1331
        %v1533 = vpop.f32.mrb[0].mxu0
        %v1534 = vadd.f32 0.0, %v1533
        %v1535 = vpop.f32.mrb[0].mxu0
        %1536 = vmatprep.mubr.f32.mxu0 %v1335
        %1537 = vmatmul.mubr.f32.gmra.mrb[0].mxu0 %v1334
        %v1538 = vpop.f32.mrb[0].mxu0
        %v1539 = vadd.f32 0.0, %v1538
        %v1540 = vpop.f32.mrb[0].mxu0
        %1541 = vmatprep.mubr.f32.mxu0 %v1338
        %1542 = vmatmul.mubr.f32.gmra.mrb[0].mxu0 %v1337
        %v1543 = vpop.f32.mrb[0].mxu0
        %v1544 = vadd.f32 0.0, %v1543
        %v1545 = vpop.f32.mrb[0].mxu0
        %1546 = vmatprep.mubr.f32.mxu0 %v1341
        %1547 = vmatmul.mubr.f32.gmra.mrb[0].mxu0 %v1340
        %v1548 = vpop.f32.mrb[0].mxu0
        %v1549 = vadd.f32 0.0, %v1548
        %v1550 = vpop.f32.mrb[0].mxu0
        %1551 = vmatprep.mubr.f32.mxu0 %v1344
        %1552 = vmatmul.mubr.f32.gmra.mrb[0].mxu0 %v1343
        %v1553 = vpop.f32.mrb[0].mxu0
        %v1554 = vadd.f32 0.0, %v1553
        %v1555 = vpop.f32.mrb[0].mxu0
        %1556 = vmatprep.mubr.f32.mxu0 %v1347
        %1557 = vmatmul.mubr.f32.gmra.mrb[0].mxu0 %v1346
        %v1558 = vpop.f32.mrb[0].mxu0
        %v1559 = vadd.f32 0.0, %v1558
        %v1560 = vpop.f32.mrb[0].mxu0
        %1561 = vmatprep.mubr.f32.mxu0 %v1350
        %1562 = vmatmul.mubr.f32.gmra.mrb[0].mxu0 %v1349
        %v1563 = vpop.f32.mrb[0].mxu0
        %v1564 = vadd.f32 0.0, %v1563
        %v1565 = vpop.f32.mrb[0].mxu0
        %1566 = vmatprep.mubr.f32.mxu0 %v1353
        %1567 = vmatmul.mubr.f32.gmra.mrb[0].mxu0 %v1352
        %v1568 = vpop.f32.mrb[0].mxu0
        %v1569 = vadd.f32 0.0, %v1568
        %v1570 = vpop.f32.mrb[0].mxu0
        %1571 = vmatprep.mubr.f32.mxu0 %v1356
        %1572 = vmatmul.mubr.f32.gmra.mrb[0].mxu0 %v1355
        %v1573 = vpop.f32.mrb[0].mxu0
        %v1574 = vadd.f32 0.0, %v1573
        %v1575 = vpop.f32.mrb[0].mxu0
        %1576 = vmatprep.mubr.f32.mxu0 %v1359
        %1577 = vmatmul.mubr.f32.gmra.mrb[0].mxu0 %v1358
        %v1578 = vpop.f32.mrb[0].mxu0
        %v1579 = vadd.f32 0.0, %v1578
        %v1580 = vpop.f32.mrb[0].mxu0
        %1581 = vdwg.mxu0
        %1582 = vmatprep.subr.mxu0 0.0
        %1583 = vmatpush1.msra.mxu0 %v1299
        %1584 = vmatprep.subr.mxu0 0.0
        %1585 = vmatpush1.msra.mxu0 %v1300
        %1586 = vmatprep.subr.mxu0 0.0
        %1587 = vmatpush1.msra.mxu0 %v1301
        %1588 = vmatprep.subr.mxu0 0.0
        %1589 = vmatpush1.msra.mxu0 %v1302
        %1590 = vmatprep.subr.mxu0 0.0
        %1591 = vmatpush1.msra.mxu0 %v1420
        %1592 = vmatprep.subr.mxu0 0.0
        %1593 = vmatpush1.msra.mxu0 0.0
        %1594 = vmatprep.subr.mxu0 0.0
        %1595 = vmatpush1.msra.mxu0 0.0
        %1596 = vmatprep.subr.mxu0 0.0
        %1597 = vmatpush1.msra.mxu0 0.0
        %1598 = vmatprep.subr.mxu0 0.0
        %1599 = vmatpush1.msra.mxu0 0.0
        %1600 = vmatprep.subr.mxu0 0.0
        %1601 = vmatpush1.msra.mxu0 0.0
        %1602 = vmatprep.subr.mxu0 0.0
        %1603 = vmatpush1.msra.mxu0 0.0
        %1604 = vmatprep.subr.mxu0 0.0
        %1605 = vmatpush1.msra.mxu0 0.0
        %1606 = vmatprep.subr.mxu0 0.0
        %1607 = vmatpush1.msra.mxu0 0.0
        %1608 = vmatprep.subr.mxu0 0.0
        %1609 = vmatpush1.msra.mxu0 0.0
        %1610 = vmatprep.subr.mxu0 0.0
        %1611 = vmatpush1.msra.mxu0 0.0
        %1612 = vmatprep.subr.mxu0 0.0
        %1613 = vmatpush1.msra.mxu0 0.0
        %1614 = vmatprep.subr.mxu0 0.0
        %1615 = vmatpush1.msra.mxu0 0.0
        %1616 = vmatprep.subr.mxu0 0.0
        %1617 = vmatpush1.msra.mxu0 0.0
        %1618 = vmatprep.subr.mxu0 0.0
        %1619 = vmatpush1.msra.mxu0 0.0
        %1620 = vmatprep.subr.mxu0 0.0
        %1621 = vmatpush1.msra.mxu0 0.0
        %1622 = vmatprep.subr.mxu0 0.0
        %1623 = vmatpush1.msra.mxu0 0.0
        %1624 = vmatprep.subr.mxu0 0.0
        %1625 = vmatpush1.msra.mxu0 0.0
        %1626 = vmatprep.subr.mxu0 0.0
        %1627 = vmatpush1.msra.mxu0 0.0
        %1628 = vmatprep.subr.mxu0 0.0
        %1629 = vmatpush1.msra.mxu0 0.0
        %1630 = vmatprep.subr.mxu0 0.0
        %1631 = vmatpush1.msra.mxu0 0.0
        %1632 = vmatprep.subr.mxu0 0.0
        %1633 = vmatpush1.msra.mxu0 0.0
        %1634 = vmatprep.subr.mxu0 0.0
        %1635 = vmatpush1.msra.mxu0 0.0
        %1636 = vmatprep.subr.mxu0 0.0
        %1637 = vmatpush1.msra.mxu0 0.0
        %1638 = vmatprep.subr.mxu0 0.0
        %1639 = vmatpush1.msra.mxu0 0.0
        %1640 = vmatprep.subr.mxu0 0.0
        %1641 = vmatpush1.msra.mxu0 0.0
        %1642 = vmatprep.subr.mxu0 0.0
        %1643 = vmatpush1.msra.mxu0 0.0
        %1644 = vmatprep.subr.mxu0 0.0
        %1645 = vmatpush1.msra.mxu0 0.0
        %1646 = vmatprep.mubr.f32.mxu0 0.0
        %1647 = vmatmul.mubr.f32.gmra.mrb[0].mxu0 %v1363
        %v1648 = vpop.f32.mrb[0].mxu0
        %v1649 = vadd.f32 %v1489, %v1648
        %v1650 = vpop.f32.mrb[0].mxu0
        %1651 = vmatprep.mubr.f32.mxu0 0.0
        %1652 = vmatmul.mubr.f32.gmra.mrb[0].mxu0 %v1366
        %v1653 = vpop.f32.mrb[0].mxu0
        %v1654 = vadd.f32 %v1494, %v1653
        %v1655 = vpop.f32.mrb[0].mxu0
        %1656 = vmatprep.mubr.f32.mxu0 0.0
        %1657 = vmatmul.mubr.f32.gmra.mrb[0].mxu0 %v1369
        %v1658 = vpop.f32.mrb[0].mxu0
        %v1659 = vadd.f32 %v1499, %v1658
        %v1660 = vpop.f32.mrb[0].mxu0
        %1661 = vmatprep.mubr.f32.mxu0 0.0
        %1662 = vmatmul.mubr.f32.gmra.mrb[0].mxu0 %v1372
        %v1663 = vpop.f32.mrb[0].mxu0
        %v1664 = vadd.f32 %v1504, %v1663
        %v1665 = vpop.f32.mrb[0].mxu0
        %1666 = vmatprep.mubr.f32.mxu0 0.0
        %1667 = vmatmul.mubr.f32.gmra.mrb[0].mxu0 %v1375
        %v1668 = vpop.f32.mrb[0].mxu0
        %v1669 = vadd.f32 %v1509, %v1668
        %v1670 = vpop.f32.mrb[0].mxu0
        %1671 = vmatprep.mubr.f32.mxu0 0.0
        %1672 = vmatmul.mubr.f32.gmra.mrb[0].mxu0 %v1378
        %v1673 = vpop.f32.mrb[0].mxu0
        %v1674 = vadd.f32 %v1514, %v1673
        %v1675 = vpop.f32.mrb[0].mxu0
        %1676 = vmatprep.mubr.f32.mxu0 0.0
        %1677 = vmatmul.mubr.f32.gmra.mrb[0].mxu0 %v1381
        %v1678 = vpop.f32.mrb[0].mxu0
        %v1679 = vadd.f32 %v1519, %v1678
        %v1680 = vpop.f32.mrb[0].mxu0
        %1681 = vmatprep.mubr.f32.mxu0 0.0
        %1682 = vmatmul.mubr.f32.gmra.mrb[0].mxu0 %v1384
        %v1683 = vpop.f32.mrb[0].mxu0
        %v1684 = vadd.f32 %v1524, %v1683
        %v1685 = vpop.f32.mrb[0].mxu0
        %1686 = vmatprep.mubr.f32.mxu0 0.0
        %1687 = vmatmul.mubr.f32.gmra.mrb[0].mxu0 %v1387
        %v1688 = vpop.f32.mrb[0].mxu0
        %v1689 = vadd.f32 %v1529, %v1688
        %v1690 = vpop.f32.mrb[0].mxu0
        %1691 = vmatprep.mubr.f32.mxu0 0.0
        %1692 = vmatmul.mubr.f32.gmra.mrb[0].mxu0 %v1390
        %v1693 = vpop.f32.mrb[0].mxu0
        %v1694 = vadd.f32 %v1534, %v1693
        %v1695 = vpop.f32.mrb[0].mxu0
        %1696 = vmatprep.mubr.f32.mxu0 0.0
        %1697 = vmatmul.mubr.f32.gmra.mrb[0].mxu0 %v1393
        %v1698 = vpop.f32.mrb[0].mxu0
        %v1699 = vadd.f32 %v1539, %v1698
        %v1700 = vpop.f32.mrb[0].mxu0
        %1701 = vmatprep.mubr.f32.mxu0 0.0
        %1702 = vmatmul.mubr.f32.gmra.mrb[0].mxu0 %v1396
        %v1703 = vpop.f32.mrb[0].mxu0
        %v1704 = vadd.f32 %v1544, %v1703
        %v1705 = vpop.f32.mrb[0].mxu0
        %1706 = vmatprep.mubr.f32.mxu0 0.0
        %1707 = vmatmul.mubr.f32.gmra.mrb[0].mxu0 %v1399
        %v1708 = vpop.f32.mrb[0].mxu0
        %v1709 = vadd.f32 %v1549, %v1708
        %v1710 = vpop.f32.mrb[0].mxu0
        %1711 = vmatprep.mubr.f32.mxu0 0.0
        %1712 = vmatmul.mubr.f32.gmra.mrb[0].mxu0 %v1402
        %v1713 = vpop.f32.mrb[0].mxu0
        %v1714 = vadd.f32 %v1554, %v1713
        %v1715 = vpop.f32.mrb[0].mxu0
        %1716 = vmatprep.mubr.f32.mxu0 0.0
        %1717 = vmatmul.mubr.f32.gmra.mrb[0].mxu0 %v1405
        %v1718 = vpop.f32.mrb[0].mxu0
        %v1719 = vadd.f32 %v1559, %v1718
        %v1720 = vpop.f32.mrb[0].mxu0
        %1721 = vmatprep.mubr.f32.mxu0 0.0
        %1722 = vmatmul.mubr.f32.gmra.mrb[0].mxu0 %v1408
        %v1723 = vpop.f32.mrb[0].mxu0
        %v1724 = vadd.f32 %v1564, %v1723
        %v1725 = vpop.f32.mrb[0].mxu0
        %1726 = vmatprep.mubr.f32.mxu0 0.0
        %1727 = vmatmul.mubr.f32.gmra.mrb[0].mxu0 %v1411
        %v1728 = vpop.f32.mrb[0].mxu0
        %v1729 = vadd.f32 %v1569, %v1728
        %v1730 = vpop.f32.mrb[0].mxu0
        %1731 = vmatprep.mubr.f32.mxu0 0.0
        %1732 = vmatmul.mubr.f32.gmra.mrb[0].mxu0 %v1414
        %v1733 = vpop.f32.mrb[0].mxu0
        %v1734 = vadd.f32 %v1574, %v1733
        %v1735 = vpop.f32.mrb[0].mxu0
        %1736 = vmatprep.mubr.f32.mxu0 0.0
        %1737 = vmatmul.mubr.f32.gmra.mrb[0].mxu0 %v1417
        %v1738 = vpop.f32.mrb[0].mxu0
        %v1739 = vadd.f32 %v1579, %v1738
        %v1740 = vpop.f32.mrb[0].mxu0
        %1741 = vdwg.mxu0
        %1742 = vst [vmem:[#allocation2 + $0x1] sm:$0xff] %v1649
        %1743 = vst [vmem:[#allocation2 + $0x9] sm:$0xff] %v1654
        %1744 = vst [vmem:[#allocation2 + $0x11] sm:$0xff] %v1659
        %1745 = vst [vmem:[#allocation2 + $0x19] sm:$0xff] %v1664
        %1746 = vst [vmem:[#allocation2 + $0x21] sm:$0xff] %v1669
        %1747 = vst [vmem:[#allocation2 + $0x29] sm:$0xff] %v1674
        %1748 = vst [vmem:[#allocation2 + $0x31] sm:$0xff] %v1679
        %1749 = vst [vmem:[#allocation2 + $0x39] sm:$0xff] %v1684
        %1750 = vst [vmem:[#allocation2 + $0x41] sm:$0xff] %v1689
        %1751 = vst [vmem:[#allocation2 + $0x49] sm:$0xff] %v1694
        %1752 = vst [vmem:[#allocation2 + $0x51] sm:$0xff] %v1699
        %1753 = vst [vmem:[#allocation2 + $0x59] sm:$0xff] %v1704
        %1754 = vst [vmem:[#allocation2 + $0x61] sm:$0xff] %v1709
        %1755 = vst [vmem:[#allocation2 + $0x69] sm:$0xff] %v1714
        %1756 = vst [vmem:[#allocation2 + $0x71] sm:$0xff] %v1719
        %1757 = vst [vmem:[#allocation2 + $0x79] sm:$0xff] %v1724
        %1758 = vst [vmem:[#allocation2 + $0x81] sm:$0xff] %v1729
        %1759 = vst [vmem:[#allocation2 + $0x89] sm:$0xff] %v1734
        %1760 = vst [vmem:[#allocation2 + $0x91] sm:$0xf] %v1739
        %v1761 = vld [vmem:[#allocation14] sm:$0x3]
        %v1762 = vld [vmem:[#allocation15] sm:$0x3]
        %v1763 = vld [vmem:[#allocation2] sm:$0xff]
        %v1764 = vld [vmem:[#allocation2 + $0x8] sm:$0xff]
        %v1765 = vld [vmem:[#allocation2 + $0x10] sm:$0xff]
        %v1766 = vld [vmem:[#allocation2 + $0x18] sm:$0xff]
        %v1767 = vld [vmem:[#allocation2 + $0x20] sm:$0xff]
        %v1768 = vld [vmem:[#allocation2 + $0x28] sm:$0xff]
        %v1769 = vld [vmem:[#allocation2 + $0x30] sm:$0xff]
        %v1770 = vld [vmem:[#allocation2 + $0x38] sm:$0xff]
        %v1771 = vld [vmem:[#allocation2 + $0x40] sm:$0xff]
        %v1772 = vld [vmem:[#allocation2 + $0x48] sm:$0xff]
        %v1773 = vld [vmem:[#allocation2 + $0x50] sm:$0xff]
        %v1774 = vld [vmem:[#allocation2 + $0x58] sm:$0xff]
        %v1775 = vld [vmem:[#allocation2 + $0x60] sm:$0xff]
        %v1776 = vld [vmem:[#allocation2 + $0x68] sm:$0xff]
        %v1777 = vld [vmem:[#allocation2 + $0x70] sm:$0xff]
        %v1778 = vld [vmem:[#allocation2 + $0x78] sm:$0xff]
        %v1779 = vld [vmem:[#allocation2 + $0x80] sm:$0xff]
        %v1780 = vld [vmem:[#allocation2 + $0x88] sm:$0xff]
        %v1781 = vld [vmem:[#allocation2 + $0x90] sm:$0x3f]
        %v1782 = vpack.c.bf16 %v1764, %v1763
        %v1783 = vpack.c.bf16 %v1766, %v1765
        %v1784 = vpack.c.bf16 %v1768, %v1767
        %v1785 = vpack.c.bf16 %v1770, %v1769
        %v1786 = vpack.c.bf16 %v1772, %v1771
        %v1787 = vpack.c.bf16 %v1774, %v1773
        %v1788 = vpack.c.bf16 %v1776, %v1775
        %v1789 = vpack.c.bf16 %v1778, %v1777
        %v1790 = vpack.c.bf16 %v1780, %v1779
        %v1791 = vpack.c.bf16 %v1781, %v1781
        %v1792 = vld [vmem:[#allocation12] sm:$0xff]
        %v1793 = vld [vmem:[#allocation12 + $0x8] sm:$0xff]
        %v1794 = vld [vmem:[#allocation12 + $0x10] sm:$0xff]
        %v1795 = vld [vmem:[#allocation12 + $0x18] sm:$0xff]
        %v1796 = vld [vmem:[#allocation12 + $0x20] sm:$0xff]
        %v1797 = vld [vmem:[#allocation12 + $0x28] sm:$0xff]
        %v1798 = vld [vmem:[#allocation12 + $0x30] sm:$0xff]
        %v1799 = vld [vmem:[#allocation12 + $0x38] sm:$0xff]
        %v1800 = vld [vmem:[#allocation12 + $0x40] sm:$0xff]
        %v1801 = vld [vmem:[#allocation12 + $0x48] sm:$0xff]
        %v1802 = vld [vmem:[#allocation12 + $0x50] sm:$0xff]
        %v1803 = vld [vmem:[#allocation12 + $0x58] sm:$0xff]
        %v1804 = vld [vmem:[#allocation12 + $0x60] sm:$0xff]
        %v1805 = vld [vmem:[#allocation12 + $0x68] sm:$0xff]
        %v1806 = vld [vmem:[#allocation12 + $0x70] sm:$0xff]
        %v1807 = vld [vmem:[#allocation12 + $0x78] sm:$0xff]
        %s1808 = scalar_lea.vmem [#allocation12], 128
        %v1809 = vld [vmem:[%s1808] sm:$0xff]
        %v1810 = vld [vmem:[%s1808 + $0x8] sm:$0xff]
        %v1811 = vld [vmem:[%s1808 + $0x10] sm:$0xff]
        %v1812 = vld [vmem:[%s1808 + $0x18] sm:$0xff]
        %v1813 = vld [vmem:[%s1808 + $0x20] sm:$0xff]
        %v1814 = vld [vmem:[%s1808 + $0x28] sm:$0xff]
        %v1815 = vld [vmem:[%s1808 + $0x30] sm:$0xff]
        %v1816 = vld [vmem:[%s1808 + $0x38] sm:$0xff]
        %v1817 = vld [vmem:[%s1808 + $0x40] sm:$0xff]
        %v1818 = vld [vmem:[%s1808 + $0x48] sm:$0xff]
        %v1819 = vld [vmem:[%s1808 + $0x50] sm:$0xff]
        %v1820 = vld [vmem:[%s1808 + $0x58] sm:$0xff]
        %v1821 = vld [vmem:[%s1808 + $0x60] sm:$0xff]
        %v1822 = vld [vmem:[%s1808 + $0x68] sm:$0xff]
        %v1823 = vld [vmem:[%s1808 + $0x70] sm:$0xff]
        %v1824 = vld [vmem:[%s1808 + $0x78] sm:$0xff]
        %vm1825 = vsmask.f32 7424
        %v1827 = vshrl.u32 %v1782, 16
        %v1829 = vshll.u32 %v1782, 16
        %v1831 = vrot.slane %v1829, 1
        %v1832 = vor.u32 %v1827, %v1831
        %v1834 = vshll.u32 %v1783, 16
        %v1836 = vrot.slane %v1834, 1
        %v1837 = vsel %vm1825, %v1832, %v1836
        %v1838 = vshrl.u32 %v1783, 16
        %v1840 = vor.u32 %v1838, %v1836
        %v1842 = vshll.u32 %v1784, 16
        %v1844 = vrot.slane %v1842, 1
        %v1845 = vsel %vm1825, %v1840, %v1844
        %v1846 = vshrl.u32 %v1784, 16
        %v1848 = vor.u32 %v1846, %v1844
        %v1850 = vshll.u32 %v1785, 16
        %v1852 = vrot.slane %v1850, 1
        %v1853 = vsel %vm1825, %v1848, %v1852
        %v1854 = vshrl.u32 %v1785, 16
        %v1856 = vor.u32 %v1854, %v1852
        %v1858 = vshll.u32 %v1786, 16
        %v1860 = vrot.slane %v1858, 1
        %v1861 = vsel %vm1825, %v1856, %v1860
        %v1862 = vshrl.u32 %v1786, 16
        %v1864 = vor.u32 %v1862, %v1860
        %v1866 = vshll.u32 %v1787, 16
        %v1868 = vrot.slane %v1866, 1
        %v1869 = vsel %vm1825, %v1864, %v1868
        %v1870 = vshrl.u32 %v1787, 16
        %v1872 = vor.u32 %v1870, %v1868
        %v1874 = vshll.u32 %v1788, 16
        %v1876 = vrot.slane %v1874, 1
        %v1877 = vsel %vm1825, %v1872, %v1876
        %v1878 = vshrl.u32 %v1788, 16
        %v1880 = vor.u32 %v1878, %v1876
        %v1882 = vshll.u32 %v1789, 16
        %v1884 = vrot.slane %v1882, 1
        %v1885 = vsel %vm1825, %v1880, %v1884
        %v1886 = vshrl.u32 %v1789, 16
        %v1888 = vor.u32 %v1886, %v1884
        %v1890 = vshll.u32 %v1790, 16
        %v1892 = vrot.slane %v1890, 1
        %v1893 = vsel %vm1825, %v1888, %v1892
        %v1894 = vshrl.u32 %v1790, 16
        %v1896 = vor.u32 %v1894, %v1892
        %v1898 = vshll.u32 %v1791, 16
        %v1900 = vrot.slane %v1898, 1
        %v1901 = vsel %vm1825, %v1896, %v1900
        %v1902 = vshrl.u32 %v1791, 16
        %v1904 = vor.u32 %v1902, %v1900
        %v1931 = vunpack.c.l.b16 %v1809
        %v1932 = vunpack.c.h.b16 %v1809
        %v1933 = vunpack.c.l.b16 %v1810
        %v1934 = vunpack.c.h.b16 %v1810
        %v1935 = vunpack.c.l.b16 %v1811
        %v1936 = vunpack.c.h.b16 %v1811
        %v1937 = vunpack.c.l.b16 %v1812
        %v1938 = vunpack.c.h.b16 %v1812
        %v1939 = vunpack.c.l.b16 %v1813
        %v1940 = vunpack.c.h.b16 %v1813
        %v1941 = vunpack.c.l.b16 %v1814
        %v1942 = vunpack.c.h.b16 %v1814
        %v1943 = vunpack.c.l.b16 %v1815
        %v1944 = vunpack.c.h.b16 %v1815
        %v1945 = vunpack.c.l.b16 %v1816
        %v1946 = vunpack.c.h.b16 %v1816
        %v1947 = vunpack.c.l.b16 %v1817
        %v1948 = vunpack.c.h.b16 %v1817
        %v1949 = vunpack.c.l.b16 %v1818
        %v1950 = vunpack.c.h.b16 %v1818
        %v1951 = vunpack.c.l.b16 %v1819
        %v1952 = vunpack.c.h.b16 %v1819
        %v1953 = vunpack.c.l.b16 %v1820
        %v1954 = vunpack.c.h.b16 %v1820
        %v1955 = vunpack.c.l.b16 %v1821
        %v1956 = vunpack.c.h.b16 %v1821
        %v1957 = vunpack.c.l.b16 %v1822
        %v1958 = vunpack.c.h.b16 %v1822
        %v1959 = vunpack.c.l.b16 %v1823
        %v1960 = vunpack.c.h.b16 %v1823
        %v1961 = vunpack.c.l.b16 %v1824
        %v1962 = vunpack.c.h.b16 %v1824
        %v1963 = vpack.c.b16 %v1933, %v1931
        %v1964 = vpack.c.b16 %v1934, %v1932
        %v1965 = vpack.c.b16 %v1937, %v1935
        %v1966 = vpack.c.b16 %v1938, %v1936
        %v1967 = vpack.c.b16 %v1941, %v1939
        %v1968 = vpack.c.b16 %v1942, %v1940
        %v1969 = vpack.c.b16 %v1945, %v1943
        %v1970 = vpack.c.b16 %v1946, %v1944
        %v1971 = vpack.c.b16 %v1949, %v1947
        %v1972 = vpack.c.b16 %v1950, %v1948
        %v1973 = vpack.c.b16 %v1953, %v1951
        %v1974 = vpack.c.b16 %v1954, %v1952
        %v1975 = vpack.c.b16 %v1957, %v1955
        %v1976 = vpack.c.b16 %v1958, %v1956
        %v1977 = vpack.c.b16 %v1961, %v1959
        %v1978 = vpack.c.b16 %v1962, %v1960
        %1995 = vmatprep.subr.bf16.mxu0 %v1964
        %1996 = vmatpush1.bf16.msra.mxu0 %v1963
        %1997 = vmatprep.subr.bf16.mxu0 %v1966
        %1998 = vmatpush1.bf16.msra.mxu0 %v1965
        %1999 = vmatprep.subr.bf16.mxu0 %v1968
        %2000 = vmatpush1.bf16.msra.mxu0 %v1967
        %2001 = vmatprep.subr.bf16.mxu0 %v1970
        %2002 = vmatpush1.bf16.msra.mxu0 %v1969
        %2003 = vmatprep.subr.bf16.mxu0 %v1972
        %2004 = vmatpush1.bf16.msra.mxu0 %v1971
        %2005 = vmatprep.subr.bf16.mxu0 %v1974
        %2006 = vmatpush1.bf16.msra.mxu0 %v1973
        %2007 = vmatprep.subr.bf16.mxu0 %v1976
        %2008 = vmatpush1.bf16.msra.mxu0 %v1975
        %2009 = vmatprep.subr.bf16.mxu0 %v1978
        %2010 = vmatpush1.bf16.msra.mxu0 %v1977
        %2011 = vmatprep.subr.bf16.mxu0 0
        %2012 = vmatpush1.bf16.msra.mxu0 0
        %2013 = vmatprep.subr.bf16.mxu0 0
        %2014 = vmatpush1.bf16.msra.mxu0 0
        %2015 = vmatprep.subr.bf16.mxu0 0
        %2016 = vmatpush1.bf16.msra.mxu0 0
        %2017 = vmatprep.subr.bf16.mxu0 0
        %2018 = vmatpush1.bf16.msra.mxu0 0
        %2019 = vmatprep.subr.bf16.mxu0 0
        %2020 = vmatpush1.bf16.msra.mxu0 0
        %2021 = vmatprep.subr.bf16.mxu0 0
        %2022 = vmatpush1.bf16.msra.mxu0 0
        %2023 = vmatprep.subr.bf16.mxu0 0
        %2024 = vmatpush1.bf16.msra.mxu0 0
        %2025 = vmatprep.subr.bf16.mxu0 0
        %2026 = vmatpush1.bf16.msra.mxu0 0
        %2027 = vmatprep.mubr.bf16.mxu0 0
        %2028 = vmatmul.mubr.bf16.gmra.mrb[0].mxu0 %v1837
        %v2029 = vpop.f32.mrb[0].mxu0
        %v2030 = vadd.f32 0.0, %v2029
        %v2031 = vpop.f32.mrb[0].mxu0
        %v2032 = vadd.f32 0.0, %v2031
        %v2033 = vpop.f32.mrb[0].mxu0
        %v2034 = vadd.f32 0.0, %v2033
        %v2035 = vpop.f32.mrb[0].mxu0
        %v2036 = vadd.f32 0.0, %v2035
        %2037 = vmatprep.mubr.bf16.mxu0 0
        %2038 = vmatmul.mubr.bf16.gmra.mrb[0].mxu0 %v1845
        %v2039 = vpop.f32.mrb[0].mxu0
        %v2040 = vadd.f32 0.0, %v2039
        %v2041 = vpop.f32.mrb[0].mxu0
        %v2042 = vadd.f32 0.0, %v2041
        %v2043 = vpop.f32.mrb[0].mxu0
        %v2044 = vadd.f32 0.0, %v2043
        %v2045 = vpop.f32.mrb[0].mxu0
        %v2046 = vadd.f32 0.0, %v2045
        %2047 = vmatprep.mubr.bf16.mxu0 0
        %2048 = vmatmul.mubr.bf16.gmra.mrb[0].mxu0 %v1853
        %v2049 = vpop.f32.mrb[0].mxu0
        %v2050 = vadd.f32 0.0, %v2049
        %v2051 = vpop.f32.mrb[0].mxu0
        %v2052 = vadd.f32 0.0, %v2051
        %v2053 = vpop.f32.mrb[0].mxu0
        %v2054 = vadd.f32 0.0, %v2053
        %v2055 = vpop.f32.mrb[0].mxu0
        %v2056 = vadd.f32 0.0, %v2055
        %2057 = vmatprep.mubr.bf16.mxu0 0
        %2058 = vmatmul.mubr.bf16.gmra.mrb[0].mxu0 %v1861
        %v2059 = vpop.f32.mrb[0].mxu0
        %v2060 = vadd.f32 0.0, %v2059
        %v2061 = vpop.f32.mrb[0].mxu0
        %v2062 = vadd.f32 0.0, %v2061
        %v2063 = vpop.f32.mrb[0].mxu0
        %v2064 = vadd.f32 0.0, %v2063
        %v2065 = vpop.f32.mrb[0].mxu0
        %v2066 = vadd.f32 0.0, %v2065
        %2067 = vmatprep.mubr.bf16.mxu0 0
        %2068 = vmatmul.mubr.bf16.gmra.mrb[0].mxu0 %v1869
        %v2069 = vpop.f32.mrb[0].mxu0
        %v2070 = vadd.f32 0.0, %v2069
        %v2071 = vpop.f32.mrb[0].mxu0
        %v2072 = vadd.f32 0.0, %v2071
        %v2073 = vpop.f32.mrb[0].mxu0
        %v2074 = vadd.f32 0.0, %v2073
        %v2075 = vpop.f32.mrb[0].mxu0
        %v2076 = vadd.f32 0.0, %v2075
        %2077 = vmatprep.mubr.bf16.mxu0 0
        %2078 = vmatmul.mubr.bf16.gmra.mrb[0].mxu0 %v1877
        %v2079 = vpop.f32.mrb[0].mxu0
        %v2080 = vadd.f32 0.0, %v2079
        %v2081 = vpop.f32.mrb[0].mxu0
        %v2082 = vadd.f32 0.0, %v2081
        %v2083 = vpop.f32.mrb[0].mxu0
        %v2084 = vadd.f32 0.0, %v2083
        %v2085 = vpop.f32.mrb[0].mxu0
        %v2086 = vadd.f32 0.0, %v2085
        %2087 = vmatprep.mubr.bf16.mxu0 0
        %2088 = vmatmul.mubr.bf16.gmra.mrb[0].mxu0 %v1885
        %v2089 = vpop.f32.mrb[0].mxu0
        %v2090 = vadd.f32 0.0, %v2089
        %v2091 = vpop.f32.mrb[0].mxu0
        %v2092 = vadd.f32 0.0, %v2091
        %v2093 = vpop.f32.mrb[0].mxu0
        %v2094 = vadd.f32 0.0, %v2093
        %v2095 = vpop.f32.mrb[0].mxu0
        %v2096 = vadd.f32 0.0, %v2095
        %2097 = vmatprep.mubr.bf16.mxu0 0
        %2098 = vmatmul.mubr.bf16.gmra.mrb[0].mxu0 %v1893
        %v2099 = vpop.f32.mrb[0].mxu0
        %v2100 = vadd.f32 0.0, %v2099
        %v2101 = vpop.f32.mrb[0].mxu0
        %v2102 = vadd.f32 0.0, %v2101
        %v2103 = vpop.f32.mrb[0].mxu0
        %v2104 = vadd.f32 0.0, %v2103
        %v2105 = vpop.f32.mrb[0].mxu0
        %v2106 = vadd.f32 0.0, %v2105
        %2107 = vmatprep.mubr.bf16.mxu0 0
        %2108 = vmatmul.mubr.bf16.gmra.mrb[0].mxu0 %v1901
        %v2109 = vpop.f32.mrb[0].mxu0
        %v2110 = vadd.f32 0.0, %v2109
        %v2111 = vpop.f32.mrb[0].mxu0
        %v2112 = vadd.f32 0.0, %v2111
        %v2113 = vpop.f32.mrb[0].mxu0
        %v2114 = vadd.f32 0.0, %v2113
        %v2115 = vpop.f32.mrb[0].mxu0
        %v2116 = vadd.f32 0.0, %v2115
        %2117 = vmatprep.mubr.bf16.mxu0 0
        %2118 = vmatmul.mubr.bf16.gmra.mrb[0].mxu0 %v1904
        %v2119 = vpop.f32.mrb[0].mxu0
        %v2120 = vadd.f32 0.0, %v2119
        %v2121 = vpop.f32.mrb[0].mxu0
        %v2122 = vadd.f32 0.0, %v2121
        %v2123 = vpop.f32.mrb[0].mxu0
        %v2124 = vpop.f32.mrb[0].mxu0
        %2125 = vdwg.mxu0
        %v2142 = vunpack.c.l.b16 %v1792
        %v2143 = vunpack.c.h.b16 %v1792
        %v2144 = vunpack.c.l.b16 %v1793
        %v2145 = vunpack.c.h.b16 %v1793
        %v2146 = vunpack.c.l.b16 %v1794
        %v2147 = vunpack.c.h.b16 %v1794
        %v2148 = vunpack.c.l.b16 %v1795
        %v2149 = vunpack.c.h.b16 %v1795
        %v2150 = vunpack.c.l.b16 %v1796
        %v2151 = vunpack.c.h.b16 %v1796
        %v2152 = vunpack.c.l.b16 %v1797
        %v2153 = vunpack.c.h.b16 %v1797
        %v2154 = vunpack.c.l.b16 %v1798
        %v2155 = vunpack.c.h.b16 %v1798
        %v2156 = vunpack.c.l.b16 %v1799
        %v2157 = vunpack.c.h.b16 %v1799
        %v2158 = vunpack.c.l.b16 %v1800
        %v2159 = vunpack.c.h.b16 %v1800
        %v2160 = vunpack.c.l.b16 %v1801
        %v2161 = vunpack.c.h.b16 %v1801
        %v2162 = vunpack.c.l.b16 %v1802
        %v2163 = vunpack.c.h.b16 %v1802
        %v2164 = vunpack.c.l.b16 %v1803
        %v2165 = vunpack.c.h.b16 %v1803
        %v2166 = vunpack.c.l.b16 %v1804
        %v2167 = vunpack.c.h.b16 %v1804
        %v2168 = vunpack.c.l.b16 %v1805
        %v2169 = vunpack.c.h.b16 %v1805
        %v2170 = vunpack.c.l.b16 %v1806
        %v2171 = vunpack.c.h.b16 %v1806
        %v2172 = vunpack.c.l.b16 %v1807
        %v2173 = vunpack.c.h.b16 %v1807
        %v2174 = vpack.c.b16 %v2144, %v2142
        %v2175 = vpack.c.b16 %v2145, %v2143
        %v2176 = vpack.c.b16 %v2148, %v2146
        %v2177 = vpack.c.b16 %v2149, %v2147
        %v2178 = vpack.c.b16 %v2152, %v2150
        %v2179 = vpack.c.b16 %v2153, %v2151
        %v2180 = vpack.c.b16 %v2156, %v2154
        %v2181 = vpack.c.b16 %v2157, %v2155
        %v2182 = vpack.c.b16 %v2160, %v2158
        %v2183 = vpack.c.b16 %v2161, %v2159
        %v2184 = vpack.c.b16 %v2164, %v2162
        %v2185 = vpack.c.b16 %v2165, %v2163
        %v2186 = vpack.c.b16 %v2168, %v2166
        %v2187 = vpack.c.b16 %v2169, %v2167
        %v2188 = vpack.c.b16 %v2172, %v2170
        %v2189 = vpack.c.b16 %v2173, %v2171
        %2206 = vmatprep.subr.bf16.mxu0 %v2175
        %2207 = vmatpush1.bf16.msra.mxu0 %v2174
        %2208 = vmatprep.subr.bf16.mxu0 %v2177
        %2209 = vmatpush1.bf16.msra.mxu0 %v2176
        %2210 = vmatprep.subr.bf16.mxu0 %v2179
        %2211 = vmatpush1.bf16.msra.mxu0 %v2178
        %2212 = vmatprep.subr.bf16.mxu0 %v2181
        %2213 = vmatpush1.bf16.msra.mxu0 %v2180
        %2214 = vmatprep.subr.bf16.mxu0 %v2183
        %2215 = vmatpush1.bf16.msra.mxu0 %v2182
        %2216 = vmatprep.subr.bf16.mxu0 %v2185
        %2217 = vmatpush1.bf16.msra.mxu0 %v2184
        %2218 = vmatprep.subr.bf16.mxu0 %v2187
        %2219 = vmatpush1.bf16.msra.mxu0 %v2186
        %2220 = vmatprep.subr.bf16.mxu0 %v2189
        %2221 = vmatpush1.bf16.msra.mxu0 %v2188
        %2222 = vmatprep.subr.bf16.mxu0 0
        %2223 = vmatpush1.bf16.msra.mxu0 0
        %2224 = vmatprep.subr.bf16.mxu0 0
        %2225 = vmatpush1.bf16.msra.mxu0 0
        %2226 = vmatprep.subr.bf16.mxu0 0
        %2227 = vmatpush1.bf16.msra.mxu0 0
        %2228 = vmatprep.subr.bf16.mxu0 0
        %2229 = vmatpush1.bf16.msra.mxu0 0
        %2230 = vmatprep.subr.bf16.mxu0 0
        %2231 = vmatpush1.bf16.msra.mxu0 0
        %2232 = vmatprep.subr.bf16.mxu0 0
        %2233 = vmatpush1.bf16.msra.mxu0 0
        %2234 = vmatprep.subr.bf16.mxu0 0
        %2235 = vmatpush1.bf16.msra.mxu0 0
        %2236 = vmatprep.subr.bf16.mxu0 0
        %2237 = vmatpush1.bf16.msra.mxu0 0
        %2238 = vmatprep.mubr.bf16.mxu0 0
        %2239 = vmatmul.mubr.bf16.gmra.mrb[0].mxu0 %v1782
        %v2240 = vpop.f32.mrb[0].mxu0
        %v2241 = vadd.f32 %v2030, %v2240
        %v2242 = vpop.f32.mrb[0].mxu0
        %v2243 = vadd.f32 %v2032, %v2242
        %v2244 = vpop.f32.mrb[0].mxu0
        %v2245 = vadd.f32 %v2034, %v2244
        %v2246 = vpop.f32.mrb[0].mxu0
        %v2247 = vadd.f32 %v2036, %v2246
        %2248 = vmatprep.mubr.bf16.mxu0 0
        %2249 = vmatmul.mubr.bf16.gmra.mrb[0].mxu0 %v1783
        %v2250 = vpop.f32.mrb[0].mxu0
        %v2251 = vadd.f32 %v2040, %v2250
        %v2252 = vpop.f32.mrb[0].mxu0
        %v2253 = vadd.f32 %v2042, %v2252
        %v2254 = vpop.f32.mrb[0].mxu0
        %v2255 = vadd.f32 %v2044, %v2254
        %v2256 = vpop.f32.mrb[0].mxu0
        %v2257 = vadd.f32 %v2046, %v2256
        %2258 = vmatprep.mubr.bf16.mxu0 0
        %2259 = vmatmul.mubr.bf16.gmra.mrb[0].mxu0 %v1784
        %v2260 = vpop.f32.mrb[0].mxu0
        %v2261 = vadd.f32 %v2050, %v2260
        %v2262 = vpop.f32.mrb[0].mxu0
        %v2263 = vadd.f32 %v2052, %v2262
        %v2264 = vpop.f32.mrb[0].mxu0
        %v2265 = vadd.f32 %v2054, %v2264
        %v2266 = vpop.f32.mrb[0].mxu0
        %v2267 = vadd.f32 %v2056, %v2266
        %2268 = vmatprep.mubr.bf16.mxu0 0
        %2269 = vmatmul.mubr.bf16.gmra.mrb[0].mxu0 %v1785
        %v2270 = vpop.f32.mrb[0].mxu0
        %v2271 = vadd.f32 %v2060, %v2270
        %v2272 = vpop.f32.mrb[0].mxu0
        %v2273 = vadd.f32 %v2062, %v2272
        %v2274 = vpop.f32.mrb[0].mxu0
        %v2275 = vadd.f32 %v2064, %v2274
        %v2276 = vpop.f32.mrb[0].mxu0
        %v2277 = vadd.f32 %v2066, %v2276
        %2278 = vmatprep.mubr.bf16.mxu0 0
        %2279 = vmatmul.mubr.bf16.gmra.mrb[0].mxu0 %v1786
        %v2280 = vpop.f32.mrb[0].mxu0
        %v2281 = vadd.f32 %v2070, %v2280
        %v2282 = vpop.f32.mrb[0].mxu0
        %v2283 = vadd.f32 %v2072, %v2282
        %v2284 = vpop.f32.mrb[0].mxu0
        %v2285 = vadd.f32 %v2074, %v2284
        %v2286 = vpop.f32.mrb[0].mxu0
        %v2287 = vadd.f32 %v2076, %v2286
        %2288 = vmatprep.mubr.bf16.mxu0 0
        %2289 = vmatmul.mubr.bf16.gmra.mrb[0].mxu0 %v1787
        %v2290 = vpop.f32.mrb[0].mxu0
        %v2291 = vadd.f32 %v2080, %v2290
        %v2292 = vpop.f32.mrb[0].mxu0
        %v2293 = vadd.f32 %v2082, %v2292
        %v2294 = vpop.f32.mrb[0].mxu0
        %v2295 = vadd.f32 %v2084, %v2294
        %v2296 = vpop.f32.mrb[0].mxu0
        %v2297 = vadd.f32 %v2086, %v2296
        %2298 = vmatprep.mubr.bf16.mxu0 0
        %2299 = vmatmul.mubr.bf16.gmra.mrb[0].mxu0 %v1788
        %v2300 = vpop.f32.mrb[0].mxu0
        %v2301 = vadd.f32 %v2090, %v2300
        %v2302 = vpop.f32.mrb[0].mxu0
        %v2303 = vadd.f32 %v2092, %v2302
        %v2304 = vpop.f32.mrb[0].mxu0
        %v2305 = vadd.f32 %v2094, %v2304
        %v2306 = vpop.f32.mrb[0].mxu0
        %v2307 = vadd.f32 %v2096, %v2306
        %2308 = vmatprep.mubr.bf16.mxu0 0
        %2309 = vmatmul.mubr.bf16.gmra.mrb[0].mxu0 %v1789
        %v2310 = vpop.f32.mrb[0].mxu0
        %v2311 = vadd.f32 %v2100, %v2310
        %v2312 = vpop.f32.mrb[0].mxu0
        %v2313 = vadd.f32 %v2102, %v2312
        %v2314 = vpop.f32.mrb[0].mxu0
        %v2315 = vadd.f32 %v2104, %v2314
        %v2316 = vpop.f32.mrb[0].mxu0
        %v2317 = vadd.f32 %v2106, %v2316
        %2318 = vmatprep.mubr.bf16.mxu0 0
        %2319 = vmatmul.mubr.bf16.gmra.mrb[0].mxu0 %v1790
        %v2320 = vpop.f32.mrb[0].mxu0
        %v2321 = vadd.f32 %v2110, %v2320
        %v2322 = vpop.f32.mrb[0].mxu0
        %v2323 = vadd.f32 %v2112, %v2322
        %v2324 = vpop.f32.mrb[0].mxu0
        %v2325 = vadd.f32 %v2114, %v2324
        %v2326 = vpop.f32.mrb[0].mxu0
        %v2327 = vadd.f32 %v2116, %v2326
        %2328 = vmatprep.mubr.bf16.mxu0 0
        %2329 = vmatmul.mubr.bf16.gmra.mrb[0].mxu0 %v1791
        %v2330 = vpop.f32.mrb[0].mxu0
        %v2331 = vadd.f32 %v2120, %v2330
        %v2332 = vpop.f32.mrb[0].mxu0
        %v2333 = vadd.f32 %v2122, %v2332
        %v2334 = vpop.f32.mrb[0].mxu0
        %v2335 = vpop.f32.mrb[0].mxu0
        %2336 = vdwg.mxu0
        %s2337 = scalar_lea.vmem [#allocation12], 256
        %v2338 = vld [vmem:[%s2337] sm:$0xff]
        %v2339 = vld [vmem:[%s2337 + $0x8] sm:$0xff]
        %v2340 = vld [vmem:[%s2337 + $0x10] sm:$0xff]
        %v2341 = vld [vmem:[%s2337 + $0x18] sm:$0xff]
        %v2342 = vld [vmem:[%s2337 + $0x20] sm:$0xff]
        %v2343 = vld [vmem:[%s2337 + $0x28] sm:$0xff]
        %v2344 = vld [vmem:[%s2337 + $0x30] sm:$0xff]
        %v2345 = vld [vmem:[%s2337 + $0x38] sm:$0xff]
        %v2346 = vld [vmem:[%s2337 + $0x40] sm:$0xff]
        %v2347 = vld [vmem:[%s2337 + $0x48] sm:$0xff]
        %v2348 = vld [vmem:[%s2337 + $0x50] sm:$0xff]
        %v2349 = vld [vmem:[%s2337 + $0x58] sm:$0xff]
        %v2350 = vld [vmem:[%s2337 + $0x60] sm:$0xff]
        %v2351 = vld [vmem:[%s2337 + $0x68] sm:$0xff]
        %v2352 = vld [vmem:[%s2337 + $0x70] sm:$0xff]
        %v2353 = vld [vmem:[%s2337 + $0x78] sm:$0xff]
        %vm2364 = vcmask 1046528
        %v2365 = vrot.slane %v1782, 1
        %v2366 = vrot.slane %v1783, 1
        %v2367 = vsel %vm2364, %v2365, %v2366
        %v2368 = vrot.slane %v1784, 1
        %v2369 = vsel %vm2364, %v2366, %v2368
        %v2370 = vrot.slane %v1785, 1
        %v2371 = vsel %vm2364, %v2368, %v2370
        %v2372 = vrot.slane %v1786, 1
        %v2373 = vsel %vm2364, %v2370, %v2372
        %v2374 = vrot.slane %v1787, 1
        %v2375 = vsel %vm2364, %v2372, %v2374
        %v2376 = vrot.slane %v1788, 1
        %v2377 = vsel %vm2364, %v2374, %v2376
        %v2378 = vrot.slane %v1789, 1
        %v2379 = vsel %vm2364, %v2376, %v2378
        %v2380 = vrot.slane %v1790, 1
        %v2381 = vsel %vm2364, %v2378, %v2380
        %v2382 = vrot.slane %v1791, 1
        %v2383 = vsel %vm2364, %v2380, %v2382
        %v2410 = vunpack.c.l.b16 %v2338
        %v2411 = vunpack.c.h.b16 %v2338
        %v2412 = vunpack.c.l.b16 %v2339
        %v2413 = vunpack.c.h.b16 %v2339
        %v2414 = vunpack.c.l.b16 %v2340
        %v2415 = vunpack.c.h.b16 %v2340
        %v2416 = vunpack.c.l.b16 %v2341
        %v2417 = vunpack.c.h.b16 %v2341
        %v2418 = vunpack.c.l.b16 %v2342
        %v2419 = vunpack.c.h.b16 %v2342
        %v2420 = vunpack.c.l.b16 %v2343
        %v2421 = vunpack.c.h.b16 %v2343
        %v2422 = vunpack.c.l.b16 %v2344
        %v2423 = vunpack.c.h.b16 %v2344
        %v2424 = vunpack.c.l.b16 %v2345
        %v2425 = vunpack.c.h.b16 %v2345
        %v2426 = vunpack.c.l.b16 %v2346
        %v2427 = vunpack.c.h.b16 %v2346
        %v2428 = vunpack.c.l.b16 %v2347
        %v2429 = vunpack.c.h.b16 %v2347
        %v2430 = vunpack.c.l.b16 %v2348
        %v2431 = vunpack.c.h.b16 %v2348
        %v2432 = vunpack.c.l.b16 %v2349
        %v2433 = vunpack.c.h.b16 %v2349
        %v2434 = vunpack.c.l.b16 %v2350
        %v2435 = vunpack.c.h.b16 %v2350
        %v2436 = vunpack.c.l.b16 %v2351
        %v2437 = vunpack.c.h.b16 %v2351
        %v2438 = vunpack.c.l.b16 %v2352
        %v2439 = vunpack.c.h.b16 %v2352
        %v2440 = vunpack.c.l.b16 %v2353
        %v2441 = vunpack.c.h.b16 %v2353
        %v2442 = vpack.c.b16 %v2412, %v2410
        %v2443 = vpack.c.b16 %v2413, %v2411
        %v2444 = vpack.c.b16 %v2416, %v2414
        %v2445 = vpack.c.b16 %v2417, %v2415
        %v2446 = vpack.c.b16 %v2420, %v2418
        %v2447 = vpack.c.b16 %v2421, %v2419
        %v2448 = vpack.c.b16 %v2424, %v2422
        %v2449 = vpack.c.b16 %v2425, %v2423
        %v2450 = vpack.c.b16 %v2428, %v2426
        %v2451 = vpack.c.b16 %v2429, %v2427
        %v2452 = vpack.c.b16 %v2432, %v2430
        %v2453 = vpack.c.b16 %v2433, %v2431
        %v2454 = vpack.c.b16 %v2436, %v2434
        %v2455 = vpack.c.b16 %v2437, %v2435
        %v2456 = vpack.c.b16 %v2440, %v2438
        %v2457 = vpack.c.b16 %v2441, %v2439
        %2474 = vmatprep.subr.bf16.mxu0 %v2443
        %2475 = vmatpush1.bf16.msra.mxu0 %v2442
        %2476 = vmatprep.subr.bf16.mxu0 %v2445
        %2477 = vmatpush1.bf16.msra.mxu0 %v2444
        %2478 = vmatprep.subr.bf16.mxu0 %v2447
        %2479 = vmatpush1.bf16.msra.mxu0 %v2446
        %2480 = vmatprep.subr.bf16.mxu0 %v2449
        %2481 = vmatpush1.bf16.msra.mxu0 %v2448
        %2482 = vmatprep.subr.bf16.mxu0 %v2451
        %2483 = vmatpush1.bf16.msra.mxu0 %v2450
        %2484 = vmatprep.subr.bf16.mxu0 %v2453
        %2485 = vmatpush1.bf16.msra.mxu0 %v2452
        %2486 = vmatprep.subr.bf16.mxu0 %v2455
        %2487 = vmatpush1.bf16.msra.mxu0 %v2454
        %2488 = vmatprep.subr.bf16.mxu0 %v2457
        %2489 = vmatpush1.bf16.msra.mxu0 %v2456
        %2490 = vmatprep.subr.bf16.mxu0 0
        %2491 = vmatpush1.bf16.msra.mxu0 0
        %2492 = vmatprep.subr.bf16.mxu0 0
        %2493 = vmatpush1.bf16.msra.mxu0 0
        %2494 = vmatprep.subr.bf16.mxu0 0
        %2495 = vmatpush1.bf16.msra.mxu0 0
        %2496 = vmatprep.subr.bf16.mxu0 0
        %2497 = vmatpush1.bf16.msra.mxu0 0
        %2498 = vmatprep.subr.bf16.mxu0 0
        %2499 = vmatpush1.bf16.msra.mxu0 0
        %2500 = vmatprep.subr.bf16.mxu0 0
        %2501 = vmatpush1.bf16.msra.mxu0 0
        %2502 = vmatprep.subr.bf16.mxu0 0
        %2503 = vmatpush1.bf16.msra.mxu0 0
        %2504 = vmatprep.subr.bf16.mxu0 0
        %2505 = vmatpush1.bf16.msra.mxu0 0
        %2506 = vmatprep.mubr.bf16.mxu0 0
        %2507 = vmatmul.mubr.bf16.gmra.mrb[0].mxu0 %v2367
        %v2508 = vpop.f32.mrb[0].mxu0
        %v2509 = vadd.f32 0.0, %v2508
        %v2510 = vpop.f32.mrb[0].mxu0
        %v2511 = vadd.f32 0.0, %v2510
        %v2512 = vpop.f32.mrb[0].mxu0
        %v2513 = vadd.f32 0.0, %v2512
        %v2514 = vpop.f32.mrb[0].mxu0
        %v2515 = vadd.f32 0.0, %v2514
        %2516 = vmatprep.mubr.bf16.mxu0 0
        %2517 = vmatmul.mubr.bf16.gmra.mrb[0].mxu0 %v2369
        %v2518 = vpop.f32.mrb[0].mxu0
        %v2519 = vadd.f32 0.0, %v2518
        %v2520 = vpop.f32.mrb[0].mxu0
        %v2521 = vadd.f32 0.0, %v2520
        %v2522 = vpop.f32.mrb[0].mxu0
        %v2523 = vadd.f32 0.0, %v2522
        %v2524 = vpop.f32.mrb[0].mxu0
        %v2525 = vadd.f32 0.0, %v2524
        %2526 = vmatprep.mubr.bf16.mxu0 0
        %2527 = vmatmul.mubr.bf16.gmra.mrb[0].mxu0 %v2371
        %v2528 = vpop.f32.mrb[0].mxu0
        %v2529 = vadd.f32 0.0, %v2528
        %v2530 = vpop.f32.mrb[0].mxu0
        %v2531 = vadd.f32 0.0, %v2530
        %v2532 = vpop.f32.mrb[0].mxu0
        %v2533 = vadd.f32 0.0, %v2532
        %v2534 = vpop.f32.mrb[0].mxu0
        %v2535 = vadd.f32 0.0, %v2534
        %2536 = vmatprep.mubr.bf16.mxu0 0
        %2537 = vmatmul.mubr.bf16.gmra.mrb[0].mxu0 %v2373
        %v2538 = vpop.f32.mrb[0].mxu0
        %v2539 = vadd.f32 0.0, %v2538
        %v2540 = vpop.f32.mrb[0].mxu0
        %v2541 = vadd.f32 0.0, %v2540
        %v2542 = vpop.f32.mrb[0].mxu0
        %v2543 = vadd.f32 0.0, %v2542
        %v2544 = vpop.f32.mrb[0].mxu0
        %v2545 = vadd.f32 0.0, %v2544
        %2546 = vmatprep.mubr.bf16.mxu0 0
        %2547 = vmatmul.mubr.bf16.gmra.mrb[0].mxu0 %v2375
        %v2548 = vpop.f32.mrb[0].mxu0
        %v2549 = vadd.f32 0.0, %v2548
        %v2550 = vpop.f32.mrb[0].mxu0
        %v2551 = vadd.f32 0.0, %v2550
        %v2552 = vpop.f32.mrb[0].mxu0
        %v2553 = vadd.f32 0.0, %v2552
        %v2554 = vpop.f32.mrb[0].mxu0
        %v2555 = vadd.f32 0.0, %v2554
        %2556 = vmatprep.mubr.bf16.mxu0 0
        %2557 = vmatmul.mubr.bf16.gmra.mrb[0].mxu0 %v2377
        %v2558 = vpop.f32.mrb[0].mxu0
        %v2559 = vadd.f32 0.0, %v2558
        %v2560 = vpop.f32.mrb[0].mxu0
        %v2561 = vadd.f32 0.0, %v2560
        %v2562 = vpop.f32.mrb[0].mxu0
        %v2563 = vadd.f32 0.0, %v2562
        %v2564 = vpop.f32.mrb[0].mxu0
        %v2565 = vadd.f32 0.0, %v2564
        %2566 = vmatprep.mubr.bf16.mxu0 0
        %2567 = vmatmul.mubr.bf16.gmra.mrb[0].mxu0 %v2379
        %v2568 = vpop.f32.mrb[0].mxu0
        %v2569 = vadd.f32 0.0, %v2568
        %v2570 = vpop.f32.mrb[0].mxu0
        %v2571 = vadd.f32 0.0, %v2570
        %v2572 = vpop.f32.mrb[0].mxu0
        %v2573 = vadd.f32 0.0, %v2572
        %v2574 = vpop.f32.mrb[0].mxu0
        %v2575 = vadd.f32 0.0, %v2574
        %2576 = vmatprep.mubr.bf16.mxu0 0
        %2577 = vmatmul.mubr.bf16.gmra.mrb[0].mxu0 %v2381
        %v2578 = vpop.f32.mrb[0].mxu0
        %v2579 = vadd.f32 0.0, %v2578
        %v2580 = vpop.f32.mrb[0].mxu0
        %v2581 = vadd.f32 0.0, %v2580
        %v2582 = vpop.f32.mrb[0].mxu0
        %v2583 = vadd.f32 0.0, %v2582
        %v2584 = vpop.f32.mrb[0].mxu0
        %v2585 = vadd.f32 0.0, %v2584
        %2586 = vmatprep.mubr.bf16.mxu0 0
        %2587 = vmatmul.mubr.bf16.gmra.mrb[0].mxu0 %v2383
        %v2588 = vpop.f32.mrb[0].mxu0
        %v2589 = vadd.f32 0.0, %v2588
        %v2590 = vpop.f32.mrb[0].mxu0
        %v2591 = vadd.f32 0.0, %v2590
        %v2592 = vpop.f32.mrb[0].mxu0
        %v2593 = vadd.f32 0.0, %v2592
        %v2594 = vpop.f32.mrb[0].mxu0
        %v2595 = vadd.f32 0.0, %v2594
        %2596 = vmatprep.mubr.bf16.mxu0 0
        %2597 = vmatmul.mubr.bf16.gmra.mrb[0].mxu0 %v2382
        %v2598 = vpop.f32.mrb[0].mxu0
        %v2599 = vadd.f32 0.0, %v2598
        %v2600 = vpop.f32.mrb[0].mxu0
        %v2601 = vadd.f32 0.0, %v2600
        %v2602 = vpop.f32.mrb[0].mxu0
        %v2603 = vpop.f32.mrb[0].mxu0
        %2604 = vdwg.mxu0
        %v2605 = vadd.f32 %v2241, %v2509
        %v2606 = vadd.f32 %v2243, %v2511
        %v2607 = vadd.f32 %v2245, %v2513
        %v2608 = vadd.f32 %v2247, %v2515
        %v2609 = vadd.f32 %v2251, %v2519
        %v2610 = vadd.f32 %v2253, %v2521
        %v2611 = vadd.f32 %v2255, %v2523
        %v2612 = vadd.f32 %v2257, %v2525
        %v2613 = vadd.f32 %v2261, %v2529
        %v2614 = vadd.f32 %v2263, %v2531
        %v2615 = vadd.f32 %v2265, %v2533
        %v2616 = vadd.f32 %v2267, %v2535
        %v2617 = vadd.f32 %v2271, %v2539
        %v2618 = vadd.f32 %v2273, %v2541
        %v2619 = vadd.f32 %v2275, %v2543
        %v2620 = vadd.f32 %v2277, %v2545
        %v2621 = vadd.f32 %v2281, %v2549
        %v2622 = vadd.f32 %v2283, %v2551
        %v2623 = vadd.f32 %v2285, %v2553
        %v2624 = vadd.f32 %v2287, %v2555
        %v2625 = vadd.f32 %v2291, %v2559
        %v2626 = vadd.f32 %v2293, %v2561
        %v2627 = vadd.f32 %v2295, %v2563
        %v2628 = vadd.f32 %v2297, %v2565
        %v2629 = vadd.f32 %v2301, %v2569
        %v2630 = vadd.f32 %v2303, %v2571
        %v2631 = vadd.f32 %v2305, %v2573
        %v2632 = vadd.f32 %v2307, %v2575
        %v2633 = vadd.f32 %v2311, %v2579
        %v2634 = vadd.f32 %v2313, %v2581
        %v2635 = vadd.f32 %v2315, %v2583
        %v2636 = vadd.f32 %v2317, %v2585
        %v2637 = vadd.f32 %v2321, %v2589
        %v2638 = vadd.f32 %v2323, %v2591
        %v2639 = vadd.f32 %v2325, %v2593
        %v2640 = vadd.f32 %v2327, %v2595
        %v2641 = vadd.f32 %v2331, %v2599
        %v2642 = vadd.f32 %v2333, %v2601
        %v2644 = vlaneseq
        %v2645 = vshrl.u32 %v2644, 7
        %v2646 = vsub.s32 0, %v2645
        %v2647 = vrot.slane %v1761, %v2646
        %v2648 = vlaneseq
        %v2649 = vshrl.u32 %v2648, 7
        %v2650 = vsub.s32 1, %v2649
        %v2651 = vrot.slane %v1761, %v2650
        %v2654 = vmul.f32 %v2605, %v2647
        %v2655 = vmul.f32 %v2606, %v2651
        %v2656 = vmul.f32 %v2607, %v2647
        %v2657 = vmul.f32 %v2608, %v2651
        %v2658 = vmul.f32 %v2609, %v2647
        %v2659 = vmul.f32 %v2610, %v2651
        %v2660 = vmul.f32 %v2611, %v2647
        %v2661 = vmul.f32 %v2612, %v2651
        %v2662 = vmul.f32 %v2613, %v2647
        %v2663 = vmul.f32 %v2614, %v2651
        %v2664 = vmul.f32 %v2615, %v2647
        %v2665 = vmul.f32 %v2616, %v2651
        %v2666 = vmul.f32 %v2617, %v2647
        %v2667 = vmul.f32 %v2618, %v2651
        %v2668 = vmul.f32 %v2619, %v2647
        %v2669 = vmul.f32 %v2620, %v2651
        %v2670 = vmul.f32 %v2621, %v2647
        %v2671 = vmul.f32 %v2622, %v2651
        %v2672 = vmul.f32 %v2623, %v2647
        %v2673 = vmul.f32 %v2624, %v2651
        %v2674 = vmul.f32 %v2625, %v2647
        %v2675 = vmul.f32 %v2626, %v2651
        %v2676 = vmul.f32 %v2627, %v2647
        %v2677 = vmul.f32 %v2628, %v2651
        %v2678 = vmul.f32 %v2629, %v2647
        %v2679 = vmul.f32 %v2630, %v2651
        %v2680 = vmul.f32 %v2631, %v2647
        %v2681 = vmul.f32 %v2632, %v2651
        %v2682 = vmul.f32 %v2633, %v2647
        %v2683 = vmul.f32 %v2634, %v2651
        %v2684 = vmul.f32 %v2635, %v2647
        %v2685 = vmul.f32 %v2636, %v2651
        %v2686 = vmul.f32 %v2637, %v2647
        %v2687 = vmul.f32 %v2638, %v2651
        %v2688 = vmul.f32 %v2639, %v2647
        %v2689 = vmul.f32 %v2640, %v2651
        %v2690 = vmul.f32 %v2641, %v2647
        %v2691 = vmul.f32 %v2642, %v2651
        %v2693 = vlaneseq
        %v2694 = vshrl.u32 %v2693, 7
        %v2695 = vsub.s32 0, %v2694
        %v2696 = vrot.slane %v1762, %v2695
        %v2697 = vlaneseq
        %v2698 = vshrl.u32 %v2697, 7
        %v2699 = vsub.s32 1, %v2698
        %v2700 = vrot.slane %v1762, %v2699
        %v2703 = vadd.f32 %v2654, %v2696
        %v2704 = vadd.f32 %v2655, %v2700
        %v2705 = vadd.f32 %v2656, %v2696
        %v2706 = vadd.f32 %v2657, %v2700
        %v2707 = vadd.f32 %v2658, %v2696
        %v2708 = vadd.f32 %v2659, %v2700
        %v2709 = vadd.f32 %v2660, %v2696
        %v2710 = vadd.f32 %v2661, %v2700
        %v2711 = vadd.f32 %v2662, %v2696
        %v2712 = vadd.f32 %v2663, %v2700
        %v2713 = vadd.f32 %v2664, %v2696
        %v2714 = vadd.f32 %v2665, %v2700
        %v2715 = vadd.f32 %v2666, %v2696
        %v2716 = vadd.f32 %v2667, %v2700
        %v2717 = vadd.f32 %v2668, %v2696
        %v2718 = vadd.f32 %v2669, %v2700
        %v2719 = vadd.f32 %v2670, %v2696
        %v2720 = vadd.f32 %v2671, %v2700
        %v2721 = vadd.f32 %v2672, %v2696
        %v2722 = vadd.f32 %v2673, %v2700
        %v2723 = vadd.f32 %v2674, %v2696
        %v2724 = vadd.f32 %v2675, %v2700
        %v2725 = vadd.f32 %v2676, %v2696
        %v2726 = vadd.f32 %v2677, %v2700
        %v2727 = vadd.f32 %v2678, %v2696
        %v2728 = vadd.f32 %v2679, %v2700
        %v2729 = vadd.f32 %v2680, %v2696
        %v2730 = vadd.f32 %v2681, %v2700
        %v2731 = vadd.f32 %v2682, %v2696
        %v2732 = vadd.f32 %v2683, %v2700
        %v2733 = vadd.f32 %v2684, %v2696
        %v2734 = vadd.f32 %v2685, %v2700
        %v2735 = vadd.f32 %v2686, %v2696
        %v2736 = vadd.f32 %v2687, %v2700
        %v2737 = vadd.f32 %v2688, %v2696
        %v2738 = vadd.f32 %v2689, %v2700
        %v2739 = vadd.f32 %v2690, %v2696
        %v2740 = vadd.f32 %v2691, %v2700
        %v2741 = vmax.f32 %v2703, 0.0
        %v2742 = vmax.f32 %v2704, 0.0
        %v2743 = vmax.f32 %v2705, 0.0
        %v2744 = vmax.f32 %v2706, 0.0
        %v2745 = vmax.f32 %v2707, 0.0
        %v2746 = vmax.f32 %v2708, 0.0
        %v2747 = vmax.f32 %v2709, 0.0
        %v2748 = vmax.f32 %v2710, 0.0
        %v2749 = vmax.f32 %v2711, 0.0
        %v2750 = vmax.f32 %v2712, 0.0
        %v2751 = vmax.f32 %v2713, 0.0
        %v2752 = vmax.f32 %v2714, 0.0
        %v2753 = vmax.f32 %v2715, 0.0
        %v2754 = vmax.f32 %v2716, 0.0
        %v2755 = vmax.f32 %v2717, 0.0
        %v2756 = vmax.f32 %v2718, 0.0
        %v2757 = vmax.f32 %v2719, 0.0
        %v2758 = vmax.f32 %v2720, 0.0
        %v2759 = vmax.f32 %v2721, 0.0
        %v2760 = vmax.f32 %v2722, 0.0
        %v2761 = vmax.f32 %v2723, 0.0
        %v2762 = vmax.f32 %v2724, 0.0
        %v2763 = vmax.f32 %v2725, 0.0
        %v2764 = vmax.f32 %v2726, 0.0
        %v2765 = vmax.f32 %v2727, 0.0
        %v2766 = vmax.f32 %v2728, 0.0
        %v2767 = vmax.f32 %v2729, 0.0
        %v2768 = vmax.f32 %v2730, 0.0
        %v2769 = vmax.f32 %v2731, 0.0
        %v2770 = vmax.f32 %v2732, 0.0
        %v2771 = vmax.f32 %v2733, 0.0
        %v2772 = vmax.f32 %v2734, 0.0
        %v2773 = vmax.f32 %v2735, 0.0
        %v2774 = vmax.f32 %v2736, 0.0
        %v2775 = vmax.f32 %v2737, 0.0
        %v2776 = vmax.f32 %v2738, 0.0
        %v2777 = vmax.f32 %v2739, 0.0
        %v2778 = vmax.f32 %v2740, 0.0
        %v2779 = vlaneseq
        %vm2780 = vcmp.ge.s32.totalorder %v2779, 0
        %vm2781 = vcmp.lt.s32.totalorder %v2779, 256
        %vm2782 = vmand %vm2780, %vm2781
        %2783 = vst.msk [vmem:[#allocation3] ss:$8 sm:$0x3] %vm2782, 0.0
        %2784 = vst.msk [vmem:[#allocation3] ss:$8 sm:$0x0] %vm2782, 0.0
        %s2785 = scalar_lea.vmem [#allocation3], 147
        %2786 = vst.msk [vmem:[%s2785] ss:$8 sm:$0x3] %vm2782, 0.0
        %2787 = vst.msk [vmem:[%s2785] ss:$8 sm:$0x0] %vm2782, 0.0
        %v2826 = vrot.slane %v2741, 1
        %v2827 = vrot.slane %v2743, 1
        %v2828 = vsel %vm1156, %v2826, %v2827
        %v2829 = vrot.slane %v2742, 1
        %v2830 = vrot.slane %v2744, 1
        %v2831 = vsel %vm1156, %v2829, %v2830
        %v2832 = vrot.slane %v2745, 1
        %v2833 = vsel %vm1156, %v2827, %v2832
        %v2834 = vrot.slane %v2746, 1
        %v2835 = vsel %vm1156, %v2830, %v2834
        %v2836 = vrot.slane %v2747, 1
        %v2837 = vsel %vm1156, %v2832, %v2836
        %v2838 = vrot.slane %v2748, 1
        %v2839 = vsel %vm1156, %v2834, %v2838
        %v2840 = vrot.slane %v2749, 1
        %v2841 = vsel %vm1156, %v2836, %v2840
        %v2842 = vrot.slane %v2750, 1
        %v2843 = vsel %vm1156, %v2838, %v2842
        %v2844 = vrot.slane %v2751, 1
        %v2845 = vsel %vm1156, %v2840, %v2844
        %v2846 = vrot.slane %v2752, 1
        %v2847 = vsel %vm1156, %v2842, %v2846
        %v2848 = vrot.slane %v2753, 1
        %v2849 = vsel %vm1156, %v2844, %v2848
        %v2850 = vrot.slane %v2754, 1
        %v2851 = vsel %vm1156, %v2846, %v2850
        %v2852 = vrot.slane %v2755, 1
        %v2853 = vsel %vm1156, %v2848, %v2852
        %v2854 = vrot.slane %v2756, 1
        %v2855 = vsel %vm1156, %v2850, %v2854
        %v2856 = vrot.slane %v2757, 1
        %v2857 = vsel %vm1156, %v2852, %v2856
        %v2858 = vrot.slane %v2758, 1
        %v2859 = vsel %vm1156, %v2854, %v2858
        %v2860 = vrot.slane %v2759, 1
        %v2861 = vsel %vm1156, %v2856, %v2860
        %v2862 = vrot.slane %v2760, 1
        %v2863 = vsel %vm1156, %v2858, %v2862
        %v2864 = vrot.slane %v2761, 1
        %v2865 = vsel %vm1156, %v2860, %v2864
        %v2866 = vrot.slane %v2762, 1
        %v2867 = vsel %vm1156, %v2862, %v2866
        %v2868 = vrot.slane %v2763, 1
        %v2869 = vsel %vm1156, %v2864, %v2868
        %v2870 = vrot.slane %v2764, 1
        %v2871 = vsel %vm1156, %v2866, %v2870
        %v2872 = vrot.slane %v2765, 1
        %v2873 = vsel %vm1156, %v2868, %v2872
        %v2874 = vrot.slane %v2766, 1
        %v2875 = vsel %vm1156, %v2870, %v2874
        %v2876 = vrot.slane %v2767, 1
        %v2877 = vsel %vm1156, %v2872, %v2876
        %v2878 = vrot.slane %v2768, 1
        %v2879 = vsel %vm1156, %v2874, %v2878
        %v2880 = vrot.slane %v2769, 1
        %v2881 = vsel %vm1156, %v2876, %v2880
        %v2882 = vrot.slane %v2770, 1
        %v2883 = vsel %vm1156, %v2878, %v2882
        %v2884 = vrot.slane %v2771, 1
        %v2885 = vsel %vm1156, %v2880, %v2884
        %v2886 = vrot.slane %v2772, 1
        %v2887 = vsel %vm1156, %v2882, %v2886
        %v2888 = vrot.slane %v2773, 1
        %v2889 = vsel %vm1156, %v2884, %v2888
        %v2890 = vrot.slane %v2774, 1
        %v2891 = vsel %vm1156, %v2886, %v2890
        %v2892 = vrot.slane %v2775, 1
        %v2893 = vsel %vm1156, %v2888, %v2892
        %v2894 = vrot.slane %v2776, 1
        %v2895 = vsel %vm1156, %v2890, %v2894
        %v2896 = vrot.slane %v2777, 1
        %v2897 = vsel %vm1156, %v2892, %v2896
        %v2898 = vrot.slane %v2778, 1
        %v2899 = vsel %vm1156, %v2894, %v2898
        %v2938 = vmax.f32 %v2741, %v2828
        %v2939 = vmax.f32 %v2742, %v2831
        %v2940 = vmax.f32 %v2743, %v2833
        %v2941 = vmax.f32 %v2744, %v2835
        %v2942 = vmax.f32 %v2745, %v2837
        %v2943 = vmax.f32 %v2746, %v2839
        %v2944 = vmax.f32 %v2747, %v2841
        %v2945 = vmax.f32 %v2748, %v2843
        %v2946 = vmax.f32 %v2749, %v2845
        %v2947 = vmax.f32 %v2750, %v2847
        %v2948 = vmax.f32 %v2751, %v2849
        %v2949 = vmax.f32 %v2752, %v2851
        %v2950 = vmax.f32 %v2753, %v2853
        %v2951 = vmax.f32 %v2754, %v2855
        %v2952 = vmax.f32 %v2755, %v2857
        %v2953 = vmax.f32 %v2756, %v2859
        %v2954 = vmax.f32 %v2757, %v2861
        %v2955 = vmax.f32 %v2758, %v2863
        %v2956 = vmax.f32 %v2759, %v2865
        %v2957 = vmax.f32 %v2760, %v2867
        %v2958 = vmax.f32 %v2761, %v2869
        %v2959 = vmax.f32 %v2762, %v2871
        %v2960 = vmax.f32 %v2763, %v2873
        %v2961 = vmax.f32 %v2764, %v2875
        %v2962 = vmax.f32 %v2765, %v2877
        %v2963 = vmax.f32 %v2766, %v2879
        %v2964 = vmax.f32 %v2767, %v2881
        %v2965 = vmax.f32 %v2768, %v2883
        %v2966 = vmax.f32 %v2769, %v2885
        %v2967 = vmax.f32 %v2770, %v2887
        %v2968 = vmax.f32 %v2771, %v2889
        %v2969 = vmax.f32 %v2772, %v2891
        %v2970 = vmax.f32 %v2773, %v2893
        %v2971 = vmax.f32 %v2774, %v2895
        %v2972 = vmax.f32 %v2775, %v2897
        %v2973 = vmax.f32 %v2776, %v2899
        %v2974 = vmax.f32 %v2777, %v2896
        %v2975 = vmax.f32 %v2778, %v2898
        %v2976 = vld [vmem:[%s2] sm:$0xff]
        %v2977 = vld [vmem:[%s2 + $0x8] sm:$0xff]
        %v2978 = vld [vmem:[%s2 + $0x10] sm:$0xff]
        %v2979 = vld [vmem:[%s2 + $0x18] sm:$0xff]
        %v2980 = vld [vmem:[%s2 + $0x20] sm:$0xff]
        %v2981 = vld [vmem:[%s2 + $0x28] sm:$0xff]
        %v2982 = vld [vmem:[%s2 + $0x30] sm:$0xff]
        %v2983 = vld [vmem:[%s2 + $0x38] sm:$0xff]
        %v2984 = vld [vmem:[%s2 + $0x40] sm:$0xff]
        %v2985 = vld [vmem:[%s2 + $0x48] sm:$0xff]
        %v2986 = vld [vmem:[%s2 + $0x50] sm:$0xff]
        %v2987 = vld [vmem:[%s2 + $0x58] sm:$0xff]
        %v2988 = vld [vmem:[%s2 + $0x60] sm:$0xff]
        %v2989 = vld [vmem:[%s2 + $0x68] sm:$0xff]
        %v2990 = vld [vmem:[%s2 + $0x70] sm:$0xff]
        %v2991 = vld [vmem:[%s2 + $0x78] sm:$0xff]
        %v2992 = vld [vmem:[%s2 + $0x80] sm:$0xff]
        %v2993 = vld [vmem:[%s2 + $0x88] sm:$0xff]
        %v2994 = vld [vmem:[%s2 + $0x90] sm:$0x3]
        %v2995 = vld [vmem:[%s2 + $0x98] sm:$0x3]
        %vm2996 = vcmask 154624
        %v2998 = vsel %vm2996, %v2977, 0
        %v3001 = vsel %vm2996, %v2979, 0
        %v3004 = vsel %vm2996, %v2981, 0
        %v3007 = vsel %vm2996, %v2983, 0
        %v3010 = vsel %vm2996, %v2985, 0
        %v3013 = vsel %vm2996, %v2987, 0
        %v3016 = vsel %vm2996, %v2989, 0
        %v3019 = vsel %vm2996, %v2991, 0
        %v3022 = vsel %vm2996, %v2993, 0
        %v3025 = vsel %vm2996, %v2995, 0
        %v3028 = vsel %vm738, %v2974, 0
        %v3031 = vsel %vm738, %v2975, 0
        %3033 = vmatprep.subr.mxu0 %v2939
        %3034 = vmatpush1.msra.mxu0 %v2938
        %3035 = vmatprep.subr.mxu0 %v2941
        %3036 = vmatpush1.msra.mxu0 %v2940
        %3037 = vmatprep.subr.mxu0 %v2943
        %3038 = vmatpush1.msra.mxu0 %v2942
        %3039 = vmatprep.subr.mxu0 %v2945
        %3040 = vmatpush1.msra.mxu0 %v2944
        %3041 = vmatprep.subr.mxu0 %v2947
        %3042 = vmatpush1.msra.mxu0 %v2946
        %3043 = vmatprep.subr.mxu0 %v2949
        %3044 = vmatpush1.msra.mxu0 %v2948
        %3045 = vmatprep.subr.mxu0 %v2951
        %3046 = vmatpush1.msra.mxu0 %v2950
        %3047 = vmatprep.subr.mxu0 %v2953
        %3048 = vmatpush1.msra.mxu0 %v2952
        %3049 = vmatprep.subr.mxu0 %v2955
        %3050 = vmatpush1.msra.mxu0 %v2954
        %3051 = vmatprep.subr.mxu0 %v2957
        %3052 = vmatpush1.msra.mxu0 %v2956
        %3053 = vmatprep.subr.mxu0 %v2959
        %3054 = vmatpush1.msra.mxu0 %v2958
        %3055 = vmatprep.subr.mxu0 %v2961
        %3056 = vmatpush1.msra.mxu0 %v2960
        %3057 = vmatprep.subr.mxu0 %v2963
        %3058 = vmatpush1.msra.mxu0 %v2962
        %3059 = vmatprep.subr.mxu0 %v2965
        %3060 = vmatpush1.msra.mxu0 %v2964
        %3061 = vmatprep.subr.mxu0 %v2967
        %3062 = vmatpush1.msra.mxu0 %v2966
        %3063 = vmatprep.subr.mxu0 %v2969
        %3064 = vmatpush1.msra.mxu0 %v2968
        %3065 = vmatprep.subr.mxu0 %v2971
        %3066 = vmatpush1.msra.mxu0 %v2970
        %3067 = vmatprep.subr.mxu0 %v2973
        %3068 = vmatpush1.msra.mxu0 %v2972
        %3069 = vmatprep.subr.mxu0 %v3031
        %3070 = vmatpush1.msra.mxu0 %v3028
        %3071 = vmatprep.subr.mxu0 0.0
        %3072 = vmatpush1.msra.mxu0 0.0
        %3073 = vmatprep.subr.mxu0 0.0
        %3074 = vmatpush1.msra.mxu0 0.0
        %3075 = vmatprep.subr.mxu0 0.0
        %3076 = vmatpush1.msra.mxu0 0.0
        %3077 = vmatprep.subr.mxu0 0.0
        %3078 = vmatpush1.msra.mxu0 0.0
        %3079 = vmatprep.subr.mxu0 0.0
        %3080 = vmatpush1.msra.mxu0 0.0
        %3081 = vmatprep.subr.mxu0 0.0
        %3082 = vmatpush1.msra.mxu0 0.0
        %3083 = vmatprep.subr.mxu0 0.0
        %3084 = vmatpush1.msra.mxu0 0.0
        %3085 = vmatprep.subr.mxu0 0.0
        %3086 = vmatpush1.msra.mxu0 0.0
        %3087 = vmatprep.subr.mxu0 0.0
        %3088 = vmatpush1.msra.mxu0 0.0
        %3089 = vmatprep.subr.mxu0 0.0
        %3090 = vmatpush1.msra.mxu0 0.0
        %3091 = vmatprep.subr.mxu0 0.0
        %3092 = vmatpush1.msra.mxu0 0.0
        %3093 = vmatprep.subr.mxu0 0.0
        %3094 = vmatpush1.msra.mxu0 0.0
        %3095 = vmatprep.subr.mxu0 0.0
        %3096 = vmatpush1.msra.mxu0 0.0
        %3097 = vmatprep.mubr.f32.mxu0 %v2998
        %3098 = vmatmul.mubr.f32.gmra.mrb[0].mxu0 %v2976
        %v3099 = vpop.f32.mrb[0].mxu0
        %v3100 = vadd.f32 0.0, %v3099
        %v3101 = vpop.f32.mrb[0].mxu0
        %v3102 = vadd.f32 0.0, %v3101
        %3103 = vmatprep.mubr.f32.mxu0 %v3001
        %3104 = vmatmul.mubr.f32.gmra.mrb[0].mxu0 %v2978
        %v3105 = vpop.f32.mrb[0].mxu0
        %v3106 = vadd.f32 0.0, %v3105
        %v3107 = vpop.f32.mrb[0].mxu0
        %v3108 = vadd.f32 0.0, %v3107
        %3109 = vmatprep.mubr.f32.mxu0 %v3004
        %3110 = vmatmul.mubr.f32.gmra.mrb[0].mxu0 %v2980
        %v3111 = vpop.f32.mrb[0].mxu0
        %v3112 = vadd.f32 0.0, %v3111
        %v3113 = vpop.f32.mrb[0].mxu0
        %v3114 = vadd.f32 0.0, %v3113
        %3115 = vmatprep.mubr.f32.mxu0 %v3007
        %3116 = vmatmul.mubr.f32.gmra.mrb[0].mxu0 %v2982
        %v3117 = vpop.f32.mrb[0].mxu0
        %v3118 = vadd.f32 0.0, %v3117
        %v3119 = vpop.f32.mrb[0].mxu0
        %v3120 = vadd.f32 0.0, %v3119
        %3121 = vmatprep.mubr.f32.mxu0 %v3010
        %3122 = vmatmul.mubr.f32.gmra.mrb[0].mxu0 %v2984
        %v3123 = vpop.f32.mrb[0].mxu0
        %v3124 = vadd.f32 0.0, %v3123
        %v3125 = vpop.f32.mrb[0].mxu0
        %v3126 = vadd.f32 0.0, %v3125
        %3127 = vmatprep.mubr.f32.mxu0 %v3013
        %3128 = vmatmul.mubr.f32.gmra.mrb[0].mxu0 %v2986
        %v3129 = vpop.f32.mrb[0].mxu0
        %v3130 = vadd.f32 0.0, %v3129
        %v3131 = vpop.f32.mrb[0].mxu0
        %v3132 = vadd.f32 0.0, %v3131
        %3133 = vmatprep.mubr.f32.mxu0 %v3016
        %3134 = vmatmul.mubr.f32.gmra.mrb[0].mxu0 %v2988
        %v3135 = vpop.f32.mrb[0].mxu0
        %v3136 = vadd.f32 0.0, %v3135
        %v3137 = vpop.f32.mrb[0].mxu0
        %v3138 = vadd.f32 0.0, %v3137
        %3139 = vmatprep.mubr.f32.mxu0 %v3019
        %3140 = vmatmul.mubr.f32.gmra.mrb[0].mxu0 %v2990
        %v3141 = vpop.f32.mrb[0].mxu0
        %v3142 = vadd.f32 0.0, %v3141
        %v3143 = vpop.f32.mrb[0].mxu0
        %v3144 = vadd.f32 0.0, %v3143
        %3145 = vmatprep.mubr.f32.mxu0 %v3022
        %3146 = vmatmul.mubr.f32.gmra.mrb[0].mxu0 %v2992
        %v3147 = vpop.f32.mrb[0].mxu0
        %v3148 = vadd.f32 0.0, %v3147
        %v3149 = vpop.f32.mrb[0].mxu0
        %v3150 = vadd.f32 0.0, %v3149
        %3151 = vmatprep.mubr.f32.mxu0 %v3025
        %3152 = vmatmul.mubr.f32.gmra.mrb[0].mxu0 %v2994
        %v3153 = vpop.f32.mrb[0].mxu0
        %v3154 = vadd.f32 0.0, %v3153
        %v3155 = vpop.f32.mrb[0].mxu0
        %v3156 = vadd.f32 0.0, %v3155
        %3157 = vdwg.mxu0
        %vm3178 = vcmask 1040384
        %v3179 = vrot.slane %v3100, 7
        %v3180 = vrot.slane %v3102, 7
        %v3181 = vrot.slane %v3106, 7
        %v3182 = vsel %vm3178, %v3179, %v3181
        %v3183 = vrot.slane %v3108, 7
        %v3184 = vsel %vm3178, %v3180, %v3183
        %v3185 = vrot.slane %v3112, 7
        %v3186 = vsel %vm3178, %v3181, %v3185
        %v3187 = vrot.slane %v3114, 7
        %v3188 = vsel %vm3178, %v3183, %v3187
        %v3189 = vrot.slane %v3118, 7
        %v3190 = vsel %vm3178, %v3185, %v3189
        %v3191 = vrot.slane %v3120, 7
        %v3192 = vsel %vm3178, %v3187, %v3191
        %v3193 = vrot.slane %v3124, 7
        %v3194 = vsel %vm3178, %v3189, %v3193
        %v3195 = vrot.slane %v3126, 7
        %v3196 = vsel %vm3178, %v3191, %v3195
        %v3197 = vrot.slane %v3130, 7
        %v3198 = vsel %vm3178, %v3193, %v3197
        %v3199 = vrot.slane %v3132, 7
        %v3200 = vsel %vm3178, %v3195, %v3199
        %v3201 = vrot.slane %v3136, 7
        %v3202 = vsel %vm3178, %v3197, %v3201
        %v3203 = vrot.slane %v3138, 7
        %v3204 = vsel %vm3178, %v3199, %v3203
        %v3205 = vrot.slane %v3142, 7
        %v3206 = vsel %vm3178, %v3201, %v3205
        %v3207 = vrot.slane %v3144, 7
        %v3208 = vsel %vm3178, %v3203, %v3207
        %v3209 = vrot.slane %v3148, 7
        %v3210 = vsel %vm3178, %v3205, %v3209
        %v3211 = vrot.slane %v3150, 7
        %v3212 = vsel %vm3178, %v3207, %v3211
        %v3213 = vrot.slane %v3154, 7
        %v3214 = vsel %vm3178, %v3209, %v3213
        %v3215 = vrot.slane %v3156, 7
        %v3216 = vsel %vm3178, %v3211, %v3215
        %3237 = vst [vmem:[#allocation3] sm:$0xfe] %v3179
        %3238 = vst [vmem:[#allocation3 + $0x8] sm:$0xfe] %v3180
        %3239 = vst [vmem:[#allocation3 + $0x10] sm:$0xff] %v3182
        %3240 = vst [vmem:[#allocation3 + $0x18] sm:$0xff] %v3184
        %3241 = vst [vmem:[#allocation3 + $0x20] sm:$0xff] %v3186
        %3242 = vst [vmem:[#allocation3 + $0x28] sm:$0xff] %v3188
        %3243 = vst [vmem:[#allocation3 + $0x30] sm:$0xff] %v3190
        %3244 = vst [vmem:[#allocation3 + $0x38] sm:$0xff] %v3192
        %3245 = vst [vmem:[#allocation3 + $0x40] sm:$0xff] %v3194
        %3246 = vst [vmem:[#allocation3 + $0x48] sm:$0xff] %v3196
        %3247 = vst [vmem:[#allocation3 + $0x50] sm:$0xff] %v3198
        %3248 = vst [vmem:[#allocation3 + $0x58] sm:$0xff] %v3200
        %3249 = vst [vmem:[#allocation3 + $0x60] sm:$0xff] %v3202
        %3250 = vst [vmem:[#allocation3 + $0x68] sm:$0xff] %v3204
        %3251 = vst [vmem:[#allocation3 + $0x70] sm:$0xff] %v3206
        %3252 = vst [vmem:[#allocation3 + $0x78] sm:$0xff] %v3208
        %3253 = vst [vmem:[#allocation3 + $0x80] sm:$0xff] %v3210
        %3254 = vst [vmem:[#allocation3 + $0x88] sm:$0xff] %v3212
        %3255 = vst [vmem:[#allocation3 + $0x90] sm:$0x7] %v3214
        %3256 = vst [vmem:[#allocation3 + $0x98] sm:$0x7] %v3216
        %v3257 = vld [vmem:[#allocation18] sm:$0xf]
        %v3258 = vld [vmem:[#allocation20] sm:$0xf]
        %v3259 = vld [vmem:[#allocation3] sm:$0xff]
        %v3260 = vld [vmem:[#allocation3 + $0x8] sm:$0xff]
        %v3261 = vld [vmem:[#allocation3 + $0x10] sm:$0xff]
        %v3262 = vld [vmem:[#allocation3 + $0x18] sm:$0xff]
        %v3263 = vld [vmem:[#allocation3 + $0x20] sm:$0xff]
        %v3264 = vld [vmem:[#allocation3 + $0x28] sm:$0xff]
        %v3265 = vld [vmem:[#allocation3 + $0x30] sm:$0xff]
        %v3266 = vld [vmem:[#allocation3 + $0x38] sm:$0xff]
        %v3267 = vld [vmem:[#allocation3 + $0x40] sm:$0xff]
        %v3268 = vld [vmem:[#allocation3 + $0x48] sm:$0xff]
        %v3269 = vld [vmem:[#allocation3 + $0x50] sm:$0xff]
        %v3270 = vld [vmem:[#allocation3 + $0x58] sm:$0xff]
        %v3271 = vld [vmem:[#allocation3 + $0x60] sm:$0xff]
        %v3272 = vld [vmem:[#allocation3 + $0x68] sm:$0xff]
        %v3273 = vld [vmem:[#allocation3 + $0x70] sm:$0xff]
        %v3274 = vld [vmem:[#allocation3 + $0x78] sm:$0xff]
        %v3275 = vld [vmem:[#allocation3 + $0x80] sm:$0xff]
        %v3276 = vld [vmem:[#allocation3 + $0x88] sm:$0xff]
        %v3277 = vld [vmem:[#allocation3 + $0x90] sm:$0xf]
        %v3278 = vld [vmem:[#allocation3 + $0x98] sm:$0xf]
        %v3279 = vpack.c.bf16 %v3261, %v3259
        %v3280 = vpack.c.bf16 %v3262, %v3260
        %v3281 = vpack.c.bf16 %v3265, %v3263
        %v3282 = vpack.c.bf16 %v3266, %v3264
        %v3283 = vpack.c.bf16 %v3269, %v3267
        %v3284 = vpack.c.bf16 %v3270, %v3268
        %v3285 = vpack.c.bf16 %v3273, %v3271
        %v3286 = vpack.c.bf16 %v3274, %v3272
        %v3287 = vpack.c.bf16 %v3277, %v3275
        %v3288 = vpack.c.bf16 %v3278, %v3276
        %v3289 = vld [vmem:[#allocation17] sm:$0xff]
        %v3290 = vld [vmem:[#allocation17 + $0x8] sm:$0xff]
        %v3291 = vld [vmem:[#allocation17 + $0x10] sm:$0xff]
        %v3292 = vld [vmem:[#allocation17 + $0x18] sm:$0xff]
        %v3293 = vld [vmem:[#allocation17 + $0x20] sm:$0xff]
        %v3294 = vld [vmem:[#allocation17 + $0x28] sm:$0xff]
        %v3295 = vld [vmem:[#allocation17 + $0x30] sm:$0xff]
        %v3296 = vld [vmem:[#allocation17 + $0x38] sm:$0xff]
        %v3297 = vld [vmem:[#allocation17 + $0x40] sm:$0xff]
        %v3298 = vld [vmem:[#allocation17 + $0x48] sm:$0xff]
        %v3299 = vld [vmem:[#allocation17 + $0x50] sm:$0xff]
        %v3300 = vld [vmem:[#allocation17 + $0x58] sm:$0xff]
        %v3301 = vld [vmem:[#allocation17 + $0x60] sm:$0xff]
        %v3302 = vld [vmem:[#allocation17 + $0x68] sm:$0xff]
        %v3303 = vld [vmem:[#allocation17 + $0x70] sm:$0xff]
        %v3304 = vld [vmem:[#allocation17 + $0x78] sm:$0xff]
        %v3305 = vld [vmem:[#allocation17 + $0x80] sm:$0xff]
        %v3306 = vld [vmem:[#allocation17 + $0x88] sm:$0xff]
        %v3307 = vld [vmem:[#allocation17 + $0x90] sm:$0xff]
        %v3308 = vld [vmem:[#allocation17 + $0x98] sm:$0xff]
        %v3309 = vld [vmem:[#allocation17 + $0xa0] sm:$0xff]
        %v3310 = vld [vmem:[#allocation17 + $0xa8] sm:$0xff]
        %v3311 = vld [vmem:[#allocation17 + $0xb0] sm:$0xff]
        %v3312 = vld [vmem:[#allocation17 + $0xb8] sm:$0xff]
        %v3313 = vld [vmem:[#allocation17 + $0xc0] sm:$0xff]
        %v3314 = vld [vmem:[#allocation17 + $0xc8] sm:$0xff]
        %v3315 = vld [vmem:[#allocation17 + $0xd0] sm:$0xff]
        %v3316 = vld [vmem:[#allocation17 + $0xd8] sm:$0xff]
        %v3317 = vld [vmem:[#allocation17 + $0xe0] sm:$0xff]
        %v3318 = vld [vmem:[#allocation17 + $0xe8] sm:$0xff]
        %v3319 = vld [vmem:[#allocation17 + $0xf0] sm:$0xff]
        %v3320 = vld [vmem:[#allocation17 + $0xf8] sm:$0xff]
        %v3321 = vld [vmem:[#allocation17 + $0x100] sm:$0xff]
        %v3322 = vld [vmem:[#allocation17 + $0x108] sm:$0xff]
        %v3323 = vld [vmem:[#allocation17 + $0x110] sm:$0xff]
        %v3324 = vld [vmem:[#allocation17 + $0x118] sm:$0xff]
        %v3325 = vld [vmem:[#allocation17 + $0x120] sm:$0xff]
        %v3326 = vld [vmem:[#allocation17 + $0x128] sm:$0xff]
        %v3327 = vld [vmem:[#allocation17 + $0x130] sm:$0xff]
        %v3328 = vld [vmem:[#allocation17 + $0x138] sm:$0xff]
        %v3329 = vld [vmem:[#allocation17 + $0x140] sm:$0xff]
        %v3330 = vld [vmem:[#allocation17 + $0x148] sm:$0xff]
        %v3331 = vld [vmem:[#allocation17 + $0x150] sm:$0xff]
        %v3332 = vld [vmem:[#allocation17 + $0x158] sm:$0xff]
        %v3333 = vld [vmem:[#allocation17 + $0x160] sm:$0xff]
        %v3334 = vld [vmem:[#allocation17 + $0x168] sm:$0xff]
        %v3335 = vld [vmem:[#allocation17 + $0x170] sm:$0xff]
        %v3336 = vld [vmem:[#allocation17 + $0x178] sm:$0xff]
        %v3337 = vld [vmem:[#allocation17 + $0x180] sm:$0xff]
        %v3338 = vld [vmem:[#allocation17 + $0x188] sm:$0xff]
        %v3339 = vld [vmem:[#allocation17 + $0x190] sm:$0xff]
        %v3340 = vld [vmem:[#allocation17 + $0x198] sm:$0xff]
        %v3341 = vld [vmem:[#allocation17 + $0x1a0] sm:$0xff]
        %v3342 = vld [vmem:[#allocation17 + $0x1a8] sm:$0xff]
        %v3343 = vld [vmem:[#allocation17 + $0x1b0] sm:$0xff]
        %v3344 = vld [vmem:[#allocation17 + $0x1b8] sm:$0xff]
        %v3345 = vld [vmem:[#allocation17 + $0x1c0] sm:$0xff]
        %v3346 = vld [vmem:[#allocation17 + $0x1c8] sm:$0xff]
        %v3347 = vld [vmem:[#allocation17 + $0x1d0] sm:$0xff]
        %v3348 = vld [vmem:[#allocation17 + $0x1d8] sm:$0xff]
        %v3349 = vld [vmem:[#allocation17 + $0x1e0] sm:$0xff]
        %v3350 = vld [vmem:[#allocation17 + $0x1e8] sm:$0xff]
        %v3351 = vld [vmem:[#allocation17 + $0x1f0] sm:$0xff]
        %v3352 = vld [vmem:[#allocation17 + $0x1f8] sm:$0xff]
        %s3353 = scalar_lea.vmem [#allocation17], 512
        %v3354 = vld [vmem:[%s3353] sm:$0xff]
        %v3355 = vld [vmem:[%s3353 + $0x8] sm:$0xff]
        %v3356 = vld [vmem:[%s3353 + $0x10] sm:$0xff]
        %v3357 = vld [vmem:[%s3353 + $0x18] sm:$0xff]
        %v3358 = vld [vmem:[%s3353 + $0x20] sm:$0xff]
        %v3359 = vld [vmem:[%s3353 + $0x28] sm:$0xff]
        %v3360 = vld [vmem:[%s3353 + $0x30] sm:$0xff]
        %v3361 = vld [vmem:[%s3353 + $0x38] sm:$0xff]
        %v3362 = vld [vmem:[%s3353 + $0x40] sm:$0xff]
        %v3363 = vld [vmem:[%s3353 + $0x48] sm:$0xff]
        %v3364 = vld [vmem:[%s3353 + $0x50] sm:$0xff]
        %v3365 = vld [vmem:[%s3353 + $0x58] sm:$0xff]
        %v3366 = vld [vmem:[%s3353 + $0x60] sm:$0xff]
        %v3367 = vld [vmem:[%s3353 + $0x68] sm:$0xff]
        %v3368 = vld [vmem:[%s3353 + $0x70] sm:$0xff]
        %v3369 = vld [vmem:[%s3353 + $0x78] sm:$0xff]
        %v3370 = vld [vmem:[%s3353 + $0x80] sm:$0xff]
        %v3371 = vld [vmem:[%s3353 + $0x88] sm:$0xff]
        %v3372 = vld [vmem:[%s3353 + $0x90] sm:$0xff]
        %v3373 = vld [vmem:[%s3353 + $0x98] sm:$0xff]
        %v3374 = vld [vmem:[%s3353 + $0xa0] sm:$0xff]
        %v3375 = vld [vmem:[%s3353 + $0xa8] sm:$0xff]
        %v3376 = vld [vmem:[%s3353 + $0xb0] sm:$0xff]
        %v3377 = vld [vmem:[%s3353 + $0xb8] sm:$0xff]
        %v3378 = vld [vmem:[%s3353 + $0xc0] sm:$0xff]
        %v3379 = vld [vmem:[%s3353 + $0xc8] sm:$0xff]
        %v3380 = vld [vmem:[%s3353 + $0xd0] sm:$0xff]
        %v3381 = vld [vmem:[%s3353 + $0xd8] sm:$0xff]
        %v3382 = vld [vmem:[%s3353 + $0xe0] sm:$0xff]
        %v3383 = vld [vmem:[%s3353 + $0xe8] sm:$0xff]
        %v3384 = vld [vmem:[%s3353 + $0xf0] sm:$0xff]
        %v3385 = vld [vmem:[%s3353 + $0xf8] sm:$0xff]
        %v3386 = vld [vmem:[%s3353 + $0x100] sm:$0xff]
        %v3387 = vld [vmem:[%s3353 + $0x108] sm:$0xff]
        %v3388 = vld [vmem:[%s3353 + $0x110] sm:$0xff]
        %v3389 = vld [vmem:[%s3353 + $0x118] sm:$0xff]
        %v3390 = vld [vmem:[%s3353 + $0x120] sm:$0xff]
        %v3391 = vld [vmem:[%s3353 + $0x128] sm:$0xff]
        %v3392 = vld [vmem:[%s3353 + $0x130] sm:$0xff]
        %v3393 = vld [vmem:[%s3353 + $0x138] sm:$0xff]
        %v3394 = vld [vmem:[%s3353 + $0x140] sm:$0xff]
        %v3395 = vld [vmem:[%s3353 + $0x148] sm:$0xff]
        %v3396 = vld [vmem:[%s3353 + $0x150] sm:$0xff]
        %v3397 = vld [vmem:[%s3353 + $0x158] sm:$0xff]
        %v3398 = vld [vmem:[%s3353 + $0x160] sm:$0xff]
        %v3399 = vld [vmem:[%s3353 + $0x168] sm:$0xff]
        %v3400 = vld [vmem:[%s3353 + $0x170] sm:$0xff]
        %v3401 = vld [vmem:[%s3353 + $0x178] sm:$0xff]
        %v3402 = vld [vmem:[%s3353 + $0x180] sm:$0xff]
        %v3403 = vld [vmem:[%s3353 + $0x188] sm:$0xff]
        %v3404 = vld [vmem:[%s3353 + $0x190] sm:$0xff]
        %v3405 = vld [vmem:[%s3353 + $0x198] sm:$0xff]
        %v3406 = vld [vmem:[%s3353 + $0x1a0] sm:$0xff]
        %v3407 = vld [vmem:[%s3353 + $0x1a8] sm:$0xff]
        %v3408 = vld [vmem:[%s3353 + $0x1b0] sm:$0xff]
        %v3409 = vld [vmem:[%s3353 + $0x1b8] sm:$0xff]
        %v3410 = vld [vmem:[%s3353 + $0x1c0] sm:$0xff]
        %v3411 = vld [vmem:[%s3353 + $0x1c8] sm:$0xff]
        %v3412 = vld [vmem:[%s3353 + $0x1d0] sm:$0xff]
        %v3413 = vld [vmem:[%s3353 + $0x1d8] sm:$0xff]
        %v3414 = vld [vmem:[%s3353 + $0x1e0] sm:$0xff]
        %v3415 = vld [vmem:[%s3353 + $0x1e8] sm:$0xff]
        %v3416 = vld [vmem:[%s3353 + $0x1f0] sm:$0xff]
        %v3417 = vld [vmem:[%s3353 + $0x1f8] sm:$0xff]
        %v3419 = vshrl.u32 %v3279, 16
        %v3421 = vshll.u32 %v3279, 16
        %v3423 = vrot.slane %v3421, 1
        %v3424 = vor.u32 %v3419, %v3423
        %v3426 = vshll.u32 %v3281, 16
        %v3428 = vrot.slane %v3426, 1
        %v3429 = vsel %vm1825, %v3424, %v3428
        %v3431 = vshrl.u32 %v3280, 16
        %v3433 = vshll.u32 %v3280, 16
        %v3435 = vrot.slane %v3433, 1
        %v3436 = vor.u32 %v3431, %v3435
        %v3438 = vshll.u32 %v3282, 16
        %v3440 = vrot.slane %v3438, 1
        %v3441 = vsel %vm1825, %v3436, %v3440
        %v3442 = vshrl.u32 %v3281, 16
        %v3444 = vor.u32 %v3442, %v3428
        %v3446 = vshll.u32 %v3283, 16
        %v3448 = vrot.slane %v3446, 1
        %v3449 = vsel %vm1825, %v3444, %v3448
        %v3450 = vshrl.u32 %v3282, 16
        %v3452 = vor.u32 %v3450, %v3440
        %v3454 = vshll.u32 %v3284, 16
        %v3456 = vrot.slane %v3454, 1
        %v3457 = vsel %vm1825, %v3452, %v3456
        %v3458 = vshrl.u32 %v3283, 16
        %v3460 = vor.u32 %v3458, %v3448
        %v3462 = vshll.u32 %v3285, 16
        %v3464 = vrot.slane %v3462, 1
        %v3465 = vsel %vm1825, %v3460, %v3464
        %v3466 = vshrl.u32 %v3284, 16
        %v3468 = vor.u32 %v3466, %v3456
        %v3470 = vshll.u32 %v3286, 16
        %v3472 = vrot.slane %v3470, 1
        %v3473 = vsel %vm1825, %v3468, %v3472
        %v3474 = vshrl.u32 %v3285, 16
        %v3476 = vor.u32 %v3474, %v3464
        %v3478 = vshll.u32 %v3287, 16
        %v3480 = vrot.slane %v3478, 1
        %v3481 = vsel %vm1825, %v3476, %v3480
        %v3482 = vshrl.u32 %v3286, 16
        %v3484 = vor.u32 %v3482, %v3472
        %v3486 = vshll.u32 %v3288, 16
        %v3488 = vrot.slane %v3486, 1
        %v3489 = vsel %vm1825, %v3484, %v3488
        %v3490 = vshrl.u32 %v3287, 16
        %v3492 = vor.u32 %v3490, %v3480
        %v3493 = vshrl.u32 %v3288, 16
        %v3495 = vor.u32 %v3493, %v3488
        %v3570 = vunpack.c.l.b16 %v3354
        %v3571 = vunpack.c.h.b16 %v3354
        %v3572 = vunpack.c.l.b16 %v3355
        %v3573 = vunpack.c.h.b16 %v3355
        %v3574 = vunpack.c.l.b16 %v3356
        %v3575 = vunpack.c.h.b16 %v3356
        %v3576 = vunpack.c.l.b16 %v3357
        %v3577 = vunpack.c.h.b16 %v3357
        %v3578 = vunpack.c.l.b16 %v3358
        %v3579 = vunpack.c.h.b16 %v3358
        %v3580 = vunpack.c.l.b16 %v3359
        %v3581 = vunpack.c.h.b16 %v3359
        %v3582 = vunpack.c.l.b16 %v3360
        %v3583 = vunpack.c.h.b16 %v3360
        %v3584 = vunpack.c.l.b16 %v3361
        %v3585 = vunpack.c.h.b16 %v3361
        %v3586 = vunpack.c.l.b16 %v3362
        %v3587 = vunpack.c.h.b16 %v3362
        %v3588 = vunpack.c.l.b16 %v3363
        %v3589 = vunpack.c.h.b16 %v3363
        %v3590 = vunpack.c.l.b16 %v3364
        %v3591 = vunpack.c.h.b16 %v3364
        %v3592 = vunpack.c.l.b16 %v3365
        %v3593 = vunpack.c.h.b16 %v3365
        %v3594 = vunpack.c.l.b16 %v3366
        %v3595 = vunpack.c.h.b16 %v3366
        %v3596 = vunpack.c.l.b16 %v3367
        %v3597 = vunpack.c.h.b16 %v3367
        %v3598 = vunpack.c.l.b16 %v3368
        %v3599 = vunpack.c.h.b16 %v3368
        %v3600 = vunpack.c.l.b16 %v3369
        %v3601 = vunpack.c.h.b16 %v3369
        %v3602 = vunpack.c.l.b16 %v3370
        %v3603 = vunpack.c.h.b16 %v3370
        %v3604 = vunpack.c.l.b16 %v3371
        %v3605 = vunpack.c.h.b16 %v3371
        %v3606 = vunpack.c.l.b16 %v3372
        %v3607 = vunpack.c.h.b16 %v3372
        %v3608 = vunpack.c.l.b16 %v3373
        %v3609 = vunpack.c.h.b16 %v3373
        %v3610 = vunpack.c.l.b16 %v3374
        %v3611 = vunpack.c.h.b16 %v3374
        %v3612 = vunpack.c.l.b16 %v3375
        %v3613 = vunpack.c.h.b16 %v3375
        %v3614 = vunpack.c.l.b16 %v3376
        %v3615 = vunpack.c.h.b16 %v3376
        %v3616 = vunpack.c.l.b16 %v3377
        %v3617 = vunpack.c.h.b16 %v3377
        %v3618 = vunpack.c.l.b16 %v3378
        %v3619 = vunpack.c.h.b16 %v3378
        %v3620 = vunpack.c.l.b16 %v3379
        %v3621 = vunpack.c.h.b16 %v3379
        %v3622 = vunpack.c.l.b16 %v3380
        %v3623 = vunpack.c.h.b16 %v3380
        %v3624 = vunpack.c.l.b16 %v3381
        %v3625 = vunpack.c.h.b16 %v3381
        %v3626 = vunpack.c.l.b16 %v3382
        %v3627 = vunpack.c.h.b16 %v3382
        %v3628 = vunpack.c.l.b16 %v3383
        %v3629 = vunpack.c.h.b16 %v3383
        %v3630 = vunpack.c.l.b16 %v3384
        %v3631 = vunpack.c.h.b16 %v3384
        %v3632 = vunpack.c.l.b16 %v3385
        %v3633 = vunpack.c.h.b16 %v3385
        %v3634 = vunpack.c.l.b16 %v3386
        %v3635 = vunpack.c.h.b16 %v3386
        %v3636 = vunpack.c.l.b16 %v3387
        %v3637 = vunpack.c.h.b16 %v3387
        %v3638 = vunpack.c.l.b16 %v3388
        %v3639 = vunpack.c.h.b16 %v3388
        %v3640 = vunpack.c.l.b16 %v3389
        %v3641 = vunpack.c.h.b16 %v3389
        %v3642 = vunpack.c.l.b16 %v3390
        %v3643 = vunpack.c.h.b16 %v3390
        %v3644 = vunpack.c.l.b16 %v3391
        %v3645 = vunpack.c.h.b16 %v3391
        %v3646 = vunpack.c.l.b16 %v3392
        %v3647 = vunpack.c.h.b16 %v3392
        %v3648 = vunpack.c.l.b16 %v3393
        %v3649 = vunpack.c.h.b16 %v3393
        %v3650 = vunpack.c.l.b16 %v3394
        %v3651 = vunpack.c.h.b16 %v3394
        %v3652 = vunpack.c.l.b16 %v3395
        %v3653 = vunpack.c.h.b16 %v3395
        %v3654 = vunpack.c.l.b16 %v3396
        %v3655 = vunpack.c.h.b16 %v3396
        %v3656 = vunpack.c.l.b16 %v3397
        %v3657 = vunpack.c.h.b16 %v3397
        %v3658 = vunpack.c.l.b16 %v3398
        %v3659 = vunpack.c.h.b16 %v3398
        %v3660 = vunpack.c.l.b16 %v3399
        %v3661 = vunpack.c.h.b16 %v3399
        %v3662 = vunpack.c.l.b16 %v3400
        %v3663 = vunpack.c.h.b16 %v3400
        %v3664 = vunpack.c.l.b16 %v3401
        %v3665 = vunpack.c.h.b16 %v3401
        %v3666 = vunpack.c.l.b16 %v3402
        %v3667 = vunpack.c.h.b16 %v3402
        %v3668 = vunpack.c.l.b16 %v3403
        %v3669 = vunpack.c.h.b16 %v3403
        %v3670 = vunpack.c.l.b16 %v3404
        %v3671 = vunpack.c.h.b16 %v3404
        %v3672 = vunpack.c.l.b16 %v3405
        %v3673 = vunpack.c.h.b16 %v3405
        %v3674 = vunpack.c.l.b16 %v3406
        %v3675 = vunpack.c.h.b16 %v3406
        %v3676 = vunpack.c.l.b16 %v3407
        %v3677 = vunpack.c.h.b16 %v3407
        %v3678 = vunpack.c.l.b16 %v3408
        %v3679 = vunpack.c.h.b16 %v3408
        %v3680 = vunpack.c.l.b16 %v3409
        %v3681 = vunpack.c.h.b16 %v3409
        %v3682 = vunpack.c.l.b16 %v3410
        %v3683 = vunpack.c.h.b16 %v3410
        %v3684 = vunpack.c.l.b16 %v3411
        %v3685 = vunpack.c.h.b16 %v3411
        %v3686 = vunpack.c.l.b16 %v3412
        %v3687 = vunpack.c.h.b16 %v3412
        %v3688 = vunpack.c.l.b16 %v3413
        %v3689 = vunpack.c.h.b16 %v3413
        %v3690 = vunpack.c.l.b16 %v3414
        %v3691 = vunpack.c.h.b16 %v3414
        %v3692 = vunpack.c.l.b16 %v3415
        %v3693 = vunpack.c.h.b16 %v3415
        %v3694 = vunpack.c.l.b16 %v3416
        %v3695 = vunpack.c.h.b16 %v3416
        %v3696 = vunpack.c.l.b16 %v3417
        %v3697 = vunpack.c.h.b16 %v3417
        %v3698 = vpack.c.b16 %v3574, %v3570
        %v3699 = vpack.c.b16 %v3575, %v3571
        %v3700 = vpack.c.b16 %v3576, %v3572
        %v3701 = vpack.c.b16 %v3577, %v3573
        %v3702 = vpack.c.b16 %v3582, %v3578
        %v3703 = vpack.c.b16 %v3583, %v3579
        %v3704 = vpack.c.b16 %v3584, %v3580
        %v3705 = vpack.c.b16 %v3585, %v3581
        %v3706 = vpack.c.b16 %v3590, %v3586
        %v3707 = vpack.c.b16 %v3591, %v3587
        %v3708 = vpack.c.b16 %v3592, %v3588
        %v3709 = vpack.c.b16 %v3593, %v3589
        %v3710 = vpack.c.b16 %v3598, %v3594
        %v3711 = vpack.c.b16 %v3599, %v3595
        %v3712 = vpack.c.b16 %v3600, %v3596
        %v3713 = vpack.c.b16 %v3601, %v3597
        %v3714 = vpack.c.b16 %v3606, %v3602
        %v3715 = vpack.c.b16 %v3607, %v3603
        %v3716 = vpack.c.b16 %v3608, %v3604
        %v3717 = vpack.c.b16 %v3609, %v3605
        %v3718 = vpack.c.b16 %v3614, %v3610
        %v3719 = vpack.c.b16 %v3615, %v3611
        %v3720 = vpack.c.b16 %v3616, %v3612
        %v3721 = vpack.c.b16 %v3617, %v3613
        %v3722 = vpack.c.b16 %v3622, %v3618
        %v3723 = vpack.c.b16 %v3623, %v3619
        %v3724 = vpack.c.b16 %v3624, %v3620
        %v3725 = vpack.c.b16 %v3625, %v3621
        %v3726 = vpack.c.b16 %v3630, %v3626
        %v3727 = vpack.c.b16 %v3631, %v3627
        %v3728 = vpack.c.b16 %v3632, %v3628
        %v3729 = vpack.c.b16 %v3633, %v3629
        %v3730 = vpack.c.b16 %v3638, %v3634
        %v3731 = vpack.c.b16 %v3639, %v3635
        %v3732 = vpack.c.b16 %v3640, %v3636
        %v3733 = vpack.c.b16 %v3641, %v3637
        %v3734 = vpack.c.b16 %v3646, %v3642
        %v3735 = vpack.c.b16 %v3647, %v3643
        %v3736 = vpack.c.b16 %v3648, %v3644
        %v3737 = vpack.c.b16 %v3649, %v3645
        %v3738 = vpack.c.b16 %v3654, %v3650
        %v3739 = vpack.c.b16 %v3655, %v3651
        %v3740 = vpack.c.b16 %v3656, %v3652
        %v3741 = vpack.c.b16 %v3657, %v3653
        %v3742 = vpack.c.b16 %v3662, %v3658
        %v3743 = vpack.c.b16 %v3663, %v3659
        %v3744 = vpack.c.b16 %v3664, %v3660
        %v3745 = vpack.c.b16 %v3665, %v3661
        %v3746 = vpack.c.b16 %v3670, %v3666
        %v3747 = vpack.c.b16 %v3671, %v3667
        %v3748 = vpack.c.b16 %v3672, %v3668
        %v3749 = vpack.c.b16 %v3673, %v3669
        %v3750 = vpack.c.b16 %v3678, %v3674
        %v3751 = vpack.c.b16 %v3679, %v3675
        %v3752 = vpack.c.b16 %v3680, %v3676
        %v3753 = vpack.c.b16 %v3681, %v3677
        %v3754 = vpack.c.b16 %v3686, %v3682
        %v3755 = vpack.c.b16 %v3687, %v3683
        %v3756 = vpack.c.b16 %v3688, %v3684
        %v3757 = vpack.c.b16 %v3689, %v3685
        %v3758 = vpack.c.b16 %v3694, %v3690
        %v3759 = vpack.c.b16 %v3695, %v3691
        %v3760 = vpack.c.b16 %v3696, %v3692
        %v3761 = vpack.c.b16 %v3697, %v3693
        %3826 = vmatprep.subr.bf16.mxu0 %v3699
        %3827 = vmatpush1.bf16.msra.mxu0 %v3698
        %3828 = vmatprep.subr.bf16.mxu0 %v3703
        %3829 = vmatpush1.bf16.msra.mxu0 %v3702
        %3830 = vmatprep.subr.bf16.mxu0 %v3707
        %3831 = vmatpush1.bf16.msra.mxu0 %v3706
        %3832 = vmatprep.subr.bf16.mxu0 %v3711
        %3833 = vmatpush1.bf16.msra.mxu0 %v3710
        %3834 = vmatprep.subr.bf16.mxu0 %v3715
        %3835 = vmatpush1.bf16.msra.mxu0 %v3714
        %3836 = vmatprep.subr.bf16.mxu0 %v3719
        %3837 = vmatpush1.bf16.msra.mxu0 %v3718
        %3838 = vmatprep.subr.bf16.mxu0 %v3723
        %3839 = vmatpush1.bf16.msra.mxu0 %v3722
        %3840 = vmatprep.subr.bf16.mxu0 %v3727
        %3841 = vmatpush1.bf16.msra.mxu0 %v3726
        %3842 = vmatprep.subr.bf16.mxu0 %v3731
        %3843 = vmatpush1.bf16.msra.mxu0 %v3730
        %3844 = vmatprep.subr.bf16.mxu0 %v3735
        %3845 = vmatpush1.bf16.msra.mxu0 %v3734
        %3846 = vmatprep.subr.bf16.mxu0 %v3739
        %3847 = vmatpush1.bf16.msra.mxu0 %v3738
        %3848 = vmatprep.subr.bf16.mxu0 %v3743
        %3849 = vmatpush1.bf16.msra.mxu0 %v3742
        %3850 = vmatprep.subr.bf16.mxu0 %v3747
        %3851 = vmatpush1.bf16.msra.mxu0 %v3746
        %3852 = vmatprep.subr.bf16.mxu0 %v3751
        %3853 = vmatpush1.bf16.msra.mxu0 %v3750
        %3854 = vmatprep.subr.bf16.mxu0 %v3755
        %3855 = vmatpush1.bf16.msra.mxu0 %v3754
        %3856 = vmatprep.subr.bf16.mxu0 %v3759
        %3857 = vmatpush1.bf16.msra.mxu0 %v3758
        %3858 = vmatprep.mubr.bf16.mxu0 %v3441
        %3859 = vmatmul.mubr.bf16.gmra.mrb[0].mxu0 %v3429
        %v3860 = vpop.f32.mrb[0].mxu0
        %v3861 = vadd.f32 0.0, %v3860
        %v3862 = vpop.f32.mrb[0].mxu0
        %v3863 = vadd.f32 0.0, %v3862
        %v3864 = vpop.f32.mrb[0].mxu0
        %v3865 = vadd.f32 0.0, %v3864
        %v3866 = vpop.f32.mrb[0].mxu0
        %v3867 = vadd.f32 0.0, %v3866
        %3868 = vmatprep.mubr.bf16.mxu0 %v3457
        %3869 = vmatmul.mubr.bf16.gmra.mrb[0].mxu0 %v3449
        %v3870 = vpop.f32.mrb[0].mxu0
        %v3871 = vadd.f32 0.0, %v3870
        %v3872 = vpop.f32.mrb[0].mxu0
        %v3873 = vadd.f32 0.0, %v3872
        %v3874 = vpop.f32.mrb[0].mxu0
        %v3875 = vadd.f32 0.0, %v3874
        %v3876 = vpop.f32.mrb[0].mxu0
        %v3877 = vadd.f32 0.0, %v3876
        %3878 = vmatprep.mubr.bf16.mxu0 %v3473
        %3879 = vmatmul.mubr.bf16.gmra.mrb[0].mxu0 %v3465
        %v3880 = vpop.f32.mrb[0].mxu0
        %v3881 = vadd.f32 0.0, %v3880
        %v3882 = vpop.f32.mrb[0].mxu0
        %v3883 = vadd.f32 0.0, %v3882
        %v3884 = vpop.f32.mrb[0].mxu0
        %v3885 = vadd.f32 0.0, %v3884
        %v3886 = vpop.f32.mrb[0].mxu0
        %v3887 = vadd.f32 0.0, %v3886
        %3888 = vmatprep.mubr.bf16.mxu0 %v3489
        %3889 = vmatmul.mubr.bf16.gmra.mrb[0].mxu0 %v3481
        %v3890 = vpop.f32.mrb[0].mxu0
        %v3891 = vadd.f32 0.0, %v3890
        %v3892 = vpop.f32.mrb[0].mxu0
        %v3893 = vadd.f32 0.0, %v3892
        %v3894 = vpop.f32.mrb[0].mxu0
        %v3895 = vadd.f32 0.0, %v3894
        %v3896 = vpop.f32.mrb[0].mxu0
        %v3897 = vadd.f32 0.0, %v3896
        %3898 = vmatprep.mubr.bf16.mxu0 %v3495
        %3899 = vmatmul.mubr.bf16.gmra.mrb[0].mxu0 %v3492
        %v3900 = vpop.f32.mrb[0].mxu0
        %v3901 = vadd.f32 0.0, %v3900
        %v3902 = vpop.f32.mrb[0].mxu0
        %v3903 = vadd.f32 0.0, %v3902
        %v3904 = vpop.f32.mrb[0].mxu0
        %v3905 = vadd.f32 0.0, %v3904
        %v3906 = vpop.f32.mrb[0].mxu0
        %v3907 = vadd.f32 0.0, %v3906
        %3908 = vdwg.mxu0
        %3909 = vmatprep.subr.bf16.mxu0 %v3701
        %3910 = vmatpush1.bf16.msra.mxu0 %v3700
        %3911 = vmatprep.subr.bf16.mxu0 %v3705
        %3912 = vmatpush1.bf16.msra.mxu0 %v3704
        %3913 = vmatprep.subr.bf16.mxu0 %v3709
        %3914 = vmatpush1.bf16.msra.mxu0 %v3708
        %3915 = vmatprep.subr.bf16.mxu0 %v3713
        %3916 = vmatpush1.bf16.msra.mxu0 %v3712
        %3917 = vmatprep.subr.bf16.mxu0 %v3717
        %3918 = vmatpush1.bf16.msra.mxu0 %v3716
        %3919 = vmatprep.subr.bf16.mxu0 %v3721
        %3920 = vmatpush1.bf16.msra.mxu0 %v3720
        %3921 = vmatprep.subr.bf16.mxu0 %v3725
        %3922 = vmatpush1.bf16.msra.mxu0 %v3724
        %3923 = vmatprep.subr.bf16.mxu0 %v3729
        %3924 = vmatpush1.bf16.msra.mxu0 %v3728
        %3925 = vmatprep.subr.bf16.mxu0 %v3733
        %3926 = vmatpush1.bf16.msra.mxu0 %v3732
        %3927 = vmatprep.subr.bf16.mxu0 %v3737
        %3928 = vmatpush1.bf16.msra.mxu0 %v3736
        %3929 = vmatprep.subr.bf16.mxu0 %v3741
        %3930 = vmatpush1.bf16.msra.mxu0 %v3740
        %3931 = vmatprep.subr.bf16.mxu0 %v3745
        %3932 = vmatpush1.bf16.msra.mxu0 %v3744
        %3933 = vmatprep.subr.bf16.mxu0 %v3749
        %3934 = vmatpush1.bf16.msra.mxu0 %v3748
        %3935 = vmatprep.subr.bf16.mxu0 %v3753
        %3936 = vmatpush1.bf16.msra.mxu0 %v3752
        %3937 = vmatprep.subr.bf16.mxu0 %v3757
        %3938 = vmatpush1.bf16.msra.mxu0 %v3756
        %3939 = vmatprep.subr.bf16.mxu0 %v3761
        %3940 = vmatpush1.bf16.msra.mxu0 %v3760
        %3941 = vmatprep.mubr.bf16.mxu0 %v3441
        %3942 = vmatmul.mubr.bf16.gmra.mrb[0].mxu0 %v3429
        %v3943 = vpop.f32.mrb[0].mxu0
        %v3944 = vadd.f32 0.0, %v3943
        %v3945 = vpop.f32.mrb[0].mxu0
        %v3946 = vadd.f32 0.0, %v3945
        %v3947 = vpop.f32.mrb[0].mxu0
        %v3948 = vadd.f32 0.0, %v3947
        %v3949 = vpop.f32.mrb[0].mxu0
        %v3950 = vadd.f32 0.0, %v3949
        %3951 = vmatprep.mubr.bf16.mxu0 %v3457
        %3952 = vmatmul.mubr.bf16.gmra.mrb[0].mxu0 %v3449
        %v3953 = vpop.f32.mrb[0].mxu0
        %v3954 = vadd.f32 0.0, %v3953
        %v3955 = vpop.f32.mrb[0].mxu0
        %v3956 = vadd.f32 0.0, %v3955
        %v3957 = vpop.f32.mrb[0].mxu0
        %v3958 = vadd.f32 0.0, %v3957
        %v3959 = vpop.f32.mrb[0].mxu0
        %v3960 = vadd.f32 0.0, %v3959
        %3961 = vmatprep.mubr.bf16.mxu0 %v3473
        %3962 = vmatmul.mubr.bf16.gmra.mrb[0].mxu0 %v3465
        %v3963 = vpop.f32.mrb[0].mxu0
        %v3964 = vadd.f32 0.0, %v3963
        %v3965 = vpop.f32.mrb[0].mxu0
        %v3966 = vadd.f32 0.0, %v3965
        %v3967 = vpop.f32.mrb[0].mxu0
        %v3968 = vadd.f32 0.0, %v3967
        %v3969 = vpop.f32.mrb[0].mxu0
        %v3970 = vadd.f32 0.0, %v3969
        %3971 = vmatprep.mubr.bf16.mxu0 %v3489
        %3972 = vmatmul.mubr.bf16.gmra.mrb[0].mxu0 %v3481
        %v3973 = vpop.f32.mrb[0].mxu0
        %v3974 = vadd.f32 0.0, %v3973
        %v3975 = vpop.f32.mrb[0].mxu0
        %v3976 = vadd.f32 0.0, %v3975
        %v3977 = vpop.f32.mrb[0].mxu0
        %v3978 = vadd.f32 0.0, %v3977
        %v3979 = vpop.f32.mrb[0].mxu0
        %v3980 = vadd.f32 0.0, %v3979
        %3981 = vmatprep.mubr.bf16.mxu0 %v3495
        %3982 = vmatmul.mubr.bf16.gmra.mrb[0].mxu0 %v3492
        %v3983 = vpop.f32.mrb[0].mxu0
        %v3984 = vadd.f32 0.0, %v3983
        %v3985 = vpop.f32.mrb[0].mxu0
        %v3986 = vadd.f32 0.0, %v3985
        %v3987 = vpop.f32.mrb[0].mxu0
        %v3988 = vadd.f32 0.0, %v3987
        %v3989 = vpop.f32.mrb[0].mxu0
        %v3990 = vadd.f32 0.0, %v3989
        %3991 = vdwg.mxu0
        %v4056 = vunpack.c.l.b16 %v3289
        %v4057 = vunpack.c.h.b16 %v3289
        %v4058 = vunpack.c.l.b16 %v3290
        %v4059 = vunpack.c.h.b16 %v3290
        %v4060 = vunpack.c.l.b16 %v3291
        %v4061 = vunpack.c.h.b16 %v3291
        %v4062 = vunpack.c.l.b16 %v3292
        %v4063 = vunpack.c.h.b16 %v3292
        %v4064 = vunpack.c.l.b16 %v3293
        %v4065 = vunpack.c.h.b16 %v3293
        %v4066 = vunpack.c.l.b16 %v3294
        %v4067 = vunpack.c.h.b16 %v3294
        %v4068 = vunpack.c.l.b16 %v3295
        %v4069 = vunpack.c.h.b16 %v3295
        %v4070 = vunpack.c.l.b16 %v3296
        %v4071 = vunpack.c.h.b16 %v3296
        %v4072 = vunpack.c.l.b16 %v3297
        %v4073 = vunpack.c.h.b16 %v3297
        %v4074 = vunpack.c.l.b16 %v3298
        %v4075 = vunpack.c.h.b16 %v3298
        %v4076 = vunpack.c.l.b16 %v3299
        %v4077 = vunpack.c.h.b16 %v3299
        %v4078 = vunpack.c.l.b16 %v3300
        %v4079 = vunpack.c.h.b16 %v3300
        %v4080 = vunpack.c.l.b16 %v3301
        %v4081 = vunpack.c.h.b16 %v3301
        %v4082 = vunpack.c.l.b16 %v3302
        %v4083 = vunpack.c.h.b16 %v3302
        %v4084 = vunpack.c.l.b16 %v3303
        %v4085 = vunpack.c.h.b16 %v3303
        %v4086 = vunpack.c.l.b16 %v3304
        %v4087 = vunpack.c.h.b16 %v3304
        %v4088 = vunpack.c.l.b16 %v3305
        %v4089 = vunpack.c.h.b16 %v3305
        %v4090 = vunpack.c.l.b16 %v3306
        %v4091 = vunpack.c.h.b16 %v3306
        %v4092 = vunpack.c.l.b16 %v3307
        %v4093 = vunpack.c.h.b16 %v3307
        %v4094 = vunpack.c.l.b16 %v3308
        %v4095 = vunpack.c.h.b16 %v3308
        %v4096 = vunpack.c.l.b16 %v3309
        %v4097 = vunpack.c.h.b16 %v3309
        %v4098 = vunpack.c.l.b16 %v3310
        %v4099 = vunpack.c.h.b16 %v3310
        %v4100 = vunpack.c.l.b16 %v3311
        %v4101 = vunpack.c.h.b16 %v3311
        %v4102 = vunpack.c.l.b16 %v3312
        %v4103 = vunpack.c.h.b16 %v3312
        %v4104 = vunpack.c.l.b16 %v3313
        %v4105 = vunpack.c.h.b16 %v3313
        %v4106 = vunpack.c.l.b16 %v3314
        %v4107 = vunpack.c.h.b16 %v3314
        %v4108 = vunpack.c.l.b16 %v3315
        %v4109 = vunpack.c.h.b16 %v3315
        %v4110 = vunpack.c.l.b16 %v3316
        %v4111 = vunpack.c.h.b16 %v3316
        %v4112 = vunpack.c.l.b16 %v3317
        %v4113 = vunpack.c.h.b16 %v3317
        %v4114 = vunpack.c.l.b16 %v3318
        %v4115 = vunpack.c.h.b16 %v3318
        %v4116 = vunpack.c.l.b16 %v3319
        %v4117 = vunpack.c.h.b16 %v3319
        %v4118 = vunpack.c.l.b16 %v3320
        %v4119 = vunpack.c.h.b16 %v3320
        %v4120 = vunpack.c.l.b16 %v3321
        %v4121 = vunpack.c.h.b16 %v3321
        %v4122 = vunpack.c.l.b16 %v3322
        %v4123 = vunpack.c.h.b16 %v3322
        %v4124 = vunpack.c.l.b16 %v3323
        %v4125 = vunpack.c.h.b16 %v3323
        %v4126 = vunpack.c.l.b16 %v3324
        %v4127 = vunpack.c.h.b16 %v3324
        %v4128 = vunpack.c.l.b16 %v3325
        %v4129 = vunpack.c.h.b16 %v3325
        %v4130 = vunpack.c.l.b16 %v3326
        %v4131 = vunpack.c.h.b16 %v3326
        %v4132 = vunpack.c.l.b16 %v3327
        %v4133 = vunpack.c.h.b16 %v3327
        %v4134 = vunpack.c.l.b16 %v3328
        %v4135 = vunpack.c.h.b16 %v3328
        %v4136 = vunpack.c.l.b16 %v3329
        %v4137 = vunpack.c.h.b16 %v3329
        %v4138 = vunpack.c.l.b16 %v3330
        %v4139 = vunpack.c.h.b16 %v3330
        %v4140 = vunpack.c.l.b16 %v3331
        %v4141 = vunpack.c.h.b16 %v3331
        %v4142 = vunpack.c.l.b16 %v3332
        %v4143 = vunpack.c.h.b16 %v3332
        %v4144 = vunpack.c.l.b16 %v3333
        %v4145 = vunpack.c.h.b16 %v3333
        %v4146 = vunpack.c.l.b16 %v3334
        %v4147 = vunpack.c.h.b16 %v3334
        %v4148 = vunpack.c.l.b16 %v3335
        %v4149 = vunpack.c.h.b16 %v3335
        %v4150 = vunpack.c.l.b16 %v3336
        %v4151 = vunpack.c.h.b16 %v3336
        %v4152 = vunpack.c.l.b16 %v3337
        %v4153 = vunpack.c.h.b16 %v3337
        %v4154 = vunpack.c.l.b16 %v3338
        %v4155 = vunpack.c.h.b16 %v3338
        %v4156 = vunpack.c.l.b16 %v3339
        %v4157 = vunpack.c.h.b16 %v3339
        %v4158 = vunpack.c.l.b16 %v3340
        %v4159 = vunpack.c.h.b16 %v3340
        %v4160 = vunpack.c.l.b16 %v3341
        %v4161 = vunpack.c.h.b16 %v3341
        %v4162 = vunpack.c.l.b16 %v3342
        %v4163 = vunpack.c.h.b16 %v3342
        %v4164 = vunpack.c.l.b16 %v3343
        %v4165 = vunpack.c.h.b16 %v3343
        %v4166 = vunpack.c.l.b16 %v3344
        %v4167 = vunpack.c.h.b16 %v3344
        %v4168 = vunpack.c.l.b16 %v3345
        %v4169 = vunpack.c.h.b16 %v3345
        %v4170 = vunpack.c.l.b16 %v3346
        %v4171 = vunpack.c.h.b16 %v3346
        %v4172 = vunpack.c.l.b16 %v3347
        %v4173 = vunpack.c.h.b16 %v3347
        %v4174 = vunpack.c.l.b16 %v3348
        %v4175 = vunpack.c.h.b16 %v3348
        %v4176 = vunpack.c.l.b16 %v3349
        %v4177 = vunpack.c.h.b16 %v3349
        %v4178 = vunpack.c.l.b16 %v3350
        %v4179 = vunpack.c.h.b16 %v3350
        %v4180 = vunpack.c.l.b16 %v3351
        %v4181 = vunpack.c.h.b16 %v3351
        %v4182 = vunpack.c.l.b16 %v3352
        %v4183 = vunpack.c.h.b16 %v3352
        %v4184 = vpack.c.b16 %v4060, %v4056
        %v4185 = vpack.c.b16 %v4061, %v4057
        %v4186 = vpack.c.b16 %v4062, %v4058
        %v4187 = vpack.c.b16 %v4063, %v4059
        %v4188 = vpack.c.b16 %v4068, %v4064
        %v4189 = vpack.c.b16 %v4069, %v4065
        %v4190 = vpack.c.b16 %v4070, %v4066
        %v4191 = vpack.c.b16 %v4071, %v4067
        %v4192 = vpack.c.b16 %v4076, %v4072
        %v4193 = vpack.c.b16 %v4077, %v4073
        %v4194 = vpack.c.b16 %v4078, %v4074
        %v4195 = vpack.c.b16 %v4079, %v4075
        %v4196 = vpack.c.b16 %v4084, %v4080
        %v4197 = vpack.c.b16 %v4085, %v4081
        %v4198 = vpack.c.b16 %v4086, %v4082
        %v4199 = vpack.c.b16 %v4087, %v4083
        %v4200 = vpack.c.b16 %v4092, %v4088
        %v4201 = vpack.c.b16 %v4093, %v4089
        %v4202 = vpack.c.b16 %v4094, %v4090
        %v4203 = vpack.c.b16 %v4095, %v4091
        %v4204 = vpack.c.b16 %v4100, %v4096
        %v4205 = vpack.c.b16 %v4101, %v4097
        %v4206 = vpack.c.b16 %v4102, %v4098
        %v4207 = vpack.c.b16 %v4103, %v4099
        %v4208 = vpack.c.b16 %v4108, %v4104
        %v4209 = vpack.c.b16 %v4109, %v4105
        %v4210 = vpack.c.b16 %v4110, %v4106
        %v4211 = vpack.c.b16 %v4111, %v4107
        %v4212 = vpack.c.b16 %v4116, %v4112
        %v4213 = vpack.c.b16 %v4117, %v4113
        %v4214 = vpack.c.b16 %v4118, %v4114
        %v4215 = vpack.c.b16 %v4119, %v4115
        %v4216 = vpack.c.b16 %v4124, %v4120
        %v4217 = vpack.c.b16 %v4125, %v4121
        %v4218 = vpack.c.b16 %v4126, %v4122
        %v4219 = vpack.c.b16 %v4127, %v4123
        %v4220 = vpack.c.b16 %v4132, %v4128
        %v4221 = vpack.c.b16 %v4133, %v4129
        %v4222 = vpack.c.b16 %v4134, %v4130
        %v4223 = vpack.c.b16 %v4135, %v4131
        %v4224 = vpack.c.b16 %v4140, %v4136
        %v4225 = vpack.c.b16 %v4141, %v4137
        %v4226 = vpack.c.b16 %v4142, %v4138
        %v4227 = vpack.c.b16 %v4143, %v4139
        %v4228 = vpack.c.b16 %v4148, %v4144
        %v4229 = vpack.c.b16 %v4149, %v4145
        %v4230 = vpack.c.b16 %v4150, %v4146
        %v4231 = vpack.c.b16 %v4151, %v4147
        %v4232 = vpack.c.b16 %v4156, %v4152
        %v4233 = vpack.c.b16 %v4157, %v4153
        %v4234 = vpack.c.b16 %v4158, %v4154
        %v4235 = vpack.c.b16 %v4159, %v4155
        %v4236 = vpack.c.b16 %v4164, %v4160
        %v4237 = vpack.c.b16 %v4165, %v4161
        %v4238 = vpack.c.b16 %v4166, %v4162
        %v4239 = vpack.c.b16 %v4167, %v4163
        %v4240 = vpack.c.b16 %v4172, %v4168
        %v4241 = vpack.c.b16 %v4173, %v4169
        %v4242 = vpack.c.b16 %v4174, %v4170
        %v4243 = vpack.c.b16 %v4175, %v4171
        %v4244 = vpack.c.b16 %v4180, %v4176
        %v4245 = vpack.c.b16 %v4181, %v4177
        %v4246 = vpack.c.b16 %v4182, %v4178
        %v4247 = vpack.c.b16 %v4183, %v4179
        %4312 = vmatprep.subr.bf16.mxu0 %v4185
        %4313 = vmatpush1.bf16.msra.mxu0 %v4184
        %4314 = vmatprep.subr.bf16.mxu0 %v4189
        %4315 = vmatpush1.bf16.msra.mxu0 %v4188
        %4316 = vmatprep.subr.bf16.mxu0 %v4193
        %4317 = vmatpush1.bf16.msra.mxu0 %v4192
        %4318 = vmatprep.subr.bf16.mxu0 %v4197
        %4319 = vmatpush1.bf16.msra.mxu0 %v4196
        %4320 = vmatprep.subr.bf16.mxu0 %v4201
        %4321 = vmatpush1.bf16.msra.mxu0 %v4200
        %4322 = vmatprep.subr.bf16.mxu0 %v4205
        %4323 = vmatpush1.bf16.msra.mxu0 %v4204
        %4324 = vmatprep.subr.bf16.mxu0 %v4209
        %4325 = vmatpush1.bf16.msra.mxu0 %v4208
        %4326 = vmatprep.subr.bf16.mxu0 %v4213
        %4327 = vmatpush1.bf16.msra.mxu0 %v4212
        %4328 = vmatprep.subr.bf16.mxu0 %v4217
        %4329 = vmatpush1.bf16.msra.mxu0 %v4216
        %4330 = vmatprep.subr.bf16.mxu0 %v4221
        %4331 = vmatpush1.bf16.msra.mxu0 %v4220
        %4332 = vmatprep.subr.bf16.mxu0 %v4225
        %4333 = vmatpush1.bf16.msra.mxu0 %v4224
        %4334 = vmatprep.subr.bf16.mxu0 %v4229
        %4335 = vmatpush1.bf16.msra.mxu0 %v4228
        %4336 = vmatprep.subr.bf16.mxu0 %v4233
        %4337 = vmatpush1.bf16.msra.mxu0 %v4232
        %4338 = vmatprep.subr.bf16.mxu0 %v4237
        %4339 = vmatpush1.bf16.msra.mxu0 %v4236
        %4340 = vmatprep.subr.bf16.mxu0 %v4241
        %4341 = vmatpush1.bf16.msra.mxu0 %v4240
        %4342 = vmatprep.subr.bf16.mxu0 %v4245
        %4343 = vmatpush1.bf16.msra.mxu0 %v4244
        %4344 = vmatprep.mubr.bf16.mxu0 %v3280
        %4345 = vmatmul.mubr.bf16.gmra.mrb[0].mxu0 %v3279
        %v4346 = vpop.f32.mrb[0].mxu0
        %v4347 = vadd.f32 %v3861, %v4346
        %v4348 = vpop.f32.mrb[0].mxu0
        %v4349 = vadd.f32 %v3863, %v4348
        %v4350 = vpop.f32.mrb[0].mxu0
        %v4351 = vadd.f32 %v3865, %v4350
        %v4352 = vpop.f32.mrb[0].mxu0
        %v4353 = vadd.f32 %v3867, %v4352
        %4354 = vmatprep.mubr.bf16.mxu0 %v3282
        %4355 = vmatmul.mubr.bf16.gmra.mrb[0].mxu0 %v3281
        %v4356 = vpop.f32.mrb[0].mxu0
        %v4357 = vadd.f32 %v3871, %v4356
        %v4358 = vpop.f32.mrb[0].mxu0
        %v4359 = vadd.f32 %v3873, %v4358
        %v4360 = vpop.f32.mrb[0].mxu0
        %v4361 = vadd.f32 %v3875, %v4360
        %v4362 = vpop.f32.mrb[0].mxu0
        %v4363 = vadd.f32 %v3877, %v4362
        %4364 = vmatprep.mubr.bf16.mxu0 %v3284
        %4365 = vmatmul.mubr.bf16.gmra.mrb[0].mxu0 %v3283
        %v4366 = vpop.f32.mrb[0].mxu0
        %v4367 = vadd.f32 %v3881, %v4366
        %v4368 = vpop.f32.mrb[0].mxu0
        %v4369 = vadd.f32 %v3883, %v4368
        %v4370 = vpop.f32.mrb[0].mxu0
        %v4371 = vadd.f32 %v3885, %v4370
        %v4372 = vpop.f32.mrb[0].mxu0
        %v4373 = vadd.f32 %v3887, %v4372
        %4374 = vmatprep.mubr.bf16.mxu0 %v3286
        %4375 = vmatmul.mubr.bf16.gmra.mrb[0].mxu0 %v3285
        %v4376 = vpop.f32.mrb[0].mxu0
        %v4377 = vadd.f32 %v3891, %v4376
        %v4378 = vpop.f32.mrb[0].mxu0
        %v4379 = vadd.f32 %v3893, %v4378
        %v4380 = vpop.f32.mrb[0].mxu0
        %v4381 = vadd.f32 %v3895, %v4380
        %v4382 = vpop.f32.mrb[0].mxu0
        %v4383 = vadd.f32 %v3897, %v4382
        %4384 = vmatprep.mubr.bf16.mxu0 %v3288
        %4385 = vmatmul.mubr.bf16.gmra.mrb[0].mxu0 %v3287
        %v4386 = vpop.f32.mrb[0].mxu0
        %v4387 = vadd.f32 %v3901, %v4386
        %v4388 = vpop.f32.mrb[0].mxu0
        %v4389 = vadd.f32 %v3903, %v4388
        %v4390 = vpop.f32.mrb[0].mxu0
        %v4391 = vadd.f32 %v3905, %v4390
        %v4392 = vpop.f32.mrb[0].mxu0
        %v4393 = vadd.f32 %v3907, %v4392
        %4394 = vdwg.mxu0
        %4395 = vmatprep.subr.bf16.mxu0 %v4187
        %4396 = vmatpush1.bf16.msra.mxu0 %v4186
        %4397 = vmatprep.subr.bf16.mxu0 %v4191
        %4398 = vmatpush1.bf16.msra.mxu0 %v4190
        %4399 = vmatprep.subr.bf16.mxu0 %v4195
        %4400 = vmatpush1.bf16.msra.mxu0 %v4194
        %4401 = vmatprep.subr.bf16.mxu0 %v4199
        %4402 = vmatpush1.bf16.msra.mxu0 %v4198
        %4403 = vmatprep.subr.bf16.mxu0 %v4203
        %4404 = vmatpush1.bf16.msra.mxu0 %v4202
        %4405 = vmatprep.subr.bf16.mxu0 %v4207
        %4406 = vmatpush1.bf16.msra.mxu0 %v4206
        %4407 = vmatprep.subr.bf16.mxu0 %v4211
        %4408 = vmatpush1.bf16.msra.mxu0 %v4210
        %4409 = vmatprep.subr.bf16.mxu0 %v4215
        %4410 = vmatpush1.bf16.msra.mxu0 %v4214
        %4411 = vmatprep.subr.bf16.mxu0 %v4219
        %4412 = vmatpush1.bf16.msra.mxu0 %v4218
        %4413 = vmatprep.subr.bf16.mxu0 %v4223
        %4414 = vmatpush1.bf16.msra.mxu0 %v4222
        %4415 = vmatprep.subr.bf16.mxu0 %v4227
        %4416 = vmatpush1.bf16.msra.mxu0 %v4226
        %4417 = vmatprep.subr.bf16.mxu0 %v4231
        %4418 = vmatpush1.bf16.msra.mxu0 %v4230
        %4419 = vmatprep.subr.bf16.mxu0 %v4235
        %4420 = vmatpush1.bf16.msra.mxu0 %v4234
        %4421 = vmatprep.subr.bf16.mxu0 %v4239
        %4422 = vmatpush1.bf16.msra.mxu0 %v4238
        %4423 = vmatprep.subr.bf16.mxu0 %v4243
        %4424 = vmatpush1.bf16.msra.mxu0 %v4242
        %4425 = vmatprep.subr.bf16.mxu0 %v4247
        %4426 = vmatpush1.bf16.msra.mxu0 %v4246
        %4427 = vmatprep.mubr.bf16.mxu0 %v3280
        %4428 = vmatmul.mubr.bf16.gmra.mrb[0].mxu0 %v3279
        %v4429 = vpop.f32.mrb[0].mxu0
        %v4430 = vadd.f32 %v3944, %v4429
        %v4431 = vpop.f32.mrb[0].mxu0
        %v4432 = vadd.f32 %v3946, %v4431
        %v4433 = vpop.f32.mrb[0].mxu0
        %v4434 = vadd.f32 %v3948, %v4433
        %v4435 = vpop.f32.mrb[0].mxu0
        %v4436 = vadd.f32 %v3950, %v4435
        %4437 = vmatprep.mubr.bf16.mxu0 %v3282
        %4438 = vmatmul.mubr.bf16.gmra.mrb[0].mxu0 %v3281
        %v4439 = vpop.f32.mrb[0].mxu0
        %v4440 = vadd.f32 %v3954, %v4439
        %v4441 = vpop.f32.mrb[0].mxu0
        %v4442 = vadd.f32 %v3956, %v4441
        %v4443 = vpop.f32.mrb[0].mxu0
        %v4444 = vadd.f32 %v3958, %v4443
        %v4445 = vpop.f32.mrb[0].mxu0
        %v4446 = vadd.f32 %v3960, %v4445
        %4447 = vmatprep.mubr.bf16.mxu0 %v3284
        %4448 = vmatmul.mubr.bf16.gmra.mrb[0].mxu0 %v3283
        %v4449 = vpop.f32.mrb[0].mxu0
        %v4450 = vadd.f32 %v3964, %v4449
        %v4451 = vpop.f32.mrb[0].mxu0
        %v4452 = vadd.f32 %v3966, %v4451
        %v4453 = vpop.f32.mrb[0].mxu0
        %v4454 = vadd.f32 %v3968, %v4453
        %v4455 = vpop.f32.mrb[0].mxu0
        %v4456 = vadd.f32 %v3970, %v4455
        %4457 = vmatprep.mubr.bf16.mxu0 %v3286
        %4458 = vmatmul.mubr.bf16.gmra.mrb[0].mxu0 %v3285
        %v4459 = vpop.f32.mrb[0].mxu0
        %v4460 = vadd.f32 %v3974, %v4459
        %v4461 = vpop.f32.mrb[0].mxu0
        %v4462 = vadd.f32 %v3976, %v4461
        %v4463 = vpop.f32.mrb[0].mxu0
        %v4464 = vadd.f32 %v3978, %v4463
        %v4465 = vpop.f32.mrb[0].mxu0
        %v4466 = vadd.f32 %v3980, %v4465
        %4467 = vmatprep.mubr.bf16.mxu0 %v3288
        %4468 = vmatmul.mubr.bf16.gmra.mrb[0].mxu0 %v3287
        %v4469 = vpop.f32.mrb[0].mxu0
        %v4470 = vadd.f32 %v3984, %v4469
        %v4471 = vpop.f32.mrb[0].mxu0
        %v4472 = vadd.f32 %v3986, %v4471
        %v4473 = vpop.f32.mrb[0].mxu0
        %v4474 = vadd.f32 %v3988, %v4473
        %v4475 = vpop.f32.mrb[0].mxu0
        %v4476 = vadd.f32 %v3990, %v4475
        %4477 = vdwg.mxu0
        %s4478 = scalar_lea.vmem [#allocation17], 1024
        %v4479 = vld [vmem:[%s4478] sm:$0xff]
        %v4480 = vld [vmem:[%s4478 + $0x8] sm:$0xff]
        %v4481 = vld [vmem:[%s4478 + $0x10] sm:$0xff]
        %v4482 = vld [vmem:[%s4478 + $0x18] sm:$0xff]
        %v4483 = vld [vmem:[%s4478 + $0x20] sm:$0xff]
        %v4484 = vld [vmem:[%s4478 + $0x28] sm:$0xff]
        %v4485 = vld [vmem:[%s4478 + $0x30] sm:$0xff]
        %v4486 = vld [vmem:[%s4478 + $0x38] sm:$0xff]
        %v4487 = vld [vmem:[%s4478 + $0x40] sm:$0xff]
        %v4488 = vld [vmem:[%s4478 + $0x48] sm:$0xff]
        %v4489 = vld [vmem:[%s4478 + $0x50] sm:$0xff]
        %v4490 = vld [vmem:[%s4478 + $0x58] sm:$0xff]
        %v4491 = vld [vmem:[%s4478 + $0x60] sm:$0xff]
        %v4492 = vld [vmem:[%s4478 + $0x68] sm:$0xff]
        %v4493 = vld [vmem:[%s4478 + $0x70] sm:$0xff]
        %v4494 = vld [vmem:[%s4478 + $0x78] sm:$0xff]
        %v4495 = vld [vmem:[%s4478 + $0x80] sm:$0xff]
        %v4496 = vld [vmem:[%s4478 + $0x88] sm:$0xff]
        %v4497 = vld [vmem:[%s4478 + $0x90] sm:$0xff]
        %v4498 = vld [vmem:[%s4478 + $0x98] sm:$0xff]
        %v4499 = vld [vmem:[%s4478 + $0xa0] sm:$0xff]
        %v4500 = vld [vmem:[%s4478 + $0xa8] sm:$0xff]
        %v4501 = vld [vmem:[%s4478 + $0xb0] sm:$0xff]
        %v4502 = vld [vmem:[%s4478 + $0xb8] sm:$0xff]
        %v4503 = vld [vmem:[%s4478 + $0xc0] sm:$0xff]
        %v4504 = vld [vmem:[%s4478 + $0xc8] sm:$0xff]
        %v4505 = vld [vmem:[%s4478 + $0xd0] sm:$0xff]
        %v4506 = vld [vmem:[%s4478 + $0xd8] sm:$0xff]
        %v4507 = vld [vmem:[%s4478 + $0xe0] sm:$0xff]
        %v4508 = vld [vmem:[%s4478 + $0xe8] sm:$0xff]
        %v4509 = vld [vmem:[%s4478 + $0xf0] sm:$0xff]
        %v4510 = vld [vmem:[%s4478 + $0xf8] sm:$0xff]
        %v4511 = vld [vmem:[%s4478 + $0x100] sm:$0xff]
        %v4512 = vld [vmem:[%s4478 + $0x108] sm:$0xff]
        %v4513 = vld [vmem:[%s4478 + $0x110] sm:$0xff]
        %v4514 = vld [vmem:[%s4478 + $0x118] sm:$0xff]
        %v4515 = vld [vmem:[%s4478 + $0x120] sm:$0xff]
        %v4516 = vld [vmem:[%s4478 + $0x128] sm:$0xff]
        %v4517 = vld [vmem:[%s4478 + $0x130] sm:$0xff]
        %v4518 = vld [vmem:[%s4478 + $0x138] sm:$0xff]
        %v4519 = vld [vmem:[%s4478 + $0x140] sm:$0xff]
        %v4520 = vld [vmem:[%s4478 + $0x148] sm:$0xff]
        %v4521 = vld [vmem:[%s4478 + $0x150] sm:$0xff]
        %v4522 = vld [vmem:[%s4478 + $0x158] sm:$0xff]
        %v4523 = vld [vmem:[%s4478 + $0x160] sm:$0xff]
        %v4524 = vld [vmem:[%s4478 + $0x168] sm:$0xff]
        %v4525 = vld [vmem:[%s4478 + $0x170] sm:$0xff]
        %v4526 = vld [vmem:[%s4478 + $0x178] sm:$0xff]
        %v4527 = vld [vmem:[%s4478 + $0x180] sm:$0xff]
        %v4528 = vld [vmem:[%s4478 + $0x188] sm:$0xff]
        %v4529 = vld [vmem:[%s4478 + $0x190] sm:$0xff]
        %v4530 = vld [vmem:[%s4478 + $0x198] sm:$0xff]
        %v4531 = vld [vmem:[%s4478 + $0x1a0] sm:$0xff]
        %v4532 = vld [vmem:[%s4478 + $0x1a8] sm:$0xff]
        %v4533 = vld [vmem:[%s4478 + $0x1b0] sm:$0xff]
        %v4534 = vld [vmem:[%s4478 + $0x1b8] sm:$0xff]
        %v4535 = vld [vmem:[%s4478 + $0x1c0] sm:$0xff]
        %v4536 = vld [vmem:[%s4478 + $0x1c8] sm:$0xff]
        %v4537 = vld [vmem:[%s4478 + $0x1d0] sm:$0xff]
        %v4538 = vld [vmem:[%s4478 + $0x1d8] sm:$0xff]
        %v4539 = vld [vmem:[%s4478 + $0x1e0] sm:$0xff]
        %v4540 = vld [vmem:[%s4478 + $0x1e8] sm:$0xff]
        %v4541 = vld [vmem:[%s4478 + $0x1f0] sm:$0xff]
        %v4542 = vld [vmem:[%s4478 + $0x1f8] sm:$0xff]
        %v4553 = vrot.slane %v3279, 1
        %v4554 = vrot.slane %v3281, 1
        %v4555 = vsel %vm2364, %v4553, %v4554
        %v4556 = vrot.slane %v3280, 1
        %v4557 = vrot.slane %v3282, 1
        %v4558 = vsel %vm2364, %v4556, %v4557
        %v4559 = vrot.slane %v3283, 1
        %v4560 = vsel %vm2364, %v4554, %v4559
        %v4561 = vrot.slane %v3284, 1
        %v4562 = vsel %vm2364, %v4557, %v4561
        %v4563 = vrot.slane %v3285, 1
        %v4564 = vsel %vm2364, %v4559, %v4563
        %v4565 = vrot.slane %v3286, 1
        %v4566 = vsel %vm2364, %v4561, %v4565
        %v4567 = vrot.slane %v3287, 1
        %v4568 = vsel %vm2364, %v4563, %v4567
        %v4569 = vrot.slane %v3288, 1
        %v4570 = vsel %vm2364, %v4565, %v4569
        %v4645 = vunpack.c.l.b16 %v4479
        %v4646 = vunpack.c.h.b16 %v4479
        %v4647 = vunpack.c.l.b16 %v4480
        %v4648 = vunpack.c.h.b16 %v4480
        %v4649 = vunpack.c.l.b16 %v4481
        %v4650 = vunpack.c.h.b16 %v4481
        %v4651 = vunpack.c.l.b16 %v4482
        %v4652 = vunpack.c.h.b16 %v4482
        %v4653 = vunpack.c.l.b16 %v4483
        %v4654 = vunpack.c.h.b16 %v4483
        %v4655 = vunpack.c.l.b16 %v4484
        %v4656 = vunpack.c.h.b16 %v4484
        %v4657 = vunpack.c.l.b16 %v4485
        %v4658 = vunpack.c.h.b16 %v4485
        %v4659 = vunpack.c.l.b16 %v4486
        %v4660 = vunpack.c.h.b16 %v4486
        %v4661 = vunpack.c.l.b16 %v4487
        %v4662 = vunpack.c.h.b16 %v4487
        %v4663 = vunpack.c.l.b16 %v4488
        %v4664 = vunpack.c.h.b16 %v4488
        %v4665 = vunpack.c.l.b16 %v4489
        %v4666 = vunpack.c.h.b16 %v4489
        %v4667 = vunpack.c.l.b16 %v4490
        %v4668 = vunpack.c.h.b16 %v4490
        %v4669 = vunpack.c.l.b16 %v4491
        %v4670 = vunpack.c.h.b16 %v4491
        %v4671 = vunpack.c.l.b16 %v4492
        %v4672 = vunpack.c.h.b16 %v4492
        %v4673 = vunpack.c.l.b16 %v4493
        %v4674 = vunpack.c.h.b16 %v4493
        %v4675 = vunpack.c.l.b16 %v4494
        %v4676 = vunpack.c.h.b16 %v4494
        %v4677 = vunpack.c.l.b16 %v4495
        %v4678 = vunpack.c.h.b16 %v4495
        %v4679 = vunpack.c.l.b16 %v4496
        %v4680 = vunpack.c.h.b16 %v4496
        %v4681 = vunpack.c.l.b16 %v4497
        %v4682 = vunpack.c.h.b16 %v4497
        %v4683 = vunpack.c.l.b16 %v4498
        %v4684 = vunpack.c.h.b16 %v4498
        %v4685 = vunpack.c.l.b16 %v4499
        %v4686 = vunpack.c.h.b16 %v4499
        %v4687 = vunpack.c.l.b16 %v4500
        %v4688 = vunpack.c.h.b16 %v4500
        %v4689 = vunpack.c.l.b16 %v4501
        %v4690 = vunpack.c.h.b16 %v4501
        %v4691 = vunpack.c.l.b16 %v4502
        %v4692 = vunpack.c.h.b16 %v4502
        %v4693 = vunpack.c.l.b16 %v4503
        %v4694 = vunpack.c.h.b16 %v4503
        %v4695 = vunpack.c.l.b16 %v4504
        %v4696 = vunpack.c.h.b16 %v4504
        %v4697 = vunpack.c.l.b16 %v4505
        %v4698 = vunpack.c.h.b16 %v4505
        %v4699 = vunpack.c.l.b16 %v4506
        %v4700 = vunpack.c.h.b16 %v4506
        %v4701 = vunpack.c.l.b16 %v4507
        %v4702 = vunpack.c.h.b16 %v4507
        %v4703 = vunpack.c.l.b16 %v4508
        %v4704 = vunpack.c.h.b16 %v4508
        %v4705 = vunpack.c.l.b16 %v4509
        %v4706 = vunpack.c.h.b16 %v4509
        %v4707 = vunpack.c.l.b16 %v4510
        %v4708 = vunpack.c.h.b16 %v4510
        %v4709 = vunpack.c.l.b16 %v4511
        %v4710 = vunpack.c.h.b16 %v4511
        %v4711 = vunpack.c.l.b16 %v4512
        %v4712 = vunpack.c.h.b16 %v4512
        %v4713 = vunpack.c.l.b16 %v4513
        %v4714 = vunpack.c.h.b16 %v4513
        %v4715 = vunpack.c.l.b16 %v4514
        %v4716 = vunpack.c.h.b16 %v4514
        %v4717 = vunpack.c.l.b16 %v4515
        %v4718 = vunpack.c.h.b16 %v4515
        %v4719 = vunpack.c.l.b16 %v4516
        %v4720 = vunpack.c.h.b16 %v4516
        %v4721 = vunpack.c.l.b16 %v4517
        %v4722 = vunpack.c.h.b16 %v4517
        %v4723 = vunpack.c.l.b16 %v4518
        %v4724 = vunpack.c.h.b16 %v4518
        %v4725 = vunpack.c.l.b16 %v4519
        %v4726 = vunpack.c.h.b16 %v4519
        %v4727 = vunpack.c.l.b16 %v4520
        %v4728 = vunpack.c.h.b16 %v4520
        %v4729 = vunpack.c.l.b16 %v4521
        %v4730 = vunpack.c.h.b16 %v4521
        %v4731 = vunpack.c.l.b16 %v4522
        %v4732 = vunpack.c.h.b16 %v4522
        %v4733 = vunpack.c.l.b16 %v4523
        %v4734 = vunpack.c.h.b16 %v4523
        %v4735 = vunpack.c.l.b16 %v4524
        %v4736 = vunpack.c.h.b16 %v4524
        %v4737 = vunpack.c.l.b16 %v4525
        %v4738 = vunpack.c.h.b16 %v4525
        %v4739 = vunpack.c.l.b16 %v4526
        %v4740 = vunpack.c.h.b16 %v4526
        %v4741 = vunpack.c.l.b16 %v4527
        %v4742 = vunpack.c.h.b16 %v4527
        %v4743 = vunpack.c.l.b16 %v4528
        %v4744 = vunpack.c.h.b16 %v4528
        %v4745 = vunpack.c.l.b16 %v4529
        %v4746 = vunpack.c.h.b16 %v4529
        %v4747 = vunpack.c.l.b16 %v4530
        %v4748 = vunpack.c.h.b16 %v4530
        %v4749 = vunpack.c.l.b16 %v4531
        %v4750 = vunpack.c.h.b16 %v4531
        %v4751 = vunpack.c.l.b16 %v4532
        %v4752 = vunpack.c.h.b16 %v4532
        %v4753 = vunpack.c.l.b16 %v4533
        %v4754 = vunpack.c.h.b16 %v4533
        %v4755 = vunpack.c.l.b16 %v4534
        %v4756 = vunpack.c.h.b16 %v4534
        %v4757 = vunpack.c.l.b16 %v4535
        %v4758 = vunpack.c.h.b16 %v4535
        %v4759 = vunpack.c.l.b16 %v4536
        %v4760 = vunpack.c.h.b16 %v4536
        %v4761 = vunpack.c.l.b16 %v4537
        %v4762 = vunpack.c.h.b16 %v4537
        %v4763 = vunpack.c.l.b16 %v4538
        %v4764 = vunpack.c.h.b16 %v4538
        %v4765 = vunpack.c.l.b16 %v4539
        %v4766 = vunpack.c.h.b16 %v4539
        %v4767 = vunpack.c.l.b16 %v4540
        %v4768 = vunpack.c.h.b16 %v4540
        %v4769 = vunpack.c.l.b16 %v4541
        %v4770 = vunpack.c.h.b16 %v4541
        %v4771 = vunpack.c.l.b16 %v4542
        %v4772 = vunpack.c.h.b16 %v4542
        %v4773 = vpack.c.b16 %v4649, %v4645
        %v4774 = vpack.c.b16 %v4650, %v4646
        %v4775 = vpack.c.b16 %v4651, %v4647
        %v4776 = vpack.c.b16 %v4652, %v4648
        %v4777 = vpack.c.b16 %v4657, %v4653
        %v4778 = vpack.c.b16 %v4658, %v4654
        %v4779 = vpack.c.b16 %v4659, %v4655
        %v4780 = vpack.c.b16 %v4660, %v4656
        %v4781 = vpack.c.b16 %v4665, %v4661
        %v4782 = vpack.c.b16 %v4666, %v4662
        %v4783 = vpack.c.b16 %v4667, %v4663
        %v4784 = vpack.c.b16 %v4668, %v4664
        %v4785 = vpack.c.b16 %v4673, %v4669
        %v4786 = vpack.c.b16 %v4674, %v4670
        %v4787 = vpack.c.b16 %v4675, %v4671
        %v4788 = vpack.c.b16 %v4676, %v4672
        %v4789 = vpack.c.b16 %v4681, %v4677
        %v4790 = vpack.c.b16 %v4682, %v4678
        %v4791 = vpack.c.b16 %v4683, %v4679
        %v4792 = vpack.c.b16 %v4684, %v4680
        %v4793 = vpack.c.b16 %v4689, %v4685
        %v4794 = vpack.c.b16 %v4690, %v4686
        %v4795 = vpack.c.b16 %v4691, %v4687
        %v4796 = vpack.c.b16 %v4692, %v4688
        %v4797 = vpack.c.b16 %v4697, %v4693
        %v4798 = vpack.c.b16 %v4698, %v4694
        %v4799 = vpack.c.b16 %v4699, %v4695
        %v4800 = vpack.c.b16 %v4700, %v4696
        %v4801 = vpack.c.b16 %v4705, %v4701
        %v4802 = vpack.c.b16 %v4706, %v4702
        %v4803 = vpack.c.b16 %v4707, %v4703
        %v4804 = vpack.c.b16 %v4708, %v4704
        %v4805 = vpack.c.b16 %v4713, %v4709
        %v4806 = vpack.c.b16 %v4714, %v4710
        %v4807 = vpack.c.b16 %v4715, %v4711
        %v4808 = vpack.c.b16 %v4716, %v4712
        %v4809 = vpack.c.b16 %v4721, %v4717
        %v4810 = vpack.c.b16 %v4722, %v4718
        %v4811 = vpack.c.b16 %v4723, %v4719
        %v4812 = vpack.c.b16 %v4724, %v4720
        %v4813 = vpack.c.b16 %v4729, %v4725
        %v4814 = vpack.c.b16 %v4730, %v4726
        %v4815 = vpack.c.b16 %v4731, %v4727
        %v4816 = vpack.c.b16 %v4732, %v4728
        %v4817 = vpack.c.b16 %v4737, %v4733
        %v4818 = vpack.c.b16 %v4738, %v4734
        %v4819 = vpack.c.b16 %v4739, %v4735
        %v4820 = vpack.c.b16 %v4740, %v4736
        %v4821 = vpack.c.b16 %v4745, %v4741
        %v4822 = vpack.c.b16 %v4746, %v4742
        %v4823 = vpack.c.b16 %v4747, %v4743
        %v4824 = vpack.c.b16 %v4748, %v4744
        %v4825 = vpack.c.b16 %v4753, %v4749
        %v4826 = vpack.c.b16 %v4754, %v4750
        %v4827 = vpack.c.b16 %v4755, %v4751
        %v4828 = vpack.c.b16 %v4756, %v4752
        %v4829 = vpack.c.b16 %v4761, %v4757
        %v4830 = vpack.c.b16 %v4762, %v4758
        %v4831 = vpack.c.b16 %v4763, %v4759
        %v4832 = vpack.c.b16 %v4764, %v4760
        %v4833 = vpack.c.b16 %v4769, %v4765
        %v4834 = vpack.c.b16 %v4770, %v4766
        %v4835 = vpack.c.b16 %v4771, %v4767
        %v4836 = vpack.c.b16 %v4772, %v4768
        %4901 = vmatprep.subr.bf16.mxu0 %v4774
        %4902 = vmatpush1.bf16.msra.mxu0 %v4773
        %4903 = vmatprep.subr.bf16.mxu0 %v4778
        %4904 = vmatpush1.bf16.msra.mxu0 %v4777
        %4905 = vmatprep.subr.bf16.mxu0 %v4782
        %4906 = vmatpush1.bf16.msra.mxu0 %v4781
        %4907 = vmatprep.subr.bf16.mxu0 %v4786
        %4908 = vmatpush1.bf16.msra.mxu0 %v4785
        %4909 = vmatprep.subr.bf16.mxu0 %v4790
        %4910 = vmatpush1.bf16.msra.mxu0 %v4789
        %4911 = vmatprep.subr.bf16.mxu0 %v4794
        %4912 = vmatpush1.bf16.msra.mxu0 %v4793
        %4913 = vmatprep.subr.bf16.mxu0 %v4798
        %4914 = vmatpush1.bf16.msra.mxu0 %v4797
        %4915 = vmatprep.subr.bf16.mxu0 %v4802
        %4916 = vmatpush1.bf16.msra.mxu0 %v4801
        %4917 = vmatprep.subr.bf16.mxu0 %v4806
        %4918 = vmatpush1.bf16.msra.mxu0 %v4805
        %4919 = vmatprep.subr.bf16.mxu0 %v4810
        %4920 = vmatpush1.bf16.msra.mxu0 %v4809
        %4921 = vmatprep.subr.bf16.mxu0 %v4814
        %4922 = vmatpush1.bf16.msra.mxu0 %v4813
        %4923 = vmatprep.subr.bf16.mxu0 %v4818
        %4924 = vmatpush1.bf16.msra.mxu0 %v4817
        %4925 = vmatprep.subr.bf16.mxu0 %v4822
        %4926 = vmatpush1.bf16.msra.mxu0 %v4821
        %4927 = vmatprep.subr.bf16.mxu0 %v4826
        %4928 = vmatpush1.bf16.msra.mxu0 %v4825
        %4929 = vmatprep.subr.bf16.mxu0 %v4830
        %4930 = vmatpush1.bf16.msra.mxu0 %v4829
        %4931 = vmatprep.subr.bf16.mxu0 %v4834
        %4932 = vmatpush1.bf16.msra.mxu0 %v4833
        %4933 = vmatprep.mubr.bf16.mxu0 %v4558
        %4934 = vmatmul.mubr.bf16.gmra.mrb[0].mxu0 %v4555
        %v4935 = vpop.f32.mrb[0].mxu0
        %v4936 = vadd.f32 0.0, %v4935
        %v4937 = vpop.f32.mrb[0].mxu0
        %v4938 = vadd.f32 0.0, %v4937
        %v4939 = vpop.f32.mrb[0].mxu0
        %v4940 = vadd.f32 0.0, %v4939
        %v4941 = vpop.f32.mrb[0].mxu0
        %v4942 = vadd.f32 0.0, %v4941
        %4943 = vmatprep.mubr.bf16.mxu0 %v4562
        %4944 = vmatmul.mubr.bf16.gmra.mrb[0].mxu0 %v4560
        %v4945 = vpop.f32.mrb[0].mxu0
        %v4946 = vadd.f32 0.0, %v4945
        %v4947 = vpop.f32.mrb[0].mxu0
        %v4948 = vadd.f32 0.0, %v4947
        %v4949 = vpop.f32.mrb[0].mxu0
        %v4950 = vadd.f32 0.0, %v4949
        %v4951 = vpop.f32.mrb[0].mxu0
        %v4952 = vadd.f32 0.0, %v4951
        %4953 = vmatprep.mubr.bf16.mxu0 %v4566
        %4954 = vmatmul.mubr.bf16.gmra.mrb[0].mxu0 %v4564
        %v4955 = vpop.f32.mrb[0].mxu0
        %v4956 = vadd.f32 0.0, %v4955
        %v4957 = vpop.f32.mrb[0].mxu0
        %v4958 = vadd.f32 0.0, %v4957
        %v4959 = vpop.f32.mrb[0].mxu0
        %v4960 = vadd.f32 0.0, %v4959
        %v4961 = vpop.f32.mrb[0].mxu0
        %v4962 = vadd.f32 0.0, %v4961
        %4963 = vmatprep.mubr.bf16.mxu0 %v4570
        %4964 = vmatmul.mubr.bf16.gmra.mrb[0].mxu0 %v4568
        %v4965 = vpop.f32.mrb[0].mxu0
        %v4966 = vadd.f32 0.0, %v4965
        %v4967 = vpop.f32.mrb[0].mxu0
        %v4968 = vadd.f32 0.0, %v4967
        %v4969 = vpop.f32.mrb[0].mxu0
        %v4970 = vadd.f32 0.0, %v4969
        %v4971 = vpop.f32.mrb[0].mxu0
        %v4972 = vadd.f32 0.0, %v4971
        %4973 = vmatprep.mubr.bf16.mxu0 %v4569
        %4974 = vmatmul.mubr.bf16.gmra.mrb[0].mxu0 %v4567
        %v4975 = vpop.f32.mrb[0].mxu0
        %v4976 = vadd.f32 0.0, %v4975
        %v4977 = vpop.f32.mrb[0].mxu0
        %v4978 = vadd.f32 0.0, %v4977
        %v4979 = vpop.f32.mrb[0].mxu0
        %v4980 = vadd.f32 0.0, %v4979
        %v4981 = vpop.f32.mrb[0].mxu0
        %v4982 = vadd.f32 0.0, %v4981
        %4983 = vdwg.mxu0
        %4984 = vmatprep.subr.bf16.mxu0 %v4776
        %4985 = vmatpush1.bf16.msra.mxu0 %v4775
        %4986 = vmatprep.subr.bf16.mxu0 %v4780
        %4987 = vmatpush1.bf16.msra.mxu0 %v4779
        %4988 = vmatprep.subr.bf16.mxu0 %v4784
        %4989 = vmatpush1.bf16.msra.mxu0 %v4783
        %4990 = vmatprep.subr.bf16.mxu0 %v4788
        %4991 = vmatpush1.bf16.msra.mxu0 %v4787
        %4992 = vmatprep.subr.bf16.mxu0 %v4792
        %4993 = vmatpush1.bf16.msra.mxu0 %v4791
        %4994 = vmatprep.subr.bf16.mxu0 %v4796
        %4995 = vmatpush1.bf16.msra.mxu0 %v4795
        %4996 = vmatprep.subr.bf16.mxu0 %v4800
        %4997 = vmatpush1.bf16.msra.mxu0 %v4799
        %4998 = vmatprep.subr.bf16.mxu0 %v4804
        %4999 = vmatpush1.bf16.msra.mxu0 %v4803
        %5000 = vmatprep.subr.bf16.mxu0 %v4808
        %5001 = vmatpush1.bf16.msra.mxu0 %v4807
        %5002 = vmatprep.subr.bf16.mxu0 %v4812
        %5003 = vmatpush1.bf16.msra.mxu0 %v4811
        %5004 = vmatprep.subr.bf16.mxu0 %v4816
        %5005 = vmatpush1.bf16.msra.mxu0 %v4815
        %5006 = vmatprep.subr.bf16.mxu0 %v4820
        %5007 = vmatpush1.bf16.msra.mxu0 %v4819
        %5008 = vmatprep.subr.bf16.mxu0 %v4824
        %5009 = vmatpush1.bf16.msra.mxu0 %v4823
        %5010 = vmatprep.subr.bf16.mxu0 %v4828
        %5011 = vmatpush1.bf16.msra.mxu0 %v4827
        %5012 = vmatprep.subr.bf16.mxu0 %v4832
        %5013 = vmatpush1.bf16.msra.mxu0 %v4831
        %5014 = vmatprep.subr.bf16.mxu0 %v4836
        %5015 = vmatpush1.bf16.msra.mxu0 %v4835
        %5016 = vmatprep.mubr.bf16.mxu0 %v4558
        %5017 = vmatmul.mubr.bf16.gmra.mrb[0].mxu0 %v4555
        %v5018 = vpop.f32.mrb[0].mxu0
        %v5019 = vadd.f32 0.0, %v5018
        %v5020 = vpop.f32.mrb[0].mxu0
        %v5021 = vadd.f32 0.0, %v5020
        %v5022 = vpop.f32.mrb[0].mxu0
        %v5023 = vadd.f32 0.0, %v5022
        %v5024 = vpop.f32.mrb[0].mxu0
        %v5025 = vadd.f32 0.0, %v5024
        %5026 = vmatprep.mubr.bf16.mxu0 %v4562
        %5027 = vmatmul.mubr.bf16.gmra.mrb[0].mxu0 %v4560
        %v5028 = vpop.f32.mrb[0].mxu0
        %v5029 = vadd.f32 0.0, %v5028
        %v5030 = vpop.f32.mrb[0].mxu0
        %v5031 = vadd.f32 0.0, %v5030
        %v5032 = vpop.f32.mrb[0].mxu0
        %v5033 = vadd.f32 0.0, %v5032
        %v5034 = vpop.f32.mrb[0].mxu0
        %v5035 = vadd.f32 0.0, %v5034
        %5036 = vmatprep.mubr.bf16.mxu0 %v4566
        %5037 = vmatmul.mubr.bf16.gmra.mrb[0].mxu0 %v4564
        %v5038 = vpop.f32.mrb[0].mxu0
        %v5039 = vadd.f32 0.0, %v5038
        %v5040 = vpop.f32.mrb[0].mxu0
        %v5041 = vadd.f32 0.0, %v5040
        %v5042 = vpop.f32.mrb[0].mxu0
        %v5043 = vadd.f32 0.0, %v5042
        %v5044 = vpop.f32.mrb[0].mxu0
        %v5045 = vadd.f32 0.0, %v5044
        %5046 = vmatprep.mubr.bf16.mxu0 %v4570
        %5047 = vmatmul.mubr.bf16.gmra.mrb[0].mxu0 %v4568
        %v5048 = vpop.f32.mrb[0].mxu0
        %v5049 = vadd.f32 0.0, %v5048
        %v5050 = vpop.f32.mrb[0].mxu0
        %v5051 = vadd.f32 0.0, %v5050
        %v5052 = vpop.f32.mrb[0].mxu0
        %v5053 = vadd.f32 0.0, %v5052
        %v5054 = vpop.f32.mrb[0].mxu0
        %v5055 = vadd.f32 0.0, %v5054
        %5056 = vmatprep.mubr.bf16.mxu0 %v4569
        %5057 = vmatmul.mubr.bf16.gmra.mrb[0].mxu0 %v4567
        %v5058 = vpop.f32.mrb[0].mxu0
        %v5059 = vadd.f32 0.0, %v5058
        %v5060 = vpop.f32.mrb[0].mxu0
        %v5061 = vadd.f32 0.0, %v5060
        %v5062 = vpop.f32.mrb[0].mxu0
        %v5063 = vadd.f32 0.0, %v5062
        %v5064 = vpop.f32.mrb[0].mxu0
        %v5065 = vadd.f32 0.0, %v5064
        %5066 = vdwg.mxu0
        %v5067 = vadd.f32 %v4347, %v4936
        %v5068 = vadd.f32 %v4349, %v4938
        %v5069 = vadd.f32 %v4430, %v5019
        %v5070 = vadd.f32 %v4432, %v5021
        %v5071 = vadd.f32 %v4351, %v4940
        %v5072 = vadd.f32 %v4353, %v4942
        %v5073 = vadd.f32 %v4434, %v5023
        %v5074 = vadd.f32 %v4436, %v5025
        %v5075 = vadd.f32 %v4357, %v4946
        %v5076 = vadd.f32 %v4359, %v4948
        %v5077 = vadd.f32 %v4440, %v5029
        %v5078 = vadd.f32 %v4442, %v5031
        %v5079 = vadd.f32 %v4361, %v4950
        %v5080 = vadd.f32 %v4363, %v4952
        %v5081 = vadd.f32 %v4444, %v5033
        %v5082 = vadd.f32 %v4446, %v5035
        %v5083 = vadd.f32 %v4367, %v4956
        %v5084 = vadd.f32 %v4369, %v4958
        %v5085 = vadd.f32 %v4450, %v5039
        %v5086 = vadd.f32 %v4452, %v5041
        %v5087 = vadd.f32 %v4371, %v4960
        %v5088 = vadd.f32 %v4373, %v4962
        %v5089 = vadd.f32 %v4454, %v5043
        %v5090 = vadd.f32 %v4456, %v5045
        %v5091 = vadd.f32 %v4377, %v4966
        %v5092 = vadd.f32 %v4379, %v4968
        %v5093 = vadd.f32 %v4460, %v5049
        %v5094 = vadd.f32 %v4462, %v5051
        %v5095 = vadd.f32 %v4381, %v4970
        %v5096 = vadd.f32 %v4383, %v4972
        %v5097 = vadd.f32 %v4464, %v5053
        %v5098 = vadd.f32 %v4466, %v5055
        %v5099 = vadd.f32 %v4387, %v4976
        %v5100 = vadd.f32 %v4389, %v4978
        %v5101 = vadd.f32 %v4470, %v5059
        %v5102 = vadd.f32 %v4472, %v5061
        %v5103 = vadd.f32 %v4391, %v4980
        %v5104 = vadd.f32 %v4393, %v4982
        %v5105 = vadd.f32 %v4474, %v5063
        %v5106 = vadd.f32 %v4476, %v5065
        %v5108 = vlaneseq
        %v5109 = vshrl.u32 %v5108, 7
        %v5110 = vsub.s32 0, %v5109
        %v5111 = vrot.slane %v3257, %v5110
        %v5112 = vlaneseq
        %v5113 = vshrl.u32 %v5112, 7
        %v5114 = vsub.s32 1, %v5113
        %v5115 = vrot.slane %v3257, %v5114
        %v5116 = vlaneseq
        %v5117 = vshrl.u32 %v5116, 7
        %v5118 = vsub.s32 2, %v5117
        %v5119 = vrot.slane %v3257, %v5118
        %v5120 = vlaneseq
        %v5121 = vshrl.u32 %v5120, 7
        %v5122 = vsub.s32 3, %v5121
        %v5123 = vrot.slane %v3257, %v5122
        %v5128 = vmul.f32 %v5067, %v5111
        %v5129 = vmul.f32 %v5068, %v5115
        %v5130 = vmul.f32 %v5069, %v5119
        %v5131 = vmul.f32 %v5070, %v5123
        %v5132 = vmul.f32 %v5071, %v5111
        %v5133 = vmul.f32 %v5072, %v5115
        %v5134 = vmul.f32 %v5073, %v5119
        %v5135 = vmul.f32 %v5074, %v5123
        %v5136 = vmul.f32 %v5075, %v5111
        %v5137 = vmul.f32 %v5076, %v5115
        %v5138 = vmul.f32 %v5077, %v5119
        %v5139 = vmul.f32 %v5078, %v5123
        %v5140 = vmul.f32 %v5079, %v5111
        %v5141 = vmul.f32 %v5080, %v5115
        %v5142 = vmul.f32 %v5081, %v5119
        %v5143 = vmul.f32 %v5082, %v5123
        %v5144 = vmul.f32 %v5083, %v5111
        %v5145 = vmul.f32 %v5084, %v5115
        %v5146 = vmul.f32 %v5085, %v5119
        %v5147 = vmul.f32 %v5086, %v5123
        %v5148 = vmul.f32 %v5087, %v5111
        %v5149 = vmul.f32 %v5088, %v5115
        %v5150 = vmul.f32 %v5089, %v5119
        %v5151 = vmul.f32 %v5090, %v5123
        %v5152 = vmul.f32 %v5091, %v5111
        %v5153 = vmul.f32 %v5092, %v5115
        %v5154 = vmul.f32 %v5093, %v5119
        %v5155 = vmul.f32 %v5094, %v5123
        %v5156 = vmul.f32 %v5095, %v5111
        %v5157 = vmul.f32 %v5096, %v5115
        %v5158 = vmul.f32 %v5097, %v5119
        %v5159 = vmul.f32 %v5098, %v5123
        %v5160 = vmul.f32 %v5099, %v5111
        %v5161 = vmul.f32 %v5100, %v5115
        %v5162 = vmul.f32 %v5101, %v5119
        %v5163 = vmul.f32 %v5102, %v5123
        %v5164 = vmul.f32 %v5103, %v5111
        %v5165 = vmul.f32 %v5104, %v5115
        %v5166 = vmul.f32 %v5105, %v5119
        %v5167 = vmul.f32 %v5106, %v5123
        %v5169 = vlaneseq
        %v5170 = vshrl.u32 %v5169, 7
        %v5171 = vsub.s32 0, %v5170
        %v5172 = vrot.slane %v3258, %v5171
        %v5173 = vlaneseq
        %v5174 = vshrl.u32 %v5173, 7
        %v5175 = vsub.s32 1, %v5174
        %v5176 = vrot.slane %v3258, %v5175
        %v5177 = vlaneseq
        %v5178 = vshrl.u32 %v5177, 7
        %v5179 = vsub.s32 2, %v5178
        %v5180 = vrot.slane %v3258, %v5179
        %v5181 = vlaneseq
        %v5182 = vshrl.u32 %v5181, 7
        %v5183 = vsub.s32 3, %v5182
        %v5184 = vrot.slane %v3258, %v5183
        %v5189 = vadd.f32 %v5128, %v5172
        %v5190 = vadd.f32 %v5129, %v5176
        %v5191 = vadd.f32 %v5130, %v5180
        %v5192 = vadd.f32 %v5131, %v5184
        %v5193 = vadd.f32 %v5132, %v5172
        %v5194 = vadd.f32 %v5133, %v5176
        %v5195 = vadd.f32 %v5134, %v5180
        %v5196 = vadd.f32 %v5135, %v5184
        %v5197 = vadd.f32 %v5136, %v5172
        %v5198 = vadd.f32 %v5137, %v5176
        %v5199 = vadd.f32 %v5138, %v5180
        %v5200 = vadd.f32 %v5139, %v5184
        %v5201 = vadd.f32 %v5140, %v5172
        %v5202 = vadd.f32 %v5141, %v5176
        %v5203 = vadd.f32 %v5142, %v5180
        %v5204 = vadd.f32 %v5143, %v5184
        %v5205 = vadd.f32 %v5144, %v5172
        %v5206 = vadd.f32 %v5145, %v5176
        %v5207 = vadd.f32 %v5146, %v5180
        %v5208 = vadd.f32 %v5147, %v5184
        %v5209 = vadd.f32 %v5148, %v5172
        %v5210 = vadd.f32 %v5149, %v5176
        %v5211 = vadd.f32 %v5150, %v5180
        %v5212 = vadd.f32 %v5151, %v5184
        %v5213 = vadd.f32 %v5152, %v5172
        %v5214 = vadd.f32 %v5153, %v5176
        %v5215 = vadd.f32 %v5154, %v5180
        %v5216 = vadd.f32 %v5155, %v5184
        %v5217 = vadd.f32 %v5156, %v5172
        %v5218 = vadd.f32 %v5157, %v5176
        %v5219 = vadd.f32 %v5158, %v5180
        %v5220 = vadd.f32 %v5159, %v5184
        %v5221 = vadd.f32 %v5160, %v5172
        %v5222 = vadd.f32 %v5161, %v5176
        %v5223 = vadd.f32 %v5162, %v5180
        %v5224 = vadd.f32 %v5163, %v5184
        %v5225 = vadd.f32 %v5164, %v5172
        %v5226 = vadd.f32 %v5165, %v5176
        %v5227 = vadd.f32 %v5166, %v5180
        %v5228 = vadd.f32 %v5167, %v5184
        %v5229 = vmax.f32 %v5189, 0.0
        %v5230 = vmax.f32 %v5190, 0.0
        %v5231 = vmax.f32 %v5191, 0.0
        %v5232 = vmax.f32 %v5192, 0.0
        %v5233 = vmax.f32 %v5193, 0.0
        %v5234 = vmax.f32 %v5194, 0.0
        %v5235 = vmax.f32 %v5195, 0.0
        %v5236 = vmax.f32 %v5196, 0.0
        %v5237 = vmax.f32 %v5197, 0.0
        %v5238 = vmax.f32 %v5198, 0.0
        %v5239 = vmax.f32 %v5199, 0.0
        %v5240 = vmax.f32 %v5200, 0.0
        %v5241 = vmax.f32 %v5201, 0.0
        %v5242 = vmax.f32 %v5202, 0.0
        %v5243 = vmax.f32 %v5203, 0.0
        %v5244 = vmax.f32 %v5204, 0.0
        %v5245 = vmax.f32 %v5205, 0.0
        %v5246 = vmax.f32 %v5206, 0.0
        %v5247 = vmax.f32 %v5207, 0.0
        %v5248 = vmax.f32 %v5208, 0.0
        %v5249 = vmax.f32 %v5209, 0.0
        %v5250 = vmax.f32 %v5210, 0.0
        %v5251 = vmax.f32 %v5211, 0.0
        %v5252 = vmax.f32 %v5212, 0.0
        %v5253 = vmax.f32 %v5213, 0.0
        %v5254 = vmax.f32 %v5214, 0.0
        %v5255 = vmax.f32 %v5215, 0.0
        %v5256 = vmax.f32 %v5216, 0.0
        %v5257 = vmax.f32 %v5217, 0.0
        %v5258 = vmax.f32 %v5218, 0.0
        %v5259 = vmax.f32 %v5219, 0.0
        %v5260 = vmax.f32 %v5220, 0.0
        %v5261 = vmax.f32 %v5221, 0.0
        %v5262 = vmax.f32 %v5222, 0.0
        %v5263 = vmax.f32 %v5223, 0.0
        %v5264 = vmax.f32 %v5224, 0.0
        %v5265 = vmax.f32 %v5225, 0.0
        %v5266 = vmax.f32 %v5226, 0.0
        %v5267 = vmax.f32 %v5227, 0.0
        %v5268 = vmax.f32 %v5228, 0.0
        %v5309 = vrot.slane %v5229, 1
        %v5310 = vrot.slane %v5233, 1
        %v5311 = vsel %vm1156, %v5309, %v5310
        %v5312 = vrot.slane %v5230, 1
        %v5313 = vrot.slane %v5234, 1
        %v5314 = vsel %vm1156, %v5312, %v5313
        %v5315 = vrot.slane %v5231, 1
        %v5316 = vrot.slane %v5235, 1
        %v5317 = vsel %vm1156, %v5315, %v5316
        %v5318 = vrot.slane %v5232, 1
        %v5319 = vrot.slane %v5236, 1
        %v5320 = vsel %vm1156, %v5318, %v5319
        %v5321 = vrot.slane %v5237, 1
        %v5322 = vsel %vm1156, %v5310, %v5321
        %v5323 = vrot.slane %v5238, 1
        %v5324 = vsel %vm1156, %v5313, %v5323
        %v5325 = vrot.slane %v5239, 1
        %v5326 = vsel %vm1156, %v5316, %v5325
        %v5327 = vrot.slane %v5240, 1
        %v5328 = vsel %vm1156, %v5319, %v5327
        %v5329 = vrot.slane %v5241, 1
        %v5330 = vsel %vm1156, %v5321, %v5329
        %v5331 = vrot.slane %v5242, 1
        %v5332 = vsel %vm1156, %v5323, %v5331
        %v5333 = vrot.slane %v5243, 1
        %v5334 = vsel %vm1156, %v5325, %v5333
        %v5335 = vrot.slane %v5244, 1
        %v5336 = vsel %vm1156, %v5327, %v5335
        %v5337 = vrot.slane %v5245, 1
        %v5338 = vsel %vm1156, %v5329, %v5337
        %v5339 = vrot.slane %v5246, 1
        %v5340 = vsel %vm1156, %v5331, %v5339
        %v5341 = vrot.slane %v5247, 1
        %v5342 = vsel %vm1156, %v5333, %v5341
        %v5343 = vrot.slane %v5248, 1
        %v5344 = vsel %vm1156, %v5335, %v5343
        %v5345 = vrot.slane %v5249, 1
        %v5346 = vsel %vm1156, %v5337, %v5345
        %v5347 = vrot.slane %v5250, 1
        %v5348 = vsel %vm1156, %v5339, %v5347
        %v5349 = vrot.slane %v5251, 1
        %v5350 = vsel %vm1156, %v5341, %v5349
        %v5351 = vrot.slane %v5252, 1
        %v5352 = vsel %vm1156, %v5343, %v5351
        %v5353 = vrot.slane %v5253, 1
        %v5354 = vsel %vm1156, %v5345, %v5353
        %v5355 = vrot.slane %v5254, 1
        %v5356 = vsel %vm1156, %v5347, %v5355
        %v5357 = vrot.slane %v5255, 1
        %v5358 = vsel %vm1156, %v5349, %v5357
        %v5359 = vrot.slane %v5256, 1
        %v5360 = vsel %vm1156, %v5351, %v5359
        %v5361 = vrot.slane %v5257, 1
        %v5362 = vsel %vm1156, %v5353, %v5361
        %v5363 = vrot.slane %v5258, 1
        %v5364 = vsel %vm1156, %v5355, %v5363
        %v5365 = vrot.slane %v5259, 1
        %v5366 = vsel %vm1156, %v5357, %v5365
        %v5367 = vrot.slane %v5260, 1
        %v5368 = vsel %vm1156, %v5359, %v5367
        %v5369 = vrot.slane %v5261, 1
        %v5370 = vsel %vm1156, %v5361, %v5369
        %v5371 = vrot.slane %v5262, 1
        %v5372 = vsel %vm1156, %v5363, %v5371
        %v5373 = vrot.slane %v5263, 1
        %v5374 = vsel %vm1156, %v5365, %v5373
        %v5375 = vrot.slane %v5264, 1
        %v5376 = vsel %vm1156, %v5367, %v5375
        %v5377 = vrot.slane %v5265, 1
        %v5378 = vsel %vm1156, %v5369, %v5377
        %v5379 = vrot.slane %v5266, 1
        %v5380 = vsel %vm1156, %v5371, %v5379
        %v5381 = vrot.slane %v5267, 1
        %v5382 = vsel %vm1156, %v5373, %v5381
        %v5383 = vrot.slane %v5268, 1
        %v5384 = vsel %vm1156, %v5375, %v5383
        %v5425 = vmax.f32 %v5229, %v5311
        %v5426 = vmax.f32 %v5230, %v5314
        %v5427 = vmax.f32 %v5231, %v5317
        %v5428 = vmax.f32 %v5232, %v5320
        %v5429 = vmax.f32 %v5233, %v5322
        %v5430 = vmax.f32 %v5234, %v5324
        %v5431 = vmax.f32 %v5235, %v5326
        %v5432 = vmax.f32 %v5236, %v5328
        %v5433 = vmax.f32 %v5237, %v5330
        %v5434 = vmax.f32 %v5238, %v5332
        %v5435 = vmax.f32 %v5239, %v5334
        %v5436 = vmax.f32 %v5240, %v5336
        %v5437 = vmax.f32 %v5241, %v5338
        %v5438 = vmax.f32 %v5242, %v5340
        %v5439 = vmax.f32 %v5243, %v5342
        %v5440 = vmax.f32 %v5244, %v5344
        %v5441 = vmax.f32 %v5245, %v5346
        %v5442 = vmax.f32 %v5246, %v5348
        %v5443 = vmax.f32 %v5247, %v5350
        %v5444 = vmax.f32 %v5248, %v5352
        %v5445 = vmax.f32 %v5249, %v5354
        %v5446 = vmax.f32 %v5250, %v5356
        %v5447 = vmax.f32 %v5251, %v5358
        %v5448 = vmax.f32 %v5252, %v5360
        %v5449 = vmax.f32 %v5253, %v5362
        %v5450 = vmax.f32 %v5254, %v5364
        %v5451 = vmax.f32 %v5255, %v5366
        %v5452 = vmax.f32 %v5256, %v5368
        %v5453 = vmax.f32 %v5257, %v5370
        %v5454 = vmax.f32 %v5258, %v5372
        %v5455 = vmax.f32 %v5259, %v5374
        %v5456 = vmax.f32 %v5260, %v5376
        %v5457 = vmax.f32 %v5261, %v5378
        %v5458 = vmax.f32 %v5262, %v5380
        %v5459 = vmax.f32 %v5263, %v5382
        %v5460 = vmax.f32 %v5264, %v5384
        %v5461 = vmax.f32 %v5265, %v5377
        %v5462 = vmax.f32 %v5266, %v5379
        %v5463 = vmax.f32 %v5267, %v5381
        %v5464 = vmax.f32 %v5268, %v5383
        %v5465 = vld [vmem:[#allocation6] sm:$0xff]
        %v5466 = vld [vmem:[#allocation6 + $0x8] sm:$0xff]
        %v5467 = vld [vmem:[#allocation6 + $0x10] sm:$0xff]
        %v5468 = vld [vmem:[#allocation6 + $0x18] sm:$0xff]
        %v5469 = vld [vmem:[#allocation6 + $0x20] sm:$0x1f]
        %vm5470 = vcmask 596992
        %v5472 = vsel %vm5470, %v5465, 0
        %v5475 = vsel %vm5470, %v5466, 0
        %v5478 = vsel %vm5470, %v5467, 0
        %v5481 = vsel %vm5470, %v5468, 0
        %v5484 = vsel %vm5470, %v5469, 0
        %v5487 = vsel %vm3178, %v5461, 0
        %v5490 = vsel %vm3178, %v5462, 0
        %v5493 = vsel %vm3178, %v5463, 0
        %v5496 = vsel %vm3178, %v5464, 0
        %5498 = vmatprep.subr.mxu0 %v5426
        %5499 = vmatpush1.msra.mxu0 %v5425
        %5500 = vmatprep.subr.mxu0 %v5430
        %5501 = vmatpush1.msra.mxu0 %v5429
        %5502 = vmatprep.subr.mxu0 %v5434
        %5503 = vmatpush1.msra.mxu0 %v5433
        %5504 = vmatprep.subr.mxu0 %v5438
        %5505 = vmatpush1.msra.mxu0 %v5437
        %5506 = vmatprep.subr.mxu0 %v5442
        %5507 = vmatpush1.msra.mxu0 %v5441
        %5508 = vmatprep.subr.mxu0 %v5446
        %5509 = vmatpush1.msra.mxu0 %v5445
        %5510 = vmatprep.subr.mxu0 %v5450
        %5511 = vmatpush1.msra.mxu0 %v5449
        %5512 = vmatprep.subr.mxu0 %v5454
        %5513 = vmatpush1.msra.mxu0 %v5453
        %5514 = vmatprep.subr.mxu0 %v5458
        %5515 = vmatpush1.msra.mxu0 %v5457
        %5516 = vmatprep.subr.mxu0 %v5490
        %5517 = vmatpush1.msra.mxu0 %v5487
        %5518 = vmatprep.subr.mxu0 0.0
        %5519 = vmatpush1.msra.mxu0 0.0
        %5520 = vmatprep.subr.mxu0 0.0
        %5521 = vmatpush1.msra.mxu0 0.0
        %5522 = vmatprep.subr.mxu0 0.0
        %5523 = vmatpush1.msra.mxu0 0.0
        %5524 = vmatprep.subr.mxu0 0.0
        %5525 = vmatpush1.msra.mxu0 0.0
        %5526 = vmatprep.subr.mxu0 0.0
        %5527 = vmatpush1.msra.mxu0 0.0
        %5528 = vmatprep.subr.mxu0 0.0
        %5529 = vmatpush1.msra.mxu0 0.0
        %5530 = vmatprep.subr.mxu0 0.0
        %5531 = vmatpush1.msra.mxu0 0.0
        %5532 = vmatprep.subr.mxu0 0.0
        %5533 = vmatpush1.msra.mxu0 0.0
        %5534 = vmatprep.subr.mxu0 0.0
        %5535 = vmatpush1.msra.mxu0 0.0
        %5536 = vmatprep.subr.mxu0 0.0
        %5537 = vmatpush1.msra.mxu0 0.0
        %5538 = vmatprep.subr.mxu0 0.0
        %5539 = vmatpush1.msra.mxu0 0.0
        %5540 = vmatprep.subr.mxu0 0.0
        %5541 = vmatpush1.msra.mxu0 0.0
        %5542 = vmatprep.subr.mxu0 0.0
        %5543 = vmatpush1.msra.mxu0 0.0
        %5544 = vmatprep.subr.mxu0 0.0
        %5545 = vmatpush1.msra.mxu0 0.0
        %5546 = vmatprep.subr.mxu0 0.0
        %5547 = vmatpush1.msra.mxu0 0.0
        %5548 = vmatprep.subr.mxu0 0.0
        %5549 = vmatpush1.msra.mxu0 0.0
        %5550 = vmatprep.subr.mxu0 0.0
        %5551 = vmatpush1.msra.mxu0 0.0
        %5552 = vmatprep.subr.mxu0 0.0
        %5553 = vmatpush1.msra.mxu0 0.0
        %5554 = vmatprep.subr.mxu0 0.0
        %5555 = vmatpush1.msra.mxu0 0.0
        %5556 = vmatprep.subr.mxu0 0.0
        %5557 = vmatpush1.msra.mxu0 0.0
        %5558 = vmatprep.subr.mxu0 0.0
        %5559 = vmatpush1.msra.mxu0 0.0
        %5560 = vmatprep.subr.mxu0 0.0
        %5561 = vmatpush1.msra.mxu0 0.0
        %5562 = vmatprep.mubr.f32.mxu0 0.0
        %5563 = vmatmul.mubr.f32.gmra.mrb[0].mxu0 %v5472
        %v5564 = vpop.f32.mrb[0].mxu0
        %v5565 = vadd.f32 0.0, %v5564
        %v5566 = vpop.f32.mrb[0].mxu0
        %v5567 = vadd.f32 0.0, %v5566
        %5568 = vmatprep.mubr.f32.mxu0 0.0
        %5569 = vmatmul.mubr.f32.gmra.mrb[0].mxu0 %v5475
        %v5570 = vpop.f32.mrb[0].mxu0
        %v5571 = vadd.f32 0.0, %v5570
        %v5572 = vpop.f32.mrb[0].mxu0
        %v5573 = vadd.f32 0.0, %v5572
        %5574 = vmatprep.mubr.f32.mxu0 0.0
        %5575 = vmatmul.mubr.f32.gmra.mrb[0].mxu0 %v5478
        %v5576 = vpop.f32.mrb[0].mxu0
        %v5577 = vadd.f32 0.0, %v5576
        %v5578 = vpop.f32.mrb[0].mxu0
        %v5579 = vadd.f32 0.0, %v5578
        %5580 = vmatprep.mubr.f32.mxu0 0.0
        %5581 = vmatmul.mubr.f32.gmra.mrb[0].mxu0 %v5481
        %v5582 = vpop.f32.mrb[0].mxu0
        %v5583 = vadd.f32 0.0, %v5582
        %v5584 = vpop.f32.mrb[0].mxu0
        %v5585 = vadd.f32 0.0, %v5584
        %5586 = vmatprep.mubr.f32.mxu0 0.0
        %5587 = vmatmul.mubr.f32.gmra.mrb[0].mxu0 %v5484
        %v5588 = vpop.f32.mrb[0].mxu0
        %v5589 = vadd.f32 0.0, %v5588
        %v5590 = vpop.f32.mrb[0].mxu0
        %v5591 = vadd.f32 0.0, %v5590
        %5592 = vdwg.mxu0
        %5593 = vmatprep.subr.mxu0 %v5428
        %5594 = vmatpush1.msra.mxu0 %v5427
        %5595 = vmatprep.subr.mxu0 %v5432
        %5596 = vmatpush1.msra.mxu0 %v5431
        %5597 = vmatprep.subr.mxu0 %v5436
        %5598 = vmatpush1.msra.mxu0 %v5435
        %5599 = vmatprep.subr.mxu0 %v5440
        %5600 = vmatpush1.msra.mxu0 %v5439
        %5601 = vmatprep.subr.mxu0 %v5444
        %5602 = vmatpush1.msra.mxu0 %v5443
        %5603 = vmatprep.subr.mxu0 %v5448
        %5604 = vmatpush1.msra.mxu0 %v5447
        %5605 = vmatprep.subr.mxu0 %v5452
        %5606 = vmatpush1.msra.mxu0 %v5451
        %5607 = vmatprep.subr.mxu0 %v5456
        %5608 = vmatpush1.msra.mxu0 %v5455
        %5609 = vmatprep.subr.mxu0 %v5460
        %5610 = vmatpush1.msra.mxu0 %v5459
        %5611 = vmatprep.subr.mxu0 %v5496
        %5612 = vmatpush1.msra.mxu0 %v5493
        %5613 = vmatprep.subr.mxu0 0.0
        %5614 = vmatpush1.msra.mxu0 0.0
        %5615 = vmatprep.subr.mxu0 0.0
        %5616 = vmatpush1.msra.mxu0 0.0
        %5617 = vmatprep.subr.mxu0 0.0
        %5618 = vmatpush1.msra.mxu0 0.0
        %5619 = vmatprep.subr.mxu0 0.0
        %5620 = vmatpush1.msra.mxu0 0.0
        %5621 = vmatprep.subr.mxu0 0.0
        %5622 = vmatpush1.msra.mxu0 0.0
        %5623 = vmatprep.subr.mxu0 0.0
        %5624 = vmatpush1.msra.mxu0 0.0
        %5625 = vmatprep.subr.mxu0 0.0
        %5626 = vmatpush1.msra.mxu0 0.0
        %5627 = vmatprep.subr.mxu0 0.0
        %5628 = vmatpush1.msra.mxu0 0.0
        %5629 = vmatprep.subr.mxu0 0.0
        %5630 = vmatpush1.msra.mxu0 0.0
        %5631 = vmatprep.subr.mxu0 0.0
        %5632 = vmatpush1.msra.mxu0 0.0
        %5633 = vmatprep.subr.mxu0 0.0
        %5634 = vmatpush1.msra.mxu0 0.0
        %5635 = vmatprep.subr.mxu0 0.0
        %5636 = vmatpush1.msra.mxu0 0.0
        %5637 = vmatprep.subr.mxu0 0.0
        %5638 = vmatpush1.msra.mxu0 0.0
        %5639 = vmatprep.subr.mxu0 0.0
        %5640 = vmatpush1.msra.mxu0 0.0
        %5641 = vmatprep.subr.mxu0 0.0
        %5642 = vmatpush1.msra.mxu0 0.0
        %5643 = vmatprep.subr.mxu0 0.0
        %5644 = vmatpush1.msra.mxu0 0.0
        %5645 = vmatprep.subr.mxu0 0.0
        %5646 = vmatpush1.msra.mxu0 0.0
        %5647 = vmatprep.subr.mxu0 0.0
        %5648 = vmatpush1.msra.mxu0 0.0
        %5649 = vmatprep.subr.mxu0 0.0
        %5650 = vmatpush1.msra.mxu0 0.0
        %5651 = vmatprep.subr.mxu0 0.0
        %5652 = vmatpush1.msra.mxu0 0.0
        %5653 = vmatprep.subr.mxu0 0.0
        %5654 = vmatpush1.msra.mxu0 0.0
        %5655 = vmatprep.subr.mxu0 0.0
        %5656 = vmatpush1.msra.mxu0 0.0
        %5657 = vmatprep.mubr.f32.mxu0 0.0
        %5658 = vmatmul.mubr.f32.gmra.mrb[0].mxu0 %v5472
        %v5659 = vpop.f32.mrb[0].mxu0
        %v5660 = vadd.f32 0.0, %v5659
        %v5661 = vpop.f32.mrb[0].mxu0
        %v5662 = vadd.f32 0.0, %v5661
        %5663 = vmatprep.mubr.f32.mxu0 0.0
        %5664 = vmatmul.mubr.f32.gmra.mrb[0].mxu0 %v5475
        %v5665 = vpop.f32.mrb[0].mxu0
        %v5666 = vadd.f32 0.0, %v5665
        %v5667 = vpop.f32.mrb[0].mxu0
        %v5668 = vadd.f32 0.0, %v5667
        %5669 = vmatprep.mubr.f32.mxu0 0.0
        %5670 = vmatmul.mubr.f32.gmra.mrb[0].mxu0 %v5478
        %v5671 = vpop.f32.mrb[0].mxu0
        %v5672 = vadd.f32 0.0, %v5671
        %v5673 = vpop.f32.mrb[0].mxu0
        %v5674 = vadd.f32 0.0, %v5673
        %5675 = vmatprep.mubr.f32.mxu0 0.0
        %5676 = vmatmul.mubr.f32.gmra.mrb[0].mxu0 %v5481
        %v5677 = vpop.f32.mrb[0].mxu0
        %v5678 = vadd.f32 0.0, %v5677
        %v5679 = vpop.f32.mrb[0].mxu0
        %v5680 = vadd.f32 0.0, %v5679
        %5681 = vmatprep.mubr.f32.mxu0 0.0
        %5682 = vmatmul.mubr.f32.gmra.mrb[0].mxu0 %v5484
        %v5683 = vpop.f32.mrb[0].mxu0
        %v5684 = vadd.f32 0.0, %v5683
        %v5685 = vpop.f32.mrb[0].mxu0
        %v5686 = vadd.f32 0.0, %v5685
        %5687 = vdwg.mxu0
        %v5688 = vpack.c.bf16 %v5571, %v5565
        %v5689 = vpack.c.bf16 %v5573, %v5567
        %v5690 = vpack.c.bf16 %v5666, %v5660
        %v5691 = vpack.c.bf16 %v5668, %v5662
        %v5692 = vpack.c.bf16 %v5583, %v5577
        %v5693 = vpack.c.bf16 %v5585, %v5579
        %v5694 = vpack.c.bf16 %v5678, %v5672
        %v5695 = vpack.c.bf16 %v5680, %v5674
        %v5696 = vpack.c.bf16 %v5589, %v5589
        %v5697 = vpack.c.bf16 %v5591, %v5591
        %v5698 = vpack.c.bf16 %v5684, %v5684
        %v5699 = vpack.c.bf16 %v5686, %v5686
        %v5712 = vunpack.c.l.b16 %v5688
        %v5713 = vunpack.c.l.b16 %v5689
        %v5714 = vunpack.c.l.b16 %v5690
        %v5715 = vunpack.c.l.b16 %v5691
        %v5716 = vunpack.c.h.b16 %v5688
        %v5717 = vunpack.c.h.b16 %v5689
        %v5718 = vunpack.c.h.b16 %v5690
        %v5719 = vunpack.c.h.b16 %v5691
        %v5720 = vunpack.c.l.b16 %v5692
        %v5721 = vunpack.c.l.b16 %v5693
        %v5722 = vunpack.c.l.b16 %v5694
        %v5723 = vunpack.c.l.b16 %v5695
        %v5724 = vunpack.c.h.b16 %v5692
        %v5725 = vunpack.c.h.b16 %v5693
        %v5726 = vunpack.c.h.b16 %v5694
        %v5727 = vunpack.c.h.b16 %v5695
        %v5728 = vunpack.c.l.b16 %v5696
        %v5729 = vunpack.c.l.b16 %v5697
        %v5730 = vunpack.c.l.b16 %v5698
        %v5731 = vunpack.c.l.b16 %v5699
        %v5732 = vpack.c.b16 %v5713, %v5712
        %v5733 = vpack.c.b16 %v5715, %v5714
        %v5734 = vpack.c.b16 %v5717, %v5716
        %v5735 = vpack.c.b16 %v5719, %v5718
        %v5736 = vpack.c.b16 %v5721, %v5720
        %v5737 = vpack.c.b16 %v5723, %v5722
        %v5738 = vpack.c.b16 %v5725, %v5724
        %v5739 = vpack.c.b16 %v5727, %v5726
        %v5740 = vpack.c.b16 %v5729, %v5728
        %v5741 = vpack.c.b16 %v5731, %v5730
        %5752 = vst [vmem:[%s586] sm:$0xff] %v5732
        %5753 = vst [vmem:[%s586 + $0x8] sm:$0xff] %v5733
        %5754 = vst [vmem:[%s586 + $0x10] sm:$0xff] %v5734
        %5755 = vst [vmem:[%s586 + $0x18] sm:$0xff] %v5735
        %5756 = vst [vmem:[%s586 + $0x20] sm:$0xff] %v5736
        %5757 = vst [vmem:[%s586 + $0x28] sm:$0xff] %v5737
        %5758 = vst [vmem:[%s586 + $0x30] sm:$0xff] %v5738
        %5759 = vst [vmem:[%s586 + $0x38] sm:$0xff] %v5739
        %vm5760 = vcmask 1042432
        %vm5761 = vsmask.f32 2304
        %vm5762 = vmand %vm5760, %vm5761
        %vm5763 = vcmask 1046532
        %vm5764 = vsmask.f32 6400
        %vm5765 = vmand %vm5763, %vm5764
        %vm5766 = vmor %vm5765, %vm5762
        %v5767 = vld [vmem:[%s586 + $0x40] sm:$0x77]
        %v5768 = vsel %vm5766, %v5740, %v5767
        %5769 = vst [vmem:[%s586 + $0x40] sm:$0x77] %v5768
        %v5770 = vld [vmem:[%s586 + $0x48] sm:$0x77]
        %v5771 = vsel %vm5766, %v5741, %v5770
        %5772 = vst [vmem:[%s586 + $0x48] sm:$0x77] %v5771
        %p5773 = scmp.lt.s32.totalorder %s30, 3
        %s5774 = scalar_select %p5773, %s30, 3
        %s5775 = smul.addr %s5774, 20
        %s5776 = smul.addr %s5775, 4
        %s5777 = scalar_lea.vmem %s13, %s5776
        // Predicated region
        $region117: #{cnn_forward.2} parent=71 // pred_check
          %p5778 = pneg %p326
        $region118: #{cnn_forward.2} parent=71 // pred_check_branch
          %5780 = sbr.rel (%p5778) target = $region120
        $region119: #{cnn_forward.2} parent=71 // pred_region
          _
        $region120: #{cnn_forward.2} parent=71 // pred_fallthru
          _
      $region72: #{cnn_forward.2} parent=5 // pred_fallthru
        _
      %p5781 = scmp.le.s32.totalorder 2, %s25
      // Predicated region
      $region121: #{cnn_forward.2} parent=5 // pred_check
        %p5782 = pneg %p5781
      $region122: #{cnn_forward.2} parent=5 // pred_check_branch
        %5784 = sbr.rel (%p5782) target = $region124
      $region123: #{cnn_forward.2} parent=5 // pred_region
        %s5785 = ssub.s32 %s25, 2
        // Predicated region
        $region125: #{cnn_forward.2} parent=123 // pred_check
          %p5786 = pneg %p332
        $region126: #{cnn_forward.2} parent=123 // pred_check_branch
          %5788 = sbr.rel (%p5786) target = $region128
        $region127: #{cnn_forward.2} parent=123 // pred_region
          %p5789 = scmp.lt.s32.totalorder %s31, 3
          %s5790 = scalar_select %p5789, %s31, 3
          %s5791 = smul.addr %s5790, 20
          %s5792 = smul.addr %s5791, 4
          %s5793 = scalar_lea.vmem %s13, %s5792
        $region128: #{cnn_forward.2} parent=123 // pred_fallthru
          _
      $region124: #{cnn_forward.2} parent=5 // pred_fallthru
        _
    $region6: #{cnn_forward.2} parent=1 // loop_footer
      %s29 = sadd.s32 1, %s25
    $region7: #{cnn_forward.2} parent=1 // loop_footer_branch
      %24 = sbr.rel target = $region3
    $region8: #{cnn_forward.2} parent=1 // loop_exit
      _
    %5794 = vsyncpa [#allocation5], 1
    %s5795 = scalar_lea.sflag [#allocation5], 1
    %5796 = vsyncpa %s5795, 1
    %5797 = vsyncpa [#allocation7], 1
    %5798 = vsyncpa [#allocation10], 1
    %5799 = vsyncpa [#allocation13], 1
    %5800 = vsyncpa [#allocation16], 1
    %5801 = vsyncpa [#allocation19], 1

// kernel: cnn_forward.3
$region0: #{cnn_forward.3}
  #allocation0 [shape = 'u32[]', space=smem, size = 0x4, offset = 0x4, fixed_abs, tag = 'smem constant byte address 0x4 - core index']
  #allocation1 [shape = 'u32[144,128]{1,0:T(1,128)}', space=vmem, size = 0x12000, scoped, tag = 'internal scratch']
  #allocation2 [shape = 'f32[4,256]{1,0:T(4,128)}', space=vmem, size = 0x1000, scoped, tag = 'scratch operand']
  #allocation3 [shape = 'f32[1,1]{1,0:T(1,128)S(1)}', space=vmem, size = 0x200, scoped, tag = 'scoped memory for cnn_forward.3']
  %s0 = inlined_call_operand.vmem [shape: bf16[4,18944], index: 0, kind: input, shape index: {}]
  %s1 = inlined_call_operand.hbm [shape: bf16[18944,256], index: 1, kind: input, shape index: {}]
  %s2 = inlined_call_operand.hbm [shape: f32[1,256], index: 2, kind: input, shape index: {}]
  %s3 = inlined_call_operand.hbm [shape: f32[1,256], index: 3, kind: input, shape index: {}]
  %s4 = inlined_call_operand.hbm [shape: bf16[256,128], index: 4, kind: input, shape index: {}]
  %s5 = inlined_call_operand.hbm [shape: f32[1,128], index: 5, kind: input, shape index: {}]
  %s6 = inlined_call_operand.hbm [shape: f32[1,128], index: 6, kind: input, shape index: {}]
  %s7 = inlined_call_operand.vmem [shape: bf16[128,64], index: 7, kind: input, shape index: {}]
  %s8 = inlined_call_operand.hbm [shape: f32[1,64], index: 8, kind: input, shape index: {}]
  %s9 = inlined_call_operand.hbm [shape: f32[1,64], index: 9, kind: input, shape index: {}]
  %s10 = inlined_call_operand.hbm [shape: bf16[64,64], index: 10, kind: input, shape index: {}]
  %s11 = inlined_call_operand.hbm [shape: f32[1,64], index: 11, kind: input, shape index: {}]
  %s12 = inlined_call_operand.hbm [shape: bf16[64,64], index: 12, kind: input, shape index: {}]
  %s13 = inlined_call_operand.hbm [shape: f32[1,64], index: 13, kind: input, shape index: {}]
  %s14 = inlined_call_operand.hbm [shape: bf16[64,64], index: 14, kind: input, shape index: {}]
  %s15 = inlined_call_operand.hbm [shape: f32[1,64], index: 15, kind: input, shape index: {}]
  %s16 = inlined_call_operand.vmem [shape: f32[64,1], index: 16, kind: input, shape index: {}]
  %s17 = inlined_call_operand.<no memory space> [shape: f32[1,1], index: 17, kind: input, shape index: {}]
  %s18 = inlined_call_operand.vmem [shape: f32[4,1], index: 18, kind: output, shape index: {}]
  %s19 = sld [smem:[#allocation0]]
  $region169: #{cnn_forward.3} parent=0
    _
  %s21 = ssub.s32 1, %s19
  %s22 = scalar_select 0, %s21, %s19
  %v23 = vstv %s17
  %24 = vst [vmem:[#allocation3] sm:$0x1] %v23
  $region1: #{cnn_forward.3} parent=0
    #allocation4 [shape = 'u8[4849664]{0}', space=vmem, size = 0x4a0000, scoped, tag = 'input window, operand 1']
    #allocation5 [shape = 's32[2]{0}', space=sflag, size = 0x8, scoped, tag = 'scoped memory for cnn_forward.3']
    #allocation6 [shape = 'u8[1024]{0}', space=vmem, size = 0x400, scoped, tag = 'input window, operand 2, single buffered']
    #allocation7 [shape = 's32[1]{0}', space=sflag, size = 0x4, scoped, tag = 'scoped memory for cnn_forward.3']
    #allocation8 [shape = 'u8[1024]{0}', space=vmem, size = 0x400, scoped, tag = 'input window, operand 3, single buffered']
    #allocation9 [shape = 'u8[65536]{0}', space=vmem, size = 0x10000, scoped, tag = 'input window, operand 4, single buffered']
    #allocation10 [shape = 's32[1]{0}', space=sflag, size = 0x4, scoped, tag = 'scoped memory for cnn_forward.3']
    #allocation11 [shape = 'u8[512]{0}', space=vmem, size = 0x400, scoped, tag = 'input window, operand 5, single buffered']
    #allocation12 [shape = 'u8[512]{0}', space=vmem, size = 0x400, scoped, tag = 'input window, operand 6, single buffered']
    #allocation13 [shape = 's32[1]{0}', space=sflag, size = 0x4, scoped, tag = 'scoped memory for cnn_forward.3']
    #allocation14 [shape = 'u8[512]{0}', space=vmem, size = 0x400, scoped, tag = 'input window, operand 8, single buffered']
    #allocation15 [shape = 'u8[512]{0}', space=vmem, size = 0x400, scoped, tag = 'input window, operand 9, single buffered']
    #allocation16 [shape = 's32[1]{0}', space=sflag, size = 0x4, scoped, tag = 'scoped memory for cnn_forward.3']
    #allocation17 [shape = 'u8[16384]{0}', space=vmem, size = 0x4000, scoped, tag = 'input window, operand 10, single buffered']
    #allocation18 [shape = 'u8[512]{0}', space=vmem, size = 0x400, scoped, tag = 'input window, operand 11, single buffered']
    #allocation19 [shape = 's32[1]{0}', space=sflag, size = 0x4, scoped, tag = 'scoped memory for cnn_forward.3']
    #allocation20 [shape = 'u8[16384]{0}', space=vmem, size = 0x4000, scoped, tag = 'input window, operand 12, single buffered']
    #allocation21 [shape = 'u8[512]{0}', space=vmem, size = 0x400, scoped, tag = 'input window, operand 13, single buffered']
    #allocation22 [shape = 's32[1]{0}', space=sflag, size = 0x4, scoped, tag = 'scoped memory for cnn_forward.3']
    #allocation23 [shape = 'u8[16384]{0}', space=vmem, size = 0x4000, scoped, tag = 'input window, operand 14, single buffered']
    #allocation24 [shape = 'u8[512]{0}', space=vmem, size = 0x400, scoped, tag = 'input window, operand 15, single buffered']
    #allocation25 [shape = 's32[1]{0}', space=sflag, size = 0x4, scoped, tag = 'scoped memory for cnn_forward.3']
    %25 = vsyncpa [#allocation5], 0
    %s26 = scalar_lea.sflag [#allocation5], 1
    %27 = vsyncpa %s26, 0
    %28 = vsyncpa [#allocation7], 0
    %29 = vsyncpa [#allocation10], 0
    %30 = vsyncpa [#allocation13], 0
    %31 = vsyncpa [#allocation16], 0
    %32 = vsyncpa [#allocation19], 0
    %33 = vsyncpa [#allocation22], 0
    %34 = vsyncpa [#allocation25], 0
    loop: start=0, step=1, limit=6
    $region2: #{cnn_forward.3} parent=1 // loop_pre_header
      _
    $region3: #{cnn_forward.3} parent=1 // loop_header
      %s36 = sphi 0, %s40
      %p37 = scmp.ge.s32.totalorder %s36, 6
      %s46 = sphi 0, %s48
      %s49 = sphi 0, %s46
      %s50 = sphi 0, %s49
      %s66 = sphi 0, %s50
      %s72 = sphi 0, %s74
      %s75 = sphi 0, %s72
      %s76 = sphi 0, %s75
      %s92 = sphi 0, %s76
      %s96 = sphi 0, %s96
      %s98 = sphi 0, %s96
      %s99 = sphi 0, %s98
      %s113 = sphi 0, %s99
      %s117 = sphi 0, %s117
      %s119 = sphi 0, %s117
      %s120 = sphi 0, %s119
      %s134 = sphi 0, %s120
      %s138 = sphi 0, %s138
      %s140 = sphi 0, %s138
      %s141 = sphi 0, %s140
      %s155 = sphi 0, %s141
      %s159 = sphi 0, %s159
      %s161 = sphi 0, %s159
      %s162 = sphi 0, %s161
      %s176 = sphi 0, %s162
      %s180 = sphi 0, %s180
      %s182 = sphi 0, %s180
      %s183 = sphi 0, %s182
      %s197 = sphi 0, %s183
      %s201 = sphi 0, %s201
      %s203 = sphi 0, %s201
      %s204 = sphi 0, %s203
      %s218 = sphi 0, %s204
      %s222 = sphi 0, %s222
      %s224 = sphi 0, %s222
      %s225 = sphi 0, %s224
      %s239 = sphi 0, %s225
      %s243 = sphi 0, %s243
      %s245 = sphi 0, %s243
      %s246 = sphi 0, %s245
      %s260 = sphi 0, %s246
      %s264 = sphi 0, %s264
      %s266 = sphi 0, %s264
      %s267 = sphi 0, %s266
      %s281 = sphi 0, %s267
      %s285 = sphi 0, %s285
      %s287 = sphi 0, %s285
      %s288 = sphi 0, %s287
      %s302 = sphi 0, %s288
      %s306 = sphi 0, %s306
      %s308 = sphi 0, %s306
      %s309 = sphi 0, %s308
      %s323 = sphi 0, %s309
      %s327 = sphi 0, %s327
      %s329 = sphi 0, %s327
      %s330 = sphi 0, %s329
      %s344 = sphi 0, %s330
      %s348 = sphi 0, %s348
      %s350 = sphi 0, %s348
      %s351 = sphi 0, %s350
      %s365 = sphi 0, %s351
      %s369 = sphi 0, %s369
      %s371 = sphi 0, %s369
      %s372 = sphi 0, %s371
      %s386 = sphi 0, %s372
      %s390 = sphi 0, %s390
      %s392 = sphi 0, %s390
      %s393 = sphi 0, %s392
      %s407 = sphi 0, %s393
      %s411 = sphi 0, %s411
      %s413 = sphi 0, %s411
      %s414 = sphi 0, %s413
      %s428 = sphi 0, %s414
      %s432 = sphi 0, %s432
      %s434 = sphi 0, %s432
      %s435 = sphi 0, %s434
      %s449 = sphi 0, %s435
    $region4: #{cnn_forward.3} parent=1 // loop_header_branch
      %39 = sbr.rel (%p37) target = $region8
    $region5: #{cnn_forward.3} parent=1 // loop_body
      %s41 = ssub.s32 %s36, 1
      %s42 = ssub.s32 %s36, 2
      %s43 = sadd.s32 %s36, 1
      %s44 = ssub.s32 %s36, %s43
      %p45 = scmp.eq.s32.totalorder %s44, 0
      %s47 = sadd.s32 %s46, 1
      %s48 = scalar_select %p45, %s46, %s47
      %p51 = pneg %p45
      %p52 = scmp.eq.s32.totalorder %s36, 3
      %p53 = por %p51, %p52
      %p54 = scmp.ne.s32.totalorder %s46, %s49
      %p55 = scmp.eq.s32.totalorder %s36, 0
      %p56 = por %p54, %p55
      %p57 = scmp.ne.s32.totalorder %s46, %s49
      %p58 = scmp.eq.s32.totalorder %s41, 3
      %p59 = por %p57, %p58
      %p60 = scmp.ne.s32.totalorder %s49, %s50
      %p61 = scmp.eq.s32.totalorder %s41, 0
      %p62 = por %p60, %p61
      %p63 = scmp.ne.s32.totalorder %s49, %s50
      %p64 = scmp.eq.s32.totalorder %s42, 3
      %p65 = por %p63, %p64
      %p67 = scmp.ne.s32.totalorder %s50, %s66
      %p68 = scmp.eq.s32.totalorder %s42, 0
      %p69 = por %p67, %p68
      %s70 = ssub.s32 %s36, %s43
      %p71 = scmp.eq.s32.totalorder %s70, 0
      %s73 = sadd.s32 %s72, 1
      %s74 = scalar_select %p71, %s72, %s73
      %p77 = pneg %p71
      %p78 = scmp.eq.s32.totalorder %s36, 3
      %p79 = por %p77, %p78
      %p80 = scmp.ne.s32.totalorder %s72, %s75
      %p81 = scmp.eq.s32.totalorder %s36, 0
      %p82 = por %p80, %p81
      %p83 = scmp.ne.s32.totalorder %s72, %s75
      %p84 = scmp.eq.s32.totalorder %s41, 3
      %p85 = por %p83, %p84
      %p86 = scmp.ne.s32.totalorder %s75, %s76
      %p87 = scmp.eq.s32.totalorder %s41, 0
      %p88 = por %p86, %p87
      %p89 = scmp.ne.s32.totalorder %s75, %s76
      %p90 = scmp.eq.s32.totalorder %s42, 3
      %p91 = por %p89, %p90
      %p93 = scmp.ne.s32.totalorder %s76, %s92
      %p94 = scmp.eq.s32.totalorder %s42, 0
      %p95 = por %p93, %p94
      %s97 = sadd.s32 %s96, 1
      %p100 = scmp.eq.s32.totalorder %s36, 3
      %p101 = scmp.ne.s32.totalorder %s96, %s98
      %p102 = scmp.eq.s32.totalorder %s36, 0
      %p103 = por %p101, %p102
      %p104 = scmp.ne.s32.totalorder %s96, %s98
      %p105 = scmp.eq.s32.totalorder %s41, 3
      %p106 = por %p104, %p105
      %p107 = scmp.ne.s32.totalorder %s98, %s99
      %p108 = scmp.eq.s32.totalorder %s41, 0
      %p109 = por %p107, %p108
      %p110 = scmp.ne.s32.totalorder %s98, %s99
      %p111 = scmp.eq.s32.totalorder %s42, 3
      %p112 = por %p110, %p111
      %p114 = scmp.ne.s32.totalorder %s99, %s113
      %p115 = scmp.eq.s32.totalorder %s42, 0
      %p116 = por %p114, %p115
      %s118 = sadd.s32 %s117, 1
      %p121 = scmp.eq.s32.totalorder %s36, 3
      %p122 = scmp.ne.s32.totalorder %s117, %s119
      %p123 = scmp.eq.s32.totalorder %s36, 0
      %p124 = por %p122, %p123
      %p125 = scmp.ne.s32.totalorder %s117, %s119
      %p126 = scmp.eq.s32.totalorder %s41, 3
      %p127 = por %p125, %p126
      %p128 = scmp.ne.s32.totalorder %s119, %s120
      %p129 = scmp.eq.s32.totalorder %s41, 0
      %p130 = por %p128, %p129
      %p131 = scmp.ne.s32.totalorder %s119, %s120
      %p132 = scmp.eq.s32.totalorder %s42, 3
      %p133 = por %p131, %p132
      %p135 = scmp.ne.s32.totalorder %s120, %s134
      %p136 = scmp.eq.s32.totalorder %s42, 0
      %p137 = por %p135, %p136
      %s139 = sadd.s32 %s138, 1
      %p142 = scmp.eq.s32.totalorder %s36, 3
      %p143 = scmp.ne.s32.totalorder %s138, %s140
      %p144 = scmp.eq.s32.totalorder %s36, 0
      %p145 = por %p143, %p144
      %p146 = scmp.ne.s32.totalorder %s138, %s140
      %p147 = scmp.eq.s32.totalorder %s41, 3
      %p148 = por %p146, %p147
      %p149 = scmp.ne.s32.totalorder %s140, %s141
      %p150 = scmp.eq.s32.totalorder %s41, 0
      %p151 = por %p149, %p150
      %p152 = scmp.ne.s32.totalorder %s140, %s141
      %p153 = scmp.eq.s32.totalorder %s42, 3
      %p154 = por %p152, %p153
      %p156 = scmp.ne.s32.totalorder %s141, %s155
      %p157 = scmp.eq.s32.totalorder %s42, 0
      %p158 = por %p156, %p157
      %s160 = sadd.s32 %s159, 1
      %p163 = scmp.eq.s32.totalorder %s36, 3
      %p164 = scmp.ne.s32.totalorder %s159, %s161
      %p165 = scmp.eq.s32.totalorder %s36, 0
      %p166 = por %p164, %p165
      %p167 = scmp.ne.s32.totalorder %s159, %s161
      %p168 = scmp.eq.s32.totalorder %s41, 3
      %p169 = por %p167, %p168
      %p170 = scmp.ne.s32.totalorder %s161, %s162
      %p171 = scmp.eq.s32.totalorder %s41, 0
      %p172 = por %p170, %p171
      %p173 = scmp.ne.s32.totalorder %s161, %s162
      %p174 = scmp.eq.s32.totalorder %s42, 3
      %p175 = por %p173, %p174
      %p177 = scmp.ne.s32.totalorder %s162, %s176
      %p178 = scmp.eq.s32.totalorder %s42, 0
      %p179 = por %p177, %p178
      %s181 = sadd.s32 %s180, 1
      %p184 = scmp.eq.s32.totalorder %s36, 3
      %p185 = scmp.ne.s32.totalorder %s180, %s182
      %p186 = scmp.eq.s32.totalorder %s36, 0
      %p187 = por %p185, %p186
      %p188 = scmp.ne.s32.totalorder %s180, %s182
      %p189 = scmp.eq.s32.totalorder %s41, 3
      %p190 = por %p188, %p189
      %p191 = scmp.ne.s32.totalorder %s182, %s183
      %p192 = scmp.eq.s32.totalorder %s41, 0
      %p193 = por %p191, %p192
      %p194 = scmp.ne.s32.totalorder %s182, %s183
      %p195 = scmp.eq.s32.totalorder %s42, 3
      %p196 = por %p194, %p195
      %p198 = scmp.ne.s32.totalorder %s183, %s197
      %p199 = scmp.eq.s32.totalorder %s42, 0
      %p200 = por %p198, %p199
      %s202 = sadd.s32 %s201, 1
      %p205 = scmp.eq.s32.totalorder %s36, 3
      %p206 = scmp.ne.s32.totalorder %s201, %s203
      %p207 = scmp.eq.s32.totalorder %s36, 0
      %p208 = por %p206, %p207
      %p209 = scmp.ne.s32.totalorder %s201, %s203
      %p210 = scmp.eq.s32.totalorder %s41, 3
      %p211 = por %p209, %p210
      %p212 = scmp.ne.s32.totalorder %s203, %s204
      %p213 = scmp.eq.s32.totalorder %s41, 0
      %p214 = por %p212, %p213
      %p215 = scmp.ne.s32.totalorder %s203, %s204
      %p216 = scmp.eq.s32.totalorder %s42, 3
      %p217 = por %p215, %p216
      %p219 = scmp.ne.s32.totalorder %s204, %s218
      %p220 = scmp.eq.s32.totalorder %s42, 0
      %p221 = por %p219, %p220
      %s223 = sadd.s32 %s222, 1
      %p226 = scmp.eq.s32.totalorder %s36, 3
      %p227 = scmp.ne.s32.totalorder %s222, %s224
      %p228 = scmp.eq.s32.totalorder %s36, 0
      %p229 = por %p227, %p228
      %p230 = scmp.ne.s32.totalorder %s222, %s224
      %p231 = scmp.eq.s32.totalorder %s41, 3
      %p232 = por %p230, %p231
      %p233 = scmp.ne.s32.totalorder %s224, %s225
      %p234 = scmp.eq.s32.totalorder %s41, 0
      %p235 = por %p233, %p234
      %p236 = scmp.ne.s32.totalorder %s224, %s225
      %p237 = scmp.eq.s32.totalorder %s42, 3
      %p238 = por %p236, %p237
      %p240 = scmp.ne.s32.totalorder %s225, %s239
      %p241 = scmp.eq.s32.totalorder %s42, 0
      %p242 = por %p240, %p241
      %s244 = sadd.s32 %s243, 1
      %p247 = scmp.eq.s32.totalorder %s36, 3
      %p248 = scmp.ne.s32.totalorder %s243, %s245
      %p249 = scmp.eq.s32.totalorder %s36, 0
      %p250 = por %p248, %p249
      %p251 = scmp.ne.s32.totalorder %s243, %s245
      %p252 = scmp.eq.s32.totalorder %s41, 3
      %p253 = por %p251, %p252
      %p254 = scmp.ne.s32.totalorder %s245, %s246
      %p255 = scmp.eq.s32.totalorder %s41, 0
      %p256 = por %p254, %p255
      %p257 = scmp.ne.s32.totalorder %s245, %s246
      %p258 = scmp.eq.s32.totalorder %s42, 3
      %p259 = por %p257, %p258
      %p261 = scmp.ne.s32.totalorder %s246, %s260
      %p262 = scmp.eq.s32.totalorder %s42, 0
      %p263 = por %p261, %p262
      %s265 = sadd.s32 %s264, 1
      %p268 = scmp.eq.s32.totalorder %s36, 3
      %p269 = scmp.ne.s32.totalorder %s264, %s266
      %p270 = scmp.eq.s32.totalorder %s36, 0
      %p271 = por %p269, %p270
      %p272 = scmp.ne.s32.totalorder %s264, %s266
      %p273 = scmp.eq.s32.totalorder %s41, 3
      %p274 = por %p272, %p273
      %p275 = scmp.ne.s32.totalorder %s266, %s267
      %p276 = scmp.eq.s32.totalorder %s41, 0
      %p277 = por %p275, %p276
      %p278 = scmp.ne.s32.totalorder %s266, %s267
      %p279 = scmp.eq.s32.totalorder %s42, 3
      %p280 = por %p278, %p279
      %p282 = scmp.ne.s32.totalorder %s267, %s281
      %p283 = scmp.eq.s32.totalorder %s42, 0
      %p284 = por %p282, %p283
      %s286 = sadd.s32 %s285, 1
      %p289 = scmp.eq.s32.totalorder %s36, 3
      %p290 = scmp.ne.s32.totalorder %s285, %s287
      %p291 = scmp.eq.s32.totalorder %s36, 0
      %p292 = por %p290, %p291
      %p293 = scmp.ne.s32.totalorder %s285, %s287
      %p294 = scmp.eq.s32.totalorder %s41, 3
      %p295 = por %p293, %p294
      %p296 = scmp.ne.s32.totalorder %s287, %s288
      %p297 = scmp.eq.s32.totalorder %s41, 0
      %p298 = por %p296, %p297
      %p299 = scmp.ne.s32.totalorder %s287, %s288
      %p300 = scmp.eq.s32.totalorder %s42, 3
      %p301 = por %p299, %p300
      %p303 = scmp.ne.s32.totalorder %s288, %s302
      %p304 = scmp.eq.s32.totalorder %s42, 0
      %p305 = por %p303, %p304
      %s307 = sadd.s32 %s306, 1
      %p310 = scmp.eq.s32.totalorder %s36, 3
      %p311 = scmp.ne.s32.totalorder %s306, %s308
      %p312 = scmp.eq.s32.totalorder %s36, 0
      %p313 = por %p311, %p312
      %p314 = scmp.ne.s32.totalorder %s306, %s308
      %p315 = scmp.eq.s32.totalorder %s41, 3
      %p316 = por %p314, %p315
      %p317 = scmp.ne.s32.totalorder %s308, %s309
      %p318 = scmp.eq.s32.totalorder %s41, 0
      %p319 = por %p317, %p318
      %p320 = scmp.ne.s32.totalorder %s308, %s309
      %p321 = scmp.eq.s32.totalorder %s42, 3
      %p322 = por %p320, %p321
      %p324 = scmp.ne.s32.totalorder %s309, %s323
      %p325 = scmp.eq.s32.totalorder %s42, 0
      %p326 = por %p324, %p325
      %s328 = sadd.s32 %s327, 1
      %p331 = scmp.eq.s32.totalorder %s36, 3
      %p332 = scmp.ne.s32.totalorder %s327, %s329
      %p333 = scmp.eq.s32.totalorder %s36, 0
      %p334 = por %p332, %p333
      %p335 = scmp.ne.s32.totalorder %s327, %s329
      %p336 = scmp.eq.s32.totalorder %s41, 3
      %p337 = por %p335, %p336
      %p338 = scmp.ne.s32.totalorder %s329, %s330
      %p339 = scmp.eq.s32.totalorder %s41, 0
      %p340 = por %p338, %p339
      %p341 = scmp.ne.s32.totalorder %s329, %s330
      %p342 = scmp.eq.s32.totalorder %s42, 3
      %p343 = por %p341, %p342
      %p345 = scmp.ne.s32.totalorder %s330, %s344
      %p346 = scmp.eq.s32.totalorder %s42, 0
      %p347 = por %p345, %p346
      %s349 = sadd.s32 %s348, 1
      %p352 = scmp.eq.s32.totalorder %s36, 3
      %p353 = scmp.ne.s32.totalorder %s348, %s350
      %p354 = scmp.eq.s32.totalorder %s36, 0
      %p355 = por %p353, %p354
      %p356 = scmp.ne.s32.totalorder %s348, %s350
      %p357 = scmp.eq.s32.totalorder %s41, 3
      %p358 = por %p356, %p357
      %p359 = scmp.ne.s32.totalorder %s350, %s351
      %p360 = scmp.eq.s32.totalorder %s41, 0
      %p361 = por %p359, %p360
      %p362 = scmp.ne.s32.totalorder %s350, %s351
      %p363 = scmp.eq.s32.totalorder %s42, 3
      %p364 = por %p362, %p363
      %p366 = scmp.ne.s32.totalorder %s351, %s365
      %p367 = scmp.eq.s32.totalorder %s42, 0
      %p368 = por %p366, %p367
      %s370 = sadd.s32 %s369, 1
      %p373 = scmp.eq.s32.totalorder %s36, 3
      %p374 = scmp.ne.s32.totalorder %s369, %s371
      %p375 = scmp.eq.s32.totalorder %s36, 0
      %p376 = por %p374, %p375
      %p377 = scmp.ne.s32.totalorder %s369, %s371
      %p378 = scmp.eq.s32.totalorder %s41, 3
      %p379 = por %p377, %p378
      %p380 = scmp.ne.s32.totalorder %s371, %s372
      %p381 = scmp.eq.s32.totalorder %s41, 0
      %p382 = por %p380, %p381
      %p383 = scmp.ne.s32.totalorder %s371, %s372
      %p384 = scmp.eq.s32.totalorder %s42, 3
      %p385 = por %p383, %p384
      %p387 = scmp.ne.s32.totalorder %s372, %s386
      %p388 = scmp.eq.s32.totalorder %s42, 0
      %p389 = por %p387, %p388
      %s391 = sadd.s32 %s390, 1
      %p394 = scmp.eq.s32.totalorder %s36, 3
      %p395 = scmp.ne.s32.totalorder %s390, %s392
      %p396 = scmp.eq.s32.totalorder %s36, 0
      %p397 = por %p395, %p396
      %p398 = scmp.ne.s32.totalorder %s390, %s392
      %p399 = scmp.eq.s32.totalorder %s41, 3
      %p400 = por %p398, %p399
      %p401 = scmp.ne.s32.totalorder %s392, %s393
      %p402 = scmp.eq.s32.totalorder %s41, 0
      %p403 = por %p401, %p402
      %p404 = scmp.ne.s32.totalorder %s392, %s393
      %p405 = scmp.eq.s32.totalorder %s42, 3
      %p406 = por %p404, %p405
      %p408 = scmp.ne.s32.totalorder %s393, %s407
      %p409 = scmp.eq.s32.totalorder %s42, 0
      %p410 = por %p408, %p409
      %s412 = sadd.s32 %s411, 1
      %p415 = scmp.eq.s32.totalorder %s36, 3
      %p416 = scmp.ne.s32.totalorder %s411, %s413
      %p417 = scmp.eq.s32.totalorder %s36, 0
      %p418 = por %p416, %p417
      %p419 = scmp.ne.s32.totalorder %s411, %s413
      %p420 = scmp.eq.s32.totalorder %s41, 3
      %p421 = por %p419, %p420
      %p422 = scmp.ne.s32.totalorder %s413, %s414
      %p423 = scmp.eq.s32.totalorder %s41, 0
      %p424 = por %p422, %p423
      %p425 = scmp.ne.s32.totalorder %s413, %s414
      %p426 = scmp.eq.s32.totalorder %s42, 3
      %p427 = por %p425, %p426
      %p429 = scmp.ne.s32.totalorder %s414, %s428
      %p430 = scmp.eq.s32.totalorder %s42, 0
      %p431 = por %p429, %p430
      %s433 = sadd.s32 %s432, 1
      %p436 = scmp.eq.s32.totalorder %s36, 3
      %p437 = scmp.ne.s32.totalorder %s432, %s434
      %p438 = scmp.eq.s32.totalorder %s36, 0
      %p439 = por %p437, %p438
      %p440 = scmp.ne.s32.totalorder %s432, %s434
      %p441 = scmp.eq.s32.totalorder %s41, 3
      %p442 = por %p440, %p441
      %p443 = scmp.ne.s32.totalorder %s434, %s435
      %p444 = scmp.eq.s32.totalorder %s41, 0
      %p445 = por %p443, %p444
      %p446 = scmp.ne.s32.totalorder %s434, %s435
      %p447 = scmp.eq.s32.totalorder %s42, 3
      %p448 = por %p446, %p447
      %p450 = scmp.ne.s32.totalorder %s435, %s449
      %p451 = scmp.eq.s32.totalorder %s42, 0
      %p452 = por %p450, %p451
      %p453 = scmp.le.s32.totalorder 1, %s36
      %p454 = scmp.lt.s32.totalorder %s36, 5
      %p455 = pnand %p453, %p454
      %p456 = pneg %p455
      // Predicated region
      $region9: #{cnn_forward.3} parent=5 // pred_check
        _
      $region10: #{cnn_forward.3} parent=5 // pred_check_branch
        %458 = sbr.rel (%p455) target = $region12
      $region11: #{cnn_forward.3} parent=5 // pred_region
        %s459 = ssub.s32 %s36, 1
        // Predicated region
        $region13: #{cnn_forward.3} parent=11 // pred_check
          %p460 = pneg %p109
        $region14: #{cnn_forward.3} parent=11 // pred_check_branch
          %462 = sbr.rel (%p460) target = $region16
        $region15: #{cnn_forward.3} parent=11 // pred_region
          %s464 = ssub.s32 32, 32
          %465 = vsyncadd [#allocation7], %s464
          %s467 = sshll.u32 [#allocation6], 4
          %s468 = int_to_ptr.vmem [resolvable:$true] %s467
          %470 = dma.hbm_to_vmem [thread:$0]  %s2, 32, %s468, [#allocation7]
        $region16: #{cnn_forward.3} parent=11 // pred_fallthru
          _
        // Predicated region
        $region17: #{cnn_forward.3} parent=11 // pred_check
          %p471 = pneg %p130
        $region18: #{cnn_forward.3} parent=11 // pred_check_branch
          %473 = sbr.rel (%p471) target = $region20
        $region19: #{cnn_forward.3} parent=11 // pred_region
          %s475 = ssub.s32 32, 32
          %476 = vsyncadd [#allocation7], %s475
          %s478 = sshll.u32 [#allocation8], 4
          %s479 = int_to_ptr.vmem [resolvable:$true] %s478
          %481 = dma.hbm_to_vmem [thread:$0]  %s3, 32, %s479, [#allocation7]
        $region20: #{cnn_forward.3} parent=11 // pred_fallthru
          _
        // Predicated region
        $region21: #{cnn_forward.3} parent=11 // pred_check
          %p482 = pneg %p151
        $region22: #{cnn_forward.3} parent=11 // pred_check_branch
          %484 = sbr.rel (%p482) target = $region24
        $region23: #{cnn_forward.3} parent=11 // pred_region
          %s486 = ssub.s32 2048, 2048
          %487 = vsyncadd [#allocation10], %s486
          %s488 = sshll.u32 [#allocation9], 4
          %s489 = int_to_ptr.vmem [resolvable:$true] %s488
          %494 = dma.hbm_to_vmem [thread:$0]  %s4, 2048, %s489, [#allocation10], 64, 64, 4
        $region24: #{cnn_forward.3} parent=11 // pred_fallthru
          _
        // Predicated region
        $region25: #{cnn_forward.3} parent=11 // pred_check
          %p495 = pneg %p172
        $region26: #{cnn_forward.3} parent=11 // pred_check_branch
          %497 = sbr.rel (%p495) target = $region28
        $region27: #{cnn_forward.3} parent=11 // pred_region
          %s499 = ssub.s32 16, 16
          %500 = vsyncadd [#allocation10], %s499
          %s502 = sshll.u32 [#allocation11], 4
          %s503 = int_to_ptr.vmem [resolvable:$true] %s502
          %505 = dma.hbm_to_vmem [thread:$0]  %s5, 16, %s503, [#allocation10]
        $region28: #{cnn_forward.3} parent=11 // pred_fallthru
          _
        // Predicated region
        $region29: #{cnn_forward.3} parent=11 // pred_check
          %p506 = pneg %p193
        $region30: #{cnn_forward.3} parent=11 // pred_check_branch
          %508 = sbr.rel (%p506) target = $region32
        $region31: #{cnn_forward.3} parent=11 // pred_region
          %s510 = ssub.s32 16, 16
          %511 = vsyncadd [#allocation13], %s510
          %s513 = sshll.u32 [#allocation12], 4
          %s514 = int_to_ptr.vmem [resolvable:$true] %s513
          %516 = dma.hbm_to_vmem [thread:$0]  %s6, 16, %s514, [#allocation13]
        $region32: #{cnn_forward.3} parent=11 // pred_fallthru
          _
        // Predicated region
        $region33: #{cnn_forward.3} parent=11 // pred_check
          %p517 = pneg %p214
        $region34: #{cnn_forward.3} parent=11 // pred_check_branch
          %519 = sbr.rel (%p517) target = $region36
        $region35: #{cnn_forward.3} parent=11 // pred_region
          _
        $region36: #{cnn_forward.3} parent=11 // pred_fallthru
          _
        // Predicated region
        $region37: #{cnn_forward.3} parent=11 // pred_check
          %p520 = pneg %p235
        $region38: #{cnn_forward.3} parent=11 // pred_check_branch
          %522 = sbr.rel (%p520) target = $region40
        $region39: #{cnn_forward.3} parent=11 // pred_region
          %s524 = ssub.s32 16, 16
          %525 = vsyncadd [#allocation13], %s524
          %s527 = sshll.u32 [#allocation14], 4
          %s528 = int_to_ptr.vmem [resolvable:$true] %s527
          %530 = dma.hbm_to_vmem [thread:$0]  %s8, 16, %s528, [#allocation13]
        $region40: #{cnn_forward.3} parent=11 // pred_fallthru
          _
        // Predicated region
        $region41: #{cnn_forward.3} parent=11 // pred_check
          %p531 = pneg %p256
        $region42: #{cnn_forward.3} parent=11 // pred_check_branch
          %533 = sbr.rel (%p531) target = $region44
        $region43: #{cnn_forward.3} parent=11 // pred_region
          %s535 = ssub.s32 16, 16
          %536 = vsyncadd [#allocation16], %s535
          %s538 = sshll.u32 [#allocation15], 4
          %s539 = int_to_ptr.vmem [resolvable:$true] %s538
          %541 = dma.hbm_to_vmem [thread:$0]  %s9, 16, %s539, [#allocation16]
        $region44: #{cnn_forward.3} parent=11 // pred_fallthru
          _
        // Predicated region
        $region45: #{cnn_forward.3} parent=11 // pred_check
          %p542 = pneg %p277
        $region46: #{cnn_forward.3} parent=11 // pred_check_branch
          %544 = sbr.rel (%p542) target = $region48
        $region47: #{cnn_forward.3} parent=11 // pred_region
          %s546 = ssub.s32 512, 512
          %547 = vsyncadd [#allocation16], %s546
          %s548 = sshll.u32 [#allocation17], 4
          %s549 = int_to_ptr.vmem [resolvable:$true] %s548
          %554 = dma.hbm_to_vmem [thread:$0]  %s10, 512, %s549, [#allocation16], 64, 64, 4
        $region48: #{cnn_forward.3} parent=11 // pred_fallthru
          _
        // Predicated region
        $region49: #{cnn_forward.3} parent=11 // pred_check
          %p555 = pneg %p298
        $region50: #{cnn_forward.3} parent=11 // pred_check_branch
          %557 = sbr.rel (%p555) target = $region52
        $region51: #{cnn_forward.3} parent=11 // pred_region
          %s559 = ssub.s32 16, 16
          %560 = vsyncadd [#allocation19], %s559
          %s562 = sshll.u32 [#allocation18], 4
          %s563 = int_to_ptr.vmem [resolvable:$true] %s562
          %565 = dma.hbm_to_vmem [thread:$0]  %s11, 16, %s563, [#allocation19]
        $region52: #{cnn_forward.3} parent=11 // pred_fallthru
          _
        // Predicated region
        $region53: #{cnn_forward.3} parent=11 // pred_check
          %p566 = pneg %p319
        $region54: #{cnn_forward.3} parent=11 // pred_check_branch
          %568 = sbr.rel (%p566) target = $region56
        $region55: #{cnn_forward.3} parent=11 // pred_region
          %s570 = ssub.s32 512, 512
          %571 = vsyncadd [#allocation19], %s570
          %s572 = sshll.u32 [#allocation20], 4
          %s573 = int_to_ptr.vmem [resolvable:$true] %s572
          %578 = dma.hbm_to_vmem [thread:$0]  %s12, 512, %s573, [#allocation19], 64, 64, 4
        $region56: #{cnn_forward.3} parent=11 // pred_fallthru
          _
        // Predicated region
        $region57: #{cnn_forward.3} parent=11 // pred_check
          %p579 = pneg %p340
        $region58: #{cnn_forward.3} parent=11 // pred_check_branch
          %581 = sbr.rel (%p579) target = $region60
        $region59: #{cnn_forward.3} parent=11 // pred_region
          %s583 = ssub.s32 16, 16
          %584 = vsyncadd [#allocation22], %s583
          %s586 = sshll.u32 [#allocation21], 4
          %s587 = int_to_ptr.vmem [resolvable:$true] %s586
          %589 = dma.hbm_to_vmem [thread:$0]  %s13, 16, %s587, [#allocation22]
        $region60: #{cnn_forward.3} parent=11 // pred_fallthru
          _
        // Predicated region
        $region61: #{cnn_forward.3} parent=11 // pred_check
          %p590 = pneg %p361
        $region62: #{cnn_forward.3} parent=11 // pred_check_branch
          %592 = sbr.rel (%p590) target = $region64
        $region63: #{cnn_forward.3} parent=11 // pred_region
          %s594 = ssub.s32 512, 512
          %595 = vsyncadd [#allocation22], %s594
          %s596 = sshll.u32 [#allocation23], 4
          %s597 = int_to_ptr.vmem [resolvable:$true] %s596
          %602 = dma.hbm_to_vmem [thread:$0]  %s14, 512, %s597, [#allocation22], 64, 64, 4
        $region64: #{cnn_forward.3} parent=11 // pred_fallthru
          _
        // Predicated region
        $region65: #{cnn_forward.3} parent=11 // pred_check
          %p603 = pneg %p382
        $region66: #{cnn_forward.3} parent=11 // pred_check_branch
          %605 = sbr.rel (%p603) target = $region68
        $region67: #{cnn_forward.3} parent=11 // pred_region
          %s607 = ssub.s32 16, 16
          %608 = vsyncadd [#allocation25], %s607
          %s610 = sshll.u32 [#allocation24], 4
          %s611 = int_to_ptr.vmem [resolvable:$true] %s610
          %613 = dma.hbm_to_vmem [thread:$0]  %s15, 16, %s611, [#allocation25]
        $region68: #{cnn_forward.3} parent=11 // pred_fallthru
          _
        // Predicated region
        $region69: #{cnn_forward.3} parent=11 // pred_check
          %p614 = pneg %p403
        $region70: #{cnn_forward.3} parent=11 // pred_check_branch
          %616 = sbr.rel (%p614) target = $region72
        $region71: #{cnn_forward.3} parent=11 // pred_region
          _
        $region72: #{cnn_forward.3} parent=11 // pred_fallthru
          _
        // Predicated region
        $region73: #{cnn_forward.3} parent=11 // pred_check
          %p617 = pneg %p424
        $region74: #{cnn_forward.3} parent=11 // pred_check_branch
          %619 = sbr.rel (%p617) target = $region76
        $region75: #{cnn_forward.3} parent=11 // pred_region
          _
        $region76: #{cnn_forward.3} parent=11 // pred_fallthru
          _
      $region12: #{cnn_forward.3} parent=5 // pred_fallthru
        _
      %p620 = scmp.lt.s32.totalorder %s36, 4
      // Predicated region
      $region77: #{cnn_forward.3} parent=5 // pred_check
        %p621 = pneg %p620
      $region78: #{cnn_forward.3} parent=5 // pred_check_branch
        %623 = sbr.rel (%p621) target = $region80
      $region79: #{cnn_forward.3} parent=5 // pred_region
        // Predicated region
        $region81: #{cnn_forward.3} parent=79 // pred_check
          %p624 = pneg %p56
        $region82: #{cnn_forward.3} parent=79 // pred_check_branch
          %626 = sbr.rel (%p624) target = $region84
        $region83: #{cnn_forward.3} parent=79 // pred_region
          %s627 = smul.u32 37, %s36
          %p628 = scmp.lt.s32.totalorder %s627, 147
          %s629 = scalar_select %p628, %s627, 147
          %s630 = smul.addr %s629, 2
          %s631 = scalar_lea.vmem %s0, %s630
          %s632 = smul.u32 37, %s36
        $region84: #{cnn_forward.3} parent=79 // pred_fallthru
          _
        // Predicated region
        $region85: #{cnn_forward.3} parent=79 // pred_check
          %p633 = pneg %p82
        $region86: #{cnn_forward.3} parent=79 // pred_check_branch
          %635 = sbr.rel (%p633) target = $region88
        $region87: #{cnn_forward.3} parent=79 // pred_region
          %s636 = sand.u32 %s72, 1
          %s637 = scalar_lea.sflag [#allocation5], %s636
          %s638 = sand.u32 %s72, 1
          %s639 = smul.addr %s638, 4736
          %s640 = scalar_lea.vmem [#allocation4], %s639
          %s641 = smul.u32 592, %s36
          %s643 = ssub.s32 75776, 75776
          %644 = vsyncadd %s637, %s643
          %s645 = smul.addr %s641, 2
          %s646 = smul.addr %s645, 64
          %s647 = scalar_lea.hbm %s1, %s646
          %s648 = sshll.u32 %s640, 4
          %s649 = int_to_ptr.vmem [resolvable:$true] %s648
          %654 = dma.hbm_to_vmem [thread:$0]  %s647, 75776, %s649, %s637, 128, 128, 8
        $region88: #{cnn_forward.3} parent=79 // pred_fallthru
          _
      $region80: #{cnn_forward.3} parent=5 // pred_fallthru
        _
      %p655 = scmp.le.s32.totalorder 1, %s36
      %p656 = scmp.lt.s32.totalorder %s36, 5
      %p657 = pnand %p655, %p656
      %p658 = pneg %p657
      // Predicated region
      $region89: #{cnn_forward.3} parent=5 // pred_check
        _
      $region90: #{cnn_forward.3} parent=5 // pred_check_branch
        %660 = sbr.rel (%p657) target = $region92
      $region91: #{cnn_forward.3} parent=5 // pred_region
        %s661 = ssub.s32 %s36, 1
        %s662 = sand.u32 %s75, 1
        %s663 = scalar_lea.sflag [#allocation5], %s662
        %s664 = sand.u32 %s75, 1
        %s665 = smul.addr %s664, 4736
        %s666 = scalar_lea.vmem [#allocation4], %s665
        // Predicated region
        $region93: #{cnn_forward.3} parent=91 // pred_check
          %p667 = pneg %p88
        $region94: #{cnn_forward.3} parent=91 // pred_check_branch
          %669 = sbr.rel (%p667) target = $region96
        $region95: #{cnn_forward.3} parent=91 // pred_region
          %670 = dma.done %s663, 75776
        $region96: #{cnn_forward.3} parent=91 // pred_fallthru
          _
        // Predicated region
        $region97: #{cnn_forward.3} parent=91 // pred_check
          %p671 = pneg %p109
        $region98: #{cnn_forward.3} parent=91 // pred_check_branch
          %673 = sbr.rel (%p671) target = $region100
        $region99: #{cnn_forward.3} parent=91 // pred_region
          %674 = dma.done [#allocation7], 32
        $region100: #{cnn_forward.3} parent=91 // pred_fallthru
          _
        // Predicated region
        $region101: #{cnn_forward.3} parent=91 // pred_check
          %p675 = pneg %p130
        $region102: #{cnn_forward.3} parent=91 // pred_check_branch
          %677 = sbr.rel (%p675) target = $region104
        $region103: #{cnn_forward.3} parent=91 // pred_region
          %678 = dma.done [#allocation7], 32
        $region104: #{cnn_forward.3} parent=91 // pred_fallthru
          _
        // Predicated region
        $region105: #{cnn_forward.3} parent=91 // pred_check
          %p679 = pneg %p151
        $region106: #{cnn_forward.3} parent=91 // pred_check_branch
          %681 = sbr.rel (%p679) target = $region108
        $region107: #{cnn_forward.3} parent=91 // pred_region
          %682 = dma.done [#allocation10], 2048
        $region108: #{cnn_forward.3} parent=91 // pred_fallthru
          _
        // Predicated region
        $region109: #{cnn_forward.3} parent=91 // pred_check
          %p683 = pneg %p172
        $region110: #{cnn_forward.3} parent=91 // pred_check_branch
          %685 = sbr.rel (%p683) target = $region112
        $region111: #{cnn_forward.3} parent=91 // pred_region
          %686 = dma.done [#allocation10], 16
        $region112: #{cnn_forward.3} parent=91 // pred_fallthru
          _
        // Predicated region
        $region113: #{cnn_forward.3} parent=91 // pred_check
          %p687 = pneg %p193
        $region114: #{cnn_forward.3} parent=91 // pred_check_branch
          %689 = sbr.rel (%p687) target = $region116
        $region115: #{cnn_forward.3} parent=91 // pred_region
          %690 = dma.done [#allocation13], 16
        $region116: #{cnn_forward.3} parent=91 // pred_fallthru
          _
        // Predicated region
        $region117: #{cnn_forward.3} parent=91 // pred_check
          %p691 = pneg %p235
        $region118: #{cnn_forward.3} parent=91 // pred_check_branch
          %693 = sbr.rel (%p691) target = $region120
        $region119: #{cnn_forward.3} parent=91 // pred_region
          %694 = dma.done [#allocation13], 16
        $region120: #{cnn_forward.3} parent=91 // pred_fallthru
          _
        // Predicated region
        $region121: #{cnn_forward.3} parent=91 // pred_check
          %p695 = pneg %p256
        $region122: #{cnn_forward.3} parent=91 // pred_check_branch
          %697 = sbr.rel (%p695) target = $region124
        $region123: #{cnn_forward.3} parent=91 // pred_region
          %698 = dma.done [#allocation16], 16
        $region124: #{cnn_forward.3} parent=91 // pred_fallthru
          _
        // Predicated region
        $region125: #{cnn_forward.3} parent=91 // pred_check
          %p699 = pneg %p277
        $region126: #{cnn_forward.3} parent=91 // pred_check_branch
          %701 = sbr.rel (%p699) target = $region128
        $region127: #{cnn_forward.3} parent=91 // pred_region
          %702 = dma.done [#allocation16], 512
        $region128: #{cnn_forward.3} parent=91 // pred_fallthru
          _
        // Predicated region
        $region129: #{cnn_forward.3} parent=91 // pred_check
          %p703 = pneg %p298
        $region130: #{cnn_forward.3} parent=91 // pred_check_branch
          %705 = sbr.rel (%p703) target = $region132
        $region131: #{cnn_forward.3} parent=91 // pred_region
          %706 = dma.done [#allocation19], 16
        $region132: #{cnn_forward.3} parent=91 // pred_fallthru
          _
        // Predicated region
        $region133: #{cnn_forward.3} parent=91 // pred_check
          %p707 = pneg %p319
        $region134: #{cnn_forward.3} parent=91 // pred_check_branch
          %709 = sbr.rel (%p707) target = $region136
        $region135: #{cnn_forward.3} parent=91 // pred_region
          %710 = dma.done [#allocation19], 512
        $region136: #{cnn_forward.3} parent=91 // pred_fallthru
          _
        // Predicated region
        $region137: #{cnn_forward.3} parent=91 // pred_check
          %p711 = pneg %p340
        $region138: #{cnn_forward.3} parent=91 // pred_check_branch
          %713 = sbr.rel (%p711) target = $region140
        $region139: #{cnn_forward.3} parent=91 // pred_region
          %714 = dma.done [#allocation22], 16
        $region140: #{cnn_forward.3} parent=91 // pred_fallthru
          _
        // Predicated region
        $region141: #{cnn_forward.3} parent=91 // pred_check
          %p715 = pneg %p361
        $region142: #{cnn_forward.3} parent=91 // pred_check_branch
          %717 = sbr.rel (%p715) target = $region144
        $region143: #{cnn_forward.3} parent=91 // pred_region
          %718 = dma.done [#allocation22], 512
        $region144: #{cnn_forward.3} parent=91 // pred_fallthru
          _
        // Predicated region
        $region145: #{cnn_forward.3} parent=91 // pred_check
          %p719 = pneg %p382
        $region146: #{cnn_forward.3} parent=91 // pred_check_branch
          %721 = sbr.rel (%p719) target = $region148
        $region147: #{cnn_forward.3} parent=91 // pred_region
          %722 = dma.done [#allocation25], 16
        $region148: #{cnn_forward.3} parent=91 // pred_fallthru
          _
        %s723 = smul.u32 37, %s41
        %p724 = scmp.lt.s32.totalorder %s723, 147
        %s725 = scalar_select %p724, %s723, 147
        %s726 = smul.addr %s725, 2
        %s727 = scalar_lea.vmem %s0, %s726
        %p728 = pneg %p62
        %p729 = pneg %p59
        %s730 = sand.u32 %s75, 1
        %s731 = scalar_lea.sflag [#allocation5], %s730
        %s732 = sand.u32 %s75, 1
        %s733 = smul.addr %s732, 4736
        %s734 = scalar_lea.vmem [#allocation4], %s733
        %p735 = pneg %p88
        %p736 = pneg %p85
        %p737 = pneg %p109
        %p738 = pneg %p106
        %p739 = pneg %p130
        %p740 = pneg %p127
        %p741 = pneg %p151
        %p742 = pneg %p148
        %p743 = pneg %p172
        %p744 = pneg %p169
        %p745 = pneg %p193
        %p746 = pneg %p190
        %p747 = pneg %p214
        %p748 = pneg %p211
        %p749 = pneg %p235
        %p750 = pneg %p232
        %p751 = pneg %p256
        %p752 = pneg %p253
        %p753 = pneg %p277
        %p754 = pneg %p274
        %p755 = pneg %p298
        %p756 = pneg %p295
        %p757 = pneg %p319
        %p758 = pneg %p316
        %p759 = pneg %p340
        %p760 = pneg %p337
        %p761 = pneg %p361
        %p762 = pneg %p358
        %p763 = pneg %p382
        %p764 = pneg %p379
        %p765 = pneg %p403
        %p766 = pneg %p400
        %p767 = pneg %p424
        %p768 = pneg %p421
        %p769 = pneg %p445
        %p770 = pneg %p442
        %s771 = smul.u32 37, %s41
        %p772 = scmp.lt.s32.totalorder %s771, 147
        %s773 = scalar_select %p772, %s771, 147
        %s774 = smul.addr %s773, 2
        %s775 = scalar_lea.vmem %s0, %s774
        %s776 = smul.u32 37, %s41
        %s777 = smul.u32 592, %s41
        %p779 = scmp.eq.s32.totalorder %s41, 0
        // Predicated region
        $region149: #{cnn_forward.3} parent=91 // pred_check
          %p780 = pneg %p779
        $region150: #{cnn_forward.3} parent=91 // pred_check_branch
          %782 = sbr.rel (%p780) target = $region152
        $region151: #{cnn_forward.3} parent=91 // pred_region
          %783 = vst [vmem:[#allocation2] sm:$0xff] 0.0
        $region152: #{cnn_forward.3} parent=91 // pred_fallthru
          _
        %v784 = vld [vmem:[#allocation2] sm:$0xff]
        %v785 = vld [vmem:[%s775] sm:$0xff]
        %v786 = vld [vmem:[%s775 + $0x8] sm:$0xff]
        %v787 = vld [vmem:[%s775 + $0x10] sm:$0xff]
        %v788 = vld [vmem:[%s775 + $0x18] sm:$0xff]
        %v789 = vld [vmem:[%s775 + $0x20] sm:$0xff]
        %v790 = vld [vmem:[%s775 + $0x28] sm:$0xff]
        %v791 = vld [vmem:[%s775 + $0x30] sm:$0xff]
        %v792 = vld [vmem:[%s775 + $0x38] sm:$0xff]
        %v793 = vld [vmem:[%s775 + $0x40] sm:$0xff]
        %v794 = vld [vmem:[%s775 + $0x48] sm:$0x3]
        %v795 = vld [vmem:[%s666] sm:$0xff]
        %v796 = vld [vmem:[%s666 + $0x8] sm:$0xff]
        %v797 = vld [vmem:[%s666 + $0x10] sm:$0xff]
        %v798 = vld [vmem:[%s666 + $0x18] sm:$0xff]
        %v799 = vld [vmem:[%s666 + $0x20] sm:$0xff]
        %v800 = vld [vmem:[%s666 + $0x28] sm:$0xff]
        %v801 = vld [vmem:[%s666 + $0x30] sm:$0xff]
        %v802 = vld [vmem:[%s666 + $0x38] sm:$0xff]
        %v803 = vld [vmem:[%s666 + $0x40] sm:$0xff]
        %v804 = vld [vmem:[%s666 + $0x48] sm:$0xff]
        %v805 = vld [vmem:[%s666 + $0x50] sm:$0xff]
        %v806 = vld [vmem:[%s666 + $0x58] sm:$0xff]
        %v807 = vld [vmem:[%s666 + $0x60] sm:$0xff]
        %v808 = vld [vmem:[%s666 + $0x68] sm:$0xff]
        %v809 = vld [vmem:[%s666 + $0x70] sm:$0xff]
        %v810 = vld [vmem:[%s666 + $0x78] sm:$0xff]
        %v811 = vld [vmem:[%s666 + $0x80] sm:$0xff]
        %v812 = vld [vmem:[%s666 + $0x88] sm:$0xff]
        %v813 = vld [vmem:[%s666 + $0x90] sm:$0xff]
        %v814 = vld [vmem:[%s666 + $0x98] sm:$0xff]
        %v815 = vld [vmem:[%s666 + $0xa0] sm:$0xff]
        %v816 = vld [vmem:[%s666 + $0xa8] sm:$0xff]
        %v817 = vld [vmem:[%s666 + $0xb0] sm:$0xff]
        %v818 = vld [vmem:[%s666 + $0xb8] sm:$0xff]
        %v819 = vld [vmem:[%s666 + $0xc0] sm:$0xff]
        %v820 = vld [vmem:[%s666 + $0xc8] sm:$0xff]
        %v821 = vld [vmem:[%s666 + $0xd0] sm:$0xff]
        %v822 = vld [vmem:[%s666 + $0xd8] sm:$0xff]
        %v823 = vld [vmem:[%s666 + $0xe0] sm:$0xff]
        %v824 = vld [vmem:[%s666 + $0xe8] sm:$0xff]
        %v825 = vld [vmem:[%s666 + $0xf0] sm:$0xff]
        %v826 = vld [vmem:[%s666 + $0xf8] sm:$0xff]
        %v827 = vld [vmem:[%s666 + $0x100] sm:$0xff]
        %v828 = vld [vmem:[%s666 + $0x108] sm:$0xff]
        %v829 = vld [vmem:[%s666 + $0x110] sm:$0xff]
        %v830 = vld [vmem:[%s666 + $0x118] sm:$0xff]
        %v831 = vld [vmem:[%s666 + $0x120] sm:$0xff]
        %v832 = vld [vmem:[%s666 + $0x128] sm:$0xff]
        %v833 = vld [vmem:[%s666 + $0x130] sm:$0xff]
        %v834 = vld [vmem:[%s666 + $0x138] sm:$0xff]
        %v835 = vld [vmem:[%s666 + $0x140] sm:$0xff]
        %v836 = vld [vmem:[%s666 + $0x148] sm:$0xff]
        %v837 = vld [vmem:[%s666 + $0x150] sm:$0xff]
        %v838 = vld [vmem:[%s666 + $0x158] sm:$0xff]
        %v839 = vld [vmem:[%s666 + $0x160] sm:$0xff]
        %v840 = vld [vmem:[%s666 + $0x168] sm:$0xff]
        %v841 = vld [vmem:[%s666 + $0x170] sm:$0xff]
        %v842 = vld [vmem:[%s666 + $0x178] sm:$0xff]
        %v843 = vld [vmem:[%s666 + $0x180] sm:$0xff]
        %v844 = vld [vmem:[%s666 + $0x188] sm:$0xff]
        %v845 = vld [vmem:[%s666 + $0x190] sm:$0xff]
        %v846 = vld [vmem:[%s666 + $0x198] sm:$0xff]
        %v847 = vld [vmem:[%s666 + $0x1a0] sm:$0xff]
        %v848 = vld [vmem:[%s666 + $0x1a8] sm:$0xff]
        %v849 = vld [vmem:[%s666 + $0x1b0] sm:$0xff]
        %v850 = vld [vmem:[%s666 + $0x1b8] sm:$0xff]
        %v851 = vld [vmem:[%s666 + $0x1c0] sm:$0xff]
        %v852 = vld [vmem:[%s666 + $0x1c8] sm:$0xff]
        %v853 = vld [vmem:[%s666 + $0x1d0] sm:$0xff]
        %v854 = vld [vmem:[%s666 + $0x1d8] sm:$0xff]
        %v855 = vld [vmem:[%s666 + $0x1e0] sm:$0xff]
        %v856 = vld [vmem:[%s666 + $0x1e8] sm:$0xff]
        %v857 = vld [vmem:[%s666 + $0x1f0] sm:$0xff]
        %v858 = vld [vmem:[%s666 + $0x1f8] sm:$0xff]
        %v859 = vld [vmem:[%s666 + $0x200] sm:$0xff]
        %v860 = vld [vmem:[%s666 + $0x208] sm:$0xff]
        %v861 = vld [vmem:[%s666 + $0x210] sm:$0xff]
        %v862 = vld [vmem:[%s666 + $0x218] sm:$0xff]
        %v863 = vld [vmem:[%s666 + $0x220] sm:$0xff]
        %v864 = vld [vmem:[%s666 + $0x228] sm:$0xff]
        %v865 = vld [vmem:[%s666 + $0x230] sm:$0xff]
        %v866 = vld [vmem:[%s666 + $0x238] sm:$0xff]
        %v867 = vld [vmem:[%s666 + $0x240] sm:$0xff]
        %v868 = vld [vmem:[%s666 + $0x248] sm:$0xff]
        %v869 = vld [vmem:[%s666 + $0x250] sm:$0xff]
        %v870 = vld [vmem:[%s666 + $0x258] sm:$0xff]
        %v871 = vld [vmem:[%s666 + $0x260] sm:$0xff]
        %v872 = vld [vmem:[%s666 + $0x268] sm:$0xff]
        %v873 = vld [vmem:[%s666 + $0x270] sm:$0xff]
        %v874 = vld [vmem:[%s666 + $0x278] sm:$0xff]
        %v875 = vld [vmem:[%s666 + $0x280] sm:$0xff]
        %v876 = vld [vmem:[%s666 + $0x288] sm:$0xff]
        %v877 = vld [vmem:[%s666 + $0x290] sm:$0xff]
        %v878 = vld [vmem:[%s666 + $0x298] sm:$0xff]
        %v879 = vld [vmem:[%s666 + $0x2a0] sm:$0xff]
        %v880 = vld [vmem:[%s666 + $0x2a8] sm:$0xff]
        %v881 = vld [vmem:[%s666 + $0x2b0] sm:$0xff]
        %v882 = vld [vmem:[%s666 + $0x2b8] sm:$0xff]
        %v883 = vld [vmem:[%s666 + $0x2c0] sm:$0xff]
        %v884 = vld [vmem:[%s666 + $0x2c8] sm:$0xff]
        %v885 = vld [vmem:[%s666 + $0x2d0] sm:$0xff]
        %v886 = vld [vmem:[%s666 + $0x2d8] sm:$0xff]
        %v887 = vld [vmem:[%s666 + $0x2e0] sm:$0xff]
        %v888 = vld [vmem:[%s666 + $0x2e8] sm:$0xff]
        %v889 = vld [vmem:[%s666 + $0x2f0] sm:$0xff]
        %v890 = vld [vmem:[%s666 + $0x2f8] sm:$0xff]
        %v891 = vld [vmem:[%s666 + $0x300] sm:$0xff]
        %v892 = vld [vmem:[%s666 + $0x308] sm:$0xff]
        %v893 = vld [vmem:[%s666 + $0x310] sm:$0xff]
        %v894 = vld [vmem:[%s666 + $0x318] sm:$0xff]
        %v895 = vld [vmem:[%s666 + $0x320] sm:$0xff]
        %v896 = vld [vmem:[%s666 + $0x328] sm:$0xff]
        %v897 = vld [vmem:[%s666 + $0x330] sm:$0xff]
        %v898 = vld [vmem:[%s666 + $0x338] sm:$0xff]
        %v899 = vld [vmem:[%s666 + $0x340] sm:$0xff]
        %v900 = vld [vmem:[%s666 + $0x348] sm:$0xff]
        %v901 = vld [vmem:[%s666 + $0x350] sm:$0xff]
        %v902 = vld [vmem:[%s666 + $0x358] sm:$0xff]
        %v903 = vld [vmem:[%s666 + $0x360] sm:$0xff]
        %v904 = vld [vmem:[%s666 + $0x368] sm:$0xff]
        %v905 = vld [vmem:[%s666 + $0x370] sm:$0xff]
        %v906 = vld [vmem:[%s666 + $0x378] sm:$0xff]
        %v907 = vld [vmem:[%s666 + $0x380] sm:$0xff]
        %v908 = vld [vmem:[%s666 + $0x388] sm:$0xff]
        %v909 = vld [vmem:[%s666 + $0x390] sm:$0xff]
        %v910 = vld [vmem:[%s666 + $0x398] sm:$0xff]
        %v911 = vld [vmem:[%s666 + $0x3a0] sm:$0xff]
        %v912 = vld [vmem:[%s666 + $0x3a8] sm:$0xff]
        %v913 = vld [vmem:[%s666 + $0x3b0] sm:$0xff]
        %v914 = vld [vmem:[%s666 + $0x3b8] sm:$0xff]
        %v915 = vld [vmem:[%s666 + $0x3c0] sm:$0xff]
        %v916 = vld [vmem:[%s666 + $0x3c8] sm:$0xff]
        %v917 = vld [vmem:[%s666 + $0x3d0] sm:$0xff]
        %v918 = vld [vmem:[%s666 + $0x3d8] sm:$0xff]
        %v919 = vld [vmem:[%s666 + $0x3e0] sm:$0xff]
        %v920 = vld [vmem:[%s666 + $0x3e8] sm:$0xff]
        %v921 = vld [vmem:[%s666 + $0x3f0] sm:$0xff]
        %v922 = vld [vmem:[%s666 + $0x3f8] sm:$0xff]
        %v923 = vld [vmem:[%s666 + $0x400] sm:$0xff]
        %v924 = vld [vmem:[%s666 + $0x408] sm:$0xff]
        %v925 = vld [vmem:[%s666 + $0x410] sm:$0xff]
        %v926 = vld [vmem:[%s666 + $0x418] sm:$0xff]
        %v927 = vld [vmem:[%s666 + $0x420] sm:$0xff]
        %v928 = vld [vmem:[%s666 + $0x428] sm:$0xff]
        %v929 = vld [vmem:[%s666 + $0x430] sm:$0xff]
        %v930 = vld [vmem:[%s666 + $0x438] sm:$0xff]
        %v931 = vld [vmem:[%s666 + $0x440] sm:$0xff]
        %v932 = vld [vmem:[%s666 + $0x448] sm:$0xff]
        %v933 = vld [vmem:[%s666 + $0x450] sm:$0xff]
        %v934 = vld [vmem:[%s666 + $0x458] sm:$0xff]
        %v935 = vld [vmem:[%s666 + $0x460] sm:$0xff]
        %v936 = vld [vmem:[%s666 + $0x468] sm:$0xff]
        %v937 = vld [vmem:[%s666 + $0x470] sm:$0xff]
        %v938 = vld [vmem:[%s666 + $0x478] sm:$0xff]
        %v939 = vld [vmem:[%s666 + $0x480] sm:$0xff]
        %v940 = vld [vmem:[%s666 + $0x488] sm:$0xff]
        %v941 = vld [vmem:[%s666 + $0x490] sm:$0xff]
        %v942 = vld [vmem:[%s666 + $0x498] sm:$0xff]
        %v943 = vld [vmem:[%s666 + $0x4a0] sm:$0xff]
        %v944 = vld [vmem:[%s666 + $0x4a8] sm:$0xff]
        %v945 = vld [vmem:[%s666 + $0x4b0] sm:$0xff]
        %v946 = vld [vmem:[%s666 + $0x4b8] sm:$0xff]
        %v947 = vld [vmem:[%s666 + $0x4c0] sm:$0xff]
        %v948 = vld [vmem:[%s666 + $0x4c8] sm:$0xff]
        %v949 = vld [vmem:[%s666 + $0x4d0] sm:$0xff]
        %v950 = vld [vmem:[%s666 + $0x4d8] sm:$0xff]
        %v951 = vld [vmem:[%s666 + $0x4e0] sm:$0xff]
        %v952 = vld [vmem:[%s666 + $0x4e8] sm:$0xff]
        %v953 = vld [vmem:[%s666 + $0x4f0] sm:$0xff]
        %v954 = vld [vmem:[%s666 + $0x4f8] sm:$0xff]
        %v955 = vld [vmem:[%s666 + $0x500] sm:$0xff]
        %v956 = vld [vmem:[%s666 + $0x508] sm:$0xff]
        %v957 = vld [vmem:[%s666 + $0x510] sm:$0xff]
        %v958 = vld [vmem:[%s666 + $0x518] sm:$0xff]
        %v959 = vld [vmem:[%s666 + $0x520] sm:$0xff]
        %v960 = vld [vmem:[%s666 + $0x528] sm:$0xff]
        %v961 = vld [vmem:[%s666 + $0x530] sm:$0xff]
        %v962 = vld [vmem:[%s666 + $0x538] sm:$0xff]
        %v963 = vld [vmem:[%s666 + $0x540] sm:$0xff]
        %v964 = vld [vmem:[%s666 + $0x548] sm:$0xff]
        %v965 = vld [vmem:[%s666 + $0x550] sm:$0xff]
        %v966 = vld [vmem:[%s666 + $0x558] sm:$0xff]
        %v967 = vld [vmem:[%s666 + $0x560] sm:$0xff]
        %v968 = vld [vmem:[%s666 + $0x568] sm:$0xff]
        %v969 = vld [vmem:[%s666 + $0x570] sm:$0xff]
        %v970 = vld [vmem:[%s666 + $0x578] sm:$0xff]
        %v971 = vld [vmem:[%s666 + $0x580] sm:$0xff]
        %v972 = vld [vmem:[%s666 + $0x588] sm:$0xff]
        %v973 = vld [vmem:[%s666 + $0x590] sm:$0xff]
        %v974 = vld [vmem:[%s666 + $0x598] sm:$0xff]
        %v975 = vld [vmem:[%s666 + $0x5a0] sm:$0xff]
        %v976 = vld [vmem:[%s666 + $0x5a8] sm:$0xff]
        %v977 = vld [vmem:[%s666 + $0x5b0] sm:$0xff]
        %v978 = vld [vmem:[%s666 + $0x5b8] sm:$0xff]
        %v979 = vld [vmem:[%s666 + $0x5c0] sm:$0xff]
        %v980 = vld [vmem:[%s666 + $0x5c8] sm:$0xff]
        %v981 = vld [vmem:[%s666 + $0x5d0] sm:$0xff]
        %v982 = vld [vmem:[%s666 + $0x5d8] sm:$0xff]
        %v983 = vld [vmem:[%s666 + $0x5e0] sm:$0xff]
        %v984 = vld [vmem:[%s666 + $0x5e8] sm:$0xff]
        %v985 = vld [vmem:[%s666 + $0x5f0] sm:$0xff]
        %v986 = vld [vmem:[%s666 + $0x5f8] sm:$0xff]
        %v987 = vld [vmem:[%s666 + $0x600] sm:$0xff]
        %v988 = vld [vmem:[%s666 + $0x608] sm:$0xff]
        %v989 = vld [vmem:[%s666 + $0x610] sm:$0xff]
        %v990 = vld [vmem:[%s666 + $0x618] sm:$0xff]
        %v991 = vld [vmem:[%s666 + $0x620] sm:$0xff]
        %v992 = vld [vmem:[%s666 + $0x628] sm:$0xff]
        %v993 = vld [vmem:[%s666 + $0x630] sm:$0xff]
        %v994 = vld [vmem:[%s666 + $0x638] sm:$0xff]
        %v995 = vld [vmem:[%s666 + $0x640] sm:$0xff]
        %v996 = vld [vmem:[%s666 + $0x648] sm:$0xff]
        %v997 = vld [vmem:[%s666 + $0x650] sm:$0xff]
        %v998 = vld [vmem:[%s666 + $0x658] sm:$0xff]
        %v999 = vld [vmem:[%s666 + $0x660] sm:$0xff]
        %v1000 = vld [vmem:[%s666 + $0x668] sm:$0xff]
        %v1001 = vld [vmem:[%s666 + $0x670] sm:$0xff]
        %v1002 = vld [vmem:[%s666 + $0x678] sm:$0xff]
        %v1003 = vld [vmem:[%s666 + $0x680] sm:$0xff]
        %v1004 = vld [vmem:[%s666 + $0x688] sm:$0xff]
        %v1005 = vld [vmem:[%s666 + $0x690] sm:$0xff]
        %v1006 = vld [vmem:[%s666 + $0x698] sm:$0xff]
        %v1007 = vld [vmem:[%s666 + $0x6a0] sm:$0xff]
        %v1008 = vld [vmem:[%s666 + $0x6a8] sm:$0xff]
        %v1009 = vld [vmem:[%s666 + $0x6b0] sm:$0xff]
        %v1010 = vld [vmem:[%s666 + $0x6b8] sm:$0xff]
        %v1011 = vld [vmem:[%s666 + $0x6c0] sm:$0xff]
        %v1012 = vld [vmem:[%s666 + $0x6c8] sm:$0xff]
        %v1013 = vld [vmem:[%s666 + $0x6d0] sm:$0xff]
        %v1014 = vld [vmem:[%s666 + $0x6d8] sm:$0xff]
        %v1015 = vld [vmem:[%s666 + $0x6e0] sm:$0xff]
        %v1016 = vld [vmem:[%s666 + $0x6e8] sm:$0xff]
        %v1017 = vld [vmem:[%s666 + $0x6f0] sm:$0xff]
        %v1018 = vld [vmem:[%s666 + $0x6f8] sm:$0xff]
        %v1019 = vld [vmem:[%s666 + $0x700] sm:$0xff]
        %v1020 = vld [vmem:[%s666 + $0x708] sm:$0xff]
        %v1021 = vld [vmem:[%s666 + $0x710] sm:$0xff]
        %v1022 = vld [vmem:[%s666 + $0x718] sm:$0xff]
        %v1023 = vld [vmem:[%s666 + $0x720] sm:$0xff]
        %v1024 = vld [vmem:[%s666 + $0x728] sm:$0xff]
        %v1025 = vld [vmem:[%s666 + $0x730] sm:$0xff]
        %v1026 = vld [vmem:[%s666 + $0x738] sm:$0xff]
        %v1027 = vld [vmem:[%s666 + $0x740] sm:$0xff]
        %v1028 = vld [vmem:[%s666 + $0x748] sm:$0xff]
        %v1029 = vld [vmem:[%s666 + $0x750] sm:$0xff]
        %v1030 = vld [vmem:[%s666 + $0x758] sm:$0xff]
        %v1031 = vld [vmem:[%s666 + $0x760] sm:$0xff]
        %v1032 = vld [vmem:[%s666 + $0x768] sm:$0xff]
        %v1033 = vld [vmem:[%s666 + $0x770] sm:$0xff]
        %v1034 = vld [vmem:[%s666 + $0x778] sm:$0xff]
        %v1035 = vld [vmem:[%s666 + $0x780] sm:$0xff]
        %v1036 = vld [vmem:[%s666 + $0x788] sm:$0xff]
        %v1037 = vld [vmem:[%s666 + $0x790] sm:$0xff]
        %v1038 = vld [vmem:[%s666 + $0x798] sm:$0xff]
        %v1039 = vld [vmem:[%s666 + $0x7a0] sm:$0xff]
        %v1040 = vld [vmem:[%s666 + $0x7a8] sm:$0xff]
        %v1041 = vld [vmem:[%s666 + $0x7b0] sm:$0xff]
        %v1042 = vld [vmem:[%s666 + $0x7b8] sm:$0xff]
        %v1043 = vld [vmem:[%s666 + $0x7c0] sm:$0xff]
        %v1044 = vld [vmem:[%s666 + $0x7c8] sm:$0xff]
        %v1045 = vld [vmem:[%s666 + $0x7d0] sm:$0xff]
        %v1046 = vld [vmem:[%s666 + $0x7d8] sm:$0xff]
        %v1047 = vld [vmem:[%s666 + $0x7e0] sm:$0xff]
        %v1048 = vld [vmem:[%s666 + $0x7e8] sm:$0xff]
        %v1049 = vld [vmem:[%s666 + $0x7f0] sm:$0xff]
        %v1050 = vld [vmem:[%s666 + $0x7f8] sm:$0xff]
        %v1051 = vld [vmem:[%s666 + $0x800] sm:$0xff]
        %v1052 = vld [vmem:[%s666 + $0x808] sm:$0xff]
        %v1053 = vld [vmem:[%s666 + $0x810] sm:$0xff]
        %v1054 = vld [vmem:[%s666 + $0x818] sm:$0xff]
        %v1055 = vld [vmem:[%s666 + $0x820] sm:$0xff]
        %v1056 = vld [vmem:[%s666 + $0x828] sm:$0xff]
        %v1057 = vld [vmem:[%s666 + $0x830] sm:$0xff]
        %v1058 = vld [vmem:[%s666 + $0x838] sm:$0xff]
        %v1059 = vld [vmem:[%s666 + $0x840] sm:$0xff]
        %v1060 = vld [vmem:[%s666 + $0x848] sm:$0xff]
        %v1061 = vld [vmem:[%s666 + $0x850] sm:$0xff]
        %v1062 = vld [vmem:[%s666 + $0x858] sm:$0xff]
        %v1063 = vld [vmem:[%s666 + $0x860] sm:$0xff]
        %v1064 = vld [vmem:[%s666 + $0x868] sm:$0xff]
        %v1065 = vld [vmem:[%s666 + $0x870] sm:$0xff]
        %v1066 = vld [vmem:[%s666 + $0x878] sm:$0xff]
        %v1067 = vld [vmem:[%s666 + $0x880] sm:$0xff]
        %v1068 = vld [vmem:[%s666 + $0x888] sm:$0xff]
        %v1069 = vld [vmem:[%s666 + $0x890] sm:$0xff]
        %v1070 = vld [vmem:[%s666 + $0x898] sm:$0xff]
        %v1071 = vld [vmem:[%s666 + $0x8a0] sm:$0xff]
        %v1072 = vld [vmem:[%s666 + $0x8a8] sm:$0xff]
        %v1073 = vld [vmem:[%s666 + $0x8b0] sm:$0xff]
        %v1074 = vld [vmem:[%s666 + $0x8b8] sm:$0xff]
        %v1075 = vld [vmem:[%s666 + $0x8c0] sm:$0xff]
        %v1076 = vld [vmem:[%s666 + $0x8c8] sm:$0xff]
        %v1077 = vld [vmem:[%s666 + $0x8d0] sm:$0xff]
        %v1078 = vld [vmem:[%s666 + $0x8d8] sm:$0xff]
        %v1079 = vld [vmem:[%s666 + $0x8e0] sm:$0xff]
        %v1080 = vld [vmem:[%s666 + $0x8e8] sm:$0xff]
        %v1081 = vld [vmem:[%s666 + $0x8f0] sm:$0xff]
        %v1082 = vld [vmem:[%s666 + $0x8f8] sm:$0xff]
        %v1083 = vld [vmem:[%s666 + $0x900] sm:$0xff]
        %v1084 = vld [vmem:[%s666 + $0x908] sm:$0xff]
        %v1085 = vld [vmem:[%s666 + $0x910] sm:$0xff]
        %v1086 = vld [vmem:[%s666 + $0x918] sm:$0xff]
        %v1087 = vld [vmem:[%s666 + $0x920] sm:$0xff]
        %v1088 = vld [vmem:[%s666 + $0x928] sm:$0xff]
        %v1089 = vld [vmem:[%s666 + $0x930] sm:$0xff]
        %v1090 = vld [vmem:[%s666 + $0x938] sm:$0xff]
        %v1091 = vld [vmem:[%s666 + $0x940] sm:$0xff]
        %v1092 = vld [vmem:[%s666 + $0x948] sm:$0xff]
        %v1093 = vld [vmem:[%s666 + $0x950] sm:$0xff]
        %v1094 = vld [vmem:[%s666 + $0x958] sm:$0xff]
        %v1095 = vld [vmem:[%s666 + $0x960] sm:$0xff]
        %v1096 = vld [vmem:[%s666 + $0x968] sm:$0xff]
        %v1097 = vld [vmem:[%s666 + $0x970] sm:$0xff]
        %v1098 = vld [vmem:[%s666 + $0x978] sm:$0xff]
        %v1099 = vld [vmem:[%s666 + $0x980] sm:$0xff]
        %v1100 = vld [vmem:[%s666 + $0x988] sm:$0xff]
        %v1101 = vld [vmem:[%s666 + $0x990] sm:$0xff]
        %v1102 = vld [vmem:[%s666 + $0x998] sm:$0xff]
        %v1103 = vld [vmem:[%s666 + $0x9a0] sm:$0xff]
        %v1104 = vld [vmem:[%s666 + $0x9a8] sm:$0xff]
        %v1105 = vld [vmem:[%s666 + $0x9b0] sm:$0xff]
        %v1106 = vld [vmem:[%s666 + $0x9b8] sm:$0xff]
        %v1107 = vld [vmem:[%s666 + $0x9c0] sm:$0xff]
        %v1108 = vld [vmem:[%s666 + $0x9c8] sm:$0xff]
        %v1109 = vld [vmem:[%s666 + $0x9d0] sm:$0xff]
        %v1110 = vld [vmem:[%s666 + $0x9d8] sm:$0xff]
        %v1111 = vld [vmem:[%s666 + $0x9e0] sm:$0xff]
        %v1112 = vld [vmem:[%s666 + $0x9e8] sm:$0xff]
        %v1113 = vld [vmem:[%s666 + $0x9f0] sm:$0xff]
        %v1114 = vld [vmem:[%s666 + $0x9f8] sm:$0xff]
        %v1115 = vld [vmem:[%s666 + $0xa00] sm:$0xff]
        %v1116 = vld [vmem:[%s666 + $0xa08] sm:$0xff]
        %v1117 = vld [vmem:[%s666 + $0xa10] sm:$0xff]
        %v1118 = vld [vmem:[%s666 + $0xa18] sm:$0xff]
        %v1119 = vld [vmem:[%s666 + $0xa20] sm:$0xff]
        %v1120 = vld [vmem:[%s666 + $0xa28] sm:$0xff]
        %v1121 = vld [vmem:[%s666 + $0xa30] sm:$0xff]
        %v1122 = vld [vmem:[%s666 + $0xa38] sm:$0xff]
        %v1123 = vld [vmem:[%s666 + $0xa40] sm:$0xff]
        %v1124 = vld [vmem:[%s666 + $0xa48] sm:$0xff]
        %v1125 = vld [vmem:[%s666 + $0xa50] sm:$0xff]
        %v1126 = vld [vmem:[%s666 + $0xa58] sm:$0xff]
        %v1127 = vld [vmem:[%s666 + $0xa60] sm:$0xff]
        %v1128 = vld [vmem:[%s666 + $0xa68] sm:$0xff]
        %v1129 = vld [vmem:[%s666 + $0xa70] sm:$0xff]
        %v1130 = vld [vmem:[%s666 + $0xa78] sm:$0xff]
        %v1131 = vld [vmem:[%s666 + $0xa80] sm:$0xff]
        %v1132 = vld [vmem:[%s666 + $0xa88] sm:$0xff]
        %v1133 = vld [vmem:[%s666 + $0xa90] sm:$0xff]
        %v1134 = vld [vmem:[%s666 + $0xa98] sm:$0xff]
        %v1135 = vld [vmem:[%s666 + $0xaa0] sm:$0xff]
        %v1136 = vld [vmem:[%s666 + $0xaa8] sm:$0xff]
        %v1137 = vld [vmem:[%s666 + $0xab0] sm:$0xff]
        %v1138 = vld [vmem:[%s666 + $0xab8] sm:$0xff]
        %v1139 = vld [vmem:[%s666 + $0xac0] sm:$0xff]
        %v1140 = vld [vmem:[%s666 + $0xac8] sm:$0xff]
        %v1141 = vld [vmem:[%s666 + $0xad0] sm:$0xff]
        %v1142 = vld [vmem:[%s666 + $0xad8] sm:$0xff]
        %v1143 = vld [vmem:[%s666 + $0xae0] sm:$0xff]
        %v1144 = vld [vmem:[%s666 + $0xae8] sm:$0xff]
        %v1145 = vld [vmem:[%s666 + $0xaf0] sm:$0xff]
        %v1146 = vld [vmem:[%s666 + $0xaf8] sm:$0xff]
        %v1147 = vld [vmem:[%s666 + $0xb00] sm:$0xff]
        %v1148 = vld [vmem:[%s666 + $0xb08] sm:$0xff]
        %v1149 = vld [vmem:[%s666 + $0xb10] sm:$0xff]
        %v1150 = vld [vmem:[%s666 + $0xb18] sm:$0xff]
        %v1151 = vld [vmem:[%s666 + $0xb20] sm:$0xff]
        %v1152 = vld [vmem:[%s666 + $0xb28] sm:$0xff]
        %v1153 = vld [vmem:[%s666 + $0xb30] sm:$0xff]
        %v1154 = vld [vmem:[%s666 + $0xb38] sm:$0xff]
        %v1155 = vld [vmem:[%s666 + $0xb40] sm:$0xff]
        %v1156 = vld [vmem:[%s666 + $0xb48] sm:$0xff]
        %v1157 = vld [vmem:[%s666 + $0xb50] sm:$0xff]
        %v1158 = vld [vmem:[%s666 + $0xb58] sm:$0xff]
        %v1159 = vld [vmem:[%s666 + $0xb60] sm:$0xff]
        %v1160 = vld [vmem:[%s666 + $0xb68] sm:$0xff]
        %v1161 = vld [vmem:[%s666 + $0xb70] sm:$0xff]
        %v1162 = vld [vmem:[%s666 + $0xb78] sm:$0xff]
        %v1163 = vld [vmem:[%s666 + $0xb80] sm:$0xff]
        %v1164 = vld [vmem:[%s666 + $0xb88] sm:$0xff]
        %v1165 = vld [vmem:[%s666 + $0xb90] sm:$0xff]
        %v1166 = vld [vmem:[%s666 + $0xb98] sm:$0xff]
        %v1167 = vld [vmem:[%s666 + $0xba0] sm:$0xff]
        %v1168 = vld [vmem:[%s666 + $0xba8] sm:$0xff]
        %v1169 = vld [vmem:[%s666 + $0xbb0] sm:$0xff]
        %v1170 = vld [vmem:[%s666 + $0xbb8] sm:$0xff]
        %v1171 = vld [vmem:[%s666 + $0xbc0] sm:$0xff]
        %v1172 = vld [vmem:[%s666 + $0xbc8] sm:$0xff]
        %v1173 = vld [vmem:[%s666 + $0xbd0] sm:$0xff]
        %v1174 = vld [vmem:[%s666 + $0xbd8] sm:$0xff]
        %v1175 = vld [vmem:[%s666 + $0xbe0] sm:$0xff]
        %v1176 = vld [vmem:[%s666 + $0xbe8] sm:$0xff]
        %v1177 = vld [vmem:[%s666 + $0xbf0] sm:$0xff]
        %v1178 = vld [vmem:[%s666 + $0xbf8] sm:$0xff]
        %v1179 = vld [vmem:[%s666 + $0xc00] sm:$0xff]
        %v1180 = vld [vmem:[%s666 + $0xc08] sm:$0xff]
        %v1181 = vld [vmem:[%s666 + $0xc10] sm:$0xff]
        %v1182 = vld [vmem:[%s666 + $0xc18] sm:$0xff]
        %v1183 = vld [vmem:[%s666 + $0xc20] sm:$0xff]
        %v1184 = vld [vmem:[%s666 + $0xc28] sm:$0xff]
        %v1185 = vld [vmem:[%s666 + $0xc30] sm:$0xff]
        %v1186 = vld [vmem:[%s666 + $0xc38] sm:$0xff]
        %v1187 = vld [vmem:[%s666 + $0xc40] sm:$0xff]
        %v1188 = vld [vmem:[%s666 + $0xc48] sm:$0xff]
        %v1189 = vld [vmem:[%s666 + $0xc50] sm:$0xff]
        %v1190 = vld [vmem:[%s666 + $0xc58] sm:$0xff]
        %v1191 = vld [vmem:[%s666 + $0xc60] sm:$0xff]
        %v1192 = vld [vmem:[%s666 + $0xc68] sm:$0xff]
        %v1193 = vld [vmem:[%s666 + $0xc70] sm:$0xff]
        %v1194 = vld [vmem:[%s666 + $0xc78] sm:$0xff]
        %v1195 = vld [vmem:[%s666 + $0xc80] sm:$0xff]
        %v1196 = vld [vmem:[%s666 + $0xc88] sm:$0xff]
        %v1197 = vld [vmem:[%s666 + $0xc90] sm:$0xff]
        %v1198 = vld [vmem:[%s666 + $0xc98] sm:$0xff]
        %v1199 = vld [vmem:[%s666 + $0xca0] sm:$0xff]
        %v1200 = vld [vmem:[%s666 + $0xca8] sm:$0xff]
        %v1201 = vld [vmem:[%s666 + $0xcb0] sm:$0xff]
        %v1202 = vld [vmem:[%s666 + $0xcb8] sm:$0xff]
        %v1203 = vld [vmem:[%s666 + $0xcc0] sm:$0xff]
        %v1204 = vld [vmem:[%s666 + $0xcc8] sm:$0xff]
        %v1205 = vld [vmem:[%s666 + $0xcd0] sm:$0xff]
        %v1206 = vld [vmem:[%s666 + $0xcd8] sm:$0xff]
        %v1207 = vld [vmem:[%s666 + $0xce0] sm:$0xff]
        %v1208 = vld [vmem:[%s666 + $0xce8] sm:$0xff]
        %v1209 = vld [vmem:[%s666 + $0xcf0] sm:$0xff]
        %v1210 = vld [vmem:[%s666 + $0xcf8] sm:$0xff]
        %v1211 = vld [vmem:[%s666 + $0xd00] sm:$0xff]
        %v1212 = vld [vmem:[%s666 + $0xd08] sm:$0xff]
        %v1213 = vld [vmem:[%s666 + $0xd10] sm:$0xff]
        %v1214 = vld [vmem:[%s666 + $0xd18] sm:$0xff]
        %v1215 = vld [vmem:[%s666 + $0xd20] sm:$0xff]
        %v1216 = vld [vmem:[%s666 + $0xd28] sm:$0xff]
        %v1217 = vld [vmem:[%s666 + $0xd30] sm:$0xff]
        %v1218 = vld [vmem:[%s666 + $0xd38] sm:$0xff]
        %v1219 = vld [vmem:[%s666 + $0xd40] sm:$0xff]
        %v1220 = vld [vmem:[%s666 + $0xd48] sm:$0xff]
        %v1221 = vld [vmem:[%s666 + $0xd50] sm:$0xff]
        %v1222 = vld [vmem:[%s666 + $0xd58] sm:$0xff]
        %v1223 = vld [vmem:[%s666 + $0xd60] sm:$0xff]
        %v1224 = vld [vmem:[%s666 + $0xd68] sm:$0xff]
        %v1225 = vld [vmem:[%s666 + $0xd70] sm:$0xff]
        %v1226 = vld [vmem:[%s666 + $0xd78] sm:$0xff]
        %v1227 = vld [vmem:[%s666 + $0xd80] sm:$0xff]
        %v1228 = vld [vmem:[%s666 + $0xd88] sm:$0xff]
        %v1229 = vld [vmem:[%s666 + $0xd90] sm:$0xff]
        %v1230 = vld [vmem:[%s666 + $0xd98] sm:$0xff]
        %v1231 = vld [vmem:[%s666 + $0xda0] sm:$0xff]
        %v1232 = vld [vmem:[%s666 + $0xda8] sm:$0xff]
        %v1233 = vld [vmem:[%s666 + $0xdb0] sm:$0xff]
        %v1234 = vld [vmem:[%s666 + $0xdb8] sm:$0xff]
        %v1235 = vld [vmem:[%s666 + $0xdc0] sm:$0xff]
        %v1236 = vld [vmem:[%s666 + $0xdc8] sm:$0xff]
        %v1237 = vld [vmem:[%s666 + $0xdd0] sm:$0xff]
        %v1238 = vld [vmem:[%s666 + $0xdd8] sm:$0xff]
        %v1239 = vld [vmem:[%s666 + $0xde0] sm:$0xff]
        %v1240 = vld [vmem:[%s666 + $0xde8] sm:$0xff]
        %v1241 = vld [vmem:[%s666 + $0xdf0] sm:$0xff]
        %v1242 = vld [vmem:[%s666 + $0xdf8] sm:$0xff]
        %v1243 = vld [vmem:[%s666 + $0xe00] sm:$0xff]
        %v1244 = vld [vmem:[%s666 + $0xe08] sm:$0xff]
        %v1245 = vld [vmem:[%s666 + $0xe10] sm:$0xff]
        %v1246 = vld [vmem:[%s666 + $0xe18] sm:$0xff]
        %v1247 = vld [vmem:[%s666 + $0xe20] sm:$0xff]
        %v1248 = vld [vmem:[%s666 + $0xe28] sm:$0xff]
        %v1249 = vld [vmem:[%s666 + $0xe30] sm:$0xff]
        %v1250 = vld [vmem:[%s666 + $0xe38] sm:$0xff]
        %v1251 = vld [vmem:[%s666 + $0xe40] sm:$0xff]
        %v1252 = vld [vmem:[%s666 + $0xe48] sm:$0xff]
        %v1253 = vld [vmem:[%s666 + $0xe50] sm:$0xff]
        %v1254 = vld [vmem:[%s666 + $0xe58] sm:$0xff]
        %v1255 = vld [vmem:[%s666 + $0xe60] sm:$0xff]
        %v1256 = vld [vmem:[%s666 + $0xe68] sm:$0xff]
        %v1257 = vld [vmem:[%s666 + $0xe70] sm:$0xff]
        %v1258 = vld [vmem:[%s666 + $0xe78] sm:$0xff]
        %v1259 = vld [vmem:[%s666 + $0xe80] sm:$0xff]
        %v1260 = vld [vmem:[%s666 + $0xe88] sm:$0xff]
        %v1261 = vld [vmem:[%s666 + $0xe90] sm:$0xff]
        %v1262 = vld [vmem:[%s666 + $0xe98] sm:$0xff]
        %v1263 = vld [vmem:[%s666 + $0xea0] sm:$0xff]
        %v1264 = vld [vmem:[%s666 + $0xea8] sm:$0xff]
        %v1265 = vld [vmem:[%s666 + $0xeb0] sm:$0xff]
        %v1266 = vld [vmem:[%s666 + $0xeb8] sm:$0xff]
        %v1267 = vld [vmem:[%s666 + $0xec0] sm:$0xff]
        %v1268 = vld [vmem:[%s666 + $0xec8] sm:$0xff]
        %v1269 = vld [vmem:[%s666 + $0xed0] sm:$0xff]
        %v1270 = vld [vmem:[%s666 + $0xed8] sm:$0xff]
        %v1271 = vld [vmem:[%s666 + $0xee0] sm:$0xff]
        %v1272 = vld [vmem:[%s666 + $0xee8] sm:$0xff]
        %v1273 = vld [vmem:[%s666 + $0xef0] sm:$0xff]
        %v1274 = vld [vmem:[%s666 + $0xef8] sm:$0xff]
        %v1275 = vld [vmem:[%s666 + $0xf00] sm:$0xff]
        %v1276 = vld [vmem:[%s666 + $0xf08] sm:$0xff]
        %v1277 = vld [vmem:[%s666 + $0xf10] sm:$0xff]
        %v1278 = vld [vmem:[%s666 + $0xf18] sm:$0xff]
        %v1279 = vld [vmem:[%s666 + $0xf20] sm:$0xff]
        %v1280 = vld [vmem:[%s666 + $0xf28] sm:$0xff]
        %v1281 = vld [vmem:[%s666 + $0xf30] sm:$0xff]
        %v1282 = vld [vmem:[%s666 + $0xf38] sm:$0xff]
        %v1283 = vld [vmem:[%s666 + $0xf40] sm:$0xff]
        %v1284 = vld [vmem:[%s666 + $0xf48] sm:$0xff]
        %v1285 = vld [vmem:[%s666 + $0xf50] sm:$0xff]
        %v1286 = vld [vmem:[%s666 + $0xf58] sm:$0xff]
        %v1287 = vld [vmem:[%s666 + $0xf60] sm:$0xff]
        %v1288 = vld [vmem:[%s666 + $0xf68] sm:$0xff]
        %v1289 = vld [vmem:[%s666 + $0xf70] sm:$0xff]
        %v1290 = vld [vmem:[%s666 + $0xf78] sm:$0xff]
        %v1291 = vld [vmem:[%s666 + $0xf80] sm:$0xff]
        %v1292 = vld [vmem:[%s666 + $0xf88] sm:$0xff]
        %v1293 = vld [vmem:[%s666 + $0xf90] sm:$0xff]
        %v1294 = vld [vmem:[%s666 + $0xf98] sm:$0xff]
        %v1295 = vld [vmem:[%s666 + $0xfa0] sm:$0xff]
        %v1296 = vld [vmem:[%s666 + $0xfa8] sm:$0xff]
        %v1297 = vld [vmem:[%s666 + $0xfb0] sm:$0xff]
        %v1298 = vld [vmem:[%s666 + $0xfb8] sm:$0xff]
        %v1299 = vld [vmem:[%s666 + $0xfc0] sm:$0xff]
        %v1300 = vld [vmem:[%s666 + $0xfc8] sm:$0xff]
        %v1301 = vld [vmem:[%s666 + $0xfd0] sm:$0xff]
        %v1302 = vld [vmem:[%s666 + $0xfd8] sm:$0xff]
        %v1303 = vld [vmem:[%s666 + $0xfe0] sm:$0xff]
        %v1304 = vld [vmem:[%s666 + $0xfe8] sm:$0xff]
        %v1305 = vld [vmem:[%s666 + $0xff0] sm:$0xff]
        %v1306 = vld [vmem:[%s666 + $0xff8] sm:$0xff]
        %v1307 = vld [vmem:[%s666 + $0x1000] sm:$0xff]
        %v1308 = vld [vmem:[%s666 + $0x1008] sm:$0xff]
        %v1309 = vld [vmem:[%s666 + $0x1010] sm:$0xff]
        %v1310 = vld [vmem:[%s666 + $0x1018] sm:$0xff]
        %v1311 = vld [vmem:[%s666 + $0x1020] sm:$0xff]
        %v1312 = vld [vmem:[%s666 + $0x1028] sm:$0xff]
        %v1313 = vld [vmem:[%s666 + $0x1030] sm:$0xff]
        %v1314 = vld [vmem:[%s666 + $0x1038] sm:$0xff]
        %v1315 = vld [vmem:[%s666 + $0x1040] sm:$0xff]
        %v1316 = vld [vmem:[%s666 + $0x1048] sm:$0xff]
        %v1317 = vld [vmem:[%s666 + $0x1050] sm:$0xff]
        %v1318 = vld [vmem:[%s666 + $0x1058] sm:$0xff]
        %v1319 = vld [vmem:[%s666 + $0x1060] sm:$0xff]
        %v1320 = vld [vmem:[%s666 + $0x1068] sm:$0xff]
        %v1321 = vld [vmem:[%s666 + $0x1070] sm:$0xff]
        %v1322 = vld [vmem:[%s666 + $0x1078] sm:$0xff]
        %v1323 = vld [vmem:[%s666 + $0x1080] sm:$0xff]
        %v1324 = vld [vmem:[%s666 + $0x1088] sm:$0xff]
        %v1325 = vld [vmem:[%s666 + $0x1090] sm:$0xff]
        %v1326 = vld [vmem:[%s666 + $0x1098] sm:$0xff]
        %v1327 = vld [vmem:[%s666 + $0x10a0] sm:$0xff]
        %v1328 = vld [vmem:[%s666 + $0x10a8] sm:$0xff]
        %v1329 = vld [vmem:[%s666 + $0x10b0] sm:$0xff]
        %v1330 = vld [vmem:[%s666 + $0x10b8] sm:$0xff]
        %v1331 = vld [vmem:[%s666 + $0x10c0] sm:$0xff]
        %v1332 = vld [vmem:[%s666 + $0x10c8] sm:$0xff]
        %v1333 = vld [vmem:[%s666 + $0x10d0] sm:$0xff]
        %v1334 = vld [vmem:[%s666 + $0x10d8] sm:$0xff]
        %v1335 = vld [vmem:[%s666 + $0x10e0] sm:$0xff]
        %v1336 = vld [vmem:[%s666 + $0x10e8] sm:$0xff]
        %v1337 = vld [vmem:[%s666 + $0x10f0] sm:$0xff]
        %v1338 = vld [vmem:[%s666 + $0x10f8] sm:$0xff]
        %v1339 = vld [vmem:[%s666 + $0x1100] sm:$0xff]
        %v1340 = vld [vmem:[%s666 + $0x1108] sm:$0xff]
        %v1341 = vld [vmem:[%s666 + $0x1110] sm:$0xff]
        %v1342 = vld [vmem:[%s666 + $0x1118] sm:$0xff]
        %v1343 = vld [vmem:[%s666 + $0x1120] sm:$0xff]
        %v1344 = vld [vmem:[%s666 + $0x1128] sm:$0xff]
        %v1345 = vld [vmem:[%s666 + $0x1130] sm:$0xff]
        %v1346 = vld [vmem:[%s666 + $0x1138] sm:$0xff]
        %v1347 = vld [vmem:[%s666 + $0x1140] sm:$0xff]
        %v1348 = vld [vmem:[%s666 + $0x1148] sm:$0xff]
        %v1349 = vld [vmem:[%s666 + $0x1150] sm:$0xff]
        %v1350 = vld [vmem:[%s666 + $0x1158] sm:$0xff]
        %v1351 = vld [vmem:[%s666 + $0x1160] sm:$0xff]
        %v1352 = vld [vmem:[%s666 + $0x1168] sm:$0xff]
        %v1353 = vld [vmem:[%s666 + $0x1170] sm:$0xff]
        %v1354 = vld [vmem:[%s666 + $0x1178] sm:$0xff]
        %v1355 = vld [vmem:[%s666 + $0x1180] sm:$0xff]
        %v1356 = vld [vmem:[%s666 + $0x1188] sm:$0xff]
        %v1357 = vld [vmem:[%s666 + $0x1190] sm:$0xff]
        %v1358 = vld [vmem:[%s666 + $0x1198] sm:$0xff]
        %v1359 = vld [vmem:[%s666 + $0x11a0] sm:$0xff]
        %v1360 = vld [vmem:[%s666 + $0x11a8] sm:$0xff]
        %v1361 = vld [vmem:[%s666 + $0x11b0] sm:$0xff]
        %v1362 = vld [vmem:[%s666 + $0x11b8] sm:$0xff]
        %v1363 = vld [vmem:[%s666 + $0x11c0] sm:$0xff]
        %v1364 = vld [vmem:[%s666 + $0x11c8] sm:$0xff]
        %v1365 = vld [vmem:[%s666 + $0x11d0] sm:$0xff]
        %v1366 = vld [vmem:[%s666 + $0x11d8] sm:$0xff]
        %v1367 = vld [vmem:[%s666 + $0x11e0] sm:$0xff]
        %v1368 = vld [vmem:[%s666 + $0x11e8] sm:$0xff]
        %v1369 = vld [vmem:[%s666 + $0x11f0] sm:$0xff]
        %v1370 = vld [vmem:[%s666 + $0x11f8] sm:$0xff]
        %v1371 = vld [vmem:[%s666 + $0x1200] sm:$0xff]
        %v1372 = vld [vmem:[%s666 + $0x1208] sm:$0xff]
        %v1373 = vld [vmem:[%s666 + $0x1210] sm:$0xff]
        %v1374 = vld [vmem:[%s666 + $0x1218] sm:$0xff]
        %v1375 = vld [vmem:[%s666 + $0x1220] sm:$0xff]
        %v1376 = vld [vmem:[%s666 + $0x1228] sm:$0xff]
        %v1377 = vld [vmem:[%s666 + $0x1230] sm:$0xff]
        %v1378 = vld [vmem:[%s666 + $0x1238] sm:$0xff]
        %v1379 = vld [vmem:[%s666 + $0x1240] sm:$0xff]
        %v1380 = vld [vmem:[%s666 + $0x1248] sm:$0xff]
        %v1381 = vld [vmem:[%s666 + $0x1250] sm:$0xff]
        %v1382 = vld [vmem:[%s666 + $0x1258] sm:$0xff]
        %v1383 = vld [vmem:[%s666 + $0x1260] sm:$0xff]
        %v1384 = vld [vmem:[%s666 + $0x1268] sm:$0xff]
        %v1385 = vld [vmem:[%s666 + $0x1270] sm:$0xff]
        %v1386 = vld [vmem:[%s666 + $0x1278] sm:$0xff]
        %v1397 = vcombine.high %v785, %v785
        %v1399 = vunpack.c.l.s4 1983009808
        %v1400 = vunpack.c.0.s8 %v1399
        %v1401 = vlaneseq
        %v1402 = vshrl.u32 %v1401, 7
        %v1403 = vsub.s32 %v1400, %v1402
        %v1404 = vrot.slane %v785, %v1403
        %v1406 = vunpack.c.l.s4 1983009808
        %v1407 = vunpack.c.0.s8 %v1406
        %v1408 = vlaneseq
        %v1409 = vshrl.u32 %v1408, 7
        %v1410 = vsub.s32 %v1407, %v1409
        %v1411 = vrot.slane %v1397, %v1410
        %v1412 = vcombine.high %v1404, %v1404
        %v1413 = vcombine.high %v1411, %v1411
        %v1414 = vcombine.high %v786, %v786
        %v1416 = vunpack.c.l.s4 1983009808
        %v1417 = vunpack.c.0.s8 %v1416
        %v1418 = vlaneseq
        %v1419 = vshrl.u32 %v1418, 7
        %v1420 = vsub.s32 %v1417, %v1419
        %v1421 = vrot.slane %v786, %v1420
        %v1423 = vunpack.c.l.s4 1983009808
        %v1424 = vunpack.c.0.s8 %v1423
        %v1425 = vlaneseq
        %v1426 = vshrl.u32 %v1425, 7
        %v1427 = vsub.s32 %v1424, %v1426
        %v1428 = vrot.slane %v1414, %v1427
        %v1429 = vcombine.high %v1421, %v1421
        %v1430 = vcombine.high %v1428, %v1428
        %v1431 = vcombine.high %v787, %v787
        %v1433 = vunpack.c.l.s4 1983009808
        %v1434 = vunpack.c.0.s8 %v1433
        %v1435 = vlaneseq
        %v1436 = vshrl.u32 %v1435, 7
        %v1437 = vsub.s32 %v1434, %v1436
        %v1438 = vrot.slane %v787, %v1437
        %v1440 = vunpack.c.l.s4 1983009808
        %v1441 = vunpack.c.0.s8 %v1440
        %v1442 = vlaneseq
        %v1443 = vshrl.u32 %v1442, 7
        %v1444 = vsub.s32 %v1441, %v1443
        %v1445 = vrot.slane %v1431, %v1444
        %v1446 = vcombine.high %v1438, %v1438
        %v1447 = vcombine.high %v1445, %v1445
        %v1448 = vcombine.high %v788, %v788
        %v1450 = vunpack.c.l.s4 1983009808
        %v1451 = vunpack.c.0.s8 %v1450
        %v1452 = vlaneseq
        %v1453 = vshrl.u32 %v1452, 7
        %v1454 = vsub.s32 %v1451, %v1453
        %v1455 = vrot.slane %v788, %v1454
        %v1457 = vunpack.c.l.s4 1983009808
        %v1458 = vunpack.c.0.s8 %v1457
        %v1459 = vlaneseq
        %v1460 = vshrl.u32 %v1459, 7
        %v1461 = vsub.s32 %v1458, %v1460
        %v1462 = vrot.slane %v1448, %v1461
        %v1463 = vcombine.high %v1455, %v1455
        %v1464 = vcombine.high %v1462, %v1462
        %v1465 = vcombine.high %v789, %v789
        %v1467 = vunpack.c.l.s4 1983009808
        %v1468 = vunpack.c.0.s8 %v1467
        %v1469 = vlaneseq
        %v1470 = vshrl.u32 %v1469, 7
        %v1471 = vsub.s32 %v1468, %v1470
        %v1472 = vrot.slane %v789, %v1471
        %v1474 = vunpack.c.l.s4 1983009808
        %v1475 = vunpack.c.0.s8 %v1474
        %v1476 = vlaneseq
        %v1477 = vshrl.u32 %v1476, 7
        %v1478 = vsub.s32 %v1475, %v1477
        %v1479 = vrot.slane %v1465, %v1478
        %v1480 = vcombine.high %v1472, %v1472
        %v1481 = vcombine.high %v1479, %v1479
        %v1482 = vcombine.high %v790, %v790
        %v1484 = vunpack.c.l.s4 1983009808
        %v1485 = vunpack.c.0.s8 %v1484
        %v1486 = vlaneseq
        %v1487 = vshrl.u32 %v1486, 7
        %v1488 = vsub.s32 %v1485, %v1487
        %v1489 = vrot.slane %v790, %v1488
        %v1491 = vunpack.c.l.s4 1983009808
        %v1492 = vunpack.c.0.s8 %v1491
        %v1493 = vlaneseq
        %v1494 = vshrl.u32 %v1493, 7
        %v1495 = vsub.s32 %v1492, %v1494
        %v1496 = vrot.slane %v1482, %v1495
        %v1497 = vcombine.high %v1489, %v1489
        %v1498 = vcombine.high %v1496, %v1496
        %v1499 = vcombine.high %v791, %v791
        %v1501 = vunpack.c.l.s4 1983009808
        %v1502 = vunpack.c.0.s8 %v1501
        %v1503 = vlaneseq
        %v1504 = vshrl.u32 %v1503, 7
        %v1505 = vsub.s32 %v1502, %v1504
        %v1506 = vrot.slane %v791, %v1505
        %v1508 = vunpack.c.l.s4 1983009808
        %v1509 = vunpack.c.0.s8 %v1508
        %v1510 = vlaneseq
        %v1511 = vshrl.u32 %v1510, 7
        %v1512 = vsub.s32 %v1509, %v1511
        %v1513 = vrot.slane %v1499, %v1512
        %v1514 = vcombine.high %v1506, %v1506
        %v1515 = vcombine.high %v1513, %v1513
        %v1516 = vcombine.high %v792, %v792
        %v1518 = vunpack.c.l.s4 1983009808
        %v1519 = vunpack.c.0.s8 %v1518
        %v1520 = vlaneseq
        %v1521 = vshrl.u32 %v1520, 7
        %v1522 = vsub.s32 %v1519, %v1521
        %v1523 = vrot.slane %v792, %v1522
        %v1525 = vunpack.c.l.s4 1983009808
        %v1526 = vunpack.c.0.s8 %v1525
        %v1527 = vlaneseq
        %v1528 = vshrl.u32 %v1527, 7
        %v1529 = vsub.s32 %v1526, %v1528
        %v1530 = vrot.slane %v1516, %v1529
        %v1531 = vcombine.high %v1523, %v1523
        %v1532 = vcombine.high %v1530, %v1530
        %v1533 = vcombine.high %v793, %v793
        %v1535 = vunpack.c.l.s4 1983009808
        %v1536 = vunpack.c.0.s8 %v1535
        %v1537 = vlaneseq
        %v1538 = vshrl.u32 %v1537, 7
        %v1539 = vsub.s32 %v1536, %v1538
        %v1540 = vrot.slane %v793, %v1539
        %v1542 = vunpack.c.l.s4 1983009808
        %v1543 = vunpack.c.0.s8 %v1542
        %v1544 = vlaneseq
        %v1545 = vshrl.u32 %v1544, 7
        %v1546 = vsub.s32 %v1543, %v1545
        %v1547 = vrot.slane %v1533, %v1546
        %v1548 = vcombine.high %v1540, %v1540
        %v1549 = vcombine.high %v1547, %v1547
        %v1551 = vunpack.c.l.s4 1983009808
        %v1552 = vunpack.c.0.s8 %v1551
        %v1553 = vlaneseq
        %v1554 = vshrl.u32 %v1553, 7
        %v1555 = vsub.s32 %v1552, %v1554
        %v1556 = vrot.slane %v794, %v1555
        %v2186 = vunpack.c.l.b16 %v795
        %v2187 = vunpack.c.h.b16 %v795
        %v2188 = vunpack.c.l.b16 %v796
        %v2189 = vunpack.c.h.b16 %v796
        %v2190 = vunpack.c.l.b16 %v797
        %v2191 = vunpack.c.h.b16 %v797
        %v2192 = vunpack.c.l.b16 %v798
        %v2193 = vunpack.c.h.b16 %v798
        %v2194 = vunpack.c.l.b16 %v799
        %v2195 = vunpack.c.h.b16 %v799
        %v2196 = vunpack.c.l.b16 %v800
        %v2197 = vunpack.c.h.b16 %v800
        %v2198 = vunpack.c.l.b16 %v801
        %v2199 = vunpack.c.h.b16 %v801
        %v2200 = vunpack.c.l.b16 %v802
        %v2201 = vunpack.c.h.b16 %v802
        %v2202 = vunpack.c.l.b16 %v803
        %v2203 = vunpack.c.h.b16 %v803
        %v2204 = vunpack.c.l.b16 %v804
        %v2205 = vunpack.c.h.b16 %v804
        %v2206 = vunpack.c.l.b16 %v805
        %v2207 = vunpack.c.h.b16 %v805
        %v2208 = vunpack.c.l.b16 %v806
        %v2209 = vunpack.c.h.b16 %v806
        %v2210 = vunpack.c.l.b16 %v807
        %v2211 = vunpack.c.h.b16 %v807
        %v2212 = vunpack.c.l.b16 %v808
        %v2213 = vunpack.c.h.b16 %v808
        %v2214 = vunpack.c.l.b16 %v809
        %v2215 = vunpack.c.h.b16 %v809
        %v2216 = vunpack.c.l.b16 %v810
        %v2217 = vunpack.c.h.b16 %v810
        %v2218 = vunpack.c.l.b16 %v811
        %v2219 = vunpack.c.h.b16 %v811
        %v2220 = vunpack.c.l.b16 %v812
        %v2221 = vunpack.c.h.b16 %v812
        %v2222 = vunpack.c.l.b16 %v813
        %v2223 = vunpack.c.h.b16 %v813
        %v2224 = vunpack.c.l.b16 %v814
        %v2225 = vunpack.c.h.b16 %v814
        %v2226 = vunpack.c.l.b16 %v815
        %v2227 = vunpack.c.h.b16 %v815
        %v2228 = vunpack.c.l.b16 %v816
        %v2229 = vunpack.c.h.b16 %v816
        %v2230 = vunpack.c.l.b16 %v817
        %v2231 = vunpack.c.h.b16 %v817
        %v2232 = vunpack.c.l.b16 %v818
        %v2233 = vunpack.c.h.b16 %v818
        %v2234 = vunpack.c.l.b16 %v819
        %v2235 = vunpack.c.h.b16 %v819
        %v2236 = vunpack.c.l.b16 %v820
        %v2237 = vunpack.c.h.b16 %v820
        %v2238 = vunpack.c.l.b16 %v821
        %v2239 = vunpack.c.h.b16 %v821
        %v2240 = vunpack.c.l.b16 %v822
        %v2241 = vunpack.c.h.b16 %v822
        %v2242 = vunpack.c.l.b16 %v823
        %v2243 = vunpack.c.h.b16 %v823
        %v2244 = vunpack.c.l.b16 %v824
        %v2245 = vunpack.c.h.b16 %v824
        %v2246 = vunpack.c.l.b16 %v825
        %v2247 = vunpack.c.h.b16 %v825
        %v2248 = vunpack.c.l.b16 %v826
        %v2249 = vunpack.c.h.b16 %v826
        %v2250 = vunpack.c.l.b16 %v827
        %v2251 = vunpack.c.h.b16 %v827
        %v2252 = vunpack.c.l.b16 %v828
        %v2253 = vunpack.c.h.b16 %v828
        %v2254 = vunpack.c.l.b16 %v829
        %v2255 = vunpack.c.h.b16 %v829
        %v2256 = vunpack.c.l.b16 %v830
        %v2257 = vunpack.c.h.b16 %v830
        %v2258 = vunpack.c.l.b16 %v831
        %v2259 = vunpack.c.h.b16 %v831
        %v2260 = vunpack.c.l.b16 %v832
        %v2261 = vunpack.c.h.b16 %v832
        %v2262 = vunpack.c.l.b16 %v833
        %v2263 = vunpack.c.h.b16 %v833
        %v2264 = vunpack.c.l.b16 %v834
        %v2265 = vunpack.c.h.b16 %v834
        %v2266 = vunpack.c.l.b16 %v835
        %v2267 = vunpack.c.h.b16 %v835
        %v2268 = vunpack.c.l.b16 %v836
        %v2269 = vunpack.c.h.b16 %v836
        %v2270 = vunpack.c.l.b16 %v837
        %v2271 = vunpack.c.h.b16 %v837
        %v2272 = vunpack.c.l.b16 %v838
        %v2273 = vunpack.c.h.b16 %v838
        %v2274 = vunpack.c.l.b16 %v839
        %v2275 = vunpack.c.h.b16 %v839
        %v2276 = vunpack.c.l.b16 %v840
        %v2277 = vunpack.c.h.b16 %v840
        %v2278 = vunpack.c.l.b16 %v841
        %v2279 = vunpack.c.h.b16 %v841
        %v2280 = vunpack.c.l.b16 %v842
        %v2281 = vunpack.c.h.b16 %v842
        %v2282 = vunpack.c.l.b16 %v843
        %v2283 = vunpack.c.h.b16 %v843
        %v2284 = vunpack.c.l.b16 %v844
        %v2285 = vunpack.c.h.b16 %v844
        %v2286 = vunpack.c.l.b16 %v845
        %v2287 = vunpack.c.h.b16 %v845
        %v2288 = vunpack.c.l.b16 %v846
        %v2289 = vunpack.c.h.b16 %v846
        %v2290 = vunpack.c.l.b16 %v847
        %v2291 = vunpack.c.h.b16 %v847
        %v2292 = vunpack.c.l.b16 %v848
        %v2293 = vunpack.c.h.b16 %v848
        %v2294 = vunpack.c.l.b16 %v849
        %v2295 = vunpack.c.h.b16 %v849
        %v2296 = vunpack.c.l.b16 %v850
        %v2297 = vunpack.c.h.b16 %v850
        %v2298 = vunpack.c.l.b16 %v851
        %v2299 = vunpack.c.h.b16 %v851
        %v2300 = vunpack.c.l.b16 %v852
        %v2301 = vunpack.c.h.b16 %v852
        %v2302 = vunpack.c.l.b16 %v853
        %v2303 = vunpack.c.h.b16 %v853
        %v2304 = vunpack.c.l.b16 %v854
        %v2305 = vunpack.c.h.b16 %v854
        %v2306 = vunpack.c.l.b16 %v855
        %v2307 = vunpack.c.h.b16 %v855
        %v2308 = vunpack.c.l.b16 %v856
        %v2309 = vunpack.c.h.b16 %v856
        %v2310 = vunpack.c.l.b16 %v857
        %v2311 = vunpack.c.h.b16 %v857
        %v2312 = vunpack.c.l.b16 %v858
        %v2313 = vunpack.c.h.b16 %v858
        %v2314 = vunpack.c.l.b16 %v859
        %v2315 = vunpack.c.h.b16 %v859
        %v2316 = vunpack.c.l.b16 %v860
        %v2317 = vunpack.c.h.b16 %v860
        %v2318 = vunpack.c.l.b16 %v861
        %v2319 = vunpack.c.h.b16 %v861
        %v2320 = vunpack.c.l.b16 %v862
        %v2321 = vunpack.c.h.b16 %v862
        %v2322 = vunpack.c.l.b16 %v863
        %v2323 = vunpack.c.h.b16 %v863
        %v2324 = vunpack.c.l.b16 %v864
        %v2325 = vunpack.c.h.b16 %v864
        %v2326 = vunpack.c.l.b16 %v865
        %v2327 = vunpack.c.h.b16 %v865
        %v2328 = vunpack.c.l.b16 %v866
        %v2329 = vunpack.c.h.b16 %v866
        %v2330 = vunpack.c.l.b16 %v867
        %v2331 = vunpack.c.h.b16 %v867
        %v2332 = vunpack.c.l.b16 %v868
        %v2333 = vunpack.c.h.b16 %v868
        %v2334 = vunpack.c.l.b16 %v869
        %v2335 = vunpack.c.h.b16 %v869
        %v2336 = vunpack.c.l.b16 %v870
        %v2337 = vunpack.c.h.b16 %v870
        %v2338 = vunpack.c.l.b16 %v871
        %v2339 = vunpack.c.h.b16 %v871
        %v2340 = vunpack.c.l.b16 %v872
        %v2341 = vunpack.c.h.b16 %v872
        %v2342 = vunpack.c.l.b16 %v873
        %v2343 = vunpack.c.h.b16 %v873
        %v2344 = vunpack.c.l.b16 %v874
        %v2345 = vunpack.c.h.b16 %v874
        %v2346 = vunpack.c.l.b16 %v875
        %v2347 = vunpack.c.h.b16 %v875
        %v2348 = vunpack.c.l.b16 %v876
        %v2349 = vunpack.c.h.b16 %v876
        %v2350 = vunpack.c.l.b16 %v877
        %v2351 = vunpack.c.h.b16 %v877
        %v2352 = vunpack.c.l.b16 %v878
        %v2353 = vunpack.c.h.b16 %v878
        %v2354 = vunpack.c.l.b16 %v879
        %v2355 = vunpack.c.h.b16 %v879
        %v2356 = vunpack.c.l.b16 %v880
        %v2357 = vunpack.c.h.b16 %v880
        %v2358 = vunpack.c.l.b16 %v881
        %v2359 = vunpack.c.h.b16 %v881
        %v2360 = vunpack.c.l.b16 %v882
        %v2361 = vunpack.c.h.b16 %v882
        %v2362 = vunpack.c.l.b16 %v883
        %v2363 = vunpack.c.h.b16 %v883
        %v2364 = vunpack.c.l.b16 %v884
        %v2365 = vunpack.c.h.b16 %v884
        %v2366 = vunpack.c.l.b16 %v885
        %v2367 = vunpack.c.h.b16 %v885
        %v2368 = vunpack.c.l.b16 %v886
        %v2369 = vunpack.c.h.b16 %v886
        %v2370 = vunpack.c.l.b16 %v887
        %v2371 = vunpack.c.h.b16 %v887
        %v2372 = vunpack.c.l.b16 %v888
        %v2373 = vunpack.c.h.b16 %v888
        %v2374 = vunpack.c.l.b16 %v889
        %v2375 = vunpack.c.h.b16 %v889
        %v2376 = vunpack.c.l.b16 %v890
        %v2377 = vunpack.c.h.b16 %v890
        %v2378 = vunpack.c.l.b16 %v891
        %v2379 = vunpack.c.h.b16 %v891
        %v2380 = vunpack.c.l.b16 %v892
        %v2381 = vunpack.c.h.b16 %v892
        %v2382 = vunpack.c.l.b16 %v893
        %v2383 = vunpack.c.h.b16 %v893
        %v2384 = vunpack.c.l.b16 %v894
        %v2385 = vunpack.c.h.b16 %v894
        %v2386 = vunpack.c.l.b16 %v895
        %v2387 = vunpack.c.h.b16 %v895
        %v2388 = vunpack.c.l.b16 %v896
        %v2389 = vunpack.c.h.b16 %v896
        %v2390 = vunpack.c.l.b16 %v897
        %v2391 = vunpack.c.h.b16 %v897
        %v2392 = vunpack.c.l.b16 %v898
        %v2393 = vunpack.c.h.b16 %v898
        %v2394 = vunpack.c.l.b16 %v899
        %v2395 = vunpack.c.h.b16 %v899
        %v2396 = vunpack.c.l.b16 %v900
        %v2397 = vunpack.c.h.b16 %v900
        %v2398 = vunpack.c.l.b16 %v901
        %v2399 = vunpack.c.h.b16 %v901
        %v2400 = vunpack.c.l.b16 %v902
        %v2401 = vunpack.c.h.b16 %v902
        %v2402 = vunpack.c.l.b16 %v903
        %v2403 = vunpack.c.h.b16 %v903
        %v2404 = vunpack.c.l.b16 %v904
        %v2405 = vunpack.c.h.b16 %v904
        %v2406 = vunpack.c.l.b16 %v905
        %v2407 = vunpack.c.h.b16 %v905
        %v2408 = vunpack.c.l.b16 %v906
        %v2409 = vunpack.c.h.b16 %v906
        %v2410 = vunpack.c.l.b16 %v907
        %v2411 = vunpack.c.h.b16 %v907
        %v2412 = vunpack.c.l.b16 %v908
        %v2413 = vunpack.c.h.b16 %v908
        %v2414 = vunpack.c.l.b16 %v909
        %v2415 = vunpack.c.h.b16 %v909
        %v2416 = vunpack.c.l.b16 %v910
        %v2417 = vunpack.c.h.b16 %v910
        %v2418 = vunpack.c.l.b16 %v911
        %v2419 = vunpack.c.h.b16 %v911
        %v2420 = vunpack.c.l.b16 %v912
        %v2421 = vunpack.c.h.b16 %v912
        %v2422 = vunpack.c.l.b16 %v913
        %v2423 = vunpack.c.h.b16 %v913
        %v2424 = vunpack.c.l.b16 %v914
        %v2425 = vunpack.c.h.b16 %v914
        %v2426 = vunpack.c.l.b16 %v915
        %v2427 = vunpack.c.h.b16 %v915
        %v2428 = vunpack.c.l.b16 %v916
        %v2429 = vunpack.c.h.b16 %v916
        %v2430 = vunpack.c.l.b16 %v917
        %v2431 = vunpack.c.h.b16 %v917
        %v2432 = vunpack.c.l.b16 %v918
        %v2433 = vunpack.c.h.b16 %v918
        %v2434 = vunpack.c.l.b16 %v919
        %v2435 = vunpack.c.h.b16 %v919
        %v2436 = vunpack.c.l.b16 %v920
        %v2437 = vunpack.c.h.b16 %v920
        %v2438 = vunpack.c.l.b16 %v921
        %v2439 = vunpack.c.h.b16 %v921
        %v2440 = vunpack.c.l.b16 %v922
        %v2441 = vunpack.c.h.b16 %v922
        %v2442 = vunpack.c.l.b16 %v923
        %v2443 = vunpack.c.h.b16 %v923
        %v2444 = vunpack.c.l.b16 %v924
        %v2445 = vunpack.c.h.b16 %v924
        %v2446 = vunpack.c.l.b16 %v925
        %v2447 = vunpack.c.h.b16 %v925
        %v2448 = vunpack.c.l.b16 %v926
        %v2449 = vunpack.c.h.b16 %v926
        %v2450 = vunpack.c.l.b16 %v927
        %v2451 = vunpack.c.h.b16 %v927
        %v2452 = vunpack.c.l.b16 %v928
        %v2453 = vunpack.c.h.b16 %v928
        %v2454 = vunpack.c.l.b16 %v929
        %v2455 = vunpack.c.h.b16 %v929
        %v2456 = vunpack.c.l.b16 %v930
        %v2457 = vunpack.c.h.b16 %v930
        %v2458 = vunpack.c.l.b16 %v931
        %v2459 = vunpack.c.h.b16 %v931
        %v2460 = vunpack.c.l.b16 %v932
        %v2461 = vunpack.c.h.b16 %v932
        %v2462 = vunpack.c.l.b16 %v933
        %v2463 = vunpack.c.h.b16 %v933
        %v2464 = vunpack.c.l.b16 %v934
        %v2465 = vunpack.c.h.b16 %v934
        %v2466 = vunpack.c.l.b16 %v935
        %v2467 = vunpack.c.h.b16 %v935
        %v2468 = vunpack.c.l.b16 %v936
        %v2469 = vunpack.c.h.b16 %v936
        %v2470 = vunpack.c.l.b16 %v937
        %v2471 = vunpack.c.h.b16 %v937
        %v2472 = vunpack.c.l.b16 %v938
        %v2473 = vunpack.c.h.b16 %v938
        %v2474 = vunpack.c.l.b16 %v939
        %v2475 = vunpack.c.h.b16 %v939
        %v2476 = vunpack.c.l.b16 %v940
        %v2477 = vunpack.c.h.b16 %v940
        %v2478 = vunpack.c.l.b16 %v941
        %v2479 = vunpack.c.h.b16 %v941
        %v2480 = vunpack.c.l.b16 %v942
        %v2481 = vunpack.c.h.b16 %v942
        %v2482 = vunpack.c.l.b16 %v943
        %v2483 = vunpack.c.h.b16 %v943
        %v2484 = vunpack.c.l.b16 %v944
        %v2485 = vunpack.c.h.b16 %v944
        %v2486 = vunpack.c.l.b16 %v945
        %v2487 = vunpack.c.h.b16 %v945
        %v2488 = vunpack.c.l.b16 %v946
        %v2489 = vunpack.c.h.b16 %v946
        %v2490 = vunpack.c.l.b16 %v947
        %v2491 = vunpack.c.h.b16 %v947
        %v2492 = vunpack.c.l.b16 %v948
        %v2493 = vunpack.c.h.b16 %v948
        %v2494 = vunpack.c.l.b16 %v949
        %v2495 = vunpack.c.h.b16 %v949
        %v2496 = vunpack.c.l.b16 %v950
        %v2497 = vunpack.c.h.b16 %v950
        %v2498 = vunpack.c.l.b16 %v951
        %v2499 = vunpack.c.h.b16 %v951
        %v2500 = vunpack.c.l.b16 %v952
        %v2501 = vunpack.c.h.b16 %v952
        %v2502 = vunpack.c.l.b16 %v953
        %v2503 = vunpack.c.h.b16 %v953
        %v2504 = vunpack.c.l.b16 %v954
        %v2505 = vunpack.c.h.b16 %v954
        %v2506 = vunpack.c.l.b16 %v955
        %v2507 = vunpack.c.h.b16 %v955
        %v2508 = vunpack.c.l.b16 %v956
        %v2509 = vunpack.c.h.b16 %v956
        %v2510 = vunpack.c.l.b16 %v957
        %v2511 = vunpack.c.h.b16 %v957
        %v2512 = vunpack.c.l.b16 %v958
        %v2513 = vunpack.c.h.b16 %v958
        %v2514 = vunpack.c.l.b16 %v959
        %v2515 = vunpack.c.h.b16 %v959
        %v2516 = vunpack.c.l.b16 %v960
        %v2517 = vunpack.c.h.b16 %v960
        %v2518 = vunpack.c.l.b16 %v961
        %v2519 = vunpack.c.h.b16 %v961
        %v2520 = vunpack.c.l.b16 %v962
        %v2521 = vunpack.c.h.b16 %v962
        %v2522 = vunpack.c.l.b16 %v963
        %v2523 = vunpack.c.h.b16 %v963
        %v2524 = vunpack.c.l.b16 %v964
        %v2525 = vunpack.c.h.b16 %v964
        %v2526 = vunpack.c.l.b16 %v965
        %v2527 = vunpack.c.h.b16 %v965
        %v2528 = vunpack.c.l.b16 %v966
        %v2529 = vunpack.c.h.b16 %v966
        %v2530 = vunpack.c.l.b16 %v967
        %v2531 = vunpack.c.h.b16 %v967
        %v2532 = vunpack.c.l.b16 %v968
        %v2533 = vunpack.c.h.b16 %v968
        %v2534 = vunpack.c.l.b16 %v969
        %v2535 = vunpack.c.h.b16 %v969
        %v2536 = vunpack.c.l.b16 %v970
        %v2537 = vunpack.c.h.b16 %v970
        %v2538 = vunpack.c.l.b16 %v971
        %v2539 = vunpack.c.h.b16 %v971
        %v2540 = vunpack.c.l.b16 %v972
        %v2541 = vunpack.c.h.b16 %v972
        %v2542 = vunpack.c.l.b16 %v973
        %v2543 = vunpack.c.h.b16 %v973
        %v2544 = vunpack.c.l.b16 %v974
        %v2545 = vunpack.c.h.b16 %v974
        %v2546 = vunpack.c.l.b16 %v975
        %v2547 = vunpack.c.h.b16 %v975
        %v2548 = vunpack.c.l.b16 %v976
        %v2549 = vunpack.c.h.b16 %v976
        %v2550 = vunpack.c.l.b16 %v977
        %v2551 = vunpack.c.h.b16 %v977
        %v2552 = vunpack.c.l.b16 %v978
        %v2553 = vunpack.c.h.b16 %v978
        %v2554 = vunpack.c.l.b16 %v979
        %v2555 = vunpack.c.h.b16 %v979
        %v2556 = vunpack.c.l.b16 %v980
        %v2557 = vunpack.c.h.b16 %v980
        %v2558 = vunpack.c.l.b16 %v981
        %v2559 = vunpack.c.h.b16 %v981
        %v2560 = vunpack.c.l.b16 %v982
        %v2561 = vunpack.c.h.b16 %v982
        %v2562 = vunpack.c.l.b16 %v983
        %v2563 = vunpack.c.h.b16 %v983
        %v2564 = vunpack.c.l.b16 %v984
        %v2565 = vunpack.c.h.b16 %v984
        %v2566 = vunpack.c.l.b16 %v985
        %v2567 = vunpack.c.h.b16 %v985
        %v2568 = vunpack.c.l.b16 %v986
        %v2569 = vunpack.c.h.b16 %v986
        %v2570 = vunpack.c.l.b16 %v987
        %v2571 = vunpack.c.h.b16 %v987
        %v2572 = vunpack.c.l.b16 %v988
        %v2573 = vunpack.c.h.b16 %v988
        %v2574 = vunpack.c.l.b16 %v989
        %v2575 = vunpack.c.h.b16 %v989
        %v2576 = vunpack.c.l.b16 %v990
        %v2577 = vunpack.c.h.b16 %v990
        %v2578 = vunpack.c.l.b16 %v991
        %v2579 = vunpack.c.h.b16 %v991
        %v2580 = vunpack.c.l.b16 %v992
        %v2581 = vunpack.c.h.b16 %v992
        %v2582 = vunpack.c.l.b16 %v993
        %v2583 = vunpack.c.h.b16 %v993
        %v2584 = vunpack.c.l.b16 %v994
        %v2585 = vunpack.c.h.b16 %v994
        %v2586 = vunpack.c.l.b16 %v995
        %v2587 = vunpack.c.h.b16 %v995
        %v2588 = vunpack.c.l.b16 %v996
        %v2589 = vunpack.c.h.b16 %v996
        %v2590 = vunpack.c.l.b16 %v997
        %v2591 = vunpack.c.h.b16 %v997
        %v2592 = vunpack.c.l.b16 %v998
        %v2593 = vunpack.c.h.b16 %v998
        %v2594 = vunpack.c.l.b16 %v999
        %v2595 = vunpack.c.h.b16 %v999
        %v2596 = vunpack.c.l.b16 %v1000
        %v2597 = vunpack.c.h.b16 %v1000
        %v2598 = vunpack.c.l.b16 %v1001
        %v2599 = vunpack.c.h.b16 %v1001
        %v2600 = vunpack.c.l.b16 %v1002
        %v2601 = vunpack.c.h.b16 %v1002
        %v2602 = vunpack.c.l.b16 %v1003
        %v2603 = vunpack.c.h.b16 %v1003
        %v2604 = vunpack.c.l.b16 %v1004
        %v2605 = vunpack.c.h.b16 %v1004
        %v2606 = vunpack.c.l.b16 %v1005
        %v2607 = vunpack.c.h.b16 %v1005
        %v2608 = vunpack.c.l.b16 %v1006
        %v2609 = vunpack.c.h.b16 %v1006
        %v2610 = vunpack.c.l.b16 %v1007
        %v2611 = vunpack.c.h.b16 %v1007
        %v2612 = vunpack.c.l.b16 %v1008
        %v2613 = vunpack.c.h.b16 %v1008
        %v2614 = vunpack.c.l.b16 %v1009
        %v2615 = vunpack.c.h.b16 %v1009
        %v2616 = vunpack.c.l.b16 %v1010
        %v2617 = vunpack.c.h.b16 %v1010
        %v2618 = vunpack.c.l.b16 %v1011
        %v2619 = vunpack.c.h.b16 %v1011
        %v2620 = vunpack.c.l.b16 %v1012
        %v2621 = vunpack.c.h.b16 %v1012
        %v2622 = vunpack.c.l.b16 %v1013
        %v2623 = vunpack.c.h.b16 %v1013
        %v2624 = vunpack.c.l.b16 %v1014
        %v2625 = vunpack.c.h.b16 %v1014
        %v2626 = vunpack.c.l.b16 %v1015
        %v2627 = vunpack.c.h.b16 %v1015
        %v2628 = vunpack.c.l.b16 %v1016
        %v2629 = vunpack.c.h.b16 %v1016
        %v2630 = vunpack.c.l.b16 %v1017
        %v2631 = vunpack.c.h.b16 %v1017
        %v2632 = vunpack.c.l.b16 %v1018
        %v2633 = vunpack.c.h.b16 %v1018
        %v2634 = vunpack.c.l.b16 %v1019
        %v2635 = vunpack.c.h.b16 %v1019
        %v2636 = vunpack.c.l.b16 %v1020
        %v2637 = vunpack.c.h.b16 %v1020
        %v2638 = vunpack.c.l.b16 %v1021
        %v2639 = vunpack.c.h.b16 %v1021
        %v2640 = vunpack.c.l.b16 %v1022
        %v2641 = vunpack.c.h.b16 %v1022
        %v2642 = vunpack.c.l.b16 %v1023
        %v2643 = vunpack.c.h.b16 %v1023
        %v2644 = vunpack.c.l.b16 %v1024
        %v2645 = vunpack.c.h.b16 %v1024
        %v2646 = vunpack.c.l.b16 %v1025
        %v2647 = vunpack.c.h.b16 %v1025
        %v2648 = vunpack.c.l.b16 %v1026
        %v2649 = vunpack.c.h.b16 %v1026
        %v2650 = vunpack.c.l.b16 %v1027
        %v2651 = vunpack.c.h.b16 %v1027
        %v2652 = vunpack.c.l.b16 %v1028
        %v2653 = vunpack.c.h.b16 %v1028
        %v2654 = vunpack.c.l.b16 %v1029
        %v2655 = vunpack.c.h.b16 %v1029
        %v2656 = vunpack.c.l.b16 %v1030
        %v2657 = vunpack.c.h.b16 %v1030
        %v2658 = vunpack.c.l.b16 %v1031
        %v2659 = vunpack.c.h.b16 %v1031
        %v2660 = vunpack.c.l.b16 %v1032
        %v2661 = vunpack.c.h.b16 %v1032
        %v2662 = vunpack.c.l.b16 %v1033
        %v2663 = vunpack.c.h.b16 %v1033
        %v2664 = vunpack.c.l.b16 %v1034
        %v2665 = vunpack.c.h.b16 %v1034
        %v2666 = vunpack.c.l.b16 %v1035
        %v2667 = vunpack.c.h.b16 %v1035
        %v2668 = vunpack.c.l.b16 %v1036
        %v2669 = vunpack.c.h.b16 %v1036
        %v2670 = vunpack.c.l.b16 %v1037
        %v2671 = vunpack.c.h.b16 %v1037
        %v2672 = vunpack.c.l.b16 %v1038
        %v2673 = vunpack.c.h.b16 %v1038
        %v2674 = vunpack.c.l.b16 %v1039
        %v2675 = vunpack.c.h.b16 %v1039
        %v2676 = vunpack.c.l.b16 %v1040
        %v2677 = vunpack.c.h.b16 %v1040
        %v2678 = vunpack.c.l.b16 %v1041
        %v2679 = vunpack.c.h.b16 %v1041
        %v2680 = vunpack.c.l.b16 %v1042
        %v2681 = vunpack.c.h.b16 %v1042
        %v2682 = vunpack.c.l.b16 %v1043
        %v2683 = vunpack.c.h.b16 %v1043
        %v2684 = vunpack.c.l.b16 %v1044
        %v2685 = vunpack.c.h.b16 %v1044
        %v2686 = vunpack.c.l.b16 %v1045
        %v2687 = vunpack.c.h.b16 %v1045
        %v2688 = vunpack.c.l.b16 %v1046
        %v2689 = vunpack.c.h.b16 %v1046
        %v2690 = vunpack.c.l.b16 %v1047
        %v2691 = vunpack.c.h.b16 %v1047
        %v2692 = vunpack.c.l.b16 %v1048
        %v2693 = vunpack.c.h.b16 %v1048
        %v2694 = vunpack.c.l.b16 %v1049
        %v2695 = vunpack.c.h.b16 %v1049
        %v2696 = vunpack.c.l.b16 %v1050
        %v2697 = vunpack.c.h.b16 %v1050
        %v2698 = vunpack.c.l.b16 %v1051
        %v2699 = vunpack.c.h.b16 %v1051
        %v2700 = vunpack.c.l.b16 %v1052
        %v2701 = vunpack.c.h.b16 %v1052
        %v2702 = vunpack.c.l.b16 %v1053
        %v2703 = vunpack.c.h.b16 %v1053
        %v2704 = vunpack.c.l.b16 %v1054
        %v2705 = vunpack.c.h.b16 %v1054
        %v2706 = vunpack.c.l.b16 %v1055
        %v2707 = vunpack.c.h.b16 %v1055
        %v2708 = vunpack.c.l.b16 %v1056
        %v2709 = vunpack.c.h.b16 %v1056
        %v2710 = vunpack.c.l.b16 %v1057
        %v2711 = vunpack.c.h.b16 %v1057
        %v2712 = vunpack.c.l.b16 %v1058
        %v2713 = vunpack.c.h.b16 %v1058
        %v2714 = vunpack.c.l.b16 %v1059
        %v2715 = vunpack.c.h.b16 %v1059
        %v2716 = vunpack.c.l.b16 %v1060
        %v2717 = vunpack.c.h.b16 %v1060
        %v2718 = vunpack.c.l.b16 %v1061
        %v2719 = vunpack.c.h.b16 %v1061
        %v2720 = vunpack.c.l.b16 %v1062
        %v2721 = vunpack.c.h.b16 %v1062
        %v2722 = vunpack.c.l.b16 %v1063
        %v2723 = vunpack.c.h.b16 %v1063
        %v2724 = vunpack.c.l.b16 %v1064
        %v2725 = vunpack.c.h.b16 %v1064
        %v2726 = vunpack.c.l.b16 %v1065
        %v2727 = vunpack.c.h.b16 %v1065
        %v2728 = vunpack.c.l.b16 %v1066
        %v2729 = vunpack.c.h.b16 %v1066
        %v2730 = vunpack.c.l.b16 %v1067
        %v2731 = vunpack.c.h.b16 %v1067
        %v2732 = vunpack.c.l.b16 %v1068
        %v2733 = vunpack.c.h.b16 %v1068
        %v2734 = vunpack.c.l.b16 %v1069
        %v2735 = vunpack.c.h.b16 %v1069
        %v2736 = vunpack.c.l.b16 %v1070
        %v2737 = vunpack.c.h.b16 %v1070
        %v2738 = vunpack.c.l.b16 %v1071
        %v2739 = vunpack.c.h.b16 %v1071
        %v2740 = vunpack.c.l.b16 %v1072
        %v2741 = vunpack.c.h.b16 %v1072
        %v2742 = vunpack.c.l.b16 %v1073
        %v2743 = vunpack.c.h.b16 %v1073
        %v2744 = vunpack.c.l.b16 %v1074
        %v2745 = vunpack.c.h.b16 %v1074
        %v2746 = vunpack.c.l.b16 %v1075
        %v2747 = vunpack.c.h.b16 %v1075
        %v2748 = vunpack.c.l.b16 %v1076
        %v2749 = vunpack.c.h.b16 %v1076
        %v2750 = vunpack.c.l.b16 %v1077
        %v2751 = vunpack.c.h.b16 %v1077
        %v2752 = vunpack.c.l.b16 %v1078
        %v2753 = vunpack.c.h.b16 %v1078
        %v2754 = vunpack.c.l.b16 %v1079
        %v2755 = vunpack.c.h.b16 %v1079
        %v2756 = vunpack.c.l.b16 %v1080
        %v2757 = vunpack.c.h.b16 %v1080
        %v2758 = vunpack.c.l.b16 %v1081
        %v2759 = vunpack.c.h.b16 %v1081
        %v2760 = vunpack.c.l.b16 %v1082
        %v2761 = vunpack.c.h.b16 %v1082
        %v2762 = vunpack.c.l.b16 %v1083
        %v2763 = vunpack.c.h.b16 %v1083
        %v2764 = vunpack.c.l.b16 %v1084
        %v2765 = vunpack.c.h.b16 %v1084
        %v2766 = vunpack.c.l.b16 %v1085
        %v2767 = vunpack.c.h.b16 %v1085
        %v2768 = vunpack.c.l.b16 %v1086
        %v2769 = vunpack.c.h.b16 %v1086
        %v2770 = vunpack.c.l.b16 %v1087
        %v2771 = vunpack.c.h.b16 %v1087
        %v2772 = vunpack.c.l.b16 %v1088
        %v2773 = vunpack.c.h.b16 %v1088
        %v2774 = vunpack.c.l.b16 %v1089
        %v2775 = vunpack.c.h.b16 %v1089
        %v2776 = vunpack.c.l.b16 %v1090
        %v2777 = vunpack.c.h.b16 %v1090
        %v2778 = vunpack.c.l.b16 %v1091
        %v2779 = vunpack.c.h.b16 %v1091
        %v2780 = vunpack.c.l.b16 %v1092
        %v2781 = vunpack.c.h.b16 %v1092
        %v2782 = vunpack.c.l.b16 %v1093
        %v2783 = vunpack.c.h.b16 %v1093
        %v2784 = vunpack.c.l.b16 %v1094
        %v2785 = vunpack.c.h.b16 %v1094
        %v2786 = vunpack.c.l.b16 %v1095
        %v2787 = vunpack.c.h.b16 %v1095
        %v2788 = vunpack.c.l.b16 %v1096
        %v2789 = vunpack.c.h.b16 %v1096
        %v2790 = vunpack.c.l.b16 %v1097
        %v2791 = vunpack.c.h.b16 %v1097
        %v2792 = vunpack.c.l.b16 %v1098
        %v2793 = vunpack.c.h.b16 %v1098
        %v2794 = vunpack.c.l.b16 %v1099
        %v2795 = vunpack.c.h.b16 %v1099
        %v2796 = vunpack.c.l.b16 %v1100
        %v2797 = vunpack.c.h.b16 %v1100
        %v2798 = vunpack.c.l.b16 %v1101
        %v2799 = vunpack.c.h.b16 %v1101
        %v2800 = vunpack.c.l.b16 %v1102
        %v2801 = vunpack.c.h.b16 %v1102
        %v2802 = vunpack.c.l.b16 %v1103
        %v2803 = vunpack.c.h.b16 %v1103
        %v2804 = vunpack.c.l.b16 %v1104
        %v2805 = vunpack.c.h.b16 %v1104
        %v2806 = vunpack.c.l.b16 %v1105
        %v2807 = vunpack.c.h.b16 %v1105
        %v2808 = vunpack.c.l.b16 %v1106
        %v2809 = vunpack.c.h.b16 %v1106
        %v2810 = vunpack.c.l.b16 %v1107
        %v2811 = vunpack.c.h.b16 %v1107
        %v2812 = vunpack.c.l.b16 %v1108
        %v2813 = vunpack.c.h.b16 %v1108
        %v2814 = vunpack.c.l.b16 %v1109
        %v2815 = vunpack.c.h.b16 %v1109
        %v2816 = vunpack.c.l.b16 %v1110
        %v2817 = vunpack.c.h.b16 %v1110
        %v2818 = vunpack.c.l.b16 %v1111
        %v2819 = vunpack.c.h.b16 %v1111
        %v2820 = vunpack.c.l.b16 %v1112
        %v2821 = vunpack.c.h.b16 %v1112
        %v2822 = vunpack.c.l.b16 %v1113
        %v2823 = vunpack.c.h.b16 %v1113
        %v2824 = vunpack.c.l.b16 %v1114
        %v2825 = vunpack.c.h.b16 %v1114
        %v2826 = vunpack.c.l.b16 %v1115
        %v2827 = vunpack.c.h.b16 %v1115
        %v2828 = vunpack.c.l.b16 %v1116
        %v2829 = vunpack.c.h.b16 %v1116
        %v2830 = vunpack.c.l.b16 %v1117
        %v2831 = vunpack.c.h.b16 %v1117
        %v2832 = vunpack.c.l.b16 %v1118
        %v2833 = vunpack.c.h.b16 %v1118
        %v2834 = vunpack.c.l.b16 %v1119
        %v2835 = vunpack.c.h.b16 %v1119
        %v2836 = vunpack.c.l.b16 %v1120
        %v2837 = vunpack.c.h.b16 %v1120
        %v2838 = vunpack.c.l.b16 %v1121
        %v2839 = vunpack.c.h.b16 %v1121
        %v2840 = vunpack.c.l.b16 %v1122
        %v2841 = vunpack.c.h.b16 %v1122
        %v2842 = vunpack.c.l.b16 %v1123
        %v2843 = vunpack.c.h.b16 %v1123
        %v2844 = vunpack.c.l.b16 %v1124
        %v2845 = vunpack.c.h.b16 %v1124
        %v2846 = vunpack.c.l.b16 %v1125
        %v2847 = vunpack.c.h.b16 %v1125
        %v2848 = vunpack.c.l.b16 %v1126
        %v2849 = vunpack.c.h.b16 %v1126
        %v2850 = vunpack.c.l.b16 %v1127
        %v2851 = vunpack.c.h.b16 %v1127
        %v2852 = vunpack.c.l.b16 %v1128
        %v2853 = vunpack.c.h.b16 %v1128
        %v2854 = vunpack.c.l.b16 %v1129
        %v2855 = vunpack.c.h.b16 %v1129
        %v2856 = vunpack.c.l.b16 %v1130
        %v2857 = vunpack.c.h.b16 %v1130
        %v2858 = vunpack.c.l.b16 %v1131
        %v2859 = vunpack.c.h.b16 %v1131
        %v2860 = vunpack.c.l.b16 %v1132
        %v2861 = vunpack.c.h.b16 %v1132
        %v2862 = vunpack.c.l.b16 %v1133
        %v2863 = vunpack.c.h.b16 %v1133
        %v2864 = vunpack.c.l.b16 %v1134
        %v2865 = vunpack.c.h.b16 %v1134
        %v2866 = vunpack.c.l.b16 %v1135
        %v2867 = vunpack.c.h.b16 %v1135
        %v2868 = vunpack.c.l.b16 %v1136
        %v2869 = vunpack.c.h.b16 %v1136
        %v2870 = vunpack.c.l.b16 %v1137
        %v2871 = vunpack.c.h.b16 %v1137
        %v2872 = vunpack.c.l.b16 %v1138
        %v2873 = vunpack.c.h.b16 %v1138
        %v2874 = vunpack.c.l.b16 %v1139
        %v2875 = vunpack.c.h.b16 %v1139
        %v2876 = vunpack.c.l.b16 %v1140
        %v2877 = vunpack.c.h.b16 %v1140
        %v2878 = vunpack.c.l.b16 %v1141
        %v2879 = vunpack.c.h.b16 %v1141
        %v2880 = vunpack.c.l.b16 %v1142
        %v2881 = vunpack.c.h.b16 %v1142
        %v2882 = vunpack.c.l.b16 %v1143
        %v2883 = vunpack.c.h.b16 %v1143
        %v2884 = vunpack.c.l.b16 %v1144
        %v2885 = vunpack.c.h.b16 %v1144
        %v2886 = vunpack.c.l.b16 %v1145
        %v2887 = vunpack.c.h.b16 %v1145
        %v2888 = vunpack.c.l.b16 %v1146
        %v2889 = vunpack.c.h.b16 %v1146
        %v2890 = vunpack.c.l.b16 %v1147
        %v2891 = vunpack.c.h.b16 %v1147
        %v2892 = vunpack.c.l.b16 %v1148
        %v2893 = vunpack.c.h.b16 %v1148
        %v2894 = vunpack.c.l.b16 %v1149
        %v2895 = vunpack.c.h.b16 %v1149
        %v2896 = vunpack.c.l.b16 %v1150
        %v2897 = vunpack.c.h.b16 %v1150
        %v2898 = vunpack.c.l.b16 %v1151
        %v2899 = vunpack.c.h.b16 %v1151
        %v2900 = vunpack.c.l.b16 %v1152
        %v2901 = vunpack.c.h.b16 %v1152
        %v2902 = vunpack.c.l.b16 %v1153
        %v2903 = vunpack.c.h.b16 %v1153
        %v2904 = vunpack.c.l.b16 %v1154
        %v2905 = vunpack.c.h.b16 %v1154
        %v2906 = vunpack.c.l.b16 %v1155
        %v2907 = vunpack.c.h.b16 %v1155
        %v2908 = vunpack.c.l.b16 %v1156
        %v2909 = vunpack.c.h.b16 %v1156
        %v2910 = vunpack.c.l.b16 %v1157
        %v2911 = vunpack.c.h.b16 %v1157
        %v2912 = vunpack.c.l.b16 %v1158
        %v2913 = vunpack.c.h.b16 %v1158
        %v2914 = vunpack.c.l.b16 %v1159
        %v2915 = vunpack.c.h.b16 %v1159
        %v2916 = vunpack.c.l.b16 %v1160
        %v2917 = vunpack.c.h.b16 %v1160
        %v2918 = vunpack.c.l.b16 %v1161
        %v2919 = vunpack.c.h.b16 %v1161
        %v2920 = vunpack.c.l.b16 %v1162
        %v2921 = vunpack.c.h.b16 %v1162
        %v2922 = vunpack.c.l.b16 %v1163
        %v2923 = vunpack.c.h.b16 %v1163
        %v2924 = vunpack.c.l.b16 %v1164
        %v2925 = vunpack.c.h.b16 %v1164
        %v2926 = vunpack.c.l.b16 %v1165
        %v2927 = vunpack.c.h.b16 %v1165
        %v2928 = vunpack.c.l.b16 %v1166
        %v2929 = vunpack.c.h.b16 %v1166
        %v2930 = vunpack.c.l.b16 %v1167
        %v2931 = vunpack.c.h.b16 %v1167
        %v2932 = vunpack.c.l.b16 %v1168
        %v2933 = vunpack.c.h.b16 %v1168
        %v2934 = vunpack.c.l.b16 %v1169
        %v2935 = vunpack.c.h.b16 %v1169
        %v2936 = vunpack.c.l.b16 %v1170
        %v2937 = vunpack.c.h.b16 %v1170
        %v2938 = vunpack.c.l.b16 %v1171
        %v2939 = vunpack.c.h.b16 %v1171
        %v2940 = vunpack.c.l.b16 %v1172
        %v2941 = vunpack.c.h.b16 %v1172
        %v2942 = vunpack.c.l.b16 %v1173
        %v2943 = vunpack.c.h.b16 %v1173
        %v2944 = vunpack.c.l.b16 %v1174
        %v2945 = vunpack.c.h.b16 %v1174
        %v2946 = vunpack.c.l.b16 %v1175
        %v2947 = vunpack.c.h.b16 %v1175
        %v2948 = vunpack.c.l.b16 %v1176
        %v2949 = vunpack.c.h.b16 %v1176
        %v2950 = vunpack.c.l.b16 %v1177
        %v2951 = vunpack.c.h.b16 %v1177
        %v2952 = vunpack.c.l.b16 %v1178
        %v2953 = vunpack.c.h.b16 %v1178
        %v2954 = vunpack.c.l.b16 %v1179
        %v2955 = vunpack.c.h.b16 %v1179
        %v2956 = vunpack.c.l.b16 %v1180
        %v2957 = vunpack.c.h.b16 %v1180
        %v2958 = vunpack.c.l.b16 %v1181
        %v2959 = vunpack.c.h.b16 %v1181
        %v2960 = vunpack.c.l.b16 %v1182
        %v2961 = vunpack.c.h.b16 %v1182
        %v2962 = vunpack.c.l.b16 %v1183
        %v2963 = vunpack.c.h.b16 %v1183
        %v2964 = vunpack.c.l.b16 %v1184
        %v2965 = vunpack.c.h.b16 %v1184
        %v2966 = vunpack.c.l.b16 %v1185
        %v2967 = vunpack.c.h.b16 %v1185
        %v2968 = vunpack.c.l.b16 %v1186
        %v2969 = vunpack.c.h.b16 %v1186
        %v2970 = vunpack.c.l.b16 %v1187
        %v2971 = vunpack.c.h.b16 %v1187
        %v2972 = vunpack.c.l.b16 %v1188
        %v2973 = vunpack.c.h.b16 %v1188
        %v2974 = vunpack.c.l.b16 %v1189
        %v2975 = vunpack.c.h.b16 %v1189
        %v2976 = vunpack.c.l.b16 %v1190
        %v2977 = vunpack.c.h.b16 %v1190
        %v2978 = vunpack.c.l.b16 %v1191
        %v2979 = vunpack.c.h.b16 %v1191
        %v2980 = vunpack.c.l.b16 %v1192
        %v2981 = vunpack.c.h.b16 %v1192
        %v2982 = vunpack.c.l.b16 %v1193
        %v2983 = vunpack.c.h.b16 %v1193
        %v2984 = vunpack.c.l.b16 %v1194
        %v2985 = vunpack.c.h.b16 %v1194
        %v2986 = vunpack.c.l.b16 %v1195
        %v2987 = vunpack.c.h.b16 %v1195
        %v2988 = vunpack.c.l.b16 %v1196
        %v2989 = vunpack.c.h.b16 %v1196
        %v2990 = vunpack.c.l.b16 %v1197
        %v2991 = vunpack.c.h.b16 %v1197
        %v2992 = vunpack.c.l.b16 %v1198
        %v2993 = vunpack.c.h.b16 %v1198
        %v2994 = vunpack.c.l.b16 %v1199
        %v2995 = vunpack.c.h.b16 %v1199
        %v2996 = vunpack.c.l.b16 %v1200
        %v2997 = vunpack.c.h.b16 %v1200
        %v2998 = vunpack.c.l.b16 %v1201
        %v2999 = vunpack.c.h.b16 %v1201
        %v3000 = vunpack.c.l.b16 %v1202
        %v3001 = vunpack.c.h.b16 %v1202
        %v3002 = vunpack.c.l.b16 %v1203
        %v3003 = vunpack.c.h.b16 %v1203
        %v3004 = vunpack.c.l.b16 %v1204
        %v3005 = vunpack.c.h.b16 %v1204
        %v3006 = vunpack.c.l.b16 %v1205
        %v3007 = vunpack.c.h.b16 %v1205
        %v3008 = vunpack.c.l.b16 %v1206
        %v3009 = vunpack.c.h.b16 %v1206
        %v3010 = vunpack.c.l.b16 %v1207
        %v3011 = vunpack.c.h.b16 %v1207
        %v3012 = vunpack.c.l.b16 %v1208
        %v3013 = vunpack.c.h.b16 %v1208
        %v3014 = vunpack.c.l.b16 %v1209
        %v3015 = vunpack.c.h.b16 %v1209
        %v3016 = vunpack.c.l.b16 %v1210
        %v3017 = vunpack.c.h.b16 %v1210
        %v3018 = vunpack.c.l.b16 %v1211
        %v3019 = vunpack.c.h.b16 %v1211
        %v3020 = vunpack.c.l.b16 %v1212
        %v3021 = vunpack.c.h.b16 %v1212
        %v3022 = vunpack.c.l.b16 %v1213
        %v3023 = vunpack.c.h.b16 %v1213
        %v3024 = vunpack.c.l.b16 %v1214
        %v3025 = vunpack.c.h.b16 %v1214
        %v3026 = vunpack.c.l.b16 %v1215
        %v3027 = vunpack.c.h.b16 %v1215
        %v3028 = vunpack.c.l.b16 %v1216
        %v3029 = vunpack.c.h.b16 %v1216
        %v3030 = vunpack.c.l.b16 %v1217
        %v3031 = vunpack.c.h.b16 %v1217
        %v3032 = vunpack.c.l.b16 %v1218
        %v3033 = vunpack.c.h.b16 %v1218
        %v3034 = vunpack.c.l.b16 %v1219
        %v3035 = vunpack.c.h.b16 %v1219
        %v3036 = vunpack.c.l.b16 %v1220
        %v3037 = vunpack.c.h.b16 %v1220
        %v3038 = vunpack.c.l.b16 %v1221
        %v3039 = vunpack.c.h.b16 %v1221
        %v3040 = vunpack.c.l.b16 %v1222
        %v3041 = vunpack.c.h.b16 %v1222
        %v3042 = vunpack.c.l.b16 %v1223
        %v3043 = vunpack.c.h.b16 %v1223
        %v3044 = vunpack.c.l.b16 %v1224
        %v3045 = vunpack.c.h.b16 %v1224
        %v3046 = vunpack.c.l.b16 %v1225
        %v3047 = vunpack.c.h.b16 %v1225
        %v3048 = vunpack.c.l.b16 %v1226
        %v3049 = vunpack.c.h.b16 %v1226
        %v3050 = vunpack.c.l.b16 %v1227
        %v3051 = vunpack.c.h.b16 %v1227
        %v3052 = vunpack.c.l.b16 %v1228
        %v3053 = vunpack.c.h.b16 %v1228
        %v3054 = vunpack.c.l.b16 %v1229
        %v3055 = vunpack.c.h.b16 %v1229
        %v3056 = vunpack.c.l.b16 %v1230
        %v3057 = vunpack.c.h.b16 %v1230
        %v3058 = vunpack.c.l.b16 %v1231
        %v3059 = vunpack.c.h.b16 %v1231
        %v3060 = vunpack.c.l.b16 %v1232
        %v3061 = vunpack.c.h.b16 %v1232
        %v3062 = vunpack.c.l.b16 %v1233
        %v3063 = vunpack.c.h.b16 %v1233
        %v3064 = vunpack.c.l.b16 %v1234
        %v3065 = vunpack.c.h.b16 %v1234
        %v3066 = vunpack.c.l.b16 %v1235
        %v3067 = vunpack.c.h.b16 %v1235
        %v3068 = vunpack.c.l.b16 %v1236
        %v3069 = vunpack.c.h.b16 %v1236
        %v3070 = vunpack.c.l.b16 %v1237
        %v3071 = vunpack.c.h.b16 %v1237
        %v3072 = vunpack.c.l.b16 %v1238
        %v3073 = vunpack.c.h.b16 %v1238
        %v3074 = vunpack.c.l.b16 %v1239
        %v3075 = vunpack.c.h.b16 %v1239
        %v3076 = vunpack.c.l.b16 %v1240
        %v3077 = vunpack.c.h.b16 %v1240
        %v3078 = vunpack.c.l.b16 %v1241
        %v3079 = vunpack.c.h.b16 %v1241
        %v3080 = vunpack.c.l.b16 %v1242
        %v3081 = vunpack.c.h.b16 %v1242
        %v3082 = vunpack.c.l.b16 %v1243
        %v3083 = vunpack.c.h.b16 %v1243
        %v3084 = vunpack.c.l.b16 %v1244
        %v3085 = vunpack.c.h.b16 %v1244
        %v3086 = vunpack.c.l.b16 %v1245
        %v3087 = vunpack.c.h.b16 %v1245
        %v3088 = vunpack.c.l.b16 %v1246
        %v3089 = vunpack.c.h.b16 %v1246
        %v3090 = vunpack.c.l.b16 %v1247
        %v3091 = vunpack.c.h.b16 %v1247
        %v3092 = vunpack.c.l.b16 %v1248
        %v3093 = vunpack.c.h.b16 %v1248
        %v3094 = vunpack.c.l.b16 %v1249
        %v3095 = vunpack.c.h.b16 %v1249
        %v3096 = vunpack.c.l.b16 %v1250
        %v3097 = vunpack.c.h.b16 %v1250
        %v3098 = vunpack.c.l.b16 %v1251
        %v3099 = vunpack.c.h.b16 %v1251
        %v3100 = vunpack.c.l.b16 %v1252
        %v3101 = vunpack.c.h.b16 %v1252
        %v3102 = vunpack.c.l.b16 %v1253
        %v3103 = vunpack.c.h.b16 %v1253
        %v3104 = vunpack.c.l.b16 %v1254
        %v3105 = vunpack.c.h.b16 %v1254
        %v3106 = vunpack.c.l.b16 %v1255
        %v3107 = vunpack.c.h.b16 %v1255
        %v3108 = vunpack.c.l.b16 %v1256
        %v3109 = vunpack.c.h.b16 %v1256
        %v3110 = vunpack.c.l.b16 %v1257
        %v3111 = vunpack.c.h.b16 %v1257
        %v3112 = vunpack.c.l.b16 %v1258
        %v3113 = vunpack.c.h.b16 %v1258
        %v3114 = vunpack.c.l.b16 %v1259
        %v3115 = vunpack.c.h.b16 %v1259
        %v3116 = vunpack.c.l.b16 %v1260
        %v3117 = vunpack.c.h.b16 %v1260
        %v3118 = vunpack.c.l.b16 %v1261
        %v3119 = vunpack.c.h.b16 %v1261
        %v3120 = vunpack.c.l.b16 %v1262
        %v3121 = vunpack.c.h.b16 %v1262
        %v3122 = vunpack.c.l.b16 %v1263
        %v3123 = vunpack.c.h.b16 %v1263
        %v3124 = vunpack.c.l.b16 %v1264
        %v3125 = vunpack.c.h.b16 %v1264
        %v3126 = vunpack.c.l.b16 %v1265
        %v3127 = vunpack.c.h.b16 %v1265
        %v3128 = vunpack.c.l.b16 %v1266
        %v3129 = vunpack.c.h.b16 %v1266
        %v3130 = vunpack.c.l.b16 %v1267
        %v3131 = vunpack.c.h.b16 %v1267
        %v3132 = vunpack.c.l.b16 %v1268
        %v3133 = vunpack.c.h.b16 %v1268
        %v3134 = vunpack.c.l.b16 %v1269
        %v3135 = vunpack.c.h.b16 %v1269
        %v3136 = vunpack.c.l.b16 %v1270
        %v3137 = vunpack.c.h.b16 %v1270
        %v3138 = vunpack.c.l.b16 %v1271
        %v3139 = vunpack.c.h.b16 %v1271
        %v3140 = vunpack.c.l.b16 %v1272
        %v3141 = vunpack.c.h.b16 %v1272
        %v3142 = vunpack.c.l.b16 %v1273
        %v3143 = vunpack.c.h.b16 %v1273
        %v3144 = vunpack.c.l.b16 %v1274
        %v3145 = vunpack.c.h.b16 %v1274
        %v3146 = vunpack.c.l.b16 %v1275
        %v3147 = vunpack.c.h.b16 %v1275
        %v3148 = vunpack.c.l.b16 %v1276
        %v3149 = vunpack.c.h.b16 %v1276
        %v3150 = vunpack.c.l.b16 %v1277
        %v3151 = vunpack.c.h.b16 %v1277
        %v3152 = vunpack.c.l.b16 %v1278
        %v3153 = vunpack.c.h.b16 %v1278
        %v3154 = vunpack.c.l.b16 %v1279
        %v3155 = vunpack.c.h.b16 %v1279
        %v3156 = vunpack.c.l.b16 %v1280
        %v3157 = vunpack.c.h.b16 %v1280
        %v3158 = vunpack.c.l.b16 %v1281
        %v3159 = vunpack.c.h.b16 %v1281
        %v3160 = vunpack.c.l.b16 %v1282
        %v3161 = vunpack.c.h.b16 %v1282
        %v3162 = vunpack.c.l.b16 %v1283
        %v3163 = vunpack.c.h.b16 %v1283
        %v3164 = vunpack.c.l.b16 %v1284
        %v3165 = vunpack.c.h.b16 %v1284
        %v3166 = vunpack.c.l.b16 %v1285
        %v3167 = vunpack.c.h.b16 %v1285
        %v3168 = vunpack.c.l.b16 %v1286
        %v3169 = vunpack.c.h.b16 %v1286
        %v3170 = vunpack.c.l.b16 %v1287
        %v3171 = vunpack.c.h.b16 %v1287
        %v3172 = vunpack.c.l.b16 %v1288
        %v3173 = vunpack.c.h.b16 %v1288
        %v3174 = vunpack.c.l.b16 %v1289
        %v3175 = vunpack.c.h.b16 %v1289
        %v3176 = vunpack.c.l.b16 %v1290
        %v3177 = vunpack.c.h.b16 %v1290
        %v3178 = vunpack.c.l.b16 %v1291
        %v3179 = vunpack.c.h.b16 %v1291
        %v3180 = vunpack.c.l.b16 %v1292
        %v3181 = vunpack.c.h.b16 %v1292
        %v3182 = vunpack.c.l.b16 %v1293
        %v3183 = vunpack.c.h.b16 %v1293
        %v3184 = vunpack.c.l.b16 %v1294
        %v3185 = vunpack.c.h.b16 %v1294
        %v3186 = vunpack.c.l.b16 %v1295
        %v3187 = vunpack.c.h.b16 %v1295
        %v3188 = vunpack.c.l.b16 %v1296
        %v3189 = vunpack.c.h.b16 %v1296
        %v3190 = vunpack.c.l.b16 %v1297
        %v3191 = vunpack.c.h.b16 %v1297
        %v3192 = vunpack.c.l.b16 %v1298
        %v3193 = vunpack.c.h.b16 %v1298
        %v3194 = vunpack.c.l.b16 %v1299
        %v3195 = vunpack.c.h.b16 %v1299
        %v3196 = vunpack.c.l.b16 %v1300
        %v3197 = vunpack.c.h.b16 %v1300
        %v3198 = vunpack.c.l.b16 %v1301
        %v3199 = vunpack.c.h.b16 %v1301
        %v3200 = vunpack.c.l.b16 %v1302
        %v3201 = vunpack.c.h.b16 %v1302
        %v3202 = vunpack.c.l.b16 %v1303
        %v3203 = vunpack.c.h.b16 %v1303
        %v3204 = vunpack.c.l.b16 %v1304
        %v3205 = vunpack.c.h.b16 %v1304
        %v3206 = vunpack.c.l.b16 %v1305
        %v3207 = vunpack.c.h.b16 %v1305
        %v3208 = vunpack.c.l.b16 %v1306
        %v3209 = vunpack.c.h.b16 %v1306
        %v3210 = vunpack.c.l.b16 %v1307
        %v3211 = vunpack.c.h.b16 %v1307
        %v3212 = vunpack.c.l.b16 %v1308
        %v3213 = vunpack.c.h.b16 %v1308
        %v3214 = vunpack.c.l.b16 %v1309
        %v3215 = vunpack.c.h.b16 %v1309
        %v3216 = vunpack.c.l.b16 %v1310
        %v3217 = vunpack.c.h.b16 %v1310
        %v3218 = vunpack.c.l.b16 %v1311
        %v3219 = vunpack.c.h.b16 %v1311
        %v3220 = vunpack.c.l.b16 %v1312
        %v3221 = vunpack.c.h.b16 %v1312
        %v3222 = vunpack.c.l.b16 %v1313
        %v3223 = vunpack.c.h.b16 %v1313
        %v3224 = vunpack.c.l.b16 %v1314
        %v3225 = vunpack.c.h.b16 %v1314
        %v3226 = vunpack.c.l.b16 %v1315
        %v3227 = vunpack.c.h.b16 %v1315
        %v3228 = vunpack.c.l.b16 %v1316
        %v3229 = vunpack.c.h.b16 %v1316
        %v3230 = vunpack.c.l.b16 %v1317
        %v3231 = vunpack.c.h.b16 %v1317
        %v3232 = vunpack.c.l.b16 %v1318
        %v3233 = vunpack.c.h.b16 %v1318
        %v3234 = vunpack.c.l.b16 %v1319
        %v3235 = vunpack.c.h.b16 %v1319
        %v3236 = vunpack.c.l.b16 %v1320
        %v3237 = vunpack.c.h.b16 %v1320
        %v3238 = vunpack.c.l.b16 %v1321
        %v3239 = vunpack.c.h.b16 %v1321
        %v3240 = vunpack.c.l.b16 %v1322
        %v3241 = vunpack.c.h.b16 %v1322
        %v3242 = vunpack.c.l.b16 %v1323
        %v3243 = vunpack.c.h.b16 %v1323
        %v3244 = vunpack.c.l.b16 %v1324
        %v3245 = vunpack.c.h.b16 %v1324
        %v3246 = vunpack.c.l.b16 %v1325
        %v3247 = vunpack.c.h.b16 %v1325
        %v3248 = vunpack.c.l.b16 %v1326
        %v3249 = vunpack.c.h.b16 %v1326
        %v3250 = vunpack.c.l.b16 %v1327
        %v3251 = vunpack.c.h.b16 %v1327
        %v3252 = vunpack.c.l.b16 %v1328
        %v3253 = vunpack.c.h.b16 %v1328
        %v3254 = vunpack.c.l.b16 %v1329
        %v3255 = vunpack.c.h.b16 %v1329
        %v3256 = vunpack.c.l.b16 %v1330
        %v3257 = vunpack.c.h.b16 %v1330
        %v3258 = vunpack.c.l.b16 %v1331
        %v3259 = vunpack.c.h.b16 %v1331
        %v3260 = vunpack.c.l.b16 %v1332
        %v3261 = vunpack.c.h.b16 %v1332
        %v3262 = vunpack.c.l.b16 %v1333
        %v3263 = vunpack.c.h.b16 %v1333
        %v3264 = vunpack.c.l.b16 %v1334
        %v3265 = vunpack.c.h.b16 %v1334
        %v3266 = vunpack.c.l.b16 %v1335
        %v3267 = vunpack.c.h.b16 %v1335
        %v3268 = vunpack.c.l.b16 %v1336
        %v3269 = vunpack.c.h.b16 %v1336
        %v3270 = vunpack.c.l.b16 %v1337
        %v3271 = vunpack.c.h.b16 %v1337
        %v3272 = vunpack.c.l.b16 %v1338
        %v3273 = vunpack.c.h.b16 %v1338
        %v3274 = vunpack.c.l.b16 %v1339
        %v3275 = vunpack.c.h.b16 %v1339
        %v3276 = vunpack.c.l.b16 %v1340
        %v3277 = vunpack.c.h.b16 %v1340
        %v3278 = vunpack.c.l.b16 %v1341
        %v3279 = vunpack.c.h.b16 %v1341
        %v3280 = vunpack.c.l.b16 %v1342
        %v3281 = vunpack.c.h.b16 %v1342
        %v3282 = vunpack.c.l.b16 %v1343
        %v3283 = vunpack.c.h.b16 %v1343
        %v3284 = vunpack.c.l.b16 %v1344
        %v3285 = vunpack.c.h.b16 %v1344
        %v3286 = vunpack.c.l.b16 %v1345
        %v3287 = vunpack.c.h.b16 %v1345
        %v3288 = vunpack.c.l.b16 %v1346
        %v3289 = vunpack.c.h.b16 %v1346
        %v3290 = vunpack.c.l.b16 %v1347
        %v3291 = vunpack.c.h.b16 %v1347
        %v3292 = vunpack.c.l.b16 %v1348
        %v3293 = vunpack.c.h.b16 %v1348
        %v3294 = vunpack.c.l.b16 %v1349
        %v3295 = vunpack.c.h.b16 %v1349
        %v3296 = vunpack.c.l.b16 %v1350
        %v3297 = vunpack.c.h.b16 %v1350
        %v3298 = vunpack.c.l.b16 %v1351
        %v3299 = vunpack.c.h.b16 %v1351
        %v3300 = vunpack.c.l.b16 %v1352
        %v3301 = vunpack.c.h.b16 %v1352
        %v3302 = vunpack.c.l.b16 %v1353
        %v3303 = vunpack.c.h.b16 %v1353
        %v3304 = vunpack.c.l.b16 %v1354
        %v3305 = vunpack.c.h.b16 %v1354
        %v3306 = vunpack.c.l.b16 %v1355
        %v3307 = vunpack.c.h.b16 %v1355
        %v3308 = vunpack.c.l.b16 %v1356
        %v3309 = vunpack.c.h.b16 %v1356
        %v3310 = vunpack.c.l.b16 %v1357
        %v3311 = vunpack.c.h.b16 %v1357
        %v3312 = vunpack.c.l.b16 %v1358
        %v3313 = vunpack.c.h.b16 %v1358
        %v3314 = vunpack.c.l.b16 %v1359
        %v3315 = vunpack.c.h.b16 %v1359
        %v3316 = vunpack.c.l.b16 %v1360
        %v3317 = vunpack.c.h.b16 %v1360
        %v3318 = vunpack.c.l.b16 %v1361
        %v3319 = vunpack.c.h.b16 %v1361
        %v3320 = vunpack.c.l.b16 %v1362
        %v3321 = vunpack.c.h.b16 %v1362
        %v3322 = vunpack.c.l.b16 %v1363
        %v3323 = vunpack.c.h.b16 %v1363
        %v3324 = vunpack.c.l.b16 %v1364
        %v3325 = vunpack.c.h.b16 %v1364
        %v3326 = vunpack.c.l.b16 %v1365
        %v3327 = vunpack.c.h.b16 %v1365
        %v3328 = vunpack.c.l.b16 %v1366
        %v3329 = vunpack.c.h.b16 %v1366
        %v3330 = vunpack.c.l.b16 %v1367
        %v3331 = vunpack.c.h.b16 %v1367
        %v3332 = vunpack.c.l.b16 %v1368
        %v3333 = vunpack.c.h.b16 %v1368
        %v3334 = vunpack.c.l.b16 %v1369
        %v3335 = vunpack.c.h.b16 %v1369
        %v3336 = vunpack.c.l.b16 %v1370
        %v3337 = vunpack.c.h.b16 %v1370
        %v3338 = vunpack.c.l.b16 %v1371
        %v3339 = vunpack.c.h.b16 %v1371
        %v3340 = vunpack.c.l.b16 %v1372
        %v3341 = vunpack.c.h.b16 %v1372
        %v3342 = vunpack.c.l.b16 %v1373
        %v3343 = vunpack.c.h.b16 %v1373
        %v3344 = vunpack.c.l.b16 %v1374
        %v3345 = vunpack.c.h.b16 %v1374
        %v3346 = vunpack.c.l.b16 %v1375
        %v3347 = vunpack.c.h.b16 %v1375
        %v3348 = vunpack.c.l.b16 %v1376
        %v3349 = vunpack.c.h.b16 %v1376
        %v3350 = vunpack.c.l.b16 %v1377
        %v3351 = vunpack.c.h.b16 %v1377
        %v3352 = vunpack.c.l.b16 %v1378
        %v3353 = vunpack.c.h.b16 %v1378
        %v3354 = vunpack.c.l.b16 %v1379
        %v3355 = vunpack.c.h.b16 %v1379
        %v3356 = vunpack.c.l.b16 %v1380
        %v3357 = vunpack.c.h.b16 %v1380
        %v3358 = vunpack.c.l.b16 %v1381
        %v3359 = vunpack.c.h.b16 %v1381
        %v3360 = vunpack.c.l.b16 %v1382
        %v3361 = vunpack.c.h.b16 %v1382
        %v3362 = vunpack.c.l.b16 %v1383
        %v3363 = vunpack.c.h.b16 %v1383
        %v3364 = vunpack.c.l.b16 %v1384
        %v3365 = vunpack.c.h.b16 %v1384
        %v3366 = vunpack.c.l.b16 %v1385
        %v3367 = vunpack.c.h.b16 %v1385
        %v3368 = vunpack.c.l.b16 %v1386
        %v3369 = vunpack.c.h.b16 %v1386
        %v3370 = vpack.c.b16 %v2188, %v2186
        %v3371 = vpack.c.b16 %v2189, %v2187
        %v3372 = vpack.c.b16 %v2192, %v2190
        %v3373 = vpack.c.b16 %v2193, %v2191
        %v3374 = vpack.c.b16 %v2196, %v2194
        %v3375 = vpack.c.b16 %v2197, %v2195
        %v3376 = vpack.c.b16 %v2200, %v2198
        %v3377 = vpack.c.b16 %v2201, %v2199
        %v3378 = vpack.c.b16 %v2204, %v2202
        %v3379 = vpack.c.b16 %v2205, %v2203
        %v3380 = vpack.c.b16 %v2208, %v2206
        %v3381 = vpack.c.b16 %v2209, %v2207
        %v3382 = vpack.c.b16 %v2212, %v2210
        %v3383 = vpack.c.b16 %v2213, %v2211
        %v3384 = vpack.c.b16 %v2216, %v2214
        %v3385 = vpack.c.b16 %v2217, %v2215
        %v3386 = vpack.c.b16 %v2220, %v2218
        %v3387 = vpack.c.b16 %v2221, %v2219
        %v3388 = vpack.c.b16 %v2224, %v2222
        %v3389 = vpack.c.b16 %v2225, %v2223
        %v3390 = vpack.c.b16 %v2228, %v2226
        %v3391 = vpack.c.b16 %v2229, %v2227
        %v3392 = vpack.c.b16 %v2232, %v2230
        %v3393 = vpack.c.b16 %v2233, %v2231
        %v3394 = vpack.c.b16 %v2236, %v2234
        %v3395 = vpack.c.b16 %v2237, %v2235
        %v3396 = vpack.c.b16 %v2240, %v2238
        %v3397 = vpack.c.b16 %v2241, %v2239
        %v3398 = vpack.c.b16 %v2244, %v2242
        %v3399 = vpack.c.b16 %v2245, %v2243
        %v3400 = vpack.c.b16 %v2248, %v2246
        %v3401 = vpack.c.b16 %v2249, %v2247
        %v3402 = vpack.c.b16 %v2252, %v2250
        %v3403 = vpack.c.b16 %v2253, %v2251
        %v3404 = vpack.c.b16 %v2256, %v2254
        %v3405 = vpack.c.b16 %v2257, %v2255
        %v3406 = vpack.c.b16 %v2260, %v2258
        %v3407 = vpack.c.b16 %v2261, %v2259
        %v3408 = vpack.c.b16 %v2264, %v2262
        %v3409 = vpack.c.b16 %v2265, %v2263
        %v3410 = vpack.c.b16 %v2268, %v2266
        %v3411 = vpack.c.b16 %v2269, %v2267
        %v3412 = vpack.c.b16 %v2272, %v2270
        %v3413 = vpack.c.b16 %v2273, %v2271
        %v3414 = vpack.c.b16 %v2276, %v2274
        %v3415 = vpack.c.b16 %v2277, %v2275
        %v3416 = vpack.c.b16 %v2280, %v2278
        %v3417 = vpack.c.b16 %v2281, %v2279
        %v3418 = vpack.c.b16 %v2284, %v2282
        %v3419 = vpack.c.b16 %v2285, %v2283
        %v3420 = vpack.c.b16 %v2288, %v2286
        %v3421 = vpack.c.b16 %v2289, %v2287
        %v3422 = vpack.c.b16 %v2292, %v2290
        %v3423 = vpack.c.b16 %v2293, %v2291
        %v3424 = vpack.c.b16 %v2296, %v2294
        %v3425 = vpack.c.b16 %v2297, %v2295
        %v3426 = vpack.c.b16 %v2300, %v2298
        %v3427 = vpack.c.b16 %v2301, %v2299
        %v3428 = vpack.c.b16 %v2304, %v2302
        %v3429 = vpack.c.b16 %v2305, %v2303
        %v3430 = vpack.c.b16 %v2308, %v2306
        %v3431 = vpack.c.b16 %v2309, %v2307
        %v3432 = vpack.c.b16 %v2312, %v2310
        %v3433 = vpack.c.b16 %v2313, %v2311
        %v3434 = vpack.c.b16 %v2316, %v2314
        %v3435 = vpack.c.b16 %v2317, %v2315
        %v3436 = vpack.c.b16 %v2320, %v2318
        %v3437 = vpack.c.b16 %v2321, %v2319
        %v3438 = vpack.c.b16 %v2324, %v2322
        %v3439 = vpack.c.b16 %v2325, %v2323
        %v3440 = vpack.c.b16 %v2328, %v2326
        %v3441 = vpack.c.b16 %v2329, %v2327
        %v3442 = vpack.c.b16 %v2332, %v2330
        %v3443 = vpack.c.b16 %v2333, %v2331
        %v3444 = vpack.c.b16 %v2336, %v2334
        %v3445 = vpack.c.b16 %v2337, %v2335
        %v3446 = vpack.c.b16 %v2340, %v2338
        %v3447 = vpack.c.b16 %v2341, %v2339
        %v3448 = vpack.c.b16 %v2344, %v2342
        %v3449 = vpack.c.b16 %v2345, %v2343
        %v3450 = vpack.c.b16 %v2348, %v2346
        %v3451 = vpack.c.b16 %v2349, %v2347
        %v3452 = vpack.c.b16 %v2352, %v2350
        %v3453 = vpack.c.b16 %v2353, %v2351
        %v3454 = vpack.c.b16 %v2356, %v2354
        %v3455 = vpack.c.b16 %v2357, %v2355
        %v3456 = vpack.c.b16 %v2360, %v2358
        %v3457 = vpack.c.b16 %v2361, %v2359
        %v3458 = vpack.c.b16 %v2364, %v2362
        %v3459 = vpack.c.b16 %v2365, %v2363
        %v3460 = vpack.c.b16 %v2368, %v2366
        %v3461 = vpack.c.b16 %v2369, %v2367
        %v3462 = vpack.c.b16 %v2372, %v2370
        %v3463 = vpack.c.b16 %v2373, %v2371
        %v3464 = vpack.c.b16 %v2376, %v2374
        %v3465 = vpack.c.b16 %v2377, %v2375
        %v3466 = vpack.c.b16 %v2380, %v2378
        %v3467 = vpack.c.b16 %v2381, %v2379
        %v3468 = vpack.c.b16 %v2384, %v2382
        %v3469 = vpack.c.b16 %v2385, %v2383
        %v3470 = vpack.c.b16 %v2388, %v2386
        %v3471 = vpack.c.b16 %v2389, %v2387
        %v3472 = vpack.c.b16 %v2392, %v2390
        %v3473 = vpack.c.b16 %v2393, %v2391
        %v3474 = vpack.c.b16 %v2396, %v2394
        %v3475 = vpack.c.b16 %v2397, %v2395
        %v3476 = vpack.c.b16 %v2400, %v2398
        %v3477 = vpack.c.b16 %v2401, %v2399
        %v3478 = vpack.c.b16 %v2404, %v2402
        %v3479 = vpack.c.b16 %v2405, %v2403
        %v3480 = vpack.c.b16 %v2408, %v2406
        %v3481 = vpack.c.b16 %v2409, %v2407
        %v3482 = vpack.c.b16 %v2412, %v2410
        %v3483 = vpack.c.b16 %v2413, %v2411
        %v3484 = vpack.c.b16 %v2416, %v2414
        %v3485 = vpack.c.b16 %v2417, %v2415
        %v3486 = vpack.c.b16 %v2420, %v2418
        %v3487 = vpack.c.b16 %v2421, %v2419
        %v3488 = vpack.c.b16 %v2424, %v2422
        %v3489 = vpack.c.b16 %v2425, %v2423
        %v3490 = vpack.c.b16 %v2428, %v2426
        %v3491 = vpack.c.b16 %v2429, %v2427
        %v3492 = vpack.c.b16 %v2432, %v2430
        %v3493 = vpack.c.b16 %v2433, %v2431
        %v3494 = vpack.c.b16 %v2436, %v2434
        %v3495 = vpack.c.b16 %v2437, %v2435
        %v3496 = vpack.c.b16 %v2440, %v2438
        %v3497 = vpack.c.b16 %v2441, %v2439
        %v3498 = vpack.c.b16 %v2444, %v2442
        %v3499 = vpack.c.b16 %v2445, %v2443
        %v3500 = vpack.c.b16 %v2448, %v2446
        %v3501 = vpack.c.b16 %v2449, %v2447
        %v3502 = vpack.c.b16 %v2452, %v2450
        %v3503 = vpack.c.b16 %v2453, %v2451
        %v3504 = vpack.c.b16 %v2456, %v2454
        %v3505 = vpack.c.b16 %v2457, %v2455
        %v3506 = vpack.c.b16 %v2460, %v2458
        %v3507 = vpack.c.b16 %v2461, %v2459
        %v3508 = vpack.c.b16 %v2464, %v2462
        %v3509 = vpack.c.b16 %v2465, %v2463
        %v3510 = vpack.c.b16 %v2468, %v2466
        %v3511 = vpack.c.b16 %v2469, %v2467
        %v3512 = vpack.c.b16 %v2472, %v2470
        %v3513 = vpack.c.b16 %v2473, %v2471
        %v3514 = vpack.c.b16 %v2476, %v2474
        %v3515 = vpack.c.b16 %v2477, %v2475
        %v3516 = vpack.c.b16 %v2480, %v2478
        %v3517 = vpack.c.b16 %v2481, %v2479
        %v3518 = vpack.c.b16 %v2484, %v2482
        %v3519 = vpack.c.b16 %v2485, %v2483
        %v3520 = vpack.c.b16 %v2488, %v2486
        %v3521 = vpack.c.b16 %v2489, %v2487
        %v3522 = vpack.c.b16 %v2492, %v2490
        %v3523 = vpack.c.b16 %v2493, %v2491
        %v3524 = vpack.c.b16 %v2496, %v2494
        %v3525 = vpack.c.b16 %v2497, %v2495
        %v3526 = vpack.c.b16 %v2500, %v2498
        %v3527 = vpack.c.b16 %v2501, %v2499
        %v3528 = vpack.c.b16 %v2504, %v2502
        %v3529 = vpack.c.b16 %v2505, %v2503
        %v3530 = vpack.c.b16 %v2508, %v2506
        %v3531 = vpack.c.b16 %v2509, %v2507
        %v3532 = vpack.c.b16 %v2512, %v2510
        %v3533 = vpack.c.b16 %v2513, %v2511
        %v3534 = vpack.c.b16 %v2516, %v2514
        %v3535 = vpack.c.b16 %v2517, %v2515
        %v3536 = vpack.c.b16 %v2520, %v2518
        %v3537 = vpack.c.b16 %v2521, %v2519
        %v3538 = vpack.c.b16 %v2524, %v2522
        %v3539 = vpack.c.b16 %v2525, %v2523
        %v3540 = vpack.c.b16 %v2528, %v2526
        %v3541 = vpack.c.b16 %v2529, %v2527
        %v3542 = vpack.c.b16 %v2532, %v2530
        %v3543 = vpack.c.b16 %v2533, %v2531
        %v3544 = vpack.c.b16 %v2536, %v2534
        %v3545 = vpack.c.b16 %v2537, %v2535
        %v3546 = vpack.c.b16 %v2540, %v2538
        %v3547 = vpack.c.b16 %v2541, %v2539
        %v3548 = vpack.c.b16 %v2544, %v2542
        %v3549 = vpack.c.b16 %v2545, %v2543
        %v3550 = vpack.c.b16 %v2548, %v2546
        %v3551 = vpack.c.b16 %v2549, %v2547
        %v3552 = vpack.c.b16 %v2552, %v2550
        %v3553 = vpack.c.b16 %v2553, %v2551
        %v3554 = vpack.c.b16 %v2556, %v2554
        %v3555 = vpack.c.b16 %v2557, %v2555
        %v3556 = vpack.c.b16 %v2560, %v2558
        %v3557 = vpack.c.b16 %v2561, %v2559
        %v3558 = vpack.c.b16 %v2564, %v2562
        %v3559 = vpack.c.b16 %v2565, %v2563
        %v3560 = vpack.c.b16 %v2568, %v2566
        %v3561 = vpack.c.b16 %v2569, %v2567
        %v3562 = vpack.c.b16 %v2572, %v2570
        %v3563 = vpack.c.b16 %v2573, %v2571
        %v3564 = vpack.c.b16 %v2576, %v2574
        %v3565 = vpack.c.b16 %v2577, %v2575
        %v3566 = vpack.c.b16 %v2580, %v2578
        %v3567 = vpack.c.b16 %v2581, %v2579
        %v3568 = vpack.c.b16 %v2584, %v2582
        %v3569 = vpack.c.b16 %v2585, %v2583
        %v3570 = vpack.c.b16 %v2588, %v2586
        %v3571 = vpack.c.b16 %v2589, %v2587
        %v3572 = vpack.c.b16 %v2592, %v2590
        %v3573 = vpack.c.b16 %v2593, %v2591
        %v3574 = vpack.c.b16 %v2596, %v2594
        %v3575 = vpack.c.b16 %v2597, %v2595
        %v3576 = vpack.c.b16 %v2600, %v2598
        %v3577 = vpack.c.b16 %v2601, %v2599
        %v3578 = vpack.c.b16 %v2604, %v2602
        %v3579 = vpack.c.b16 %v2605, %v2603
        %v3580 = vpack.c.b16 %v2608, %v2606
        %v3581 = vpack.c.b16 %v2609, %v2607
        %v3582 = vpack.c.b16 %v2612, %v2610
        %v3583 = vpack.c.b16 %v2613, %v2611
        %v3584 = vpack.c.b16 %v2616, %v2614
        %v3585 = vpack.c.b16 %v2617, %v2615
        %v3586 = vpack.c.b16 %v2620, %v2618
        %v3587 = vpack.c.b16 %v2621, %v2619
        %v3588 = vpack.c.b16 %v2624, %v2622
        %v3589 = vpack.c.b16 %v2625, %v2623
        %v3590 = vpack.c.b16 %v2628, %v2626
        %v3591 = vpack.c.b16 %v2629, %v2627
        %v3592 = vpack.c.b16 %v2632, %v2630
        %v3593 = vpack.c.b16 %v2633, %v2631
        %v3594 = vpack.c.b16 %v2636, %v2634
        %v3595 = vpack.c.b16 %v2637, %v2635
        %v3596 = vpack.c.b16 %v2640, %v2638
        %v3597 = vpack.c.b16 %v2641, %v2639
        %v3598 = vpack.c.b16 %v2644, %v2642
        %v3599 = vpack.c.b16 %v2645, %v2643
        %v3600 = vpack.c.b16 %v2648, %v2646
        %v3601 = vpack.c.b16 %v2649, %v2647
        %v3602 = vpack.c.b16 %v2652, %v2650
        %v3603 = vpack.c.b16 %v2653, %v2651
        %v3604 = vpack.c.b16 %v2656, %v2654
        %v3605 = vpack.c.b16 %v2657, %v2655
        %v3606 = vpack.c.b16 %v2660, %v2658
        %v3607 = vpack.c.b16 %v2661, %v2659
        %v3608 = vpack.c.b16 %v2664, %v2662
        %v3609 = vpack.c.b16 %v2665, %v2663
        %v3610 = vpack.c.b16 %v2668, %v2666
        %v3611 = vpack.c.b16 %v2669, %v2667
        %v3612 = vpack.c.b16 %v2672, %v2670
        %v3613 = vpack.c.b16 %v2673, %v2671
        %v3614 = vpack.c.b16 %v2676, %v2674
        %v3615 = vpack.c.b16 %v2677, %v2675
        %v3616 = vpack.c.b16 %v2680, %v2678
        %v3617 = vpack.c.b16 %v2681, %v2679
        %v3618 = vpack.c.b16 %v2684, %v2682
        %v3619 = vpack.c.b16 %v2685, %v2683
        %v3620 = vpack.c.b16 %v2688, %v2686
        %v3621 = vpack.c.b16 %v2689, %v2687
        %v3622 = vpack.c.b16 %v2692, %v2690
        %v3623 = vpack.c.b16 %v2693, %v2691
        %v3624 = vpack.c.b16 %v2696, %v2694
        %v3625 = vpack.c.b16 %v2697, %v2695
        %v3626 = vpack.c.b16 %v2700, %v2698
        %v3627 = vpack.c.b16 %v2701, %v2699
        %v3628 = vpack.c.b16 %v2704, %v2702
        %v3629 = vpack.c.b16 %v2705, %v2703
        %v3630 = vpack.c.b16 %v2708, %v2706
        %v3631 = vpack.c.b16 %v2709, %v2707
        %v3632 = vpack.c.b16 %v2712, %v2710
        %v3633 = vpack.c.b16 %v2713, %v2711
        %v3634 = vpack.c.b16 %v2716, %v2714
        %v3635 = vpack.c.b16 %v2717, %v2715
        %v3636 = vpack.c.b16 %v2720, %v2718
        %v3637 = vpack.c.b16 %v2721, %v2719
        %v3638 = vpack.c.b16 %v2724, %v2722
        %v3639 = vpack.c.b16 %v2725, %v2723
        %v3640 = vpack.c.b16 %v2728, %v2726
        %v3641 = vpack.c.b16 %v2729, %v2727
        %v3642 = vpack.c.b16 %v2732, %v2730
        %v3643 = vpack.c.b16 %v2733, %v2731
        %v3644 = vpack.c.b16 %v2736, %v2734
        %v3645 = vpack.c.b16 %v2737, %v2735
        %v3646 = vpack.c.b16 %v2740, %v2738
        %v3647 = vpack.c.b16 %v2741, %v2739
        %v3648 = vpack.c.b16 %v2744, %v2742
        %v3649 = vpack.c.b16 %v2745, %v2743
        %v3650 = vpack.c.b16 %v2748, %v2746
        %v3651 = vpack.c.b16 %v2749, %v2747
        %v3652 = vpack.c.b16 %v2752, %v2750
        %v3653 = vpack.c.b16 %v2753, %v2751
        %v3654 = vpack.c.b16 %v2756, %v2754
        %v3655 = vpack.c.b16 %v2757, %v2755
        %v3656 = vpack.c.b16 %v2760, %v2758
        %v3657 = vpack.c.b16 %v2761, %v2759
        %v3658 = vpack.c.b16 %v2764, %v2762
        %v3659 = vpack.c.b16 %v2765, %v2763
        %v3660 = vpack.c.b16 %v2768, %v2766
        %v3661 = vpack.c.b16 %v2769, %v2767
        %v3662 = vpack.c.b16 %v2772, %v2770
        %v3663 = vpack.c.b16 %v2773, %v2771
        %v3664 = vpack.c.b16 %v2776, %v2774
        %v3665 = vpack.c.b16 %v2777, %v2775
        %v3666 = vpack.c.b16 %v2780, %v2778
        %v3667 = vpack.c.b16 %v2781, %v2779
        %v3668 = vpack.c.b16 %v2784, %v2782
        %v3669 = vpack.c.b16 %v2785, %v2783
        %v3670 = vpack.c.b16 %v2788, %v2786
        %v3671 = vpack.c.b16 %v2789, %v2787
        %v3672 = vpack.c.b16 %v2792, %v2790
        %v3673 = vpack.c.b16 %v2793, %v2791
        %v3674 = vpack.c.b16 %v2796, %v2794
        %v3675 = vpack.c.b16 %v2797, %v2795
        %v3676 = vpack.c.b16 %v2800, %v2798
        %v3677 = vpack.c.b16 %v2801, %v2799
        %v3678 = vpack.c.b16 %v2804, %v2802
        %v3679 = vpack.c.b16 %v2805, %v2803
        %v3680 = vpack.c.b16 %v2808, %v2806
        %v3681 = vpack.c.b16 %v2809, %v2807
        %v3682 = vpack.c.b16 %v2812, %v2810
        %v3683 = vpack.c.b16 %v2813, %v2811
        %v3684 = vpack.c.b16 %v2816, %v2814
        %v3685 = vpack.c.b16 %v2817, %v2815
        %v3686 = vpack.c.b16 %v2820, %v2818
        %v3687 = vpack.c.b16 %v2821, %v2819
        %v3688 = vpack.c.b16 %v2824, %v2822
        %v3689 = vpack.c.b16 %v2825, %v2823
        %v3690 = vpack.c.b16 %v2828, %v2826
        %v3691 = vpack.c.b16 %v2829, %v2827
        %v3692 = vpack.c.b16 %v2832, %v2830
        %v3693 = vpack.c.b16 %v2833, %v2831
        %v3694 = vpack.c.b16 %v2836, %v2834
        %v3695 = vpack.c.b16 %v2837, %v2835
        %v3696 = vpack.c.b16 %v2840, %v2838
        %v3697 = vpack.c.b16 %v2841, %v2839
        %v3698 = vpack.c.b16 %v2844, %v2842
        %v3699 = vpack.c.b16 %v2845, %v2843
        %v3700 = vpack.c.b16 %v2848, %v2846
        %v3701 = vpack.c.b16 %v2849, %v2847
        %v3702 = vpack.c.b16 %v2852, %v2850
        %v3703 = vpack.c.b16 %v2853, %v2851
        %v3704 = vpack.c.b16 %v2856, %v2854
        %v3705 = vpack.c.b16 %v2857, %v2855
        %v3706 = vpack.c.b16 %v2860, %v2858
        %v3707 = vpack.c.b16 %v2861, %v2859
        %v3708 = vpack.c.b16 %v2864, %v2862
        %v3709 = vpack.c.b16 %v2865, %v2863
        %v3710 = vpack.c.b16 %v2868, %v2866
        %v3711 = vpack.c.b16 %v2869, %v2867
        %v3712 = vpack.c.b16 %v2872, %v2870
        %v3713 = vpack.c.b16 %v2873, %v2871
        %v3714 = vpack.c.b16 %v2876, %v2874
        %v3715 = vpack.c.b16 %v2877, %v2875
        %v3716 = vpack.c.b16 %v2880, %v2878
        %v3717 = vpack.c.b16 %v2881, %v2879
        %v3718 = vpack.c.b16 %v2884, %v2882
        %v3719 = vpack.c.b16 %v2885, %v2883
        %v3720 = vpack.c.b16 %v2888, %v2886
        %v3721 = vpack.c.b16 %v2889, %v2887
        %v3722 = vpack.c.b16 %v2892, %v2890
        %v3723 = vpack.c.b16 %v2893, %v2891
        %v3724 = vpack.c.b16 %v2896, %v2894
        %v3725 = vpack.c.b16 %v2897, %v2895
        %v3726 = vpack.c.b16 %v2900, %v2898
        %v3727 = vpack.c.b16 %v2901, %v2899
        %v3728 = vpack.c.b16 %v2904, %v2902
        %v3729 = vpack.c.b16 %v2905, %v2903
        %v3730 = vpack.c.b16 %v2908, %v2906
        %v3731 = vpack.c.b16 %v2909, %v2907
        %v3732 = vpack.c.b16 %v2912, %v2910
        %v3733 = vpack.c.b16 %v2913, %v2911
        %v3734 = vpack.c.b16 %v2916, %v2914
        %v3735 = vpack.c.b16 %v2917, %v2915
        %v3736 = vpack.c.b16 %v2920, %v2918
        %v3737 = vpack.c.b16 %v2921, %v2919
        %v3738 = vpack.c.b16 %v2924, %v2922
        %v3739 = vpack.c.b16 %v2925, %v2923
        %v3740 = vpack.c.b16 %v2928, %v2926
        %v3741 = vpack.c.b16 %v2929, %v2927
        %v3742 = vpack.c.b16 %v2932, %v2930
        %v3743 = vpack.c.b16 %v2933, %v2931
        %v3744 = vpack.c.b16 %v2936, %v2934
        %v3745 = vpack.c.b16 %v2937, %v2935
        %v3746 = vpack.c.b16 %v2940, %v2938
        %v3747 = vpack.c.b16 %v2941, %v2939
        %v3748 = vpack.c.b16 %v2944, %v2942
        %v3749 = vpack.c.b16 %v2945, %v2943
        %v3750 = vpack.c.b16 %v2948, %v2946
        %v3751 = vpack.c.b16 %v2949, %v2947
        %v3752 = vpack.c.b16 %v2952, %v2950
        %v3753 = vpack.c.b16 %v2953, %v2951
        %v3754 = vpack.c.b16 %v2956, %v2954
        %v3755 = vpack.c.b16 %v2957, %v2955
        %v3756 = vpack.c.b16 %v2960, %v2958
        %v3757 = vpack.c.b16 %v2961, %v2959
        %v3758 = vpack.c.b16 %v2964, %v2962
        %v3759 = vpack.c.b16 %v2965, %v2963
        %v3760 = vpack.c.b16 %v2968, %v2966
        %v3761 = vpack.c.b16 %v2969, %v2967
        %v3762 = vpack.c.b16 %v2972, %v2970
        %v3763 = vpack.c.b16 %v2973, %v2971
        %v3764 = vpack.c.b16 %v2976, %v2974
        %v3765 = vpack.c.b16 %v2977, %v2975
        %v3766 = vpack.c.b16 %v2980, %v2978
        %v3767 = vpack.c.b16 %v2981, %v2979
        %v3768 = vpack.c.b16 %v2984, %v2982
        %v3769 = vpack.c.b16 %v2985, %v2983
        %v3770 = vpack.c.b16 %v2988, %v2986
        %v3771 = vpack.c.b16 %v2989, %v2987
        %v3772 = vpack.c.b16 %v2992, %v2990
        %v3773 = vpack.c.b16 %v2993, %v2991
        %v3774 = vpack.c.b16 %v2996, %v2994
        %v3775 = vpack.c.b16 %v2997, %v2995
        %v3776 = vpack.c.b16 %v3000, %v2998
        %v3777 = vpack.c.b16 %v3001, %v2999
        %v3778 = vpack.c.b16 %v3004, %v3002
        %v3779 = vpack.c.b16 %v3005, %v3003
        %v3780 = vpack.c.b16 %v3008, %v3006
        %v3781 = vpack.c.b16 %v3009, %v3007
        %v3782 = vpack.c.b16 %v3012, %v3010
        %v3783 = vpack.c.b16 %v3013, %v3011
        %v3784 = vpack.c.b16 %v3016, %v3014
        %v3785 = vpack.c.b16 %v3017, %v3015
        %v3786 = vpack.c.b16 %v3020, %v3018
        %v3787 = vpack.c.b16 %v3021, %v3019
        %v3788 = vpack.c.b16 %v3024, %v3022
        %v3789 = vpack.c.b16 %v3025, %v3023
        %v3790 = vpack.c.b16 %v3028, %v3026
        %v3791 = vpack.c.b16 %v3029, %v3027
        %v3792 = vpack.c.b16 %v3032, %v3030
        %v3793 = vpack.c.b16 %v3033, %v3031
        %v3794 = vpack.c.b16 %v3036, %v3034
        %v3795 = vpack.c.b16 %v3037, %v3035
        %v3796 = vpack.c.b16 %v3040, %v3038
        %v3797 = vpack.c.b16 %v3041, %v3039
        %v3798 = vpack.c.b16 %v3044, %v3042
        %v3799 = vpack.c.b16 %v3045, %v3043
        %v3800 = vpack.c.b16 %v3048, %v3046
        %v3801 = vpack.c.b16 %v3049, %v3047
        %v3802 = vpack.c.b16 %v3052, %v3050
        %v3803 = vpack.c.b16 %v3053, %v3051
        %v3804 = vpack.c.b16 %v3056, %v3054
        %v3805 = vpack.c.b16 %v3057, %v3055
        %v3806 = vpack.c.b16 %v3060, %v3058
        %v3807 = vpack.c.b16 %v3061, %v3059
        %v3808 = vpack.c.b16 %v3064, %v3062
        %v3809 = vpack.c.b16 %v3065, %v3063
        %v3810 = vpack.c.b16 %v3068, %v3066
        %v3811 = vpack.c.b16 %v3069, %v3067
        %v3812 = vpack.c.b16 %v3072, %v3070
        %v3813 = vpack.c.b16 %v3073, %v3071
        %v3814 = vpack.c.b16 %v3076, %v3074
        %v3815 = vpack.c.b16 %v3077, %v3075
        %v3816 = vpack.c.b16 %v3080, %v3078
        %v3817 = vpack.c.b16 %v3081, %v3079
        %v3818 = vpack.c.b16 %v3084, %v3082
        %v3819 = vpack.c.b16 %v3085, %v3083
        %v3820 = vpack.c.b16 %v3088, %v3086
        %v3821 = vpack.c.b16 %v3089, %v3087
        %v3822 = vpack.c.b16 %v3092, %v3090
        %v3823 = vpack.c.b16 %v3093, %v3091
        %v3824 = vpack.c.b16 %v3096, %v3094
        %v3825 = vpack.c.b16 %v3097, %v3095
        %v3826 = vpack.c.b16 %v3100, %v3098
        %v3827 = vpack.c.b16 %v3101, %v3099
        %v3828 = vpack.c.b16 %v3104, %v3102
        %v3829 = vpack.c.b16 %v3105, %v3103
        %v3830 = vpack.c.b16 %v3108, %v3106
        %v3831 = vpack.c.b16 %v3109, %v3107
        %v3832 = vpack.c.b16 %v3112, %v3110
        %v3833 = vpack.c.b16 %v3113, %v3111
        %v3834 = vpack.c.b16 %v3116, %v3114
        %v3835 = vpack.c.b16 %v3117, %v3115
        %v3836 = vpack.c.b16 %v3120, %v3118
        %v3837 = vpack.c.b16 %v3121, %v3119
        %v3838 = vpack.c.b16 %v3124, %v3122
        %v3839 = vpack.c.b16 %v3125, %v3123
        %v3840 = vpack.c.b16 %v3128, %v3126
        %v3841 = vpack.c.b16 %v3129, %v3127
        %v3842 = vpack.c.b16 %v3132, %v3130
        %v3843 = vpack.c.b16 %v3133, %v3131
        %v3844 = vpack.c.b16 %v3136, %v3134
        %v3845 = vpack.c.b16 %v3137, %v3135
        %v3846 = vpack.c.b16 %v3140, %v3138
        %v3847 = vpack.c.b16 %v3141, %v3139
        %v3848 = vpack.c.b16 %v3144, %v3142
        %v3849 = vpack.c.b16 %v3145, %v3143
        %v3850 = vpack.c.b16 %v3148, %v3146
        %v3851 = vpack.c.b16 %v3149, %v3147
        %v3852 = vpack.c.b16 %v3152, %v3150
        %v3853 = vpack.c.b16 %v3153, %v3151
        %v3854 = vpack.c.b16 %v3156, %v3154
        %v3855 = vpack.c.b16 %v3157, %v3155
        %v3856 = vpack.c.b16 %v3160, %v3158
        %v3857 = vpack.c.b16 %v3161, %v3159
        %v3858 = vpack.c.b16 %v3164, %v3162
        %v3859 = vpack.c.b16 %v3165, %v3163
        %v3860 = vpack.c.b16 %v3168, %v3166
        %v3861 = vpack.c.b16 %v3169, %v3167
        %v3862 = vpack.c.b16 %v3172, %v3170
        %v3863 = vpack.c.b16 %v3173, %v3171
        %v3864 = vpack.c.b16 %v3176, %v3174
        %v3865 = vpack.c.b16 %v3177, %v3175
        %v3866 = vpack.c.b16 %v3180, %v3178
        %v3867 = vpack.c.b16 %v3181, %v3179
        %v3868 = vpack.c.b16 %v3184, %v3182
        %v3869 = vpack.c.b16 %v3185, %v3183
        %v3870 = vpack.c.b16 %v3188, %v3186
        %v3871 = vpack.c.b16 %v3189, %v3187
        %v3872 = vpack.c.b16 %v3192, %v3190
        %v3873 = vpack.c.b16 %v3193, %v3191
        %v3874 = vpack.c.b16 %v3196, %v3194
        %v3875 = vpack.c.b16 %v3197, %v3195
        %v3876 = vpack.c.b16 %v3200, %v3198
        %v3877 = vpack.c.b16 %v3201, %v3199
        %v3878 = vpack.c.b16 %v3204, %v3202
        %v3879 = vpack.c.b16 %v3205, %v3203
        %v3880 = vpack.c.b16 %v3208, %v3206
        %v3881 = vpack.c.b16 %v3209, %v3207
        %v3882 = vpack.c.b16 %v3212, %v3210
        %v3883 = vpack.c.b16 %v3213, %v3211
        %v3884 = vpack.c.b16 %v3216, %v3214
        %v3885 = vpack.c.b16 %v3217, %v3215
        %v3886 = vpack.c.b16 %v3220, %v3218
        %v3887 = vpack.c.b16 %v3221, %v3219
        %v3888 = vpack.c.b16 %v3224, %v3222
        %v3889 = vpack.c.b16 %v3225, %v3223
        %v3890 = vpack.c.b16 %v3228, %v3226
        %v3891 = vpack.c.b16 %v3229, %v3227
        %v3892 = vpack.c.b16 %v3232, %v3230
        %v3893 = vpack.c.b16 %v3233, %v3231
        %v3894 = vpack.c.b16 %v3236, %v3234
        %v3895 = vpack.c.b16 %v3237, %v3235
        %v3896 = vpack.c.b16 %v3240, %v3238
        %v3897 = vpack.c.b16 %v3241, %v3239
        %v3898 = vpack.c.b16 %v3244, %v3242
        %v3899 = vpack.c.b16 %v3245, %v3243
        %v3900 = vpack.c.b16 %v3248, %v3246
        %v3901 = vpack.c.b16 %v3249, %v3247
        %v3902 = vpack.c.b16 %v3252, %v3250
        %v3903 = vpack.c.b16 %v3253, %v3251
        %v3904 = vpack.c.b16 %v3256, %v3254
        %v3905 = vpack.c.b16 %v3257, %v3255
        %v3906 = vpack.c.b16 %v3260, %v3258
        %v3907 = vpack.c.b16 %v3261, %v3259
        %v3908 = vpack.c.b16 %v3264, %v3262
        %v3909 = vpack.c.b16 %v3265, %v3263
        %v3910 = vpack.c.b16 %v3268, %v3266
        %v3911 = vpack.c.b16 %v3269, %v3267
        %v3912 = vpack.c.b16 %v3272, %v3270
        %v3913 = vpack.c.b16 %v3273, %v3271
        %v3914 = vpack.c.b16 %v3276, %v3274
        %v3915 = vpack.c.b16 %v3277, %v3275
        %v3916 = vpack.c.b16 %v3280, %v3278
        %v3917 = vpack.c.b16 %v3281, %v3279
        %v3918 = vpack.c.b16 %v3284, %v3282
        %v3919 = vpack.c.b16 %v3285, %v3283
        %v3920 = vpack.c.b16 %v3288, %v3286
        %v3921 = vpack.c.b16 %v3289, %v3287
        %v3922 = vpack.c.b16 %v3292, %v3290
        %v3923 = vpack.c.b16 %v3293, %v3291
        %v3924 = vpack.c.b16 %v3296, %v3294
        %v3925 = vpack.c.b16 %v3297, %v3295
        %v3926 = vpack.c.b16 %v3300, %v3298
        %v3927 = vpack.c.b16 %v3301, %v3299
        %v3928 = vpack.c.b16 %v3304, %v3302
        %v3929 = vpack.c.b16 %v3305, %v3303
        %v3930 = vpack.c.b16 %v3308, %v3306
        %v3931 = vpack.c.b16 %v3309, %v3307
        %v3932 = vpack.c.b16 %v3312, %v3310
        %v3933 = vpack.c.b16 %v3313, %v3311
        %v3934 = vpack.c.b16 %v3316, %v3314
        %v3935 = vpack.c.b16 %v3317, %v3315
        %v3936 = vpack.c.b16 %v3320, %v3318
        %v3937 = vpack.c.b16 %v3321, %v3319
        %v3938 = vpack.c.b16 %v3324, %v3322
        %v3939 = vpack.c.b16 %v3325, %v3323
        %v3940 = vpack.c.b16 %v3328, %v3326
        %v3941 = vpack.c.b16 %v3329, %v3327
        %v3942 = vpack.c.b16 %v3332, %v3330
        %v3943 = vpack.c.b16 %v3333, %v3331
        %v3944 = vpack.c.b16 %v3336, %v3334
        %v3945 = vpack.c.b16 %v3337, %v3335
        %v3946 = vpack.c.b16 %v3340, %v3338
        %v3947 = vpack.c.b16 %v3341, %v3339
        %v3948 = vpack.c.b16 %v3344, %v3342
        %v3949 = vpack.c.b16 %v3345, %v3343
        %v3950 = vpack.c.b16 %v3348, %v3346
        %v3951 = vpack.c.b16 %v3349, %v3347
        %v3952 = vpack.c.b16 %v3352, %v3350
        %v3953 = vpack.c.b16 %v3353, %v3351
        %v3954 = vpack.c.b16 %v3356, %v3354
        %v3955 = vpack.c.b16 %v3357, %v3355
        %v3956 = vpack.c.b16 %v3360, %v3358
        %v3957 = vpack.c.b16 %v3361, %v3359
        %v3958 = vpack.c.b16 %v3364, %v3362
        %v3959 = vpack.c.b16 %v3365, %v3363
        %v3960 = vpack.c.b16 %v3368, %v3366
        %v3961 = vpack.c.b16 %v3369, %v3367
        %4554 = vmatprep.subr.bf16.mxu0 %v3371
        %4555 = vmatpush1.bf16.msra.mxu0 %v3370
        %4556 = vmatprep.subr.bf16.mxu0 %v3373
        %4557 = vmatpush1.bf16.msra.mxu0 %v3372
        %4558 = vmatprep.subr.bf16.mxu0 %v3375
        %4559 = vmatpush1.bf16.msra.mxu0 %v3374
        %4560 = vmatprep.subr.bf16.mxu0 %v3377
        %4561 = vmatpush1.bf16.msra.mxu0 %v3376
        %4562 = vmatprep.subr.bf16.mxu0 %v3379
        %4563 = vmatpush1.bf16.msra.mxu0 %v3378
        %4564 = vmatprep.subr.bf16.mxu0 %v3381
        %4565 = vmatpush1.bf16.msra.mxu0 %v3380
        %4566 = vmatprep.subr.bf16.mxu0 %v3383
        %4567 = vmatpush1.bf16.msra.mxu0 %v3382
        %4568 = vmatprep.subr.bf16.mxu0 %v3385
        %4569 = vmatpush1.bf16.msra.mxu0 %v3384
        %4570 = vmatprep.subr.bf16.mxu0 %v3387
        %4571 = vmatpush1.bf16.msra.mxu0 %v3386
        %4572 = vmatprep.subr.bf16.mxu0 %v3389
        %4573 = vmatpush1.bf16.msra.mxu0 %v3388
        %4574 = vmatprep.subr.bf16.mxu0 %v3391
        %4575 = vmatpush1.bf16.msra.mxu0 %v3390
        %4576 = vmatprep.subr.bf16.mxu0 %v3393
        %4577 = vmatpush1.bf16.msra.mxu0 %v3392
        %4578 = vmatprep.subr.bf16.mxu0 %v3395
        %4579 = vmatpush1.bf16.msra.mxu0 %v3394
        %4580 = vmatprep.subr.bf16.mxu0 %v3397
        %4581 = vmatpush1.bf16.msra.mxu0 %v3396
        %4582 = vmatprep.subr.bf16.mxu0 %v3399
        %4583 = vmatpush1.bf16.msra.mxu0 %v3398
        %4584 = vmatprep.subr.bf16.mxu0 %v3401
        %4585 = vmatpush1.bf16.msra.mxu0 %v3400
        %4586 = vmatprep.mubr.bf16.mxu0 %v1412
        %4587 = vmatmul.mubr.bf16.gmra.mrb[0].mxu0 %v1404
        %v4588 = vpop.f32.mrb[0].mxu0
        %v4589 = vadd.f32 0.0, %v4588
        %v4590 = vpop.f32.mrb[0].mxu0
        %v4591 = vadd.f32 0.0, %v4590
        %v4592 = vpop.f32.mrb[0].mxu0
        %v4593 = vpop.f32.mrb[0].mxu0
        %4594 = vdwg.mxu0
        %4595 = vmatprep.subr.bf16.mxu0 %v3403
        %4596 = vmatpush1.bf16.msra.mxu0 %v3402
        %4597 = vmatprep.subr.bf16.mxu0 %v3405
        %4598 = vmatpush1.bf16.msra.mxu0 %v3404
        %4599 = vmatprep.subr.bf16.mxu0 %v3407
        %4600 = vmatpush1.bf16.msra.mxu0 %v3406
        %4601 = vmatprep.subr.bf16.mxu0 %v3409
        %4602 = vmatpush1.bf16.msra.mxu0 %v3408
        %4603 = vmatprep.subr.bf16.mxu0 %v3411
        %4604 = vmatpush1.bf16.msra.mxu0 %v3410
        %4605 = vmatprep.subr.bf16.mxu0 %v3413
        %4606 = vmatpush1.bf16.msra.mxu0 %v3412
        %4607 = vmatprep.subr.bf16.mxu0 %v3415
        %4608 = vmatpush1.bf16.msra.mxu0 %v3414
        %4609 = vmatprep.subr.bf16.mxu0 %v3417
        %4610 = vmatpush1.bf16.msra.mxu0 %v3416
        %4611 = vmatprep.subr.bf16.mxu0 %v3419
        %4612 = vmatpush1.bf16.msra.mxu0 %v3418
        %4613 = vmatprep.subr.bf16.mxu0 %v3421
        %4614 = vmatpush1.bf16.msra.mxu0 %v3420
        %4615 = vmatprep.subr.bf16.mxu0 %v3423
        %4616 = vmatpush1.bf16.msra.mxu0 %v3422
        %4617 = vmatprep.subr.bf16.mxu0 %v3425
        %4618 = vmatpush1.bf16.msra.mxu0 %v3424
        %4619 = vmatprep.subr.bf16.mxu0 %v3427
        %4620 = vmatpush1.bf16.msra.mxu0 %v3426
        %4621 = vmatprep.subr.bf16.mxu0 %v3429
        %4622 = vmatpush1.bf16.msra.mxu0 %v3428
        %4623 = vmatprep.subr.bf16.mxu0 %v3431
        %4624 = vmatpush1.bf16.msra.mxu0 %v3430
        %4625 = vmatprep.subr.bf16.mxu0 %v3433
        %4626 = vmatpush1.bf16.msra.mxu0 %v3432
        %4627 = vmatprep.mubr.bf16.mxu0 %v1413
        %4628 = vmatmul.mubr.bf16.gmra.mrb[0].mxu0 %v1411
        %v4629 = vpop.f32.mrb[0].mxu0
        %v4630 = vadd.f32 %v4589, %v4629
        %v4631 = vpop.f32.mrb[0].mxu0
        %v4632 = vadd.f32 %v4591, %v4631
        %v4633 = vpop.f32.mrb[0].mxu0
        %v4634 = vpop.f32.mrb[0].mxu0
        %4635 = vdwg.mxu0
        %4636 = vmatprep.subr.bf16.mxu0 %v3435
        %4637 = vmatpush1.bf16.msra.mxu0 %v3434
        %4638 = vmatprep.subr.bf16.mxu0 %v3437
        %4639 = vmatpush1.bf16.msra.mxu0 %v3436
        %4640 = vmatprep.subr.bf16.mxu0 %v3439
        %4641 = vmatpush1.bf16.msra.mxu0 %v3438
        %4642 = vmatprep.subr.bf16.mxu0 %v3441
        %4643 = vmatpush1.bf16.msra.mxu0 %v3440
        %4644 = vmatprep.subr.bf16.mxu0 %v3443
        %4645 = vmatpush1.bf16.msra.mxu0 %v3442
        %4646 = vmatprep.subr.bf16.mxu0 %v3445
        %4647 = vmatpush1.bf16.msra.mxu0 %v3444
        %4648 = vmatprep.subr.bf16.mxu0 %v3447
        %4649 = vmatpush1.bf16.msra.mxu0 %v3446
        %4650 = vmatprep.subr.bf16.mxu0 %v3449
        %4651 = vmatpush1.bf16.msra.mxu0 %v3448
        %4652 = vmatprep.subr.bf16.mxu0 %v3451
        %4653 = vmatpush1.bf16.msra.mxu0 %v3450
        %4654 = vmatprep.subr.bf16.mxu0 %v3453
        %4655 = vmatpush1.bf16.msra.mxu0 %v3452
        %4656 = vmatprep.subr.bf16.mxu0 %v3455
        %4657 = vmatpush1.bf16.msra.mxu0 %v3454
        %4658 = vmatprep.subr.bf16.mxu0 %v3457
        %4659 = vmatpush1.bf16.msra.mxu0 %v3456
        %4660 = vmatprep.subr.bf16.mxu0 %v3459
        %4661 = vmatpush1.bf16.msra.mxu0 %v3458
        %4662 = vmatprep.subr.bf16.mxu0 %v3461
        %4663 = vmatpush1.bf16.msra.mxu0 %v3460
        %4664 = vmatprep.subr.bf16.mxu0 %v3463
        %4665 = vmatpush1.bf16.msra.mxu0 %v3462
        %4666 = vmatprep.subr.bf16.mxu0 %v3465
        %4667 = vmatpush1.bf16.msra.mxu0 %v3464
        %4668 = vmatprep.mubr.bf16.mxu0 %v1429
        %4669 = vmatmul.mubr.bf16.gmra.mrb[0].mxu0 %v1421
        %v4670 = vpop.f32.mrb[0].mxu0
        %v4671 = vadd.f32 %v4630, %v4670
        %v4672 = vpop.f32.mrb[0].mxu0
        %v4673 = vadd.f32 %v4632, %v4672
        %v4674 = vpop.f32.mrb[0].mxu0
        %v4675 = vpop.f32.mrb[0].mxu0
        %4676 = vdwg.mxu0
        %4677 = vmatprep.subr.bf16.mxu0 %v3467
        %4678 = vmatpush1.bf16.msra.mxu0 %v3466
        %4679 = vmatprep.subr.bf16.mxu0 %v3469
        %4680 = vmatpush1.bf16.msra.mxu0 %v3468
        %4681 = vmatprep.subr.bf16.mxu0 %v3471
        %4682 = vmatpush1.bf16.msra.mxu0 %v3470
        %4683 = vmatprep.subr.bf16.mxu0 %v3473
        %4684 = vmatpush1.bf16.msra.mxu0 %v3472
        %4685 = vmatprep.subr.bf16.mxu0 %v3475
        %4686 = vmatpush1.bf16.msra.mxu0 %v3474
        %4687 = vmatprep.subr.bf16.mxu0 %v3477
        %4688 = vmatpush1.bf16.msra.mxu0 %v3476
        %4689 = vmatprep.subr.bf16.mxu0 %v3479
        %4690 = vmatpush1.bf16.msra.mxu0 %v3478
        %4691 = vmatprep.subr.bf16.mxu0 %v3481
        %4692 = vmatpush1.bf16.msra.mxu0 %v3480
        %4693 = vmatprep.subr.bf16.mxu0 %v3483
        %4694 = vmatpush1.bf16.msra.mxu0 %v3482
        %4695 = vmatprep.subr.bf16.mxu0 %v3485
        %4696 = vmatpush1.bf16.msra.mxu0 %v3484
        %4697 = vmatprep.subr.bf16.mxu0 %v3487
        %4698 = vmatpush1.bf16.msra.mxu0 %v3486
        %4699 = vmatprep.subr.bf16.mxu0 %v3489
        %4700 = vmatpush1.bf16.msra.mxu0 %v3488
        %4701 = vmatprep.subr.bf16.mxu0 %v3491
        %4702 = vmatpush1.bf16.msra.mxu0 %v3490
        %4703 = vmatprep.subr.bf16.mxu0 %v3493
        %4704 = vmatpush1.bf16.msra.mxu0 %v3492
        %4705 = vmatprep.subr.bf16.mxu0 %v3495
        %4706 = vmatpush1.bf16.msra.mxu0 %v3494
        %4707 = vmatprep.subr.bf16.mxu0 %v3497
        %4708 = vmatpush1.bf16.msra.mxu0 %v3496
        %4709 = vmatprep.mubr.bf16.mxu0 %v1430
        %4710 = vmatmul.mubr.bf16.gmra.mrb[0].mxu0 %v1428
        %v4711 = vpop.f32.mrb[0].mxu0
        %v4712 = vadd.f32 %v4671, %v4711
        %v4713 = vpop.f32.mrb[0].mxu0
        %v4714 = vadd.f32 %v4673, %v4713
        %v4715 = vpop.f32.mrb[0].mxu0
        %v4716 = vpop.f32.mrb[0].mxu0
        %4717 = vdwg.mxu0
        %4718 = vmatprep.subr.bf16.mxu0 %v3499
        %4719 = vmatpush1.bf16.msra.mxu0 %v3498
        %4720 = vmatprep.subr.bf16.mxu0 %v3501
        %4721 = vmatpush1.bf16.msra.mxu0 %v3500
        %4722 = vmatprep.subr.bf16.mxu0 %v3503
        %4723 = vmatpush1.bf16.msra.mxu0 %v3502
        %4724 = vmatprep.subr.bf16.mxu0 %v3505
        %4725 = vmatpush1.bf16.msra.mxu0 %v3504
        %4726 = vmatprep.subr.bf16.mxu0 %v3507
        %4727 = vmatpush1.bf16.msra.mxu0 %v3506
        %4728 = vmatprep.subr.bf16.mxu0 %v3509
        %4729 = vmatpush1.bf16.msra.mxu0 %v3508
        %4730 = vmatprep.subr.bf16.mxu0 %v3511
        %4731 = vmatpush1.bf16.msra.mxu0 %v3510
        %4732 = vmatprep.subr.bf16.mxu0 %v3513
        %4733 = vmatpush1.bf16.msra.mxu0 %v3512
        %4734 = vmatprep.subr.bf16.mxu0 %v3515
        %4735 = vmatpush1.bf16.msra.mxu0 %v3514
        %4736 = vmatprep.subr.bf16.mxu0 %v3517
        %4737 = vmatpush1.bf16.msra.mxu0 %v3516
        %4738 = vmatprep.subr.bf16.mxu0 %v3519
        %4739 = vmatpush1.bf16.msra.mxu0 %v3518
        %4740 = vmatprep.subr.bf16.mxu0 %v3521
        %4741 = vmatpush1.bf16.msra.mxu0 %v3520
        %4742 = vmatprep.subr.bf16.mxu0 %v3523
        %4743 = vmatpush1.bf16.msra.mxu0 %v3522
        %4744 = vmatprep.subr.bf16.mxu0 %v3525
        %4745 = vmatpush1.bf16.msra.mxu0 %v3524
        %4746 = vmatprep.subr.bf16.mxu0 %v3527
        %4747 = vmatpush1.bf16.msra.mxu0 %v3526
        %4748 = vmatprep.subr.bf16.mxu0 %v3529
        %4749 = vmatpush1.bf16.msra.mxu0 %v3528
        %4750 = vmatprep.mubr.bf16.mxu0 %v1446
        %4751 = vmatmul.mubr.bf16.gmra.mrb[0].mxu0 %v1438
        %v4752 = vpop.f32.mrb[0].mxu0
        %v4753 = vadd.f32 %v4712, %v4752
        %v4754 = vpop.f32.mrb[0].mxu0
        %v4755 = vadd.f32 %v4714, %v4754
        %v4756 = vpop.f32.mrb[0].mxu0
        %v4757 = vpop.f32.mrb[0].mxu0
        %4758 = vdwg.mxu0
        %4759 = vmatprep.subr.bf16.mxu0 %v3531
        %4760 = vmatpush1.bf16.msra.mxu0 %v3530
        %4761 = vmatprep.subr.bf16.mxu0 %v3533
        %4762 = vmatpush1.bf16.msra.mxu0 %v3532
        %4763 = vmatprep.subr.bf16.mxu0 %v3535
        %4764 = vmatpush1.bf16.msra.mxu0 %v3534
        %4765 = vmatprep.subr.bf16.mxu0 %v3537
        %4766 = vmatpush1.bf16.msra.mxu0 %v3536
        %4767 = vmatprep.subr.bf16.mxu0 %v3539
        %4768 = vmatpush1.bf16.msra.mxu0 %v3538
        %4769 = vmatprep.subr.bf16.mxu0 %v3541
        %4770 = vmatpush1.bf16.msra.mxu0 %v3540
        %4771 = vmatprep.subr.bf16.mxu0 %v3543
        %4772 = vmatpush1.bf16.msra.mxu0 %v3542
        %4773 = vmatprep.subr.bf16.mxu0 %v3545
        %4774 = vmatpush1.bf16.msra.mxu0 %v3544
        %4775 = vmatprep.subr.bf16.mxu0 %v3547
        %4776 = vmatpush1.bf16.msra.mxu0 %v3546
        %4777 = vmatprep.subr.bf16.mxu0 %v3549
        %4778 = vmatpush1.bf16.msra.mxu0 %v3548
        %4779 = vmatprep.subr.bf16.mxu0 %v3551
        %4780 = vmatpush1.bf16.msra.mxu0 %v3550
        %4781 = vmatprep.subr.bf16.mxu0 %v3553
        %4782 = vmatpush1.bf16.msra.mxu0 %v3552
        %4783 = vmatprep.subr.bf16.mxu0 %v3555
        %4784 = vmatpush1.bf16.msra.mxu0 %v3554
        %4785 = vmatprep.subr.bf16.mxu0 %v3557
        %4786 = vmatpush1.bf16.msra.mxu0 %v3556
        %4787 = vmatprep.subr.bf16.mxu0 %v3559
        %4788 = vmatpush1.bf16.msra.mxu0 %v3558
        %4789 = vmatprep.subr.bf16.mxu0 %v3561
        %4790 = vmatpush1.bf16.msra.mxu0 %v3560
        %4791 = vmatprep.mubr.bf16.mxu0 %v1447
        %4792 = vmatmul.mubr.bf16.gmra.mrb[0].mxu0 %v1445
        %v4793 = vpop.f32.mrb[0].mxu0
        %v4794 = vadd.f32 %v4753, %v4793
        %v4795 = vpop.f32.mrb[0].mxu0
        %v4796 = vadd.f32 %v4755, %v4795
        %v4797 = vpop.f32.mrb[0].mxu0
        %v4798 = vpop.f32.mrb[0].mxu0
        %4799 = vdwg.mxu0
        %4800 = vmatprep.subr.bf16.mxu0 %v3563
        %4801 = vmatpush1.bf16.msra.mxu0 %v3562
        %4802 = vmatprep.subr.bf16.mxu0 %v3565
        %4803 = vmatpush1.bf16.msra.mxu0 %v3564
        %4804 = vmatprep.subr.bf16.mxu0 %v3567
        %4805 = vmatpush1.bf16.msra.mxu0 %v3566
        %4806 = vmatprep.subr.bf16.mxu0 %v3569
        %4807 = vmatpush1.bf16.msra.mxu0 %v3568
        %4808 = vmatprep.subr.bf16.mxu0 %v3571
        %4809 = vmatpush1.bf16.msra.mxu0 %v3570
        %4810 = vmatprep.subr.bf16.mxu0 %v3573
        %4811 = vmatpush1.bf16.msra.mxu0 %v3572
        %4812 = vmatprep.subr.bf16.mxu0 %v3575
        %4813 = vmatpush1.bf16.msra.mxu0 %v3574
        %4814 = vmatprep.subr.bf16.mxu0 %v3577
        %4815 = vmatpush1.bf16.msra.mxu0 %v3576
        %4816 = vmatprep.subr.bf16.mxu0 %v3579
        %4817 = vmatpush1.bf16.msra.mxu0 %v3578
        %4818 = vmatprep.subr.bf16.mxu0 %v3581
        %4819 = vmatpush1.bf16.msra.mxu0 %v3580
        %4820 = vmatprep.subr.bf16.mxu0 %v3583
        %4821 = vmatpush1.bf16.msra.mxu0 %v3582
        %4822 = vmatprep.subr.bf16.mxu0 %v3585
        %4823 = vmatpush1.bf16.msra.mxu0 %v3584
        %4824 = vmatprep.subr.bf16.mxu0 %v3587
        %4825 = vmatpush1.bf16.msra.mxu0 %v3586
        %4826 = vmatprep.subr.bf16.mxu0 %v3589
        %4827 = vmatpush1.bf16.msra.mxu0 %v3588
        %4828 = vmatprep.subr.bf16.mxu0 %v3591
        %4829 = vmatpush1.bf16.msra.mxu0 %v3590
        %4830 = vmatprep.subr.bf16.mxu0 %v3593
        %4831 = vmatpush1.bf16.msra.mxu0 %v3592
        %4832 = vmatprep.mubr.bf16.mxu0 %v1463
        %4833 = vmatmul.mubr.bf16.gmra.mrb[0].mxu0 %v1455
        %v4834 = vpop.f32.mrb[0].mxu0
        %v4835 = vadd.f32 %v4794, %v4834
        %v4836 = vpop.f32.mrb[0].mxu0
        %v4837 = vadd.f32 %v4796, %v4836
        %v4838 = vpop.f32.mrb[0].mxu0
        %v4839 = vpop.f32.mrb[0].mxu0
        %4840 = vdwg.mxu0
        %4841 = vmatprep.subr.bf16.mxu0 %v3595
        %4842 = vmatpush1.bf16.msra.mxu0 %v3594
        %4843 = vmatprep.subr.bf16.mxu0 %v3597
        %4844 = vmatpush1.bf16.msra.mxu0 %v3596
        %4845 = vmatprep.subr.bf16.mxu0 %v3599
        %4846 = vmatpush1.bf16.msra.mxu0 %v3598
        %4847 = vmatprep.subr.bf16.mxu0 %v3601
        %4848 = vmatpush1.bf16.msra.mxu0 %v3600
        %4849 = vmatprep.subr.bf16.mxu0 %v3603
        %4850 = vmatpush1.bf16.msra.mxu0 %v3602
        %4851 = vmatprep.subr.bf16.mxu0 %v3605
        %4852 = vmatpush1.bf16.msra.mxu0 %v3604
        %4853 = vmatprep.subr.bf16.mxu0 %v3607
        %4854 = vmatpush1.bf16.msra.mxu0 %v3606
        %4855 = vmatprep.subr.bf16.mxu0 %v3609
        %4856 = vmatpush1.bf16.msra.mxu0 %v3608
        %4857 = vmatprep.subr.bf16.mxu0 %v3611
        %4858 = vmatpush1.bf16.msra.mxu0 %v3610
        %4859 = vmatprep.subr.bf16.mxu0 %v3613
        %4860 = vmatpush1.bf16.msra.mxu0 %v3612
        %4861 = vmatprep.subr.bf16.mxu0 %v3615
        %4862 = vmatpush1.bf16.msra.mxu0 %v3614
        %4863 = vmatprep.subr.bf16.mxu0 %v3617
        %4864 = vmatpush1.bf16.msra.mxu0 %v3616
        %4865 = vmatprep.subr.bf16.mxu0 %v3619
        %4866 = vmatpush1.bf16.msra.mxu0 %v3618
        %4867 = vmatprep.subr.bf16.mxu0 %v3621
        %4868 = vmatpush1.bf16.msra.mxu0 %v3620
        %4869 = vmatprep.subr.bf16.mxu0 %v3623
        %4870 = vmatpush1.bf16.msra.mxu0 %v3622
        %4871 = vmatprep.subr.bf16.mxu0 %v3625
        %4872 = vmatpush1.bf16.msra.mxu0 %v3624
        %4873 = vmatprep.mubr.bf16.mxu0 %v1464
        %4874 = vmatmul.mubr.bf16.gmra.mrb[0].mxu0 %v1462
        %v4875 = vpop.f32.mrb[0].mxu0
        %v4876 = vadd.f32 %v4835, %v4875
        %v4877 = vpop.f32.mrb[0].mxu0
        %v4878 = vadd.f32 %v4837, %v4877
        %v4879 = vpop.f32.mrb[0].mxu0
        %v4880 = vpop.f32.mrb[0].mxu0
        %4881 = vdwg.mxu0
        %4882 = vmatprep.subr.bf16.mxu0 %v3627
        %4883 = vmatpush1.bf16.msra.mxu0 %v3626
        %4884 = vmatprep.subr.bf16.mxu0 %v3629
        %4885 = vmatpush1.bf16.msra.mxu0 %v3628
        %4886 = vmatprep.subr.bf16.mxu0 %v3631
        %4887 = vmatpush1.bf16.msra.mxu0 %v3630
        %4888 = vmatprep.subr.bf16.mxu0 %v3633
        %4889 = vmatpush1.bf16.msra.mxu0 %v3632
        %4890 = vmatprep.subr.bf16.mxu0 %v3635
        %4891 = vmatpush1.bf16.msra.mxu0 %v3634
        %4892 = vmatprep.subr.bf16.mxu0 %v3637
        %4893 = vmatpush1.bf16.msra.mxu0 %v3636
        %4894 = vmatprep.subr.bf16.mxu0 %v3639
        %4895 = vmatpush1.bf16.msra.mxu0 %v3638
        %4896 = vmatprep.subr.bf16.mxu0 %v3641
        %4897 = vmatpush1.bf16.msra.mxu0 %v3640
        %4898 = vmatprep.subr.bf16.mxu0 %v3643
        %4899 = vmatpush1.bf16.msra.mxu0 %v3642
        %4900 = vmatprep.subr.bf16.mxu0 %v3645
        %4901 = vmatpush1.bf16.msra.mxu0 %v3644
        %4902 = vmatprep.subr.bf16.mxu0 %v3647
        %4903 = vmatpush1.bf16.msra.mxu0 %v3646
        %4904 = vmatprep.subr.bf16.mxu0 %v3649
        %4905 = vmatpush1.bf16.msra.mxu0 %v3648
        %4906 = vmatprep.subr.bf16.mxu0 %v3651
        %4907 = vmatpush1.bf16.msra.mxu0 %v3650
        %4908 = vmatprep.subr.bf16.mxu0 %v3653
        %4909 = vmatpush1.bf16.msra.mxu0 %v3652
        %4910 = vmatprep.subr.bf16.mxu0 %v3655
        %4911 = vmatpush1.bf16.msra.mxu0 %v3654
        %4912 = vmatprep.subr.bf16.mxu0 %v3657
        %4913 = vmatpush1.bf16.msra.mxu0 %v3656
        %4914 = vmatprep.mubr.bf16.mxu0 %v1480
        %4915 = vmatmul.mubr.bf16.gmra.mrb[0].mxu0 %v1472
        %v4916 = vpop.f32.mrb[0].mxu0
        %v4917 = vadd.f32 %v4876, %v4916
        %v4918 = vpop.f32.mrb[0].mxu0
        %v4919 = vadd.f32 %v4878, %v4918
        %v4920 = vpop.f32.mrb[0].mxu0
        %v4921 = vpop.f32.mrb[0].mxu0
        %4922 = vdwg.mxu0
        %4923 = vmatprep.subr.bf16.mxu0 %v3659
        %4924 = vmatpush1.bf16.msra.mxu0 %v3658
        %4925 = vmatprep.subr.bf16.mxu0 %v3661
        %4926 = vmatpush1.bf16.msra.mxu0 %v3660
        %4927 = vmatprep.subr.bf16.mxu0 %v3663
        %4928 = vmatpush1.bf16.msra.mxu0 %v3662
        %4929 = vmatprep.subr.bf16.mxu0 %v3665
        %4930 = vmatpush1.bf16.msra.mxu0 %v3664
        %4931 = vmatprep.subr.bf16.mxu0 %v3667
        %4932 = vmatpush1.bf16.msra.mxu0 %v3666
        %4933 = vmatprep.subr.bf16.mxu0 %v3669
        %4934 = vmatpush1.bf16.msra.mxu0 %v3668
        %4935 = vmatprep.subr.bf16.mxu0 %v3671
        %4936 = vmatpush1.bf16.msra.mxu0 %v3670
        %4937 = vmatprep.subr.bf16.mxu0 %v3673
        %4938 = vmatpush1.bf16.msra.mxu0 %v3672
        %4939 = vmatprep.subr.bf16.mxu0 %v3675
        %4940 = vmatpush1.bf16.msra.mxu0 %v3674
        %4941 = vmatprep.subr.bf16.mxu0 %v3677
        %4942 = vmatpush1.bf16.msra.mxu0 %v3676
        %4943 = vmatprep.subr.bf16.mxu0 %v3679
        %4944 = vmatpush1.bf16.msra.mxu0 %v3678
        %4945 = vmatprep.subr.bf16.mxu0 %v3681
        %4946 = vmatpush1.bf16.msra.mxu0 %v3680
        %4947 = vmatprep.subr.bf16.mxu0 %v3683
        %4948 = vmatpush1.bf16.msra.mxu0 %v3682
        %4949 = vmatprep.subr.bf16.mxu0 %v3685
        %4950 = vmatpush1.bf16.msra.mxu0 %v3684
        %4951 = vmatprep.subr.bf16.mxu0 %v3687
        %4952 = vmatpush1.bf16.msra.mxu0 %v3686
        %4953 = vmatprep.subr.bf16.mxu0 %v3689
        %4954 = vmatpush1.bf16.msra.mxu0 %v3688
        %4955 = vmatprep.mubr.bf16.mxu0 %v1481
        %4956 = vmatmul.mubr.bf16.gmra.mrb[0].mxu0 %v1479
        %v4957 = vpop.f32.mrb[0].mxu0
        %v4958 = vadd.f32 %v4917, %v4957
        %v4959 = vpop.f32.mrb[0].mxu0
        %v4960 = vadd.f32 %v4919, %v4959
        %v4961 = vpop.f32.mrb[0].mxu0
        %v4962 = vpop.f32.mrb[0].mxu0
        %4963 = vdwg.mxu0
        %4964 = vmatprep.subr.bf16.mxu0 %v3691
        %4965 = vmatpush1.bf16.msra.mxu0 %v3690
        %4966 = vmatprep.subr.bf16.mxu0 %v3693
        %4967 = vmatpush1.bf16.msra.mxu0 %v3692
        %4968 = vmatprep.subr.bf16.mxu0 %v3695
        %4969 = vmatpush1.bf16.msra.mxu0 %v3694
        %4970 = vmatprep.subr.bf16.mxu0 %v3697
        %4971 = vmatpush1.bf16.msra.mxu0 %v3696
        %4972 = vmatprep.subr.bf16.mxu0 %v3699
        %4973 = vmatpush1.bf16.msra.mxu0 %v3698
        %4974 = vmatprep.subr.bf16.mxu0 %v3701
        %4975 = vmatpush1.bf16.msra.mxu0 %v3700
        %4976 = vmatprep.subr.bf16.mxu0 %v3703
        %4977 = vmatpush1.bf16.msra.mxu0 %v3702
        %4978 = vmatprep.subr.bf16.mxu0 %v3705
        %4979 = vmatpush1.bf16.msra.mxu0 %v3704
        %4980 = vmatprep.subr.bf16.mxu0 %v3707
        %4981 = vmatpush1.bf16.msra.mxu0 %v3706
        %4982 = vmatprep.subr.bf16.mxu0 %v3709
        %4983 = vmatpush1.bf16.msra.mxu0 %v3708
        %4984 = vmatprep.subr.bf16.mxu0 %v3711
        %4985 = vmatpush1.bf16.msra.mxu0 %v3710
        %4986 = vmatprep.subr.bf16.mxu0 %v3713
        %4987 = vmatpush1.bf16.msra.mxu0 %v3712
        %4988 = vmatprep.subr.bf16.mxu0 %v3715
        %4989 = vmatpush1.bf16.msra.mxu0 %v3714
        %4990 = vmatprep.subr.bf16.mxu0 %v3717
        %4991 = vmatpush1.bf16.msra.mxu0 %v3716
        %4992 = vmatprep.subr.bf16.mxu0 %v3719
        %4993 = vmatpush1.bf16.msra.mxu0 %v3718
        %4994 = vmatprep.subr.bf16.mxu0 %v3721
        %4995 = vmatpush1.bf16.msra.mxu0 %v3720
        %4996 = vmatprep.mubr.bf16.mxu0 %v1497
        %4997 = vmatmul.mubr.bf16.gmra.mrb[0].mxu0 %v1489
        %v4998 = vpop.f32.mrb[0].mxu0
        %v4999 = vadd.f32 %v4958, %v4998
        %v5000 = vpop.f32.mrb[0].mxu0
        %v5001 = vadd.f32 %v4960, %v5000
        %v5002 = vpop.f32.mrb[0].mxu0
        %v5003 = vpop.f32.mrb[0].mxu0
        %5004 = vdwg.mxu0
        %5005 = vmatprep.subr.bf16.mxu0 %v3723
        %5006 = vmatpush1.bf16.msra.mxu0 %v3722
        %5007 = vmatprep.subr.bf16.mxu0 %v3725
        %5008 = vmatpush1.bf16.msra.mxu0 %v3724
        %5009 = vmatprep.subr.bf16.mxu0 %v3727
        %5010 = vmatpush1.bf16.msra.mxu0 %v3726
        %5011 = vmatprep.subr.bf16.mxu0 %v3729
        %5012 = vmatpush1.bf16.msra.mxu0 %v3728
        %5013 = vmatprep.subr.bf16.mxu0 %v3731
        %5014 = vmatpush1.bf16.msra.mxu0 %v3730
        %5015 = vmatprep.subr.bf16.mxu0 %v3733
        %5016 = vmatpush1.bf16.msra.mxu0 %v3732
        %5017 = vmatprep.subr.bf16.mxu0 %v3735
        %5018 = vmatpush1.bf16.msra.mxu0 %v3734
        %5019 = vmatprep.subr.bf16.mxu0 %v3737
        %5020 = vmatpush1.bf16.msra.mxu0 %v3736
        %5021 = vmatprep.subr.bf16.mxu0 %v3739
        %5022 = vmatpush1.bf16.msra.mxu0 %v3738
        %5023 = vmatprep.subr.bf16.mxu0 %v3741
        %5024 = vmatpush1.bf16.msra.mxu0 %v3740
        %5025 = vmatprep.subr.bf16.mxu0 %v3743
        %5026 = vmatpush1.bf16.msra.mxu0 %v3742
        %5027 = vmatprep.subr.bf16.mxu0 %v3745
        %5028 = vmatpush1.bf16.msra.mxu0 %v3744
        %5029 = vmatprep.subr.bf16.mxu0 %v3747
        %5030 = vmatpush1.bf16.msra.mxu0 %v3746
        %5031 = vmatprep.subr.bf16.mxu0 %v3749
        %5032 = vmatpush1.bf16.msra.mxu0 %v3748
        %5033 = vmatprep.subr.bf16.mxu0 %v3751
        %5034 = vmatpush1.bf16.msra.mxu0 %v3750
        %5035 = vmatprep.subr.bf16.mxu0 %v3753
        %5036 = vmatpush1.bf16.msra.mxu0 %v3752
        %5037 = vmatprep.mubr.bf16.mxu0 %v1498
        %5038 = vmatmul.mubr.bf16.gmra.mrb[0].mxu0 %v1496
        %v5039 = vpop.f32.mrb[0].mxu0
        %v5040 = vadd.f32 %v4999, %v5039
        %v5041 = vpop.f32.mrb[0].mxu0
        %v5042 = vadd.f32 %v5001, %v5041
        %v5043 = vpop.f32.mrb[0].mxu0
        %v5044 = vpop.f32.mrb[0].mxu0
        %5045 = vdwg.mxu0
        %5046 = vmatprep.subr.bf16.mxu0 %v3755
        %5047 = vmatpush1.bf16.msra.mxu0 %v3754
        %5048 = vmatprep.subr.bf16.mxu0 %v3757
        %5049 = vmatpush1.bf16.msra.mxu0 %v3756
        %5050 = vmatprep.subr.bf16.mxu0 %v3759
        %5051 = vmatpush1.bf16.msra.mxu0 %v3758
        %5052 = vmatprep.subr.bf16.mxu0 %v3761
        %5053 = vmatpush1.bf16.msra.mxu0 %v3760
        %5054 = vmatprep.subr.bf16.mxu0 %v3763
        %5055 = vmatpush1.bf16.msra.mxu0 %v3762
        %5056 = vmatprep.subr.bf16.mxu0 %v3765
        %5057 = vmatpush1.bf16.msra.mxu0 %v3764
        %5058 = vmatprep.subr.bf16.mxu0 %v3767
        %5059 = vmatpush1.bf16.msra.mxu0 %v3766
        %5060 = vmatprep.subr.bf16.mxu0 %v3769
        %5061 = vmatpush1.bf16.msra.mxu0 %v3768
        %5062 = vmatprep.subr.bf16.mxu0 %v3771
        %5063 = vmatpush1.bf16.msra.mxu0 %v3770
        %5064 = vmatprep.subr.bf16.mxu0 %v3773
        %5065 = vmatpush1.bf16.msra.mxu0 %v3772
        %5066 = vmatprep.subr.bf16.mxu0 %v3775
        %5067 = vmatpush1.bf16.msra.mxu0 %v3774
        %5068 = vmatprep.subr.bf16.mxu0 %v3777
        %5069 = vmatpush1.bf16.msra.mxu0 %v3776
        %5070 = vmatprep.subr.bf16.mxu0 %v3779
        %5071 = vmatpush1.bf16.msra.mxu0 %v3778
        %5072 = vmatprep.subr.bf16.mxu0 %v3781
        %5073 = vmatpush1.bf16.msra.mxu0 %v3780
        %5074 = vmatprep.subr.bf16.mxu0 %v3783
        %5075 = vmatpush1.bf16.msra.mxu0 %v3782
        %5076 = vmatprep.subr.bf16.mxu0 %v3785
        %5077 = vmatpush1.bf16.msra.mxu0 %v3784
        %5078 = vmatprep.mubr.bf16.mxu0 %v1514
        %5079 = vmatmul.mubr.bf16.gmra.mrb[0].mxu0 %v1506
        %v5080 = vpop.f32.mrb[0].mxu0
        %v5081 = vadd.f32 %v5040, %v5080
        %v5082 = vpop.f32.mrb[0].mxu0
        %v5083 = vadd.f32 %v5042, %v5082
        %v5084 = vpop.f32.mrb[0].mxu0
        %v5085 = vpop.f32.mrb[0].mxu0
        %5086 = vdwg.mxu0
        %5087 = vmatprep.subr.bf16.mxu0 %v3787
        %5088 = vmatpush1.bf16.msra.mxu0 %v3786
        %5089 = vmatprep.subr.bf16.mxu0 %v3789
        %5090 = vmatpush1.bf16.msra.mxu0 %v3788
        %5091 = vmatprep.subr.bf16.mxu0 %v3791
        %5092 = vmatpush1.bf16.msra.mxu0 %v3790
        %5093 = vmatprep.subr.bf16.mxu0 %v3793
        %5094 = vmatpush1.bf16.msra.mxu0 %v3792
        %5095 = vmatprep.subr.bf16.mxu0 %v3795
        %5096 = vmatpush1.bf16.msra.mxu0 %v3794
        %5097 = vmatprep.subr.bf16.mxu0 %v3797
        %5098 = vmatpush1.bf16.msra.mxu0 %v3796
        %5099 = vmatprep.subr.bf16.mxu0 %v3799
        %5100 = vmatpush1.bf16.msra.mxu0 %v3798
        %5101 = vmatprep.subr.bf16.mxu0 %v3801
        %5102 = vmatpush1.bf16.msra.mxu0 %v3800
        %5103 = vmatprep.subr.bf16.mxu0 %v3803
        %5104 = vmatpush1.bf16.msra.mxu0 %v3802
        %5105 = vmatprep.subr.bf16.mxu0 %v3805
        %5106 = vmatpush1.bf16.msra.mxu0 %v3804
        %5107 = vmatprep.subr.bf16.mxu0 %v3807
        %5108 = vmatpush1.bf16.msra.mxu0 %v3806
        %5109 = vmatprep.subr.bf16.mxu0 %v3809
        %5110 = vmatpush1.bf16.msra.mxu0 %v3808
        %5111 = vmatprep.subr.bf16.mxu0 %v3811
        %5112 = vmatpush1.bf16.msra.mxu0 %v3810
        %5113 = vmatprep.subr.bf16.mxu0 %v3813
        %5114 = vmatpush1.bf16.msra.mxu0 %v3812
        %5115 = vmatprep.subr.bf16.mxu0 %v3815
        %5116 = vmatpush1.bf16.msra.mxu0 %v3814
        %5117 = vmatprep.subr.bf16.mxu0 %v3817
        %5118 = vmatpush1.bf16.msra.mxu0 %v3816
        %5119 = vmatprep.mubr.bf16.mxu0 %v1515
        %5120 = vmatmul.mubr.bf16.gmra.mrb[0].mxu0 %v1513
        %v5121 = vpop.f32.mrb[0].mxu0
        %v5122 = vadd.f32 %v5081, %v5121
        %v5123 = vpop.f32.mrb[0].mxu0
        %v5124 = vadd.f32 %v5083, %v5123
        %v5125 = vpop.f32.mrb[0].mxu0
        %v5126 = vpop.f32.mrb[0].mxu0
        %5127 = vdwg.mxu0
        %5128 = vmatprep.subr.bf16.mxu0 %v3819
        %5129 = vmatpush1.bf16.msra.mxu0 %v3818
        %5130 = vmatprep.subr.bf16.mxu0 %v3821
        %5131 = vmatpush1.bf16.msra.mxu0 %v3820
        %5132 = vmatprep.subr.bf16.mxu0 %v3823
        %5133 = vmatpush1.bf16.msra.mxu0 %v3822
        %5134 = vmatprep.subr.bf16.mxu0 %v3825
        %5135 = vmatpush1.bf16.msra.mxu0 %v3824
        %5136 = vmatprep.subr.bf16.mxu0 %v3827
        %5137 = vmatpush1.bf16.msra.mxu0 %v3826
        %5138 = vmatprep.subr.bf16.mxu0 %v3829
        %5139 = vmatpush1.bf16.msra.mxu0 %v3828
        %5140 = vmatprep.subr.bf16.mxu0 %v3831
        %5141 = vmatpush1.bf16.msra.mxu0 %v3830
        %5142 = vmatprep.subr.bf16.mxu0 %v3833
        %5143 = vmatpush1.bf16.msra.mxu0 %v3832
        %5144 = vmatprep.subr.bf16.mxu0 %v3835
        %5145 = vmatpush1.bf16.msra.mxu0 %v3834
        %5146 = vmatprep.subr.bf16.mxu0 %v3837
        %5147 = vmatpush1.bf16.msra.mxu0 %v3836
        %5148 = vmatprep.subr.bf16.mxu0 %v3839
        %5149 = vmatpush1.bf16.msra.mxu0 %v3838
        %5150 = vmatprep.subr.bf16.mxu0 %v3841
        %5151 = vmatpush1.bf16.msra.mxu0 %v3840
        %5152 = vmatprep.subr.bf16.mxu0 %v3843
        %5153 = vmatpush1.bf16.msra.mxu0 %v3842
        %5154 = vmatprep.subr.bf16.mxu0 %v3845
        %5155 = vmatpush1.bf16.msra.mxu0 %v3844
        %5156 = vmatprep.subr.bf16.mxu0 %v3847
        %5157 = vmatpush1.bf16.msra.mxu0 %v3846
        %5158 = vmatprep.subr.bf16.mxu0 %v3849
        %5159 = vmatpush1.bf16.msra.mxu0 %v3848
        %5160 = vmatprep.mubr.bf16.mxu0 %v1531
        %5161 = vmatmul.mubr.bf16.gmra.mrb[0].mxu0 %v1523
        %v5162 = vpop.f32.mrb[0].mxu0
        %v5163 = vadd.f32 %v5122, %v5162
        %v5164 = vpop.f32.mrb[0].mxu0
        %v5165 = vadd.f32 %v5124, %v5164
        %v5166 = vpop.f32.mrb[0].mxu0
        %v5167 = vpop.f32.mrb[0].mxu0
        %5168 = vdwg.mxu0
        %5169 = vmatprep.subr.bf16.mxu0 %v3851
        %5170 = vmatpush1.bf16.msra.mxu0 %v3850
        %5171 = vmatprep.subr.bf16.mxu0 %v3853
        %5172 = vmatpush1.bf16.msra.mxu0 %v3852
        %5173 = vmatprep.subr.bf16.mxu0 %v3855
        %5174 = vmatpush1.bf16.msra.mxu0 %v3854
        %5175 = vmatprep.subr.bf16.mxu0 %v3857
        %5176 = vmatpush1.bf16.msra.mxu0 %v3856
        %5177 = vmatprep.subr.bf16.mxu0 %v3859
        %5178 = vmatpush1.bf16.msra.mxu0 %v3858
        %5179 = vmatprep.subr.bf16.mxu0 %v3861
        %5180 = vmatpush1.bf16.msra.mxu0 %v3860
        %5181 = vmatprep.subr.bf16.mxu0 %v3863
        %5182 = vmatpush1.bf16.msra.mxu0 %v3862
        %5183 = vmatprep.subr.bf16.mxu0 %v3865
        %5184 = vmatpush1.bf16.msra.mxu0 %v3864
        %5185 = vmatprep.subr.bf16.mxu0 %v3867
        %5186 = vmatpush1.bf16.msra.mxu0 %v3866
        %5187 = vmatprep.subr.bf16.mxu0 %v3869
        %5188 = vmatpush1.bf16.msra.mxu0 %v3868
        %5189 = vmatprep.subr.bf16.mxu0 %v3871
        %5190 = vmatpush1.bf16.msra.mxu0 %v3870
        %5191 = vmatprep.subr.bf16.mxu0 %v3873
        %5192 = vmatpush1.bf16.msra.mxu0 %v3872
        %5193 = vmatprep.subr.bf16.mxu0 %v3875
        %5194 = vmatpush1.bf16.msra.mxu0 %v3874
        %5195 = vmatprep.subr.bf16.mxu0 %v3877
        %5196 = vmatpush1.bf16.msra.mxu0 %v3876
        %5197 = vmatprep.subr.bf16.mxu0 %v3879
        %5198 = vmatpush1.bf16.msra.mxu0 %v3878
        %5199 = vmatprep.subr.bf16.mxu0 %v3881
        %5200 = vmatpush1.bf16.msra.mxu0 %v3880
        %5201 = vmatprep.mubr.bf16.mxu0 %v1532
        %5202 = vmatmul.mubr.bf16.gmra.mrb[0].mxu0 %v1530
        %v5203 = vpop.f32.mrb[0].mxu0
        %v5204 = vadd.f32 %v5163, %v5203
        %v5205 = vpop.f32.mrb[0].mxu0
        %v5206 = vadd.f32 %v5165, %v5205
        %v5207 = vpop.f32.mrb[0].mxu0
        %v5208 = vpop.f32.mrb[0].mxu0
        %5209 = vdwg.mxu0
        %5210 = vmatprep.subr.bf16.mxu0 %v3883
        %5211 = vmatpush1.bf16.msra.mxu0 %v3882
        %5212 = vmatprep.subr.bf16.mxu0 %v3885
        %5213 = vmatpush1.bf16.msra.mxu0 %v3884
        %5214 = vmatprep.subr.bf16.mxu0 %v3887
        %5215 = vmatpush1.bf16.msra.mxu0 %v3886
        %5216 = vmatprep.subr.bf16.mxu0 %v3889
        %5217 = vmatpush1.bf16.msra.mxu0 %v3888
        %5218 = vmatprep.subr.bf16.mxu0 %v3891
        %5219 = vmatpush1.bf16.msra.mxu0 %v3890
        %5220 = vmatprep.subr.bf16.mxu0 %v3893
        %5221 = vmatpush1.bf16.msra.mxu0 %v3892
        %5222 = vmatprep.subr.bf16.mxu0 %v3895
        %5223 = vmatpush1.bf16.msra.mxu0 %v3894
        %5224 = vmatprep.subr.bf16.mxu0 %v3897
        %5225 = vmatpush1.bf16.msra.mxu0 %v3896
        %5226 = vmatprep.subr.bf16.mxu0 %v3899
        %5227 = vmatpush1.bf16.msra.mxu0 %v3898
        %5228 = vmatprep.subr.bf16.mxu0 %v3901
        %5229 = vmatpush1.bf16.msra.mxu0 %v3900
        %5230 = vmatprep.subr.bf16.mxu0 %v3903
        %5231 = vmatpush1.bf16.msra.mxu0 %v3902
        %5232 = vmatprep.subr.bf16.mxu0 %v3905
        %5233 = vmatpush1.bf16.msra.mxu0 %v3904
        %5234 = vmatprep.subr.bf16.mxu0 %v3907
        %5235 = vmatpush1.bf16.msra.mxu0 %v3906
        %5236 = vmatprep.subr.bf16.mxu0 %v3909
        %5237 = vmatpush1.bf16.msra.mxu0 %v3908
        %5238 = vmatprep.subr.bf16.mxu0 %v3911
        %5239 = vmatpush1.bf16.msra.mxu0 %v3910
        %5240 = vmatprep.subr.bf16.mxu0 %v3913
        %5241 = vmatpush1.bf16.msra.mxu0 %v3912
        %5242 = vmatprep.mubr.bf16.mxu0 %v1548
        %5243 = vmatmul.mubr.bf16.gmra.mrb[0].mxu0 %v1540
        %v5244 = vpop.f32.mrb[0].mxu0
        %v5245 = vadd.f32 %v5204, %v5244
        %v5246 = vpop.f32.mrb[0].mxu0
        %v5247 = vadd.f32 %v5206, %v5246
        %v5248 = vpop.f32.mrb[0].mxu0
        %v5249 = vpop.f32.mrb[0].mxu0
        %5250 = vdwg.mxu0
        %5251 = vmatprep.subr.bf16.mxu0 %v3915
        %5252 = vmatpush1.bf16.msra.mxu0 %v3914
        %5253 = vmatprep.subr.bf16.mxu0 %v3917
        %5254 = vmatpush1.bf16.msra.mxu0 %v3916
        %5255 = vmatprep.subr.bf16.mxu0 %v3919
        %5256 = vmatpush1.bf16.msra.mxu0 %v3918
        %5257 = vmatprep.subr.bf16.mxu0 %v3921
        %5258 = vmatpush1.bf16.msra.mxu0 %v3920
        %5259 = vmatprep.subr.bf16.mxu0 %v3923
        %5260 = vmatpush1.bf16.msra.mxu0 %v3922
        %5261 = vmatprep.subr.bf16.mxu0 %v3925
        %5262 = vmatpush1.bf16.msra.mxu0 %v3924
        %5263 = vmatprep.subr.bf16.mxu0 %v3927
        %5264 = vmatpush1.bf16.msra.mxu0 %v3926
        %5265 = vmatprep.subr.bf16.mxu0 %v3929
        %5266 = vmatpush1.bf16.msra.mxu0 %v3928
        %5267 = vmatprep.subr.bf16.mxu0 %v3931
        %5268 = vmatpush1.bf16.msra.mxu0 %v3930
        %5269 = vmatprep.subr.bf16.mxu0 %v3933
        %5270 = vmatpush1.bf16.msra.mxu0 %v3932
        %5271 = vmatprep.subr.bf16.mxu0 %v3935
        %5272 = vmatpush1.bf16.msra.mxu0 %v3934
        %5273 = vmatprep.subr.bf16.mxu0 %v3937
        %5274 = vmatpush1.bf16.msra.mxu0 %v3936
        %5275 = vmatprep.subr.bf16.mxu0 %v3939
        %5276 = vmatpush1.bf16.msra.mxu0 %v3938
        %5277 = vmatprep.subr.bf16.mxu0 %v3941
        %5278 = vmatpush1.bf16.msra.mxu0 %v3940
        %5279 = vmatprep.subr.bf16.mxu0 %v3943
        %5280 = vmatpush1.bf16.msra.mxu0 %v3942
        %5281 = vmatprep.subr.bf16.mxu0 %v3945
        %5282 = vmatpush1.bf16.msra.mxu0 %v3944
        %5283 = vmatprep.mubr.bf16.mxu0 %v1549
        %5284 = vmatmul.mubr.bf16.gmra.mrb[0].mxu0 %v1547
        %v5285 = vpop.f32.mrb[0].mxu0
        %v5286 = vadd.f32 %v5245, %v5285
        %v5287 = vpop.f32.mrb[0].mxu0
        %v5288 = vadd.f32 %v5247, %v5287
        %v5289 = vpop.f32.mrb[0].mxu0
        %v5290 = vpop.f32.mrb[0].mxu0
        %5291 = vdwg.mxu0
        %5292 = vmatprep.subr.bf16.mxu0 %v3947
        %5293 = vmatpush1.bf16.msra.mxu0 %v3946
        %5294 = vmatprep.subr.bf16.mxu0 %v3949
        %5295 = vmatpush1.bf16.msra.mxu0 %v3948
        %5296 = vmatprep.subr.bf16.mxu0 %v3951
        %5297 = vmatpush1.bf16.msra.mxu0 %v3950
        %5298 = vmatprep.subr.bf16.mxu0 %v3953
        %5299 = vmatpush1.bf16.msra.mxu0 %v3952
        %5300 = vmatprep.subr.bf16.mxu0 %v3955
        %5301 = vmatpush1.bf16.msra.mxu0 %v3954
        %5302 = vmatprep.subr.bf16.mxu0 %v3957
        %5303 = vmatpush1.bf16.msra.mxu0 %v3956
        %5304 = vmatprep.subr.bf16.mxu0 %v3959
        %5305 = vmatpush1.bf16.msra.mxu0 %v3958
        %5306 = vmatprep.subr.bf16.mxu0 %v3961
        %5307 = vmatpush1.bf16.msra.mxu0 %v3960
        %5308 = vmatprep.subr.bf16.mxu0 0
        %5309 = vmatpush1.bf16.msra.mxu0 0
        %5310 = vmatprep.subr.bf16.mxu0 0
        %5311 = vmatpush1.bf16.msra.mxu0 0
        %5312 = vmatprep.subr.bf16.mxu0 0
        %5313 = vmatpush1.bf16.msra.mxu0 0
        %5314 = vmatprep.subr.bf16.mxu0 0
        %5315 = vmatpush1.bf16.msra.mxu0 0
        %5316 = vmatprep.subr.bf16.mxu0 0
        %5317 = vmatpush1.bf16.msra.mxu0 0
        %5318 = vmatprep.subr.bf16.mxu0 0
        %5319 = vmatpush1.bf16.msra.mxu0 0
        %5320 = vmatprep.subr.bf16.mxu0 0
        %5321 = vmatpush1.bf16.msra.mxu0 0
        %5322 = vmatprep.subr.bf16.mxu0 0
        %5323 = vmatpush1.bf16.msra.mxu0 0
        %5324 = vmatprep.mubr.bf16.mxu0 0
        %5325 = vmatmul.mubr.bf16.gmra.mrb[0].mxu0 %v1556
        %v5326 = vpop.f32.mrb[0].mxu0
        %v5327 = vadd.f32 %v5286, %v5326
        %v5328 = vpop.f32.mrb[0].mxu0
        %v5329 = vadd.f32 %v5288, %v5328
        %v5330 = vpop.f32.mrb[0].mxu0
        %v5331 = vpop.f32.mrb[0].mxu0
        %5332 = vdwg.mxu0
        %v5335 = vcombine.low %v5327, %v5329
        %v5337 = vadd.f32 %v784, %v5335
        %5338 = vst [vmem:[#allocation2] sm:$0xff] %v5337
        %p5339 = scmp.eq.s32.totalorder %s41, 3
        // Predicated region
        $region153: #{cnn_forward.3} parent=91 // pred_check
          %p5340 = pneg %p5339
        $region154: #{cnn_forward.3} parent=91 // pred_check_branch
          %5342 = sbr.rel (%p5340) target = $region156
        $region155: #{cnn_forward.3} parent=91 // pred_region
          %v5343 = vld [vmem:[#allocation2] sm:$0xff]
          %v5344 = vld [vmem:[#allocation6] sm:$0x3]
          %v5346 = vlaneseq
          %v5347 = vshrl.u32 %v5346, 7
          %v5348 = vsub.s32 0, %v5347
          %v5349 = vrot.slane %v5344, %v5348
          %v5350 = vlaneseq
          %v5351 = vshrl.u32 %v5350, 7
          %v5352 = vsub.s32 1, %v5351
          %v5353 = vrot.slane %v5344, %v5352
          %v5354 = vcombine.low %v5349, %v5353
          %v5356 = vmul.f32 %v5343, %v5354
          %v5357 = vld [vmem:[#allocation8] sm:$0x3]
          %v5359 = vlaneseq
          %v5360 = vshrl.u32 %v5359, 7
          %v5361 = vsub.s32 0, %v5360
          %v5362 = vrot.slane %v5357, %v5361
          %v5363 = vlaneseq
          %v5364 = vshrl.u32 %v5363, 7
          %v5365 = vsub.s32 1, %v5364
          %v5366 = vrot.slane %v5357, %v5365
          %v5367 = vcombine.low %v5362, %v5366
          %v5369 = vadd.f32 %v5356, %v5367
          %v5370 = vmax.f32 %v5369, 0.0
          %v5372 = vcombine.high %v5370, %v5370
          %v5374 = vpack.c.bf16 %v5370, %v5370
          %v5375 = vpack.c.bf16 %v5372, %v5372
          %v5376 = vld [vmem:[#allocation9] sm:$0xf]
          %v5377 = vld [vmem:[#allocation9 + $0x4] sm:$0xf]
          %v5378 = vld [vmem:[#allocation9 + $0x8] sm:$0xf]
          %v5379 = vld [vmem:[#allocation9 + $0xc] sm:$0xf]
          %v5380 = vld [vmem:[#allocation9 + $0x10] sm:$0xf]
          %v5381 = vld [vmem:[#allocation9 + $0x14] sm:$0xf]
          %v5382 = vld [vmem:[#allocation9 + $0x18] sm:$0xf]
          %v5383 = vld [vmem:[#allocation9 + $0x1c] sm:$0xf]
          %v5384 = vld [vmem:[#allocation9 + $0x20] sm:$0xf]
          %v5385 = vld [vmem:[#allocation9 + $0x24] sm:$0xf]
          %v5386 = vld [vmem:[#allocation9 + $0x28] sm:$0xf]
          %v5387 = vld [vmem:[#allocation9 + $0x2c] sm:$0xf]
          %v5388 = vld [vmem:[#allocation9 + $0x30] sm:$0xf]
          %v5389 = vld [vmem:[#allocation9 + $0x34] sm:$0xf]
          %v5390 = vld [vmem:[#allocation9 + $0x38] sm:$0xf]
          %v5391 = vld [vmem:[#allocation9 + $0x3c] sm:$0xf]
          %v5392 = vld [vmem:[#allocation9 + $0x40] sm:$0xf]
          %v5393 = vld [vmem:[#allocation9 + $0x44] sm:$0xf]
          %v5394 = vld [vmem:[#allocation9 + $0x48] sm:$0xf]
          %v5395 = vld [vmem:[#allocation9 + $0x4c] sm:$0xf]
          %v5396 = vld [vmem:[#allocation9 + $0x50] sm:$0xf]
          %v5397 = vld [vmem:[#allocation9 + $0x54] sm:$0xf]
          %v5398 = vld [vmem:[#allocation9 + $0x58] sm:$0xf]
          %v5399 = vld [vmem:[#allocation9 + $0x5c] sm:$0xf]
          %v5400 = vld [vmem:[#allocation9 + $0x60] sm:$0xf]
          %v5401 = vld [vmem:[#allocation9 + $0x64] sm:$0xf]
          %v5402 = vld [vmem:[#allocation9 + $0x68] sm:$0xf]
          %v5403 = vld [vmem:[#allocation9 + $0x6c] sm:$0xf]
          %v5404 = vld [vmem:[#allocation9 + $0x70] sm:$0xf]
          %v5405 = vld [vmem:[#allocation9 + $0x74] sm:$0xf]
          %v5406 = vld [vmem:[#allocation9 + $0x78] sm:$0xf]
          %v5407 = vld [vmem:[#allocation9 + $0x7c] sm:$0xf]
          %v5440 = vunpack.c.l.b16 %v5376
          %v5441 = vunpack.c.l.b16 %v5377
          %v5442 = vunpack.c.l.b16 %v5378
          %v5443 = vunpack.c.l.b16 %v5379
          %v5444 = vunpack.c.l.b16 %v5380
          %v5445 = vunpack.c.l.b16 %v5381
          %v5446 = vunpack.c.l.b16 %v5382
          %v5447 = vunpack.c.l.b16 %v5383
          %v5448 = vunpack.c.l.b16 %v5384
          %v5449 = vunpack.c.l.b16 %v5385
          %v5450 = vunpack.c.l.b16 %v5386
          %v5451 = vunpack.c.l.b16 %v5387
          %v5452 = vunpack.c.l.b16 %v5388
          %v5453 = vunpack.c.l.b16 %v5389
          %v5454 = vunpack.c.l.b16 %v5390
          %v5455 = vunpack.c.l.b16 %v5391
          %v5456 = vunpack.c.l.b16 %v5392
          %v5457 = vunpack.c.l.b16 %v5393
          %v5458 = vunpack.c.l.b16 %v5394
          %v5459 = vunpack.c.l.b16 %v5395
          %v5460 = vunpack.c.l.b16 %v5396
          %v5461 = vunpack.c.l.b16 %v5397
          %v5462 = vunpack.c.l.b16 %v5398
          %v5463 = vunpack.c.l.b16 %v5399
          %v5464 = vunpack.c.l.b16 %v5400
          %v5465 = vunpack.c.l.b16 %v5401
          %v5466 = vunpack.c.l.b16 %v5402
          %v5467 = vunpack.c.l.b16 %v5403
          %v5468 = vunpack.c.l.b16 %v5404
          %v5469 = vunpack.c.l.b16 %v5405
          %v5470 = vunpack.c.l.b16 %v5406
          %v5471 = vunpack.c.l.b16 %v5407
          %v5472 = vpack.c.b16 %v5441, %v5440
          %v5473 = vpack.c.b16 %v5443, %v5442
          %v5474 = vpack.c.b16 %v5445, %v5444
          %v5475 = vpack.c.b16 %v5447, %v5446
          %v5476 = vpack.c.b16 %v5449, %v5448
          %v5477 = vpack.c.b16 %v5451, %v5450
          %v5478 = vpack.c.b16 %v5453, %v5452
          %v5479 = vpack.c.b16 %v5455, %v5454
          %v5480 = vpack.c.b16 %v5457, %v5456
          %v5481 = vpack.c.b16 %v5459, %v5458
          %v5482 = vpack.c.b16 %v5461, %v5460
          %v5483 = vpack.c.b16 %v5463, %v5462
          %v5484 = vpack.c.b16 %v5465, %v5464
          %v5485 = vpack.c.b16 %v5467, %v5466
          %v5486 = vpack.c.b16 %v5469, %v5468
          %v5487 = vpack.c.b16 %v5471, %v5470
          %5504 = vmatprep.subr.bf16.mxu0 0
          %5505 = vmatpush1.bf16.msra.mxu0 %v5472
          %5506 = vmatprep.subr.bf16.mxu0 0
          %5507 = vmatpush1.bf16.msra.mxu0 %v5473
          %5508 = vmatprep.subr.bf16.mxu0 0
          %5509 = vmatpush1.bf16.msra.mxu0 %v5474
          %5510 = vmatprep.subr.bf16.mxu0 0
          %5511 = vmatpush1.bf16.msra.mxu0 %v5475
          %5512 = vmatprep.subr.bf16.mxu0 0
          %5513 = vmatpush1.bf16.msra.mxu0 %v5476
          %5514 = vmatprep.subr.bf16.mxu0 0
          %5515 = vmatpush1.bf16.msra.mxu0 %v5477
          %5516 = vmatprep.subr.bf16.mxu0 0
          %5517 = vmatpush1.bf16.msra.mxu0 %v5478
          %5518 = vmatprep.subr.bf16.mxu0 0
          %5519 = vmatpush1.bf16.msra.mxu0 %v5479
          %5520 = vmatprep.subr.bf16.mxu0 0
          %5521 = vmatpush1.bf16.msra.mxu0 %v5480
          %5522 = vmatprep.subr.bf16.mxu0 0
          %5523 = vmatpush1.bf16.msra.mxu0 %v5481
          %5524 = vmatprep.subr.bf16.mxu0 0
          %5525 = vmatpush1.bf16.msra.mxu0 %v5482
          %5526 = vmatprep.subr.bf16.mxu0 0
          %5527 = vmatpush1.bf16.msra.mxu0 %v5483
          %5528 = vmatprep.subr.bf16.mxu0 0
          %5529 = vmatpush1.bf16.msra.mxu0 %v5484
          %5530 = vmatprep.subr.bf16.mxu0 0
          %5531 = vmatpush1.bf16.msra.mxu0 %v5485
          %5532 = vmatprep.subr.bf16.mxu0 0
          %5533 = vmatpush1.bf16.msra.mxu0 %v5486
          %5534 = vmatprep.subr.bf16.mxu0 0
          %5535 = vmatpush1.bf16.msra.mxu0 %v5487
          %5536 = vmatprep.mubr.bf16.mxu0 %v5375
          %5537 = vmatmul.mubr.bf16.gmra.mrb[0].mxu0 %v5374
          %v5538 = vpop.f32.mrb[0].mxu0
          %v5539 = vadd.f32 0.0, %v5538
          %v5540 = vpop.f32.mrb[0].mxu0
          %v5541 = vpop.f32.mrb[0].mxu0
          %v5542 = vpop.f32.mrb[0].mxu0
          %5543 = vdwg.mxu0
          %v5544 = vld [vmem:[#allocation11] sm:$0x1]
          %v5546 = vlaneseq
          %v5547 = vshrl.u32 %v5546, 7
          %v5548 = vsub.s32 0, %v5547
          %v5549 = vrot.slane %v5544, %v5548
          %v5551 = vmul.f32 %v5539, %v5549
          %v5552 = vld [vmem:[#allocation12] sm:$0x1]
          %v5554 = vlaneseq
          %v5555 = vshrl.u32 %v5554, 7
          %v5556 = vsub.s32 0, %v5555
          %v5557 = vrot.slane %v5552, %v5556
          %v5559 = vadd.f32 %v5551, %v5557
          %v5560 = vmax.f32 %v5559, 0.0
          %v5561 = vpack.c.bf16 %v5560, %v5560
          %v5562 = vld [vmem:[%s7] sm:$0xf]
          %v5563 = vld [vmem:[%s7 + $0x4] sm:$0xf]
          %v5564 = vld [vmem:[%s7 + $0x8] sm:$0xf]
          %v5565 = vld [vmem:[%s7 + $0xc] sm:$0xf]
          %v5566 = vld [vmem:[%s7 + $0x10] sm:$0xf]
          %v5567 = vld [vmem:[%s7 + $0x14] sm:$0xf]
          %v5568 = vld [vmem:[%s7 + $0x18] sm:$0xf]
          %v5569 = vld [vmem:[%s7 + $0x1c] sm:$0xf]
          %v5570 = vld [vmem:[%s7 + $0x20] sm:$0xf]
          %v5571 = vld [vmem:[%s7 + $0x24] sm:$0xf]
          %v5572 = vld [vmem:[%s7 + $0x28] sm:$0xf]
          %v5573 = vld [vmem:[%s7 + $0x2c] sm:$0xf]
          %v5574 = vld [vmem:[%s7 + $0x30] sm:$0xf]
          %v5575 = vld [vmem:[%s7 + $0x34] sm:$0xf]
          %v5576 = vld [vmem:[%s7 + $0x38] sm:$0xf]
          %v5577 = vld [vmem:[%s7 + $0x3c] sm:$0xf]
          %v5594 = vunpack.c.l.b16 %v5562
          %v5595 = vunpack.c.l.b16 %v5563
          %v5596 = vunpack.c.l.b16 %v5564
          %v5597 = vunpack.c.l.b16 %v5565
          %v5598 = vunpack.c.l.b16 %v5566
          %v5599 = vunpack.c.l.b16 %v5567
          %v5600 = vunpack.c.l.b16 %v5568
          %v5601 = vunpack.c.l.b16 %v5569
          %v5602 = vunpack.c.l.b16 %v5570
          %v5603 = vunpack.c.l.b16 %v5571
          %v5604 = vunpack.c.l.b16 %v5572
          %v5605 = vunpack.c.l.b16 %v5573
          %v5606 = vunpack.c.l.b16 %v5574
          %v5607 = vunpack.c.l.b16 %v5575
          %v5608 = vunpack.c.l.b16 %v5576
          %v5609 = vunpack.c.l.b16 %v5577
          %v5610 = vpack.c.b16 %v5595, %v5594
          %v5611 = vpack.c.b16 %v5597, %v5596
          %v5612 = vpack.c.b16 %v5599, %v5598
          %v5613 = vpack.c.b16 %v5601, %v5600
          %v5614 = vpack.c.b16 %v5603, %v5602
          %v5615 = vpack.c.b16 %v5605, %v5604
          %v5616 = vpack.c.b16 %v5607, %v5606
          %v5617 = vpack.c.b16 %v5609, %v5608
          %5626 = vmatprep.subr.bf16.mxu0 0
          %5627 = vmatpush1.bf16.msra.mxu0 %v5610
          %5628 = vmatprep.subr.bf16.mxu0 0
          %5629 = vmatpush1.bf16.msra.mxu0 %v5611
          %5630 = vmatprep.subr.bf16.mxu0 0
          %5631 = vmatpush1.bf16.msra.mxu0 %v5612
          %5632 = vmatprep.subr.bf16.mxu0 0
          %5633 = vmatpush1.bf16.msra.mxu0 %v5613
          %5634 = vmatprep.subr.bf16.mxu0 0
          %5635 = vmatpush1.bf16.msra.mxu0 %v5614
          %5636 = vmatprep.subr.bf16.mxu0 0
          %5637 = vmatpush1.bf16.msra.mxu0 %v5615
          %5638 = vmatprep.subr.bf16.mxu0 0
          %5639 = vmatpush1.bf16.msra.mxu0 %v5616
          %5640 = vmatprep.subr.bf16.mxu0 0
          %5641 = vmatpush1.bf16.msra.mxu0 %v5617
          %5642 = vmatprep.subr.bf16.mxu0 0
          %5643 = vmatpush1.bf16.msra.mxu0 0
          %5644 = vmatprep.subr.bf16.mxu0 0
          %5645 = vmatpush1.bf16.msra.mxu0 0
          %5646 = vmatprep.subr.bf16.mxu0 0
          %5647 = vmatpush1.bf16.msra.mxu0 0
          %5648 = vmatprep.subr.bf16.mxu0 0
          %5649 = vmatpush1.bf16.msra.mxu0 0
          %5650 = vmatprep.subr.bf16.mxu0 0
          %5651 = vmatpush1.bf16.msra.mxu0 0
          %5652 = vmatprep.subr.bf16.mxu0 0
          %5653 = vmatpush1.bf16.msra.mxu0 0
          %5654 = vmatprep.subr.bf16.mxu0 0
          %5655 = vmatpush1.bf16.msra.mxu0 0
          %5656 = vmatprep.subr.bf16.mxu0 0
          %5657 = vmatpush1.bf16.msra.mxu0 0
          %5658 = vmatprep.mubr.bf16.mxu0 0
          %5659 = vmatmul.mubr.bf16.gmra.mrb[0].mxu0 %v5561
          %v5660 = vpop.f32.mrb[0].mxu0
          %v5661 = vadd.f32 0.0, %v5660
          %v5662 = vpop.f32.mrb[0].mxu0
          %v5663 = vpop.f32.mrb[0].mxu0
          %v5664 = vpop.f32.mrb[0].mxu0
          %5665 = vdwg.mxu0
          %v5666 = vld [vmem:[#allocation14] sm:$0x1]
          %v5668 = vlaneseq
          %v5669 = vshrl.u32 %v5668, 7
          %v5670 = vsub.s32 0, %v5669
          %v5671 = vrot.slane %v5666, %v5670
          %v5673 = vmul.f32 %v5661, %v5671
          %v5674 = vld [vmem:[#allocation15] sm:$0x1]
          %v5676 = vlaneseq
          %v5677 = vshrl.u32 %v5676, 7
          %v5678 = vsub.s32 0, %v5677
          %v5679 = vrot.slane %v5674, %v5678
          %v5681 = vadd.f32 %v5673, %v5679
          %v5682 = vmax.f32 %v5681, 0.0
          %v5683 = vpack.c.bf16 %v5682, %v5682
          %v5684 = vld [vmem:[#allocation17] sm:$0xf]
          %v5685 = vld [vmem:[#allocation17 + $0x4] sm:$0xf]
          %v5686 = vld [vmem:[#allocation17 + $0x8] sm:$0xf]
          %v5687 = vld [vmem:[#allocation17 + $0xc] sm:$0xf]
          %v5688 = vld [vmem:[#allocation17 + $0x10] sm:$0xf]
          %v5689 = vld [vmem:[#allocation17 + $0x14] sm:$0xf]
          %v5690 = vld [vmem:[#allocation17 + $0x18] sm:$0xf]
          %v5691 = vld [vmem:[#allocation17 + $0x1c] sm:$0xf]
          %v5692 = vld [vmem:[#allocation18] sm:$0x1]
          %v5694 = vlaneseq
          %v5695 = vshrl.u32 %v5694, 7
          %v5696 = vsub.s32 0, %v5695
          %v5697 = vrot.slane %v5692, %v5696
          %v5707 = vunpack.c.l.b16 %v5684
          %v5708 = vunpack.c.l.b16 %v5685
          %v5709 = vunpack.c.l.b16 %v5686
          %v5710 = vunpack.c.l.b16 %v5687
          %v5711 = vunpack.c.l.b16 %v5688
          %v5712 = vunpack.c.l.b16 %v5689
          %v5713 = vunpack.c.l.b16 %v5690
          %v5714 = vunpack.c.l.b16 %v5691
          %v5715 = vpack.c.b16 %v5708, %v5707
          %v5716 = vpack.c.b16 %v5710, %v5709
          %v5717 = vpack.c.b16 %v5712, %v5711
          %v5718 = vpack.c.b16 %v5714, %v5713
          %vm5723 = vcmask 523264
          %v5725 = vsel %vm5723, %v5683, 0
          %5727 = vmatprep.subr.bf16.mxu0 0
          %5728 = vmatpush1.bf16.msra.mxu0 %v5715
          %5729 = vmatprep.subr.bf16.mxu0 0
          %5730 = vmatpush1.bf16.msra.mxu0 %v5716
          %5731 = vmatprep.subr.bf16.mxu0 0
          %5732 = vmatpush1.bf16.msra.mxu0 %v5717
          %5733 = vmatprep.subr.bf16.mxu0 0
          %5734 = vmatpush1.bf16.msra.mxu0 %v5718
          %5735 = vmatprep.subr.bf16.mxu0 0
          %5736 = vmatpush1.bf16.msra.mxu0 0
          %5737 = vmatprep.subr.bf16.mxu0 0
          %5738 = vmatpush1.bf16.msra.mxu0 0
          %5739 = vmatprep.subr.bf16.mxu0 0
          %5740 = vmatpush1.bf16.msra.mxu0 0
          %5741 = vmatprep.subr.bf16.mxu0 0
          %5742 = vmatpush1.bf16.msra.mxu0 0
          %5743 = vmatprep.subr.bf16.mxu0 0
          %5744 = vmatpush1.bf16.msra.mxu0 0
          %5745 = vmatprep.subr.bf16.mxu0 0
          %5746 = vmatpush1.bf16.msra.mxu0 0
          %5747 = vmatprep.subr.bf16.mxu0 0
          %5748 = vmatpush1.bf16.msra.mxu0 0
          %5749 = vmatprep.subr.bf16.mxu0 0
          %5750 = vmatpush1.bf16.msra.mxu0 0
          %5751 = vmatprep.subr.bf16.mxu0 0
          %5752 = vmatpush1.bf16.msra.mxu0 0
          %5753 = vmatprep.subr.bf16.mxu0 0
          %5754 = vmatpush1.bf16.msra.mxu0 0
          %5755 = vmatprep.subr.bf16.mxu0 0
          %5756 = vmatpush1.bf16.msra.mxu0 0
          %5757 = vmatprep.subr.bf16.mxu0 0
          %5758 = vmatpush1.bf16.msra.mxu0 0
          %5759 = vmatprep.mubr.bf16.mxu0 0
          %5760 = vmatmul.mubr.bf16.gmra.mrb[0].mxu0 %v5725
          %v5761 = vpop.f32.mrb[0].mxu0
          %v5762 = vadd.f32 %v5697, %v5761
          %v5763 = vpop.f32.mrb[0].mxu0
          %v5764 = vpop.f32.mrb[0].mxu0
          %v5765 = vpop.f32.mrb[0].mxu0
          %5766 = vdwg.mxu0
          %v5767 = vld [vmem:[#allocation20] sm:$0xf]
          %v5768 = vld [vmem:[#allocation20 + $0x4] sm:$0xf]
          %v5769 = vld [vmem:[#allocation20 + $0x8] sm:$0xf]
          %v5770 = vld [vmem:[#allocation20 + $0xc] sm:$0xf]
          %v5771 = vld [vmem:[#allocation20 + $0x10] sm:$0xf]
          %v5772 = vld [vmem:[#allocation20 + $0x14] sm:$0xf]
          %v5773 = vld [vmem:[#allocation20 + $0x18] sm:$0xf]
          %v5774 = vld [vmem:[#allocation20 + $0x1c] sm:$0xf]
          %v5775 = vld [vmem:[#allocation21] sm:$0x1]
          %v5777 = vlaneseq
          %v5778 = vshrl.u32 %v5777, 7
          %v5779 = vsub.s32 0, %v5778
          %v5780 = vrot.slane %v5775, %v5779
          %v5790 = vunpack.c.l.b16 %v5767
          %v5791 = vunpack.c.l.b16 %v5768
          %v5792 = vunpack.c.l.b16 %v5769
          %v5793 = vunpack.c.l.b16 %v5770
          %v5794 = vunpack.c.l.b16 %v5771
          %v5795 = vunpack.c.l.b16 %v5772
          %v5796 = vunpack.c.l.b16 %v5773
          %v5797 = vunpack.c.l.b16 %v5774
          %v5798 = vpack.c.b16 %v5791, %v5790
          %v5799 = vpack.c.b16 %v5793, %v5792
          %v5800 = vpack.c.b16 %v5795, %v5794
          %v5801 = vpack.c.b16 %v5797, %v5796
          %5806 = vmatprep.subr.bf16.mxu0 0
          %5807 = vmatpush1.bf16.msra.mxu0 %v5798
          %5808 = vmatprep.subr.bf16.mxu0 0
          %5809 = vmatpush1.bf16.msra.mxu0 %v5799
          %5810 = vmatprep.subr.bf16.mxu0 0
          %5811 = vmatpush1.bf16.msra.mxu0 %v5800
          %5812 = vmatprep.subr.bf16.mxu0 0
          %5813 = vmatpush1.bf16.msra.mxu0 %v5801
          %5814 = vmatprep.subr.bf16.mxu0 0
          %5815 = vmatpush1.bf16.msra.mxu0 0
          %5816 = vmatprep.subr.bf16.mxu0 0
          %5817 = vmatpush1.bf16.msra.mxu0 0
          %5818 = vmatprep.subr.bf16.mxu0 0
          %5819 = vmatpush1.bf16.msra.mxu0 0
          %5820 = vmatprep.subr.bf16.mxu0 0
          %5821 = vmatpush1.bf16.msra.mxu0 0
          %5822 = vmatprep.subr.bf16.mxu0 0
          %5823 = vmatpush1.bf16.msra.mxu0 0
          %5824 = vmatprep.subr.bf16.mxu0 0
          %5825 = vmatpush1.bf16.msra.mxu0 0
          %5826 = vmatprep.subr.bf16.mxu0 0
          %5827 = vmatpush1.bf16.msra.mxu0 0
          %5828 = vmatprep.subr.bf16.mxu0 0
          %5829 = vmatpush1.bf16.msra.mxu0 0
          %5830 = vmatprep.subr.bf16.mxu0 0
          %5831 = vmatpush1.bf16.msra.mxu0 0
          %5832 = vmatprep.subr.bf16.mxu0 0
          %5833 = vmatpush1.bf16.msra.mxu0 0
          %5834 = vmatprep.subr.bf16.mxu0 0
          %5835 = vmatpush1.bf16.msra.mxu0 0
          %5836 = vmatprep.subr.bf16.mxu0 0
          %5837 = vmatpush1.bf16.msra.mxu0 0
          %5838 = vmatprep.mubr.bf16.mxu0 0
          %5839 = vmatmul.mubr.bf16.gmra.mrb[0].mxu0 %v5725
          %v5840 = vpop.f32.mrb[0].mxu0
          %v5841 = vadd.f32 %v5780, %v5840
          %v5842 = vpop.f32.mrb[0].mxu0
          %v5843 = vpop.f32.mrb[0].mxu0
          %v5844 = vpop.f32.mrb[0].mxu0
          %5845 = vdwg.mxu0
          %v5846 = vld [vmem:[#allocation23] sm:$0xf]
          %v5847 = vld [vmem:[#allocation23 + $0x4] sm:$0xf]
          %v5848 = vld [vmem:[#allocation23 + $0x8] sm:$0xf]
          %v5849 = vld [vmem:[#allocation23 + $0xc] sm:$0xf]
          %v5850 = vld [vmem:[#allocation23 + $0x10] sm:$0xf]
          %v5851 = vld [vmem:[#allocation23 + $0x14] sm:$0xf]
          %v5852 = vld [vmem:[#allocation23 + $0x18] sm:$0xf]
          %v5853 = vld [vmem:[#allocation23 + $0x1c] sm:$0xf]
          %v5854 = vld [vmem:[#allocation24] sm:$0x1]
          %v5856 = vlaneseq
          %v5857 = vshrl.u32 %v5856, 7
          %v5858 = vsub.s32 0, %v5857
          %v5859 = vrot.slane %v5854, %v5858
          %v5869 = vunpack.c.l.b16 %v5846
          %v5870 = vunpack.c.l.b16 %v5847
          %v5871 = vunpack.c.l.b16 %v5848
          %v5872 = vunpack.c.l.b16 %v5849
          %v5873 = vunpack.c.l.b16 %v5850
          %v5874 = vunpack.c.l.b16 %v5851
          %v5875 = vunpack.c.l.b16 %v5852
          %v5876 = vunpack.c.l.b16 %v5853
          %v5877 = vpack.c.b16 %v5870, %v5869
          %v5878 = vpack.c.b16 %v5872, %v5871
          %v5879 = vpack.c.b16 %v5874, %v5873
          %v5880 = vpack.c.b16 %v5876, %v5875
          %5885 = vmatprep.subr.bf16.mxu0 0
          %5886 = vmatpush1.bf16.msra.mxu0 %v5877
          %5887 = vmatprep.subr.bf16.mxu0 0
          %5888 = vmatpush1.bf16.msra.mxu0 %v5878
          %5889 = vmatprep.subr.bf16.mxu0 0
          %5890 = vmatpush1.bf16.msra.mxu0 %v5879
          %5891 = vmatprep.subr.bf16.mxu0 0
          %5892 = vmatpush1.bf16.msra.mxu0 %v5880
          %5893 = vmatprep.subr.bf16.mxu0 0
          %5894 = vmatpush1.bf16.msra.mxu0 0
          %5895 = vmatprep.subr.bf16.mxu0 0
          %5896 = vmatpush1.bf16.msra.mxu0 0
          %5897 = vmatprep.subr.bf16.mxu0 0
          %5898 = vmatpush1.bf16.msra.mxu0 0
          %5899 = vmatprep.subr.bf16.mxu0 0
          %5900 = vmatpush1.bf16.msra.mxu0 0
          %5901 = vmatprep.subr.bf16.mxu0 0
          %5902 = vmatpush1.bf16.msra.mxu0 0
          %5903 = vmatprep.subr.bf16.mxu0 0
          %5904 = vmatpush1.bf16.msra.mxu0 0
          %5905 = vmatprep.subr.bf16.mxu0 0
          %5906 = vmatpush1.bf16.msra.mxu0 0
          %5907 = vmatprep.subr.bf16.mxu0 0
          %5908 = vmatpush1.bf16.msra.mxu0 0
          %5909 = vmatprep.subr.bf16.mxu0 0
          %5910 = vmatpush1.bf16.msra.mxu0 0
          %5911 = vmatprep.subr.bf16.mxu0 0
          %5912 = vmatpush1.bf16.msra.mxu0 0
          %5913 = vmatprep.subr.bf16.mxu0 0
          %5914 = vmatpush1.bf16.msra.mxu0 0
          %5915 = vmatprep.subr.bf16.mxu0 0
          %5916 = vmatpush1.bf16.msra.mxu0 0
          %5917 = vmatprep.mubr.bf16.mxu0 0
          %5918 = vmatmul.mubr.bf16.gmra.mrb[0].mxu0 %v5725
          %v5919 = vpop.f32.mrb[0].mxu0
          %v5920 = vadd.f32 %v5859, %v5919
          %v5921 = vpop.f32.mrb[0].mxu0
          %v5922 = vpop.f32.mrb[0].mxu0
          %v5923 = vpop.f32.mrb[0].mxu0
          %5924 = vdwg.mxu0
          %v5926 = vsel %vm5723, %v5762, 0
          %v5929 = vsel %vm5723, %v5841, 0
          %5931 = vmatprep.subr.mxu0 0.0
          %5932 = vmatpush1.xpose.msra.mxu0 %v5929
          %5933 = vmatprep.subr.mxu0 0.0
          %5934 = vmatpush1.xpose.msra.mxu0 0.0
          %5935 = vmatprep.subr.mxu0 0.0
          %5936 = vmatpush1.xpose.msra.mxu0 0.0
          %5937 = vmatprep.subr.mxu0 0.0
          %5938 = vmatpush1.xpose.msra.mxu0 0.0
          %5939 = vmatprep.subr.mxu0 0.0
          %5940 = vmatpush1.xpose.msra.mxu0 0.0
          %5941 = vmatprep.subr.mxu0 0.0
          %5942 = vmatpush1.xpose.msra.mxu0 0.0
          %5943 = vmatprep.subr.mxu0 0.0
          %5944 = vmatpush1.xpose.msra.mxu0 0.0
          %5945 = vmatprep.subr.mxu0 0.0
          %5946 = vmatpush1.xpose.msra.mxu0 0.0
          %5947 = vmatprep.subr.mxu0 0.0
          %5948 = vmatpush1.xpose.msra.mxu0 0.0
          %5949 = vmatprep.subr.mxu0 0.0
          %5950 = vmatpush1.xpose.msra.mxu0 0.0
          %5951 = vmatprep.subr.mxu0 0.0
          %5952 = vmatpush1.xpose.msra.mxu0 0.0
          %5953 = vmatprep.subr.mxu0 0.0
          %5954 = vmatpush1.xpose.msra.mxu0 0.0
          %5955 = vmatprep.subr.mxu0 0.0
          %5956 = vmatpush1.xpose.msra.mxu0 0.0
          %5957 = vmatprep.subr.mxu0 0.0
          %5958 = vmatpush1.xpose.msra.mxu0 0.0
          %5959 = vmatprep.subr.mxu0 0.0
          %5960 = vmatpush1.xpose.msra.mxu0 0.0
          %5961 = vmatprep.subr.mxu0 0.0
          %5962 = vmatpush1.xpose.msra.mxu0 0.0
          %5963 = vmatprep.subr.mxu0 0.0
          %5964 = vmatpush1.xpose.msra.mxu0 0.0
          %5965 = vmatprep.subr.mxu0 0.0
          %5966 = vmatpush1.xpose.msra.mxu0 0.0
          %5967 = vmatprep.subr.mxu0 0.0
          %5968 = vmatpush1.xpose.msra.mxu0 0.0
          %5969 = vmatprep.subr.mxu0 0.0
          %5970 = vmatpush1.xpose.msra.mxu0 0.0
          %5971 = vmatprep.subr.mxu0 0.0
          %5972 = vmatpush1.xpose.msra.mxu0 0.0
          %5973 = vmatprep.subr.mxu0 0.0
          %5974 = vmatpush1.xpose.msra.mxu0 0.0
          %5975 = vmatprep.subr.mxu0 0.0
          %5976 = vmatpush1.xpose.msra.mxu0 0.0
          %5977 = vmatprep.subr.mxu0 0.0
          %5978 = vmatpush1.xpose.msra.mxu0 0.0
          %5979 = vmatprep.subr.mxu0 0.0
          %5980 = vmatpush1.xpose.msra.mxu0 0.0
          %5981 = vmatprep.subr.mxu0 0.0
          %5982 = vmatpush1.xpose.msra.mxu0 0.0
          %5983 = vmatprep.subr.mxu0 0.0
          %5984 = vmatpush1.xpose.msra.mxu0 0.0
          %5985 = vmatprep.subr.mxu0 0.0
          %5986 = vmatpush1.xpose.msra.mxu0 0.0
          %5987 = vmatprep.subr.mxu0 0.0
          %5988 = vmatpush1.xpose.msra.mxu0 0.0
          %5989 = vmatprep.subr.mxu0 0.0
          %5990 = vmatpush1.xpose.msra.mxu0 0.0
          %5991 = vmatprep.subr.mxu0 0.0
          %5992 = vmatpush1.xpose.msra.mxu0 0.0
          %5993 = vmatprep.subr.mxu0 0.0
          %5994 = vmatpush1.xpose.msra.mxu0 0.0
          %5995 = vmatprep.mubr.f32.mxu0 0.0
          %5996 = vmatmul.mubr.f32.gmra.mrb[0].mxu0 %v5926
          %v5997 = vpop.f32.mrb[0].mxu0
          %v5998 = vadd.f32 0.0, %v5997
          %v5999 = vpop.f32.mrb[0].mxu0
          %6000 = vdwg.mxu0
          %v6001 = vmul.f32 %v5998, 0.125
          %vm6002 = vcmask 27648
          %v6003 = vsel %vm6002, %v6001, -inf
          %6004 = vmax.xlane.f32.xlu0 %v6003
          %v6005 = vpop.xlane.xlu0 %6004
          %v6006 = vsub.f32 %v6001, %v6005
          %v6007 = vmul.f32 %v6006, 1.442695
          %v6008 = vpow.pop %v6007
          %v6009 = vsel %vm6002, %v6008, 0.0
          %6010 = vadd.xlane.f32.xlu0 %v6009
          %v6011 = vpop.xlane.xlu0 %6010
          %v6012 = vrcp.pop %v6011
          %v6013 = vmul.f32 %v6008, %v6012
          %vm6014 = vcmask 31744
          %v6016 = vsel %vm6014, %v6013, 0
          %vm6018 = vcmask 1043456
          %v6020 = vsel %vm6018, %v5920, 0
          %6022 = vmatprep.subr.mxu0 0.0
          %6023 = vmatpush1.msra.mxu0 %v6020
          %6024 = vmatprep.subr.mxu0 0.0
          %6025 = vmatpush1.msra.mxu0 0.0
          %6026 = vmatprep.subr.mxu0 0.0
          %6027 = vmatpush1.msra.mxu0 0.0
          %6028 = vmatprep.subr.mxu0 0.0
          %6029 = vmatpush1.msra.mxu0 0.0
          %6030 = vmatprep.subr.mxu0 0.0
          %6031 = vmatpush1.msra.mxu0 0.0
          %6032 = vmatprep.subr.mxu0 0.0
          %6033 = vmatpush1.msra.mxu0 0.0
          %6034 = vmatprep.subr.mxu0 0.0
          %6035 = vmatpush1.msra.mxu0 0.0
          %6036 = vmatprep.subr.mxu0 0.0
          %6037 = vmatpush1.msra.mxu0 0.0
          %6038 = vmatprep.subr.mxu0 0.0
          %6039 = vmatpush1.msra.mxu0 0.0
          %6040 = vmatprep.subr.mxu0 0.0
          %6041 = vmatpush1.msra.mxu0 0.0
          %6042 = vmatprep.subr.mxu0 0.0
          %6043 = vmatpush1.msra.mxu0 0.0
          %6044 = vmatprep.subr.mxu0 0.0
          %6045 = vmatpush1.msra.mxu0 0.0
          %6046 = vmatprep.subr.mxu0 0.0
          %6047 = vmatpush1.msra.mxu0 0.0
          %6048 = vmatprep.subr.mxu0 0.0
          %6049 = vmatpush1.msra.mxu0 0.0
          %6050 = vmatprep.subr.mxu0 0.0
          %6051 = vmatpush1.msra.mxu0 0.0
          %6052 = vmatprep.subr.mxu0 0.0
          %6053 = vmatpush1.msra.mxu0 0.0
          %6054 = vmatprep.subr.mxu0 0.0
          %6055 = vmatpush1.msra.mxu0 0.0
          %6056 = vmatprep.subr.mxu0 0.0
          %6057 = vmatpush1.msra.mxu0 0.0
          %6058 = vmatprep.subr.mxu0 0.0
          %6059 = vmatpush1.msra.mxu0 0.0
          %6060 = vmatprep.subr.mxu0 0.0
          %6061 = vmatpush1.msra.mxu0 0.0
          %6062 = vmatprep.subr.mxu0 0.0
          %6063 = vmatpush1.msra.mxu0 0.0
          %6064 = vmatprep.subr.mxu0 0.0
          %6065 = vmatpush1.msra.mxu0 0.0
          %6066 = vmatprep.subr.mxu0 0.0
          %6067 = vmatpush1.msra.mxu0 0.0
          %6068 = vmatprep.subr.mxu0 0.0
          %6069 = vmatpush1.msra.mxu0 0.0
          %6070 = vmatprep.subr.mxu0 0.0
          %6071 = vmatpush1.msra.mxu0 0.0
          %6072 = vmatprep.subr.mxu0 0.0
          %6073 = vmatpush1.msra.mxu0 0.0
          %6074 = vmatprep.subr.mxu0 0.0
          %6075 = vmatpush1.msra.mxu0 0.0
          %6076 = vmatprep.subr.mxu0 0.0
          %6077 = vmatpush1.msra.mxu0 0.0
          %6078 = vmatprep.subr.mxu0 0.0
          %6079 = vmatpush1.msra.mxu0 0.0
          %6080 = vmatprep.subr.mxu0 0.0
          %6081 = vmatpush1.msra.mxu0 0.0
          %6082 = vmatprep.subr.mxu0 0.0
          %6083 = vmatpush1.msra.mxu0 0.0
          %6084 = vmatprep.subr.mxu0 0.0
          %6085 = vmatpush1.msra.mxu0 0.0
          %6086 = vmatprep.mubr.f32.mxu0 0.0
          %6087 = vmatmul.mubr.f32.gmra.mrb[0].mxu0 %v6016
          %v6088 = vpop.f32.mrb[0].mxu0
          %v6089 = vadd.f32 0.0, %v6088
          %v6090 = vpop.f32.mrb[0].mxu0
          %6091 = vdwg.mxu0
          %v6092 = vld [vmem:[%s16] sm:$0xff]
          %v6093 = vld [vmem:[%s16 + $0x8] sm:$0xff]
          %v6094 = vld [vmem:[%s16 + $0x10] sm:$0xff]
          %v6095 = vld [vmem:[%s16 + $0x18] sm:$0xff]
          %v6096 = vld [vmem:[%s16 + $0x20] sm:$0xff]
          %v6097 = vld [vmem:[%s16 + $0x28] sm:$0xff]
          %v6098 = vld [vmem:[%s16 + $0x30] sm:$0xff]
          %v6099 = vld [vmem:[%s16 + $0x38] sm:$0xff]
          %v6100 = vld [vmem:[#allocation3] sm:$0x1]
          %v6102 = vlaneseq
          %v6103 = vshrl.u32 %v6102, 7
          %v6104 = vsub.s32 0, %v6103
          %v6105 = vrot.slane %v6100, %v6104
          %v6108 = vsel %vm5723, %v6089, 0
          %6110 = vmatprep.subr.mxu0 0.0
          %6111 = vmatpush1.msra.mxu0 %v6092
          %6112 = vmatprep.subr.mxu0 0.0
          %6113 = vmatpush1.msra.mxu0 %v6093
          %6114 = vmatprep.subr.mxu0 0.0
          %6115 = vmatpush1.msra.mxu0 %v6094
          %6116 = vmatprep.subr.mxu0 0.0
          %6117 = vmatpush1.msra.mxu0 %v6095
          %6118 = vmatprep.subr.mxu0 0.0
          %6119 = vmatpush1.msra.mxu0 %v6096
          %6120 = vmatprep.subr.mxu0 0.0
          %6121 = vmatpush1.msra.mxu0 %v6097
          %6122 = vmatprep.subr.mxu0 0.0
          %6123 = vmatpush1.msra.mxu0 %v6098
          %6124 = vmatprep.subr.mxu0 0.0
          %6125 = vmatpush1.msra.mxu0 %v6099
          %6126 = vmatprep.subr.mxu0 0.0
          %6127 = vmatpush1.msra.mxu0 0.0
          %6128 = vmatprep.subr.mxu0 0.0
          %6129 = vmatpush1.msra.mxu0 0.0
          %6130 = vmatprep.subr.mxu0 0.0
          %6131 = vmatpush1.msra.mxu0 0.0
          %6132 = vmatprep.subr.mxu0 0.0
          %6133 = vmatpush1.msra.mxu0 0.0
          %6134 = vmatprep.subr.mxu0 0.0
          %6135 = vmatpush1.msra.mxu0 0.0
          %6136 = vmatprep.subr.mxu0 0.0
          %6137 = vmatpush1.msra.mxu0 0.0
          %6138 = vmatprep.subr.mxu0 0.0
          %6139 = vmatpush1.msra.mxu0 0.0
          %6140 = vmatprep.subr.mxu0 0.0
          %6141 = vmatpush1.msra.mxu0 0.0
          %6142 = vmatprep.subr.mxu0 0.0
          %6143 = vmatpush1.msra.mxu0 0.0
          %6144 = vmatprep.subr.mxu0 0.0
          %6145 = vmatpush1.msra.mxu0 0.0
          %6146 = vmatprep.subr.mxu0 0.0
          %6147 = vmatpush1.msra.mxu0 0.0
          %6148 = vmatprep.subr.mxu0 0.0
          %6149 = vmatpush1.msra.mxu0 0.0
          %6150 = vmatprep.subr.mxu0 0.0
          %6151 = vmatpush1.msra.mxu0 0.0
          %6152 = vmatprep.subr.mxu0 0.0
          %6153 = vmatpush1.msra.mxu0 0.0
          %6154 = vmatprep.subr.mxu0 0.0
          %6155 = vmatpush1.msra.mxu0 0.0
          %6156 = vmatprep.subr.mxu0 0.0
          %6157 = vmatpush1.msra.mxu0 0.0
          %6158 = vmatprep.subr.mxu0 0.0
          %6159 = vmatpush1.msra.mxu0 0.0
          %6160 = vmatprep.subr.mxu0 0.0
          %6161 = vmatpush1.msra.mxu0 0.0
          %6162 = vmatprep.subr.mxu0 0.0
          %6163 = vmatpush1.msra.mxu0 0.0
          %6164 = vmatprep.subr.mxu0 0.0
          %6165 = vmatpush1.msra.mxu0 0.0
          %6166 = vmatprep.subr.mxu0 0.0
          %6167 = vmatpush1.msra.mxu0 0.0
          %6168 = vmatprep.subr.mxu0 0.0
          %6169 = vmatpush1.msra.mxu0 0.0
          %6170 = vmatprep.subr.mxu0 0.0
          %6171 = vmatpush1.msra.mxu0 0.0
          %6172 = vmatprep.subr.mxu0 0.0
          %6173 = vmatpush1.msra.mxu0 0.0
          %6174 = vmatprep.mubr.f32.mxu0 0.0
          %6175 = vmatmul.mubr.f32.gmra.mrb[0].mxu0 %v6108
          %v6176 = vpop.f32.mrb[0].mxu0
          %v6177 = vadd.f32 %v6105, %v6176
          %v6178 = vpop.f32.mrb[0].mxu0
          %6179 = vdwg.mxu0
          %v6180 = vxor.u32 %v6177, 2147483648
          %v6181 = vmul.f32 %v6180, 1.442695
          %v6182 = vpow.pop %v6181
          %v6183 = vadd.f32 %v6182, 1.0
          %v6184 = vrcp.pop %v6183
          %v6185 = vmul.f32 1.0, %v6184
          %vm6186 = vcmask 3072
          %6187 = vst.msk [vmem:[%s18] sm:$0xf] %vm6186, %v6185
        $region156: #{cnn_forward.3} parent=91 // pred_fallthru
          _
        // Predicated region
        $region157: #{cnn_forward.3} parent=91 // pred_check
          %p6188 = pneg %p442
        $region158: #{cnn_forward.3} parent=91 // pred_check_branch
          %6190 = sbr.rel (%p6188) target = $region160
        $region159: #{cnn_forward.3} parent=91 // pred_region
          _
        $region160: #{cnn_forward.3} parent=91 // pred_fallthru
          _
        // Predicated region
        $region161: #{cnn_forward.3} parent=91 // pred_check
          %p6191 = pneg %p442
        $region162: #{cnn_forward.3} parent=91 // pred_check_branch
          %6193 = sbr.rel (%p6191) target = $region164
        $region163: #{cnn_forward.3} parent=91 // pred_region
          _
        $region164: #{cnn_forward.3} parent=91 // pred_fallthru
          _
      $region92: #{cnn_forward.3} parent=5 // pred_fallthru
        _
      %p6194 = scmp.le.s32.totalorder 2, %s36
      // Predicated region
      $region165: #{cnn_forward.3} parent=5 // pred_check
        %p6195 = pneg %p6194
      $region166: #{cnn_forward.3} parent=5 // pred_check_branch
        %6197 = sbr.rel (%p6195) target = $region168
      $region167: #{cnn_forward.3} parent=5 // pred_region
        %s6198 = ssub.s32 %s36, 2
      $region168: #{cnn_forward.3} parent=5 // pred_fallthru
        _
    $region6: #{cnn_forward.3} parent=1 // loop_footer
      %s40 = sadd.s32 1, %s36
    $region7: #{cnn_forward.3} parent=1 // loop_footer_branch
      %35 = sbr.rel target = $region3
    $region8: #{cnn_forward.3} parent=1 // loop_exit
      _
    %6199 = vsyncpa [#allocation5], 1
    %s6200 = scalar_lea.sflag [#allocation5], 1
    %6201 = vsyncpa %s6200, 1
    %6202 = vsyncpa [#allocation7], 1
    %6203 = vsyncpa [#allocation10], 1
    %6204 = vsyncpa [#allocation13], 1
    %6205 = vsyncpa [#allocation16], 1
    %6206 = vsyncpa [#allocation19], 1
    %6207 = vsyncpa [#allocation22], 1
    %6208 = vsyncpa [#allocation25], 1

</llo_original>
